<compile_context>
chip_gen: v6e
topology: v6e:2x2x1
jax: 0.10.0
libtpu: 0.0.40
codegen_flags: <defaults>
</compile_context>

<pallas_src>
import numpy as np
import jax
import jax.numpy as jnp
from jax.experimental import pallas as pl
from jax.experimental.pallas import tpu as pltpu

EPS = 1e-5
VMEM = pl.BlockSpec(memory_space=pltpu.MemorySpace.VMEM)

# LeNet geometry (32x32, single input channel)
K = 5                      # conv kernel size
H0 = 32                    # input H/W
H1 = H0 - K + 1            # 28: conv1 output H/W
P1 = H1 // 2               # 14: pool1 output H/W
H2 = P1 - K + 1            # 10: conv2 output H/W
P2 = H2 // 2               # 5 : pool2 output H/W
C1, C2 = 6, 16             # conv channel counts
F1, F2, F3 = 120, 84, 10   # fc widths


# ---------------------------------------------------------------------------
# The fused kernel
# ---------------------------------------------------------------------------
def lenet_kernel(
    x_ref,                                  # (N, 32, 32)            f32
    w1b_ref,                                # (5, 32, 28*6)          bf16
    s1_ref, s1t_ref,                        # (168, 6), (6, 168)     f32
    pe1_ref, po1_ref,                       # (168, 84)              f32
    re1_ref, ro1_ref,                       # (14, 28)               f32
    g1_ref, be1_ref,                        # (1, 6)                 f32
    w2b_ref,                                # (5, 14*6, 10*16)       bf16
    s2_ref, s2t_ref,                        # (160, 16), (16, 160)   f32
    pe2_ref, po2_ref,                       # (160, 80)              f32
    re2_ref, ro2_ref,                       # (5, 10)                f32
    g2_ref, be2_ref,                        # (1, 16)                f32
    w3p_ref,                                # (5, 5*16, 120)         bf16
    g3_ref, be3_ref,                        # (1, 120)               f32
    w4_ref,                                 # (120, 84)              bf16
    g4_ref, be4_ref,                        # (1, 84)                f32
    w5_ref,                                 # (84, 10)               bf16
    b5_ref,                                 # (1, 10)                f32
    out_ref,                                # (N, 10)                f32
    sp1_ref,                                # scratch (N*14, 84)     f32
    sp2_ref,                                # scratch (N*5, 80)      f32
):
    n_batch = x_ref.shape[0]
    f32, bf16 = jnp.float32, jnp.bfloat16

    def mm(a, b):                            # f32 x f32 (selector / BN matmuls)
        return jnp.dot(a, b, preferred_element_type=f32)

    def mm16(a, b16):                        # bf16 x bf16 -> f32 (weight matmuls)
        return jnp.dot(a.astype(bf16), b16, preferred_element_type=f32)

    def bn_lane_affine(rows_list, sel, sel_t, g, b, count):
        # Train-mode BN: per-channel mean/biased-var over all rows of all
        # samples; channel gather/scatter between (OW*C) lanes and C channels
        # is a 0/1 selector matmul.  Returns the lane-tiled scale & shift.
        tot = rows_list[0].sum(axis=0, keepdims=True)
        for r in rows_list[1:]:
            tot = tot + r.sum(axis=0, keepdims=True)
        mean_c = mm(tot, sel) / count                        # (1, C)
        mean_l = mm(mean_c, sel_t)                           # (1, OW*C)
        vtot = ((rows_list[0] - mean_l) ** 2).sum(axis=0, keepdims=True)
        for r in rows_list[1:]:
            vtot = vtot + ((r - mean_l) ** 2).sum(axis=0, keepdims=True)
        var_c = mm(vtot, sel) / count                        # biased variance
        sc_c = g * jax.lax.rsqrt(var_c + EPS)
        sh_c = b - mean_c * sc_c
        return mm(sc_c, sel_t), mm(sh_c, sel_t)

    # ------------------- conv1: 5 banded MXU matmuls / sample -------------------
    o1 = []
    for n in range(n_batch):
        acc = mm16(x_ref[n, 0:H1, :], w1b_ref[0])
        for kh in range(1, K):
            acc = acc + mm16(x_ref[n, kh:kh + H1, :], w1b_ref[kh])
        o1.append(acc)                                       # (28, 28*6)

    sc1_l, sh1_l = bn_lane_affine(o1, s1_ref[...], s1t_ref[...],
                                  g1_ref[...], be1_ref[...],
                                  float(n_batch * H1 * H1))

    # BN + sigmoid + 2x2 maxpool (columns then rows via 0/1 selector matmuls);
    # park pooled maps in VMEM scratch so conv2 can read row windows.
    for n in range(n_batch):
        a = jax.nn.sigmoid(o1[n] * sc1_l + sh1_l)                       # (28, 168)
        t = jnp.maximum(mm(a, pe1_ref[...]), mm(a, po1_ref[...]))       # (28, 84)
        p = jnp.maximum(mm(re1_ref[...], t), mm(ro1_ref[...], t))       # (14, 84)
        sp1_ref[n * P1:(n + 1) * P1, :] = p

    # ------------------------------- conv2 -------------------------------------
    o2 = []
    for n in range(n_batch):
        acc = mm16(sp1_ref[n * P1 + 0:n * P1 + H2, :], w2b_ref[0])
        for kh in range(1, K):
            acc = acc + mm16(sp1_ref[n * P1 + kh:n * P1 + kh + H2, :], w2b_ref[kh])
        o2.append(acc)                                                  # (10, 160)

    sc2_l, sh2_l = bn_lane_affine(o2, s2_ref[...], s2t_ref[...],
                                  g2_ref[...], be2_ref[...],
                                  float(n_batch * H2 * H2))

    for n in range(n_batch):
        a = jax.nn.sigmoid(o2[n] * sc2_l + sh2_l)                       # (10, 160)
        t = jnp.maximum(mm(a, pe2_ref[...]), mm(a, po2_ref[...]))       # (10, 80)
        p = jnp.maximum(mm(re2_ref[...], t), mm(ro2_ref[...], t))       # (5, 80)
        sp2_ref[n * P2:(n + 1) * P2, :] = p

    # -------------- fc1 (PyTorch flatten folded into the weight layout) --------
    y1 = []
    for n in range(n_batch):
        acc = mm16(sp2_ref[n * P2 + 0:n * P2 + 1, :], w3p_ref[0])
        for oh in range(1, P2):
            acc = acc + mm16(sp2_ref[n * P2 + oh:n * P2 + oh + 1, :], w3p_ref[oh])
        y1.append(acc)                                                  # (1, 120)

    # BatchNorm1d over the batch (per feature) + sigmoid.
    def bn_rows(rows, g, b):
        count = float(len(rows))
        m = rows[0]
        for r in rows[1:]:
            m = m + r
        m = m / count
        v = (rows[0] - m) ** 2
        for r in rows[1:]:
            v = v + (r - m) ** 2
        v = v / count                                                   # biased
        sc = g * jax.lax.rsqrt(v + EPS)
        sh = b - m * sc
        return [jax.nn.sigmoid(r * sc + sh) for r in rows]

    a3 = bn_rows(y1, g3_ref[...], be3_ref[...])                         # N x (1, 120)
    y2 = [mm16(a, w4_ref[...]) for a in a3]                             # N x (1, 84)
    a4 = bn_rows(y2, g4_ref[...], be4_ref[...])                         # N x (1, 84)

    for n in range(n_batch):
        out_ref[n:n + 1, :] = mm16(a4[n], w5_ref[...]) + b5_ref[...]    # (1, 10)


# ---------------------------------------------------------------------------
# Host-side parameter prep (pure weight reshuffles, traced once under jit)
# ---------------------------------------------------------------------------
def _conv1_band(w1):
    """(6,1,5,5) conv1 weight -> (K, 32, 28*6) banded matmul weights."""
    sel = np.zeros((H0, H1, K), np.float32)          # sel[w, ow, kw] = [w == ow+kw]
    for ow in range(H1):
        for kw in range(K):
            sel[ow + kw, ow, kw] = 1.0
    t = jnp.einsum("wok,chk->hwoc", jnp.asarray(sel), w1[:, 0])   # (K, 32, 28, 6)
    return t.reshape(K, H0, H1 * C1).astype(jnp.bfloat16)


def _conv2_band(w2):
    """(16,6,5,5) conv2 weight -> (K, 14*6, 10*16) banded matmul weights."""
    sel = np.zeros((P1, H2, K), np.float32)          # sel[ow1, ow2, kw] = [ow1 == ow2+kw]
    for ow2 in range(H2):
        for kw in range(K):
            sel[ow2 + kw, ow2, kw] = 1.0
    t = jnp.einsum("xyk,cihk->hxiyc", jnp.asarray(sel), w2)       # (K, 14, 6, 10, 16)
    return t.reshape(K, P1 * C1, H2 * C2).astype(jnp.bfloat16)


def _fc1_folded(w3):
    """(400,120) fc1 weight (feature index co*25+oh*5+ow) -> (P2, 5*16, 120)."""
    t = w3.reshape(C2, P2, P2, F1)                   # (co, oh, ow, j)
    t = jnp.transpose(t, (1, 2, 0, 3))               # (oh, ow, co, j)
    return t.reshape(P2, P2 * C2, F1).astype(jnp.bfloat16)


def _channel_selector(c, reps):
    return np.tile(np.eye(c, dtype=np.float32), (reps, 1))        # (reps*c, c)


def _pool_col_selectors(c, w_in):
    w_out = w_in // 2
    even = np.zeros((w_in * c, w_out * c), np.float32)
    odd = np.zeros((w_in * c, w_out * c), np.float32)
    eye = np.eye(c, dtype=np.float32)
    for ow in range(w_out):
        even[(2 * ow) * c:(2 * ow) * c + c, ow * c:ow * c + c] = eye
        odd[(2 * ow + 1) * c:(2 * ow + 1) * c + c, ow * c:ow * c + c] = eye
    return even, odd


def _pool_row_selectors(h_in):
    h_out = h_in // 2
    even = np.zeros((h_out, h_in), np.float32)
    odd = np.zeros((h_out, h_in), np.float32)
    for r in range(h_out):
        even[r, 2 * r] = 1.0
        odd[r, 2 * r + 1] = 1.0
    return even, odd


# ---------------------------------------------------------------------------
# Forward pass (single fused pallas_call)
# ---------------------------------------------------------------------------
@jax.jit
def lenet_forward(x_nchw, p):
    n = x_nchw.shape[0]
    # Cin == 1, so NCHW -> (N, H, W) is a free reshape (no transpose needed).
    x = x_nchw.reshape(n, H0, H0).astype(jnp.float32)

    w1b = _conv1_band(p["w1"].astype(jnp.float32))
    w2b = _conv2_band(p["w2"].astype(jnp.float32))
    w3p = _fc1_folded(p["w3"].astype(jnp.float32))

    s1 = _channel_selector(C1, H1); s1t = s1.T.copy()
    s2 = _channel_selector(C2, H2); s2t = s2.T.copy()
    pe1, po1 = _pool_col_selectors(C1, H1)
    re1, ro1 = _pool_row_selectors(H1)
    pe2, po2 = _pool_col_selectors(C2, H2)
    re2, ro2 = _pool_row_selectors(H2)

    def row(v):
        return v.reshape(1, -1).astype(jnp.float32)

    args = [
        x,
        w1b, jnp.asarray(s1), jnp.asarray(s1t), jnp.asarray(pe1), jnp.asarray(po1),
        jnp.asarray(re1), jnp.asarray(ro1), row(p["g1"]), row(p["be1"]),
        w2b, jnp.asarray(s2), jnp.asarray(s2t), jnp.asarray(pe2), jnp.asarray(po2),
        jnp.asarray(re2), jnp.asarray(ro2), row(p["g2"]), row(p["be2"]),
        w3p, row(p["g3"]), row(p["be3"]),
        p["w4"].astype(jnp.bfloat16), row(p["g4"]), row(p["be4"]),
        p["w5"].astype(jnp.bfloat16), row(p["b5"]),
    ]

    return pl.pallas_call(
        lenet_kernel,
        out_shape=jax.ShapeDtypeStruct((n, F3), jnp.float32),
        in_specs=[VMEM] * len(args),
        out_specs=VMEM,
        scratch_shapes=[
            pltpu.VMEM((n * P1, P1 * C1), jnp.float32),   # pooled conv1 maps
            pltpu.VMEM((n * P2, P2 * C2), jnp.float32),   # pooled conv2 maps
        ],
    )(*args)


# ---------------------------------------------------------------------------
# Deterministic parameters mirroring the nn.Module shapes
# (conv/fc biases feeding a train-mode BatchNorm cancel exactly -> omitted)
# ---------------------------------------------------------------------------
def init_params(key):
    ks = jax.random.split(key, 10)

    def nrm(k, shape, scale):
        return (scale * jax.random.normal(k, shape)).astype(jnp.float32)

    return {
        # conv1: Conv2d(1, 6, 5)
        "w1": nrm(ks[0], (C1, 1, K, K), 0.2),
        "g1": jnp.ones((C1,), jnp.float32), "be1": jnp.zeros((C1,), jnp.float32),
        # conv2: Conv2d(6, 16, 5)
        "w2": nrm(ks[2], (C2, C1, K, K), 0.1),
        "g2": jnp.ones((C2,), jnp.float32), "be2": jnp.zeros((C2,), jnp.float32),
        # fc1: Linear(400, 120), stored (in, out); feature index = c*25 + h*5 + w
        "w3": nrm(ks[4], (C2 * P2 * P2, F1), 0.05),
        "g3": jnp.ones((F1,), jnp.float32), "be3": jnp.zeros((F1,), jnp.float32),
        # fc2: Linear(120, 84)
        "w4": nrm(ks[6], (F1, F2), 0.1),
        "g4": jnp.ones((F2,), jnp.float32), "be4": jnp.zeros((F2,), jnp.float32),
        # fc3: Linear(84, 10)
        "w5": nrm(ks[8], (F2, F3), 0.1),
        "b5": nrm(ks[9], (F3,), 0.1),
    }


if __name__ == "__main__":
    key = jax.random.PRNGKey(0)
    k_x, k_p = jax.random.split(key)
    # LeNet needs 32x32 single-channel input so that fc1 sees 16*5*5 features.
    x = jax.random.normal(k_x, (2, 1, H0, H0), dtype=jnp.float32)
    params = init_params(k_p)

    out = lenet_forward(x, params)
    out = jax.block_until_ready(out)
    assert out.shape == (2, F3) and out.dtype == jnp.float32
    assert bool(jnp.all(jnp.isfinite(out)))
    print("KERNEL_OK")
</pallas_src>

<mosaic_0001>
module attributes {stable_mosaic.version = 11 : i64} {
  func.func @lenet_kernel(%arg0: memref<2x32x32xf32, #tpu.memory_space<vmem>>, %arg1: memref<5x32x168xbf16, #tpu.memory_space<vmem>>, %arg2: memref<168x6xf32, #tpu.memory_space<vmem>>, %arg3: memref<6x168xf32, #tpu.memory_space<vmem>>, %arg4: memref<168x84xf32, #tpu.memory_space<vmem>>, %arg5: memref<168x84xf32, #tpu.memory_space<vmem>>, %arg6: memref<14x28xf32, #tpu.memory_space<vmem>>, %arg7: memref<14x28xf32, #tpu.memory_space<vmem>>, %arg8: memref<1x6xf32, #tpu.memory_space<vmem>>, %arg9: memref<1x6xf32, #tpu.memory_space<vmem>>, %arg10: memref<5x84x160xbf16, #tpu.memory_space<vmem>>, %arg11: memref<160x16xf32, #tpu.memory_space<vmem>>, %arg12: memref<16x160xf32, #tpu.memory_space<vmem>>, %arg13: memref<160x80xf32, #tpu.memory_space<vmem>>, %arg14: memref<160x80xf32, #tpu.memory_space<vmem>>, %arg15: memref<5x10xf32, #tpu.memory_space<vmem>>, %arg16: memref<5x10xf32, #tpu.memory_space<vmem>>, %arg17: memref<1x16xf32, #tpu.memory_space<vmem>>, %arg18: memref<1x16xf32, #tpu.memory_space<vmem>>, %arg19: memref<5x80x120xbf16, #tpu.memory_space<vmem>>, %arg20: memref<1x120xf32, #tpu.memory_space<vmem>>, %arg21: memref<1x120xf32, #tpu.memory_space<vmem>>, %arg22: memref<120x84xbf16, #tpu.memory_space<vmem>>, %arg23: memref<1x84xf32, #tpu.memory_space<vmem>>, %arg24: memref<1x84xf32, #tpu.memory_space<vmem>>, %arg25: memref<84x10xbf16, #tpu.memory_space<vmem>>, %arg26: memref<1x10xf32, #tpu.memory_space<vmem>>, %arg27: memref<2x10xf32, #tpu.memory_space<vmem>>, %arg28: memref<28x84xf32, #tpu.memory_space<vmem>>, %arg29: memref<10x80xf32, #tpu.memory_space<vmem>>) attributes {dimension_semantics = [], scalar_prefetch = 0 : i64, scratch_operands = 2 : i64, tpu.core_type = #tpu.core_type<tc>} {
    %c0 = arith.constant 0 : index
    %c0_0 = arith.constant 0 : index
    %c0_1 = arith.constant 0 : index
    %0 = vector.load %arg0[%c0, %c0_0, %c0_1] : memref<2x32x32xf32, #tpu.memory_space<vmem>>, vector<1x28x32xf32>
    %1 = vector.shape_cast %0 : vector<1x28x32xf32> to vector<28x32xf32>
    %c0_2 = arith.constant 0 : index
    %c0_3 = arith.constant 0 : index
    %c0_4 = arith.constant 0 : index
    %2 = vector.load %arg1[%c0_2, %c0_3, %c0_4] : memref<5x32x168xbf16, #tpu.memory_space<vmem>>, vector<1x32x168xbf16>
    %3 = vector.shape_cast %2 : vector<1x32x168xbf16> to vector<32x168xbf16>
    %4 = arith.truncf %1 : vector<28x32xf32> to vector<28x32xbf16>
    %cst = arith.constant dense<0.000000e+00> : vector<28x168xf32>
    %5 = tpu.matmul %4, %3, %cst {dimension_numbers = #tpu.dot_dimension_numbers<[1], [0], [0], [1], [0, 0, 1, 1], [], []>} : vector<28x32xbf16>, vector<32x168xbf16>, vector<28x168xf32> -> vector<28x168xf32>
    %c0_5 = arith.constant 0 : index
    %c1 = arith.constant 1 : index
    %c0_6 = arith.constant 0 : index
    %6 = vector.load %arg0[%c0_5, %c1, %c0_6] : memref<2x32x32xf32, #tpu.memory_space<vmem>>, vector<1x28x32xf32>
    %7 = vector.shape_cast %6 : vector<1x28x32xf32> to vector<28x32xf32>
    %c1_7 = arith.constant 1 : index
    %c0_8 = arith.constant 0 : index
    %c0_9 = arith.constant 0 : index
    %8 = vector.load %arg1[%c1_7, %c0_8, %c0_9] : memref<5x32x168xbf16, #tpu.memory_space<vmem>>, vector<1x32x168xbf16>
    %9 = vector.shape_cast %8 : vector<1x32x168xbf16> to vector<32x168xbf16>
    %10 = arith.truncf %7 : vector<28x32xf32> to vector<28x32xbf16>
    %cst_10 = arith.constant dense<0.000000e+00> : vector<28x168xf32>
    %11 = tpu.matmul %10, %9, %cst_10 {dimension_numbers = #tpu.dot_dimension_numbers<[1], [0], [0], [1], [0, 0, 1, 1], [], []>} : vector<28x32xbf16>, vector<32x168xbf16>, vector<28x168xf32> -> vector<28x168xf32>
    %12 = arith.addf %5, %11 : vector<28x168xf32>
    %c0_11 = arith.constant 0 : index
    %c2 = arith.constant 2 : index
    %c0_12 = arith.constant 0 : index
    %13 = vector.load %arg0[%c0_11, %c2, %c0_12] : memref<2x32x32xf32, #tpu.memory_space<vmem>>, vector<1x28x32xf32>
    %14 = vector.shape_cast %13 : vector<1x28x32xf32> to vector<28x32xf32>
    %c2_13 = arith.constant 2 : index
    %c0_14 = arith.constant 0 : index
    %c0_15 = arith.constant 0 : index
    %15 = vector.load %arg1[%c2_13, %c0_14, %c0_15] : memref<5x32x168xbf16, #tpu.memory_space<vmem>>, vector<1x32x168xbf16>
    %16 = vector.shape_cast %15 : vector<1x32x168xbf16> to vector<32x168xbf16>
    %17 = arith.truncf %14 : vector<28x32xf32> to vector<28x32xbf16>
    %cst_16 = arith.constant dense<0.000000e+00> : vector<28x168xf32>
    %18 = tpu.matmul %17, %16, %cst_16 {dimension_numbers = #tpu.dot_dimension_numbers<[1], [0], [0], [1], [0, 0, 1, 1], [], []>} : vector<28x32xbf16>, vector<32x168xbf16>, vector<28x168xf32> -> vector<28x168xf32>
    %19 = arith.addf %12, %18 : vector<28x168xf32>
    %c0_17 = arith.constant 0 : index
    %c3 = arith.constant 3 : index
    %c0_18 = arith.constant 0 : index
    %20 = vector.load %arg0[%c0_17, %c3, %c0_18] : memref<2x32x32xf32, #tpu.memory_space<vmem>>, vector<1x28x32xf32>
    %21 = vector.shape_cast %20 : vector<1x28x32xf32> to vector<28x32xf32>
    %c3_19 = arith.constant 3 : index
    %c0_20 = arith.constant 0 : index
    %c0_21 = arith.constant 0 : index
    %22 = vector.load %arg1[%c3_19, %c0_20, %c0_21] : memref<5x32x168xbf16, #tpu.memory_space<vmem>>, vector<1x32x168xbf16>
    %23 = vector.shape_cast %22 : vector<1x32x168xbf16> to vector<32x168xbf16>
    %24 = arith.truncf %21 : vector<28x32xf32> to vector<28x32xbf16>
    %cst_22 = arith.constant dense<0.000000e+00> : vector<28x168xf32>
    %25 = tpu.matmul %24, %23, %cst_22 {dimension_numbers = #tpu.dot_dimension_numbers<[1], [0], [0], [1], [0, 0, 1, 1], [], []>} : vector<28x32xbf16>, vector<32x168xbf16>, vector<28x168xf32> -> vector<28x168xf32>
    %26 = arith.addf %19, %25 : vector<28x168xf32>
    %c0_23 = arith.constant 0 : index
    %c4 = arith.constant 4 : index
    %c0_24 = arith.constant 0 : index
    %27 = vector.load %arg0[%c0_23, %c4, %c0_24] : memref<2x32x32xf32, #tpu.memory_space<vmem>>, vector<1x28x32xf32>
    %28 = vector.shape_cast %27 : vector<1x28x32xf32> to vector<28x32xf32>
    %c4_25 = arith.constant 4 : index
    %c0_26 = arith.constant 0 : index
    %c0_27 = arith.constant 0 : index
    %29 = vector.load %arg1[%c4_25, %c0_26, %c0_27] : memref<5x32x168xbf16, #tpu.memory_space<vmem>>, vector<1x32x168xbf16>
    %30 = vector.shape_cast %29 : vector<1x32x168xbf16> to vector<32x168xbf16>
    %31 = arith.truncf %28 : vector<28x32xf32> to vector<28x32xbf16>
    %cst_28 = arith.constant dense<0.000000e+00> : vector<28x168xf32>
    %32 = tpu.matmul %31, %30, %cst_28 {dimension_numbers = #tpu.dot_dimension_numbers<[1], [0], [0], [1], [0, 0, 1, 1], [], []>} : vector<28x32xbf16>, vector<32x168xbf16>, vector<28x168xf32> -> vector<28x168xf32>
    %33 = arith.addf %26, %32 : vector<28x168xf32>
    %c1_29 = arith.constant 1 : index
    %c0_30 = arith.constant 0 : index
    %c0_31 = arith.constant 0 : index
    %34 = vector.load %arg0[%c1_29, %c0_30, %c0_31] : memref<2x32x32xf32, #tpu.memory_space<vmem>>, vector<1x28x32xf32>
    %35 = vector.shape_cast %34 : vector<1x28x32xf32> to vector<28x32xf32>
    %c0_32 = arith.constant 0 : index
    %c0_33 = arith.constant 0 : index
    %c0_34 = arith.constant 0 : index
    %36 = vector.load %arg1[%c0_32, %c0_33, %c0_34] : memref<5x32x168xbf16, #tpu.memory_space<vmem>>, vector<1x32x168xbf16>
    %37 = vector.shape_cast %36 : vector<1x32x168xbf16> to vector<32x168xbf16>
    %38 = arith.truncf %35 : vector<28x32xf32> to vector<28x32xbf16>
    %cst_35 = arith.constant dense<0.000000e+00> : vector<28x168xf32>
    %39 = tpu.matmul %38, %37, %cst_35 {dimension_numbers = #tpu.dot_dimension_numbers<[1], [0], [0], [1], [0, 0, 1, 1], [], []>} : vector<28x32xbf16>, vector<32x168xbf16>, vector<28x168xf32> -> vector<28x168xf32>
    %c1_36 = arith.constant 1 : index
    %c1_37 = arith.constant 1 : index
    %c0_38 = arith.constant 0 : index
    %40 = vector.load %arg0[%c1_36, %c1_37, %c0_38] : memref<2x32x32xf32, #tpu.memory_space<vmem>>, vector<1x28x32xf32>
    %41 = vector.shape_cast %40 : vector<1x28x32xf32> to vector<28x32xf32>
    %c1_39 = arith.constant 1 : index
    %c0_40 = arith.constant 0 : index
    %c0_41 = arith.constant 0 : index
    %42 = vector.load %arg1[%c1_39, %c0_40, %c0_41] : memref<5x32x168xbf16, #tpu.memory_space<vmem>>, vector<1x32x168xbf16>
    %43 = vector.shape_cast %42 : vector<1x32x168xbf16> to vector<32x168xbf16>
    %44 = arith.truncf %41 : vector<28x32xf32> to vector<28x32xbf16>
    %cst_42 = arith.constant dense<0.000000e+00> : vector<28x168xf32>
    %45 = tpu.matmul %44, %43, %cst_42 {dimension_numbers = #tpu.dot_dimension_numbers<[1], [0], [0], [1], [0, 0, 1, 1], [], []>} : vector<28x32xbf16>, vector<32x168xbf16>, vector<28x168xf32> -> vector<28x168xf32>
    %46 = arith.addf %39, %45 : vector<28x168xf32>
    %c1_43 = arith.constant 1 : index
    %c2_44 = arith.constant 2 : index
    %c0_45 = arith.constant 0 : index
    %47 = vector.load %arg0[%c1_43, %c2_44, %c0_45] : memref<2x32x32xf32, #tpu.memory_space<vmem>>, vector<1x28x32xf32>
    %48 = vector.shape_cast %47 : vector<1x28x32xf32> to vector<28x32xf32>
    %c2_46 = arith.constant 2 : index
    %c0_47 = arith.constant 0 : index
    %c0_48 = arith.constant 0 : index
    %49 = vector.load %arg1[%c2_46, %c0_47, %c0_48] : memref<5x32x168xbf16, #tpu.memory_space<vmem>>, vector<1x32x168xbf16>
    %50 = vector.shape_cast %49 : vector<1x32x168xbf16> to vector<32x168xbf16>
    %51 = arith.truncf %48 : vector<28x32xf32> to vector<28x32xbf16>
    %cst_49 = arith.constant dense<0.000000e+00> : vector<28x168xf32>
    %52 = tpu.matmul %51, %50, %cst_49 {dimension_numbers = #tpu.dot_dimension_numbers<[1], [0], [0], [1], [0, 0, 1, 1], [], []>} : vector<28x32xbf16>, vector<32x168xbf16>, vector<28x168xf32> -> vector<28x168xf32>
    %53 = arith.addf %46, %52 : vector<28x168xf32>
    %c1_50 = arith.constant 1 : index
    %c3_51 = arith.constant 3 : index
    %c0_52 = arith.constant 0 : index
    %54 = vector.load %arg0[%c1_50, %c3_51, %c0_52] : memref<2x32x32xf32, #tpu.memory_space<vmem>>, vector<1x28x32xf32>
    %55 = vector.shape_cast %54 : vector<1x28x32xf32> to vector<28x32xf32>
    %c3_53 = arith.constant 3 : index
    %c0_54 = arith.constant 0 : index
    %c0_55 = arith.constant 0 : index
    %56 = vector.load %arg1[%c3_53, %c0_54, %c0_55] : memref<5x32x168xbf16, #tpu.memory_space<vmem>>, vector<1x32x168xbf16>
    %57 = vector.shape_cast %56 : vector<1x32x168xbf16> to vector<32x168xbf16>
    %58 = arith.truncf %55 : vector<28x32xf32> to vector<28x32xbf16>
    %cst_56 = arith.constant dense<0.000000e+00> : vector<28x168xf32>
    %59 = tpu.matmul %58, %57, %cst_56 {dimension_numbers = #tpu.dot_dimension_numbers<[1], [0], [0], [1], [0, 0, 1, 1], [], []>} : vector<28x32xbf16>, vector<32x168xbf16>, vector<28x168xf32> -> vector<28x168xf32>
    %60 = arith.addf %53, %59 : vector<28x168xf32>
    %c1_57 = arith.constant 1 : index
    %c4_58 = arith.constant 4 : index
    %c0_59 = arith.constant 0 : index
    %61 = vector.load %arg0[%c1_57, %c4_58, %c0_59] : memref<2x32x32xf32, #tpu.memory_space<vmem>>, vector<1x28x32xf32>
    %62 = vector.shape_cast %61 : vector<1x28x32xf32> to vector<28x32xf32>
    %c4_60 = arith.constant 4 : index
    %c0_61 = arith.constant 0 : index
    %c0_62 = arith.constant 0 : index
    %63 = vector.load %arg1[%c4_60, %c0_61, %c0_62] : memref<5x32x168xbf16, #tpu.memory_space<vmem>>, vector<1x32x168xbf16>
    %64 = vector.shape_cast %63 : vector<1x32x168xbf16> to vector<32x168xbf16>
    %65 = arith.truncf %62 : vector<28x32xf32> to vector<28x32xbf16>
    %cst_63 = arith.constant dense<0.000000e+00> : vector<28x168xf32>
    %66 = tpu.matmul %65, %64, %cst_63 {dimension_numbers = #tpu.dot_dimension_numbers<[1], [0], [0], [1], [0, 0, 1, 1], [], []>} : vector<28x32xbf16>, vector<32x168xbf16>, vector<28x168xf32> -> vector<28x168xf32>
    %67 = arith.addf %60, %66 : vector<28x168xf32>
    %c0_64 = arith.constant 0 : index
    %c0_65 = arith.constant 0 : index
    %68 = vector.load %arg2[%c0_64, %c0_65] : memref<168x6xf32, #tpu.memory_space<vmem>>, vector<168x6xf32>
    %c0_66 = arith.constant 0 : index
    %c0_67 = arith.constant 0 : index
    %69 = vector.load %arg3[%c0_66, %c0_67] : memref<6x168xf32, #tpu.memory_space<vmem>>, vector<6x168xf32>
    %c0_68 = arith.constant 0 : index
    %c0_69 = arith.constant 0 : index
    %70 = vector.load %arg8[%c0_68, %c0_69] : memref<1x6xf32, #tpu.memory_space<vmem>>, vector<1x6xf32>
    %c0_70 = arith.constant 0 : index
    %c0_71 = arith.constant 0 : index
    %71 = vector.load %arg9[%c0_70, %c0_71] : memref<1x6xf32, #tpu.memory_space<vmem>>, vector<1x6xf32>
    %cst_72 = arith.constant dense<0.000000e+00> : vector<168xf32>
    %72 = vector.multi_reduction <add>, %33, %cst_72 [0] : vector<28x168xf32> to vector<168xf32>
    %73 = vector.shape_cast %72 : vector<168xf32> to vector<1x168xf32>
    %cst_73 = arith.constant dense<0.000000e+00> : vector<168xf32>
    %74 = vector.multi_reduction <add>, %67, %cst_73 [0] : vector<28x168xf32> to vector<168xf32>
    %75 = vector.shape_cast %74 : vector<168xf32> to vector<1x168xf32>
    %76 = arith.addf %73, %75 : vector<1x168xf32>
    %cst_74 = arith.constant dense<0.000000e+00> : vector<1x6xf32>
    %77 = tpu.matmul %76, %68, %cst_74 {dimension_numbers = #tpu.dot_dimension_numbers<[1], [0], [0], [1], [0, 0, 1, 1], [], []>} : vector<1x168xf32>, vector<168x6xf32>, vector<1x6xf32> -> vector<1x6xf32>
    %cst_75 = arith.constant 1.568000e+03 : f32
    %78 = vector.broadcast %cst_75 : f32 to vector<1x6xf32>
    %79 = arith.divf %77, %78 : vector<1x6xf32>
    %cst_76 = arith.constant dense<0.000000e+00> : vector<1x168xf32>
    %80 = tpu.matmul %79, %69, %cst_76 {dimension_numbers = #tpu.dot_dimension_numbers<[1], [0], [0], [1], [0, 0, 1, 1], [], []>} : vector<1x6xf32>, vector<6x168xf32>, vector<1x168xf32> -> vector<1x168xf32>
    %81 = vector.broadcast %80 : vector<1x168xf32> to vector<28x168xf32>
    %82 = arith.subf %33, %81 : vector<28x168xf32>
    %83 = arith.mulf %82, %82 : vector<28x168xf32>
    %cst_77 = arith.constant dense<0.000000e+00> : vector<168xf32>
    %84 = vector.multi_reduction <add>, %83, %cst_77 [0] : vector<28x168xf32> to vector<168xf32>
    %85 = vector.shape_cast %84 : vector<168xf32> to vector<1x168xf32>
    %86 = vector.broadcast %80 : vector<1x168xf32> to vector<28x168xf32>
    %87 = arith.subf %67, %86 : vector<28x168xf32>
    %88 = arith.mulf %87, %87 : vector<28x168xf32>
    %cst_78 = arith.constant dense<0.000000e+00> : vector<168xf32>
    %89 = vector.multi_reduction <add>, %88, %cst_78 [0] : vector<28x168xf32> to vector<168xf32>
    %90 = vector.shape_cast %89 : vector<168xf32> to vector<1x168xf32>
    %91 = arith.addf %85, %90 : vector<1x168xf32>
    %cst_79 = arith.constant dense<0.000000e+00> : vector<1x6xf32>
    %92 = tpu.matmul %91, %68, %cst_79 {dimension_numbers = #tpu.dot_dimension_numbers<[1], [0], [0], [1], [0, 0, 1, 1], [], []>} : vector<1x168xf32>, vector<168x6xf32>, vector<1x6xf32> -> vector<1x6xf32>
    %cst_80 = arith.constant 1.568000e+03 : f32
    %93 = vector.broadcast %cst_80 : f32 to vector<1x6xf32>
    %94 = arith.divf %92, %93 : vector<1x6xf32>
    %cst_81 = arith.constant 9.99999974E-6 : f32
    %95 = vector.broadcast %cst_81 : f32 to vector<1x6xf32>
    %96 = arith.addf %94, %95 : vector<1x6xf32>
    %97 = math.rsqrt %96 : vector<1x6xf32>
    %98 = arith.mulf %70, %97 : vector<1x6xf32>
    %99 = arith.mulf %79, %98 : vector<1x6xf32>
    %100 = arith.subf %71, %99 : vector<1x6xf32>
    %cst_82 = arith.constant dense<0.000000e+00> : vector<1x168xf32>
    %101 = tpu.matmul %98, %69, %cst_82 {dimension_numbers = #tpu.dot_dimension_numbers<[1], [0], [0], [1], [0, 0, 1, 1], [], []>} : vector<1x6xf32>, vector<6x168xf32>, vector<1x168xf32> -> vector<1x168xf32>
    %cst_83 = arith.constant dense<0.000000e+00> : vector<1x168xf32>
    %102 = tpu.matmul %100, %69, %cst_83 {dimension_numbers = #tpu.dot_dimension_numbers<[1], [0], [0], [1], [0, 0, 1, 1], [], []>} : vector<1x6xf32>, vector<6x168xf32>, vector<1x168xf32> -> vector<1x168xf32>
    %103 = vector.broadcast %101 : vector<1x168xf32> to vector<28x168xf32>
    %104 = arith.mulf %33, %103 : vector<28x168xf32>
    %105 = vector.broadcast %102 : vector<1x168xf32> to vector<28x168xf32>
    %106 = arith.addf %104, %105 : vector<28x168xf32>
    %107 = arith.negf %106 : vector<28x168xf32>
    %108 = math.exp %107 : vector<28x168xf32>
    %cst_84 = arith.constant 1.000000e+00 : f32
    %109 = vector.broadcast %cst_84 : f32 to vector<28x168xf32>
    %110 = arith.addf %109, %108 : vector<28x168xf32>
    %111 = arith.divf %109, %110 : vector<28x168xf32>
    %c0_85 = arith.constant 0 : index
    %c0_86 = arith.constant 0 : index
    %112 = vector.load %arg4[%c0_85, %c0_86] : memref<168x84xf32, #tpu.memory_space<vmem>>, vector<168x84xf32>
    %cst_87 = arith.constant dense<0.000000e+00> : vector<28x84xf32>
    %113 = tpu.matmul %111, %112, %cst_87 {dimension_numbers = #tpu.dot_dimension_numbers<[1], [0], [0], [1], [0, 0, 1, 1], [], []>} : vector<28x168xf32>, vector<168x84xf32>, vector<28x84xf32> -> vector<28x84xf32>
    %c0_88 = arith.constant 0 : index
    %c0_89 = arith.constant 0 : index
    %114 = vector.load %arg5[%c0_88, %c0_89] : memref<168x84xf32, #tpu.memory_space<vmem>>, vector<168x84xf32>
    %cst_90 = arith.constant dense<0.000000e+00> : vector<28x84xf32>
    %115 = tpu.matmul %111, %114, %cst_90 {dimension_numbers = #tpu.dot_dimension_numbers<[1], [0], [0], [1], [0, 0, 1, 1], [], []>} : vector<28x168xf32>, vector<168x84xf32>, vector<28x84xf32> -> vector<28x84xf32>
    %116 = arith.maximumf %113, %115 : vector<28x84xf32>
    %c0_91 = arith.constant 0 : index
    %c0_92 = arith.constant 0 : index
    %117 = vector.load %arg6[%c0_91, %c0_92] : memref<14x28xf32, #tpu.memory_space<vmem>>, vector<14x28xf32>
    %cst_93 = arith.constant dense<0.000000e+00> : vector<14x84xf32>
    %118 = tpu.matmul %117, %116, %cst_93 {dimension_numbers = #tpu.dot_dimension_numbers<[1], [0], [0], [1], [0, 0, 1, 1], [], []>} : vector<14x28xf32>, vector<28x84xf32>, vector<14x84xf32> -> vector<14x84xf32>
    %c0_94 = arith.constant 0 : index
    %c0_95 = arith.constant 0 : index
    %119 = vector.load %arg7[%c0_94, %c0_95] : memref<14x28xf32, #tpu.memory_space<vmem>>, vector<14x28xf32>
    %cst_96 = arith.constant dense<0.000000e+00> : vector<14x84xf32>
    %120 = tpu.matmul %119, %116, %cst_96 {dimension_numbers = #tpu.dot_dimension_numbers<[1], [0], [0], [1], [0, 0, 1, 1], [], []>} : vector<14x28xf32>, vector<28x84xf32>, vector<14x84xf32> -> vector<14x84xf32>
    %121 = arith.maximumf %118, %120 : vector<14x84xf32>
    %c0_97 = arith.constant 0 : index
    %c0_98 = arith.constant 0 : index
    %122 = vector.load %arg28[%c0_97, %c0_98] : memref<28x84xf32, #tpu.memory_space<vmem>>, vector<14x84xf32>
    tpu.vector_store %arg28[%c0_97, %c0_98], %121 {strides = array<i32>} : memref<28x84xf32, #tpu.memory_space<vmem>>, vector<14x84xf32>,
    %123 = vector.broadcast %101 : vector<1x168xf32> to vector<28x168xf32>
    %124 = arith.mulf %67, %123 : vector<28x168xf32>
    %125 = vector.broadcast %102 : vector<1x168xf32> to vector<28x168xf32>
    %126 = arith.addf %124, %125 : vector<28x168xf32>
    %127 = arith.negf %126 : vector<28x168xf32>
    %128 = math.exp %127 : vector<28x168xf32>
    %cst_99 = arith.constant 1.000000e+00 : f32
    %129 = vector.broadcast %cst_99 : f32 to vector<28x168xf32>
    %130 = arith.addf %129, %128 : vector<28x168xf32>
    %131 = arith.divf %129, %130 : vector<28x168xf32>
    %c0_100 = arith.constant 0 : index
    %c0_101 = arith.constant 0 : index
    %132 = vector.load %arg4[%c0_100, %c0_101] : memref<168x84xf32, #tpu.memory_space<vmem>>, vector<168x84xf32>
    %cst_102 = arith.constant dense<0.000000e+00> : vector<28x84xf32>
    %133 = tpu.matmul %131, %132, %cst_102 {dimension_numbers = #tpu.dot_dimension_numbers<[1], [0], [0], [1], [0, 0, 1, 1], [], []>} : vector<28x168xf32>, vector<168x84xf32>, vector<28x84xf32> -> vector<28x84xf32>
    %c0_103 = arith.constant 0 : index
    %c0_104 = arith.constant 0 : index
    %134 = vector.load %arg5[%c0_103, %c0_104] : memref<168x84xf32, #tpu.memory_space<vmem>>, vector<168x84xf32>
    %cst_105 = arith.constant dense<0.000000e+00> : vector<28x84xf32>
    %135 = tpu.matmul %131, %134, %cst_105 {dimension_numbers = #tpu.dot_dimension_numbers<[1], [0], [0], [1], [0, 0, 1, 1], [], []>} : vector<28x168xf32>, vector<168x84xf32>, vector<28x84xf32> -> vector<28x84xf32>
    %136 = arith.maximumf %133, %135 : vector<28x84xf32>
    %c0_106 = arith.constant 0 : index
    %c0_107 = arith.constant 0 : index
    %137 = vector.load %arg6[%c0_106, %c0_107] : memref<14x28xf32, #tpu.memory_space<vmem>>, vector<14x28xf32>
    %cst_108 = arith.constant dense<0.000000e+00> : vector<14x84xf32>
    %138 = tpu.matmul %137, %136, %cst_108 {dimension_numbers = #tpu.dot_dimension_numbers<[1], [0], [0], [1], [0, 0, 1, 1], [], []>} : vector<14x28xf32>, vector<28x84xf32>, vector<14x84xf32> -> vector<14x84xf32>
    %c0_109 = arith.constant 0 : index
    %c0_110 = arith.constant 0 : index
    %139 = vector.load %arg7[%c0_109, %c0_110] : memref<14x28xf32, #tpu.memory_space<vmem>>, vector<14x28xf32>
    %cst_111 = arith.constant dense<0.000000e+00> : vector<14x84xf32>
    %140 = tpu.matmul %139, %136, %cst_111 {dimension_numbers = #tpu.dot_dimension_numbers<[1], [0], [0], [1], [0, 0, 1, 1], [], []>} : vector<14x28xf32>, vector<28x84xf32>, vector<14x84xf32> -> vector<14x84xf32>
    %141 = arith.maximumf %138, %140 : vector<14x84xf32>
    %c14 = arith.constant 14 : index
    %c0_112 = arith.constant 0 : index
    %142 = vector.load %arg28[%c14, %c0_112] : memref<28x84xf32, #tpu.memory_space<vmem>>, vector<14x84xf32>
    tpu.vector_store %arg28[%c14, %c0_112], %141 {strides = array<i32>} : memref<28x84xf32, #tpu.memory_space<vmem>>, vector<14x84xf32>,
    %c0_113 = arith.constant 0 : index
    %c0_114 = arith.constant 0 : index
    %143 = vector.load %arg28[%c0_113, %c0_114] : memref<28x84xf32, #tpu.memory_space<vmem>>, vector<10x84xf32>
    %c0_115 = arith.constant 0 : index
    %c0_116 = arith.constant 0 : index
    %c0_117 = arith.constant 0 : index
    %144 = vector.load %arg10[%c0_115, %c0_116, %c0_117] : memref<5x84x160xbf16, #tpu.memory_space<vmem>>, vector<1x84x160xbf16>
    %145 = vector.shape_cast %144 : vector<1x84x160xbf16> to vector<84x160xbf16>
    %146 = arith.truncf %143 : vector<10x84xf32> to vector<10x84xbf16>
    %cst_118 = arith.constant dense<0.000000e+00> : vector<10x160xf32>
    %147 = tpu.matmul %146, %145, %cst_118 {dimension_numbers = #tpu.dot_dimension_numbers<[1], [0], [0], [1], [0, 0, 1, 1], [], []>} : vector<10x84xbf16>, vector<84x160xbf16>, vector<10x160xf32> -> vector<10x160xf32>
    %c1_119 = arith.constant 1 : index
    %c0_120 = arith.constant 0 : index
    %148 = vector.load %arg28[%c1_119, %c0_120] : memref<28x84xf32, #tpu.memory_space<vmem>>, vector<10x84xf32>
    %c1_121 = arith.constant 1 : index
    %c0_122 = arith.constant 0 : index
    %c0_123 = arith.constant 0 : index
    %149 = vector.load %arg10[%c1_121, %c0_122, %c0_123] : memref<5x84x160xbf16, #tpu.memory_space<vmem>>, vector<1x84x160xbf16>
    %150 = vector.shape_cast %149 : vector<1x84x160xbf16> to vector<84x160xbf16>
    %151 = arith.truncf %148 : vector<10x84xf32> to vector<10x84xbf16>
    %cst_124 = arith.constant dense<0.000000e+00> : vector<10x160xf32>
    %152 = tpu.matmul %151, %150, %cst_124 {dimension_numbers = #tpu.dot_dimension_numbers<[1], [0], [0], [1], [0, 0, 1, 1], [], []>} : vector<10x84xbf16>, vector<84x160xbf16>, vector<10x160xf32> -> vector<10x160xf32>
    %153 = arith.addf %147, %152 : vector<10x160xf32>
    %c2_125 = arith.constant 2 : index
    %c0_126 = arith.constant 0 : index
    %154 = vector.load %arg28[%c2_125, %c0_126] : memref<28x84xf32, #tpu.memory_space<vmem>>, vector<10x84xf32>
    %c2_127 = arith.constant 2 : index
    %c0_128 = arith.constant 0 : index
    %c0_129 = arith.constant 0 : index
    %155 = vector.load %arg10[%c2_127, %c0_128, %c0_129] : memref<5x84x160xbf16, #tpu.memory_space<vmem>>, vector<1x84x160xbf16>
    %156 = vector.shape_cast %155 : vector<1x84x160xbf16> to vector<84x160xbf16>
    %157 = arith.truncf %154 : vector<10x84xf32> to vector<10x84xbf16>
    %cst_130 = arith.constant dense<0.000000e+00> : vector<10x160xf32>
    %158 = tpu.matmul %157, %156, %cst_130 {dimension_numbers = #tpu.dot_dimension_numbers<[1], [0], [0], [1], [0, 0, 1, 1], [], []>} : vector<10x84xbf16>, vector<84x160xbf16>, vector<10x160xf32> -> vector<10x160xf32>
    %159 = arith.addf %153, %158 : vector<10x160xf32>
    %c3_131 = arith.constant 3 : index
    %c0_132 = arith.constant 0 : index
    %160 = vector.load %arg28[%c3_131, %c0_132] : memref<28x84xf32, #tpu.memory_space<vmem>>, vector<10x84xf32>
    %c3_133 = arith.constant 3 : index
    %c0_134 = arith.constant 0 : index
    %c0_135 = arith.constant 0 : index
    %161 = vector.load %arg10[%c3_133, %c0_134, %c0_135] : memref<5x84x160xbf16, #tpu.memory_space<vmem>>, vector<1x84x160xbf16>
    %162 = vector.shape_cast %161 : vector<1x84x160xbf16> to vector<84x160xbf16>
    %163 = arith.truncf %160 : vector<10x84xf32> to vector<10x84xbf16>
    %cst_136 = arith.constant dense<0.000000e+00> : vector<10x160xf32>
    %164 = tpu.matmul %163, %162, %cst_136 {dimension_numbers = #tpu.dot_dimension_numbers<[1], [0], [0], [1], [0, 0, 1, 1], [], []>} : vector<10x84xbf16>, vector<84x160xbf16>, vector<10x160xf32> -> vector<10x160xf32>
    %165 = arith.addf %159, %164 : vector<10x160xf32>
    %c4_137 = arith.constant 4 : index
    %c0_138 = arith.constant 0 : index
    %166 = vector.load %arg28[%c4_137, %c0_138] : memref<28x84xf32, #tpu.memory_space<vmem>>, vector<10x84xf32>
    %c4_139 = arith.constant 4 : index
    %c0_140 = arith.constant 0 : index
    %c0_141 = arith.constant 0 : index
    %167 = vector.load %arg10[%c4_139, %c0_140, %c0_141] : memref<5x84x160xbf16, #tpu.memory_space<vmem>>, vector<1x84x160xbf16>
    %168 = vector.shape_cast %167 : vector<1x84x160xbf16> to vector<84x160xbf16>
    %169 = arith.truncf %166 : vector<10x84xf32> to vector<10x84xbf16>
    %cst_142 = arith.constant dense<0.000000e+00> : vector<10x160xf32>
    %170 = tpu.matmul %169, %168, %cst_142 {dimension_numbers = #tpu.dot_dimension_numbers<[1], [0], [0], [1], [0, 0, 1, 1], [], []>} : vector<10x84xbf16>, vector<84x160xbf16>, vector<10x160xf32> -> vector<10x160xf32>
    %171 = arith.addf %165, %170 : vector<10x160xf32>
    %c14_143 = arith.constant 14 : index
    %c0_144 = arith.constant 0 : index
    %172 = vector.load %arg28[%c14_143, %c0_144] : memref<28x84xf32, #tpu.memory_space<vmem>>, vector<10x84xf32>
    %c0_145 = arith.constant 0 : index
    %c0_146 = arith.constant 0 : index
    %c0_147 = arith.constant 0 : index
    %173 = vector.load %arg10[%c0_145, %c0_146, %c0_147] : memref<5x84x160xbf16, #tpu.memory_space<vmem>>, vector<1x84x160xbf16>
    %174 = vector.shape_cast %173 : vector<1x84x160xbf16> to vector<84x160xbf16>
    %175 = arith.truncf %172 : vector<10x84xf32> to vector<10x84xbf16>
    %cst_148 = arith.constant dense<0.000000e+00> : vector<10x160xf32>
    %176 = tpu.matmul %175, %174, %cst_148 {dimension_numbers = #tpu.dot_dimension_numbers<[1], [0], [0], [1], [0, 0, 1, 1], [], []>} : vector<10x84xbf16>, vector<84x160xbf16>, vector<10x160xf32> -> vector<10x160xf32>
    %c15 = arith.constant 15 : index
    %c0_149 = arith.constant 0 : index
    %177 = vector.load %arg28[%c15, %c0_149] : memref<28x84xf32, #tpu.memory_space<vmem>>, vector<10x84xf32>
    %c1_150 = arith.constant 1 : index
    %c0_151 = arith.constant 0 : index
    %c0_152 = arith.constant 0 : index
    %178 = vector.load %arg10[%c1_150, %c0_151, %c0_152] : memref<5x84x160xbf16, #tpu.memory_space<vmem>>, vector<1x84x160xbf16>
    %179 = vector.shape_cast %178 : vector<1x84x160xbf16> to vector<84x160xbf16>
    %180 = arith.truncf %177 : vector<10x84xf32> to vector<10x84xbf16>
    %cst_153 = arith.constant dense<0.000000e+00> : vector<10x160xf32>
    %181 = tpu.matmul %180, %179, %cst_153 {dimension_numbers = #tpu.dot_dimension_numbers<[1], [0], [0], [1], [0, 0, 1, 1], [], []>} : vector<10x84xbf16>, vector<84x160xbf16>, vector<10x160xf32> -> vector<10x160xf32>
    %182 = arith.addf %176, %181 : vector<10x160xf32>
    %c16 = arith.constant 16 : index
    %c0_154 = arith.constant 0 : index
    %183 = vector.load %arg28[%c16, %c0_154] : memref<28x84xf32, #tpu.memory_space<vmem>>, vector<10x84xf32>
    %c2_155 = arith.constant 2 : index
    %c0_156 = arith.constant 0 : index
    %c0_157 = arith.constant 0 : index
    %184 = vector.load %arg10[%c2_155, %c0_156, %c0_157] : memref<5x84x160xbf16, #tpu.memory_space<vmem>>, vector<1x84x160xbf16>
    %185 = vector.shape_cast %184 : vector<1x84x160xbf16> to vector<84x160xbf16>
    %186 = arith.truncf %183 : vector<10x84xf32> to vector<10x84xbf16>
    %cst_158 = arith.constant dense<0.000000e+00> : vector<10x160xf32>
    %187 = tpu.matmul %186, %185, %cst_158 {dimension_numbers = #tpu.dot_dimension_numbers<[1], [0], [0], [1], [0, 0, 1, 1], [], []>} : vector<10x84xbf16>, vector<84x160xbf16>, vector<10x160xf32> -> vector<10x160xf32>
    %188 = arith.addf %182, %187 : vector<10x160xf32>
    %c17 = arith.constant 17 : index
    %c0_159 = arith.constant 0 : index
    %189 = vector.load %arg28[%c17, %c0_159] : memref<28x84xf32, #tpu.memory_space<vmem>>, vector<10x84xf32>
    %c3_160 = arith.constant 3 : index
    %c0_161 = arith.constant 0 : index
    %c0_162 = arith.constant 0 : index
    %190 = vector.load %arg10[%c3_160, %c0_161, %c0_162] : memref<5x84x160xbf16, #tpu.memory_space<vmem>>, vector<1x84x160xbf16>
    %191 = vector.shape_cast %190 : vector<1x84x160xbf16> to vector<84x160xbf16>
    %192 = arith.truncf %189 : vector<10x84xf32> to vector<10x84xbf16>
    %cst_163 = arith.constant dense<0.000000e+00> : vector<10x160xf32>
    %193 = tpu.matmul %192, %191, %cst_163 {dimension_numbers = #tpu.dot_dimension_numbers<[1], [0], [0], [1], [0, 0, 1, 1], [], []>} : vector<10x84xbf16>, vector<84x160xbf16>, vector<10x160xf32> -> vector<10x160xf32>
    %194 = arith.addf %188, %193 : vector<10x160xf32>
    %c18 = arith.constant 18 : index
    %c0_164 = arith.constant 0 : index
    %195 = vector.load %arg28[%c18, %c0_164] : memref<28x84xf32, #tpu.memory_space<vmem>>, vector<10x84xf32>
    %c4_165 = arith.constant 4 : index
    %c0_166 = arith.constant 0 : index
    %c0_167 = arith.constant 0 : index
    %196 = vector.load %arg10[%c4_165, %c0_166, %c0_167] : memref<5x84x160xbf16, #tpu.memory_space<vmem>>, vector<1x84x160xbf16>
    %197 = vector.shape_cast %196 : vector<1x84x160xbf16> to vector<84x160xbf16>
    %198 = arith.truncf %195 : vector<10x84xf32> to vector<10x84xbf16>
    %cst_168 = arith.constant dense<0.000000e+00> : vector<10x160xf32>
    %199 = tpu.matmul %198, %197, %cst_168 {dimension_numbers = #tpu.dot_dimension_numbers<[1], [0], [0], [1], [0, 0, 1, 1], [], []>} : vector<10x84xbf16>, vector<84x160xbf16>, vector<10x160xf32> -> vector<10x160xf32>
    %200 = arith.addf %194, %199 : vector<10x160xf32>
    %c0_169 = arith.constant 0 : index
    %c0_170 = arith.constant 0 : index
    %201 = vector.load %arg11[%c0_169, %c0_170] : memref<160x16xf32, #tpu.memory_space<vmem>>, vector<160x16xf32>
    %c0_171 = arith.constant 0 : index
    %c0_172 = arith.constant 0 : index
    %202 = vector.load %arg12[%c0_171, %c0_172] : memref<16x160xf32, #tpu.memory_space<vmem>>, vector<16x160xf32>
    %c0_173 = arith.constant 0 : index
    %c0_174 = arith.constant 0 : index
    %203 = vector.load %arg17[%c0_173, %c0_174] : memref<1x16xf32, #tpu.memory_space<vmem>>, vector<1x16xf32>
    %c0_175 = arith.constant 0 : index
    %c0_176 = arith.constant 0 : index
    %204 = vector.load %arg18[%c0_175, %c0_176] : memref<1x16xf32, #tpu.memory_space<vmem>>, vector<1x16xf32>
    %cst_177 = arith.constant dense<0.000000e+00> : vector<160xf32>
    %205 = vector.multi_reduction <add>, %171, %cst_177 [0] : vector<10x160xf32> to vector<160xf32>
    %206 = vector.shape_cast %205 : vector<160xf32> to vector<1x160xf32>
    %cst_178 = arith.constant dense<0.000000e+00> : vector<160xf32>
    %207 = vector.multi_reduction <add>, %200, %cst_178 [0] : vector<10x160xf32> to vector<160xf32>
    %208 = vector.shape_cast %207 : vector<160xf32> to vector<1x160xf32>
    %209 = arith.addf %206, %208 : vector<1x160xf32>
    %cst_179 = arith.constant dense<0.000000e+00> : vector<1x16xf32>
    %210 = tpu.matmul %209, %201, %cst_179 {dimension_numbers = #tpu.dot_dimension_numbers<[1], [0], [0], [1], [0, 0, 1, 1], [], []>} : vector<1x160xf32>, vector<160x16xf32>, vector<1x16xf32> -> vector<1x16xf32>
    %cst_180 = arith.constant 2.000000e+02 : f32
    %211 = vector.broadcast %cst_180 : f32 to vector<1x16xf32>
    %212 = arith.divf %210, %211 : vector<1x16xf32>
    %cst_181 = arith.constant dense<0.000000e+00> : vector<1x160xf32>
    %213 = tpu.matmul %212, %202, %cst_181 {dimension_numbers = #tpu.dot_dimension_numbers<[1], [0], [0], [1], [0, 0, 1, 1], [], []>} : vector<1x16xf32>, vector<16x160xf32>, vector<1x160xf32> -> vector<1x160xf32>
    %214 = vector.broadcast %213 : vector<1x160xf32> to vector<10x160xf32>
    %215 = arith.subf %171, %214 : vector<10x160xf32>
    %216 = arith.mulf %215, %215 : vector<10x160xf32>
    %cst_182 = arith.constant dense<0.000000e+00> : vector<160xf32>
    %217 = vector.multi_reduction <add>, %216, %cst_182 [0] : vector<10x160xf32> to vector<160xf32>
    %218 = vector.shape_cast %217 : vector<160xf32> to vector<1x160xf32>
    %219 = vector.broadcast %213 : vector<1x160xf32> to vector<10x160xf32>
    %220 = arith.subf %200, %219 : vector<10x160xf32>
    %221 = arith.mulf %220, %220 : vector<10x160xf32>
    %cst_183 = arith.constant dense<0.000000e+00> : vector<160xf32>
    %222 = vector.multi_reduction <add>, %221, %cst_183 [0] : vector<10x160xf32> to vector<160xf32>
    %223 = vector.shape_cast %222 : vector<160xf32> to vector<1x160xf32>
    %224 = arith.addf %218, %223 : vector<1x160xf32>
    %cst_184 = arith.constant dense<0.000000e+00> : vector<1x16xf32>
    %225 = tpu.matmul %224, %201, %cst_184 {dimension_numbers = #tpu.dot_dimension_numbers<[1], [0], [0], [1], [0, 0, 1, 1], [], []>} : vector<1x160xf32>, vector<160x16xf32>, vector<1x16xf32> -> vector<1x16xf32>
    %cst_185 = arith.constant 2.000000e+02 : f32
    %226 = vector.broadcast %cst_185 : f32 to vector<1x16xf32>
    %227 = arith.divf %225, %226 : vector<1x16xf32>
    %cst_186 = arith.constant 9.99999974E-6 : f32
    %228 = vector.broadcast %cst_186 : f32 to vector<1x16xf32>
    %229 = arith.addf %227, %228 : vector<1x16xf32>
    %230 = math.rsqrt %229 : vector<1x16xf32>
    %231 = arith.mulf %203, %230 : vector<1x16xf32>
    %232 = arith.mulf %212, %231 : vector<1x16xf32>
    %233 = arith.subf %204, %232 : vector<1x16xf32>
    %cst_187 = arith.constant dense<0.000000e+00> : vector<1x160xf32>
    %234 = tpu.matmul %231, %202, %cst_187 {dimension_numbers = #tpu.dot_dimension_numbers<[1], [0], [0], [1], [0, 0, 1, 1], [], []>} : vector<1x16xf32>, vector<16x160xf32>, vector<1x160xf32> -> vector<1x160xf32>
    %cst_188 = arith.constant dense<0.000000e+00> : vector<1x160xf32>
    %235 = tpu.matmul %233, %202, %cst_188 {dimension_numbers = #tpu.dot_dimension_numbers<[1], [0], [0], [1], [0, 0, 1, 1], [], []>} : vector<1x16xf32>, vector<16x160xf32>, vector<1x160xf32> -> vector<1x160xf32>
    %236 = vector.broadcast %234 : vector<1x160xf32> to vector<10x160xf32>
    %237 = arith.mulf %171, %236 : vector<10x160xf32>
    %238 = vector.broadcast %235 : vector<1x160xf32> to vector<10x160xf32>
    %239 = arith.addf %237, %238 : vector<10x160xf32>
    %240 = arith.negf %239 : vector<10x160xf32>
    %241 = math.exp %240 : vector<10x160xf32>
    %cst_189 = arith.constant 1.000000e+00 : f32
    %242 = vector.broadcast %cst_189 : f32 to vector<10x160xf32>
    %243 = arith.addf %242, %241 : vector<10x160xf32>
    %244 = arith.divf %242, %243 : vector<10x160xf32>
    %c0_190 = arith.constant 0 : index
    %c0_191 = arith.constant 0 : index
    %245 = vector.load %arg13[%c0_190, %c0_191] : memref<160x80xf32, #tpu.memory_space<vmem>>, vector<160x80xf32>
    %cst_192 = arith.constant dense<0.000000e+00> : vector<10x80xf32>
    %246 = tpu.matmul %244, %245, %cst_192 {dimension_numbers = #tpu.dot_dimension_numbers<[1], [0], [0], [1], [0, 0, 1, 1], [], []>} : vector<10x160xf32>, vector<160x80xf32>, vector<10x80xf32> -> vector<10x80xf32>
    %c0_193 = arith.constant 0 : index
    %c0_194 = arith.constant 0 : index
    %247 = vector.load %arg14[%c0_193, %c0_194] : memref<160x80xf32, #tpu.memory_space<vmem>>, vector<160x80xf32>
    %cst_195 = arith.constant dense<0.000000e+00> : vector<10x80xf32>
    %248 = tpu.matmul %244, %247, %cst_195 {dimension_numbers = #tpu.dot_dimension_numbers<[1], [0], [0], [1], [0, 0, 1, 1], [], []>} : vector<10x160xf32>, vector<160x80xf32>, vector<10x80xf32> -> vector<10x80xf32>
    %249 = arith.maximumf %246, %248 : vector<10x80xf32>
    %c0_196 = arith.constant 0 : index
    %c0_197 = arith.constant 0 : index
    %250 = vector.load %arg15[%c0_196, %c0_197] : memref<5x10xf32, #tpu.memory_space<vmem>>, vector<5x10xf32>
    %cst_198 = arith.constant dense<0.000000e+00> : vector<5x80xf32>
    %251 = tpu.matmul %250, %249, %cst_198 {dimension_numbers = #tpu.dot_dimension_numbers<[1], [0], [0], [1], [0, 0, 1, 1], [], []>} : vector<5x10xf32>, vector<10x80xf32>, vector<5x80xf32> -> vector<5x80xf32>
    %c0_199 = arith.constant 0 : index
    %c0_200 = arith.constant 0 : index
    %252 = vector.load %arg16[%c0_199, %c0_200] : memref<5x10xf32, #tpu.memory_space<vmem>>, vector<5x10xf32>
    %cst_201 = arith.constant dense<0.000000e+00> : vector<5x80xf32>
    %253 = tpu.matmul %252, %249, %cst_201 {dimension_numbers = #tpu.dot_dimension_numbers<[1], [0], [0], [1], [0, 0, 1, 1], [], []>} : vector<5x10xf32>, vector<10x80xf32>, vector<5x80xf32> -> vector<5x80xf32>
    %254 = arith.maximumf %251, %253 : vector<5x80xf32>
    %c0_202 = arith.constant 0 : index
    %c0_203 = arith.constant 0 : index
    %255 = vector.load %arg29[%c0_202, %c0_203] : memref<10x80xf32, #tpu.memory_space<vmem>>, vector<5x80xf32>
    tpu.vector_store %arg29[%c0_202, %c0_203], %254 {strides = array<i32>} : memref<10x80xf32, #tpu.memory_space<vmem>>, vector<5x80xf32>,
    %256 = vector.broadcast %234 : vector<1x160xf32> to vector<10x160xf32>
    %257 = arith.mulf %200, %256 : vector<10x160xf32>
    %258 = vector.broadcast %235 : vector<1x160xf32> to vector<10x160xf32>
    %259 = arith.addf %257, %258 : vector<10x160xf32>
    %260 = arith.negf %259 : vector<10x160xf32>
    %261 = math.exp %260 : vector<10x160xf32>
    %cst_204 = arith.constant 1.000000e+00 : f32
    %262 = vector.broadcast %cst_204 : f32 to vector<10x160xf32>
    %263 = arith.addf %262, %261 : vector<10x160xf32>
    %264 = arith.divf %262, %263 : vector<10x160xf32>
    %c0_205 = arith.constant 0 : index
    %c0_206 = arith.constant 0 : index
    %265 = vector.load %arg13[%c0_205, %c0_206] : memref<160x80xf32, #tpu.memory_space<vmem>>, vector<160x80xf32>
    %cst_207 = arith.constant dense<0.000000e+00> : vector<10x80xf32>
    %266 = tpu.matmul %264, %265, %cst_207 {dimension_numbers = #tpu.dot_dimension_numbers<[1], [0], [0], [1], [0, 0, 1, 1], [], []>} : vector<10x160xf32>, vector<160x80xf32>, vector<10x80xf32> -> vector<10x80xf32>
    %c0_208 = arith.constant 0 : index
    %c0_209 = arith.constant 0 : index
    %267 = vector.load %arg14[%c0_208, %c0_209] : memref<160x80xf32, #tpu.memory_space<vmem>>, vector<160x80xf32>
    %cst_210 = arith.constant dense<0.000000e+00> : vector<10x80xf32>
    %268 = tpu.matmul %264, %267, %cst_210 {dimension_numbers = #tpu.dot_dimension_numbers<[1], [0], [0], [1], [0, 0, 1, 1], [], []>} : vector<10x160xf32>, vector<160x80xf32>, vector<10x80xf32> -> vector<10x80xf32>
    %269 = arith.maximumf %266, %268 : vector<10x80xf32>
    %c0_211 = arith.constant 0 : index
    %c0_212 = arith.constant 0 : index
    %270 = vector.load %arg15[%c0_211, %c0_212] : memref<5x10xf32, #tpu.memory_space<vmem>>, vector<5x10xf32>
    %cst_213 = arith.constant dense<0.000000e+00> : vector<5x80xf32>
    %271 = tpu.matmul %270, %269, %cst_213 {dimension_numbers = #tpu.dot_dimension_numbers<[1], [0], [0], [1], [0, 0, 1, 1], [], []>} : vector<5x10xf32>, vector<10x80xf32>, vector<5x80xf32> -> vector<5x80xf32>
    %c0_214 = arith.constant 0 : index
    %c0_215 = arith.constant 0 : index
    %272 = vector.load %arg16[%c0_214, %c0_215] : memref<5x10xf32, #tpu.memory_space<vmem>>, vector<5x10xf32>
    %cst_216 = arith.constant dense<0.000000e+00> : vector<5x80xf32>
    %273 = tpu.matmul %272, %269, %cst_216 {dimension_numbers = #tpu.dot_dimension_numbers<[1], [0], [0], [1], [0, 0, 1, 1], [], []>} : vector<5x10xf32>, vector<10x80xf32>, vector<5x80xf32> -> vector<5x80xf32>
    %274 = arith.maximumf %271, %273 : vector<5x80xf32>
    %c5 = arith.constant 5 : index
    %c0_217 = arith.constant 0 : index
    %275 = vector.load %arg29[%c5, %c0_217] : memref<10x80xf32, #tpu.memory_space<vmem>>, vector<5x80xf32>
    tpu.vector_store %arg29[%c5, %c0_217], %274 {strides = array<i32>} : memref<10x80xf32, #tpu.memory_space<vmem>>, vector<5x80xf32>,
    %c0_218 = arith.constant 0 : index
    %c0_219 = arith.constant 0 : index
    %276 = vector.load %arg29[%c0_218, %c0_219] : memref<10x80xf32, #tpu.memory_space<vmem>>, vector<1x80xf32>
    %c0_220 = arith.constant 0 : index
    %c0_221 = arith.constant 0 : index
    %c0_222 = arith.constant 0 : index
    %277 = vector.load %arg19[%c0_220, %c0_221, %c0_222] : memref<5x80x120xbf16, #tpu.memory_space<vmem>>, vector<1x80x120xbf16>
    %278 = vector.shape_cast %277 : vector<1x80x120xbf16> to vector<80x120xbf16>
    %279 = arith.truncf %276 : vector<1x80xf32> to vector<1x80xbf16>
    %cst_223 = arith.constant dense<0.000000e+00> : vector<1x120xf32>
    %280 = tpu.matmul %279, %278, %cst_223 {dimension_numbers = #tpu.dot_dimension_numbers<[1], [0], [0], [1], [0, 0, 1, 1], [], []>} : vector<1x80xbf16>, vector<80x120xbf16>, vector<1x120xf32> -> vector<1x120xf32>
    %c1_224 = arith.constant 1 : index
    %c0_225 = arith.constant 0 : index
    %281 = vector.load %arg29[%c1_224, %c0_225] : memref<10x80xf32, #tpu.memory_space<vmem>>, vector<1x80xf32>
    %c1_226 = arith.constant 1 : index
    %c0_227 = arith.constant 0 : index
    %c0_228 = arith.constant 0 : index
    %282 = vector.load %arg19[%c1_226, %c0_227, %c0_228] : memref<5x80x120xbf16, #tpu.memory_space<vmem>>, vector<1x80x120xbf16>
    %283 = vector.shape_cast %282 : vector<1x80x120xbf16> to vector<80x120xbf16>
    %284 = arith.truncf %281 : vector<1x80xf32> to vector<1x80xbf16>
    %cst_229 = arith.constant dense<0.000000e+00> : vector<1x120xf32>
    %285 = tpu.matmul %284, %283, %cst_229 {dimension_numbers = #tpu.dot_dimension_numbers<[1], [0], [0], [1], [0, 0, 1, 1], [], []>} : vector<1x80xbf16>, vector<80x120xbf16>, vector<1x120xf32> -> vector<1x120xf32>
    %286 = arith.addf %280, %285 : vector<1x120xf32>
    %c2_230 = arith.constant 2 : index
    %c0_231 = arith.constant 0 : index
    %287 = vector.load %arg29[%c2_230, %c0_231] : memref<10x80xf32, #tpu.memory_space<vmem>>, vector<1x80xf32>
    %c2_232 = arith.constant 2 : index
    %c0_233 = arith.constant 0 : index
    %c0_234 = arith.constant 0 : index
    %288 = vector.load %arg19[%c2_232, %c0_233, %c0_234] : memref<5x80x120xbf16, #tpu.memory_space<vmem>>, vector<1x80x120xbf16>
    %289 = vector.shape_cast %288 : vector<1x80x120xbf16> to vector<80x120xbf16>
    %290 = arith.truncf %287 : vector<1x80xf32> to vector<1x80xbf16>
    %cst_235 = arith.constant dense<0.000000e+00> : vector<1x120xf32>
    %291 = tpu.matmul %290, %289, %cst_235 {dimension_numbers = #tpu.dot_dimension_numbers<[1], [0], [0], [1], [0, 0, 1, 1], [], []>} : vector<1x80xbf16>, vector<80x120xbf16>, vector<1x120xf32> -> vector<1x120xf32>
    %292 = arith.addf %286, %291 : vector<1x120xf32>
    %c3_236 = arith.constant 3 : index
    %c0_237 = arith.constant 0 : index
    %293 = vector.load %arg29[%c3_236, %c0_237] : memref<10x80xf32, #tpu.memory_space<vmem>>, vector<1x80xf32>
    %c3_238 = arith.constant 3 : index
    %c0_239 = arith.constant 0 : index
    %c0_240 = arith.constant 0 : index
    %294 = vector.load %arg19[%c3_238, %c0_239, %c0_240] : memref<5x80x120xbf16, #tpu.memory_space<vmem>>, vector<1x80x120xbf16>
    %295 = vector.shape_cast %294 : vector<1x80x120xbf16> to vector<80x120xbf16>
    %296 = arith.truncf %293 : vector<1x80xf32> to vector<1x80xbf16>
    %cst_241 = arith.constant dense<0.000000e+00> : vector<1x120xf32>
    %297 = tpu.matmul %296, %295, %cst_241 {dimension_numbers = #tpu.dot_dimension_numbers<[1], [0], [0], [1], [0, 0, 1, 1], [], []>} : vector<1x80xbf16>, vector<80x120xbf16>, vector<1x120xf32> -> vector<1x120xf32>
    %298 = arith.addf %292, %297 : vector<1x120xf32>
    %c4_242 = arith.constant 4 : index
    %c0_243 = arith.constant 0 : index
    %299 = vector.load %arg29[%c4_242, %c0_243] : memref<10x80xf32, #tpu.memory_space<vmem>>, vector<1x80xf32>
    %c4_244 = arith.constant 4 : index
    %c0_245 = arith.constant 0 : index
    %c0_246 = arith.constant 0 : index
    %300 = vector.load %arg19[%c4_244, %c0_245, %c0_246] : memref<5x80x120xbf16, #tpu.memory_space<vmem>>, vector<1x80x120xbf16>
    %301 = vector.shape_cast %300 : vector<1x80x120xbf16> to vector<80x120xbf16>
    %302 = arith.truncf %299 : vector<1x80xf32> to vector<1x80xbf16>
    %cst_247 = arith.constant dense<0.000000e+00> : vector<1x120xf32>
    %303 = tpu.matmul %302, %301, %cst_247 {dimension_numbers = #tpu.dot_dimension_numbers<[1], [0], [0], [1], [0, 0, 1, 1], [], []>} : vector<1x80xbf16>, vector<80x120xbf16>, vector<1x120xf32> -> vector<1x120xf32>
    %304 = arith.addf %298, %303 : vector<1x120xf32>
    %c5_248 = arith.constant 5 : index
    %c0_249 = arith.constant 0 : index
    %305 = vector.load %arg29[%c5_248, %c0_249] : memref<10x80xf32, #tpu.memory_space<vmem>>, vector<1x80xf32>
    %c0_250 = arith.constant 0 : index
    %c0_251 = arith.constant 0 : index
    %c0_252 = arith.constant 0 : index
    %306 = vector.load %arg19[%c0_250, %c0_251, %c0_252] : memref<5x80x120xbf16, #tpu.memory_space<vmem>>, vector<1x80x120xbf16>
    %307 = vector.shape_cast %306 : vector<1x80x120xbf16> to vector<80x120xbf16>
    %308 = arith.truncf %305 : vector<1x80xf32> to vector<1x80xbf16>
    %cst_253 = arith.constant dense<0.000000e+00> : vector<1x120xf32>
    %309 = tpu.matmul %308, %307, %cst_253 {dimension_numbers = #tpu.dot_dimension_numbers<[1], [0], [0], [1], [0, 0, 1, 1], [], []>} : vector<1x80xbf16>, vector<80x120xbf16>, vector<1x120xf32> -> vector<1x120xf32>
    %c6 = arith.constant 6 : index
    %c0_254 = arith.constant 0 : index
    %310 = vector.load %arg29[%c6, %c0_254] : memref<10x80xf32, #tpu.memory_space<vmem>>, vector<1x80xf32>
    %c1_255 = arith.constant 1 : index
    %c0_256 = arith.constant 0 : index
    %c0_257 = arith.constant 0 : index
    %311 = vector.load %arg19[%c1_255, %c0_256, %c0_257] : memref<5x80x120xbf16, #tpu.memory_space<vmem>>, vector<1x80x120xbf16>
    %312 = vector.shape_cast %311 : vector<1x80x120xbf16> to vector<80x120xbf16>
    %313 = arith.truncf %310 : vector<1x80xf32> to vector<1x80xbf16>
    %cst_258 = arith.constant dense<0.000000e+00> : vector<1x120xf32>
    %314 = tpu.matmul %313, %312, %cst_258 {dimension_numbers = #tpu.dot_dimension_numbers<[1], [0], [0], [1], [0, 0, 1, 1], [], []>} : vector<1x80xbf16>, vector<80x120xbf16>, vector<1x120xf32> -> vector<1x120xf32>
    %315 = arith.addf %309, %314 : vector<1x120xf32>
    %c7 = arith.constant 7 : index
    %c0_259 = arith.constant 0 : index
    %316 = vector.load %arg29[%c7, %c0_259] : memref<10x80xf32, #tpu.memory_space<vmem>>, vector<1x80xf32>
    %c2_260 = arith.constant 2 : index
    %c0_261 = arith.constant 0 : index
    %c0_262 = arith.constant 0 : index
    %317 = vector.load %arg19[%c2_260, %c0_261, %c0_262] : memref<5x80x120xbf16, #tpu.memory_space<vmem>>, vector<1x80x120xbf16>
    %318 = vector.shape_cast %317 : vector<1x80x120xbf16> to vector<80x120xbf16>
    %319 = arith.truncf %316 : vector<1x80xf32> to vector<1x80xbf16>
    %cst_263 = arith.constant dense<0.000000e+00> : vector<1x120xf32>
    %320 = tpu.matmul %319, %318, %cst_263 {dimension_numbers = #tpu.dot_dimension_numbers<[1], [0], [0], [1], [0, 0, 1, 1], [], []>} : vector<1x80xbf16>, vector<80x120xbf16>, vector<1x120xf32> -> vector<1x120xf32>
    %321 = arith.addf %315, %320 : vector<1x120xf32>
    %c8 = arith.constant 8 : index
    %c0_264 = arith.constant 0 : index
    %322 = vector.load %arg29[%c8, %c0_264] : memref<10x80xf32, #tpu.memory_space<vmem>>, vector<1x80xf32>
    %c3_265 = arith.constant 3 : index
    %c0_266 = arith.constant 0 : index
    %c0_267 = arith.constant 0 : index
    %323 = vector.load %arg19[%c3_265, %c0_266, %c0_267] : memref<5x80x120xbf16, #tpu.memory_space<vmem>>, vector<1x80x120xbf16>
    %324 = vector.shape_cast %323 : vector<1x80x120xbf16> to vector<80x120xbf16>
    %325 = arith.truncf %322 : vector<1x80xf32> to vector<1x80xbf16>
    %cst_268 = arith.constant dense<0.000000e+00> : vector<1x120xf32>
    %326 = tpu.matmul %325, %324, %cst_268 {dimension_numbers = #tpu.dot_dimension_numbers<[1], [0], [0], [1], [0, 0, 1, 1], [], []>} : vector<1x80xbf16>, vector<80x120xbf16>, vector<1x120xf32> -> vector<1x120xf32>
    %327 = arith.addf %321, %326 : vector<1x120xf32>
    %c9 = arith.constant 9 : index
    %c0_269 = arith.constant 0 : index
    %328 = vector.load %arg29[%c9, %c0_269] : memref<10x80xf32, #tpu.memory_space<vmem>>, vector<1x80xf32>
    %c4_270 = arith.constant 4 : index
    %c0_271 = arith.constant 0 : index
    %c0_272 = arith.constant 0 : index
    %329 = vector.load %arg19[%c4_270, %c0_271, %c0_272] : memref<5x80x120xbf16, #tpu.memory_space<vmem>>, vector<1x80x120xbf16>
    %330 = vector.shape_cast %329 : vector<1x80x120xbf16> to vector<80x120xbf16>
    %331 = arith.truncf %328 : vector<1x80xf32> to vector<1x80xbf16>
    %cst_273 = arith.constant dense<0.000000e+00> : vector<1x120xf32>
    %332 = tpu.matmul %331, %330, %cst_273 {dimension_numbers = #tpu.dot_dimension_numbers<[1], [0], [0], [1], [0, 0, 1, 1], [], []>} : vector<1x80xbf16>, vector<80x120xbf16>, vector<1x120xf32> -> vector<1x120xf32>
    %333 = arith.addf %327, %332 : vector<1x120xf32>
    %c0_274 = arith.constant 0 : index
    %c0_275 = arith.constant 0 : index
    %334 = vector.load %arg20[%c0_274, %c0_275] : memref<1x120xf32, #tpu.memory_space<vmem>>, vector<1x120xf32>
    %c0_276 = arith.constant 0 : index
    %c0_277 = arith.constant 0 : index
    %335 = vector.load %arg21[%c0_276, %c0_277] : memref<1x120xf32, #tpu.memory_space<vmem>>, vector<1x120xf32>
    %336 = arith.addf %304, %333 : vector<1x120xf32>
    %cst_278 = arith.constant 2.000000e+00 : f32
    %337 = vector.broadcast %cst_278 : f32 to vector<1x120xf32>
    %338 = arith.divf %336, %337 : vector<1x120xf32>
    %339 = arith.subf %304, %338 : vector<1x120xf32>
    %340 = arith.mulf %339, %339 : vector<1x120xf32>
    %341 = arith.subf %333, %338 : vector<1x120xf32>
    %342 = arith.mulf %341, %341 : vector<1x120xf32>
    %343 = arith.addf %340, %342 : vector<1x120xf32>
    %cst_279 = arith.constant 2.000000e+00 : f32
    %344 = vector.broadcast %cst_279 : f32 to vector<1x120xf32>
    %345 = arith.divf %343, %344 : vector<1x120xf32>
    %cst_280 = arith.constant 9.99999974E-6 : f32
    %346 = vector.broadcast %cst_280 : f32 to vector<1x120xf32>
    %347 = arith.addf %345, %346 : vector<1x120xf32>
    %348 = math.rsqrt %347 : vector<1x120xf32>
    %349 = arith.mulf %334, %348 : vector<1x120xf32>
    %350 = arith.mulf %338, %349 : vector<1x120xf32>
    %351 = arith.subf %335, %350 : vector<1x120xf32>
    %352 = arith.mulf %304, %349 : vector<1x120xf32>
    %353 = arith.addf %352, %351 : vector<1x120xf32>
    %354 = arith.negf %353 : vector<1x120xf32>
    %355 = math.exp %354 : vector<1x120xf32>
    %cst_281 = arith.constant 1.000000e+00 : f32
    %356 = vector.broadcast %cst_281 : f32 to vector<1x120xf32>
    %357 = arith.addf %356, %355 : vector<1x120xf32>
    %358 = arith.divf %356, %357 : vector<1x120xf32>
    %359 = arith.mulf %333, %349 : vector<1x120xf32>
    %360 = arith.addf %359, %351 : vector<1x120xf32>
    %361 = arith.negf %360 : vector<1x120xf32>
    %362 = math.exp %361 : vector<1x120xf32>
    %cst_282 = arith.constant 1.000000e+00 : f32
    %363 = vector.broadcast %cst_282 : f32 to vector<1x120xf32>
    %364 = arith.addf %363, %362 : vector<1x120xf32>
    %365 = arith.divf %363, %364 : vector<1x120xf32>
    %c0_283 = arith.constant 0 : index
    %c0_284 = arith.constant 0 : index
    %366 = vector.load %arg22[%c0_283, %c0_284] : memref<120x84xbf16, #tpu.memory_space<vmem>>, vector<120x84xbf16>
    %367 = arith.truncf %358 : vector<1x120xf32> to vector<1x120xbf16>
    %cst_285 = arith.constant dense<0.000000e+00> : vector<1x84xf32>
    %368 = tpu.matmul %367, %366, %cst_285 {dimension_numbers = #tpu.dot_dimension_numbers<[1], [0], [0], [1], [0, 0, 1, 1], [], []>} : vector<1x120xbf16>, vector<120x84xbf16>, vector<1x84xf32> -> vector<1x84xf32>
    %c0_286 = arith.constant 0 : index
    %c0_287 = arith.constant 0 : index
    %369 = vector.load %arg22[%c0_286, %c0_287] : memref<120x84xbf16, #tpu.memory_space<vmem>>, vector<120x84xbf16>
    %370 = arith.truncf %365 : vector<1x120xf32> to vector<1x120xbf16>
    %cst_288 = arith.constant dense<0.000000e+00> : vector<1x84xf32>
    %371 = tpu.matmul %370, %369, %cst_288 {dimension_numbers = #tpu.dot_dimension_numbers<[1], [0], [0], [1], [0, 0, 1, 1], [], []>} : vector<1x120xbf16>, vector<120x84xbf16>, vector<1x84xf32> -> vector<1x84xf32>
    %c0_289 = arith.constant 0 : index
    %c0_290 = arith.constant 0 : index
    %372 = vector.load %arg23[%c0_289, %c0_290] : memref<1x84xf32, #tpu.memory_space<vmem>>, vector<1x84xf32>
    %c0_291 = arith.constant 0 : index
    %c0_292 = arith.constant 0 : index
    %373 = vector.load %arg24[%c0_291, %c0_292] : memref<1x84xf32, #tpu.memory_space<vmem>>, vector<1x84xf32>
    %374 = arith.addf %368, %371 : vector<1x84xf32>
    %cst_293 = arith.constant 2.000000e+00 : f32
    %375 = vector.broadcast %cst_293 : f32 to vector<1x84xf32>
    %376 = arith.divf %374, %375 : vector<1x84xf32>
    %377 = arith.subf %368, %376 : vector<1x84xf32>
    %378 = arith.mulf %377, %377 : vector<1x84xf32>
    %379 = arith.subf %371, %376 : vector<1x84xf32>
    %380 = arith.mulf %379, %379 : vector<1x84xf32>
    %381 = arith.addf %378, %380 : vector<1x84xf32>
    %cst_294 = arith.constant 2.000000e+00 : f32
    %382 = vector.broadcast %cst_294 : f32 to vector<1x84xf32>
    %383 = arith.divf %381, %382 : vector<1x84xf32>
    %cst_295 = arith.constant 9.99999974E-6 : f32
    %384 = vector.broadcast %cst_295 : f32 to vector<1x84xf32>
    %385 = arith.addf %383, %384 : vector<1x84xf32>
    %386 = math.rsqrt %385 : vector<1x84xf32>
    %387 = arith.mulf %372, %386 : vector<1x84xf32>
    %388 = arith.mulf %376, %387 : vector<1x84xf32>
    %389 = arith.subf %373, %388 : vector<1x84xf32>
    %390 = arith.mulf %368, %387 : vector<1x84xf32>
    %391 = arith.addf %390, %389 : vector<1x84xf32>
    %392 = arith.negf %391 : vector<1x84xf32>
    %393 = math.exp %392 : vector<1x84xf32>
    %cst_296 = arith.constant 1.000000e+00 : f32
    %394 = vector.broadcast %cst_296 : f32 to vector<1x84xf32>
    %395 = arith.addf %394, %393 : vector<1x84xf32>
    %396 = arith.divf %394, %395 : vector<1x84xf32>
    %397 = arith.mulf %371, %387 : vector<1x84xf32>
    %398 = arith.addf %397, %389 : vector<1x84xf32>
    %399 = arith.negf %398 : vector<1x84xf32>
    %400 = math.exp %399 : vector<1x84xf32>
    %cst_297 = arith.constant 1.000000e+00 : f32
    %401 = vector.broadcast %cst_297 : f32 to vector<1x84xf32>
    %402 = arith.addf %401, %400 : vector<1x84xf32>
    %403 = arith.divf %401, %402 : vector<1x84xf32>
    %c0_298 = arith.constant 0 : index
    %c0_299 = arith.constant 0 : index
    %404 = vector.load %arg25[%c0_298, %c0_299] : memref<84x10xbf16, #tpu.memory_space<vmem>>, vector<84x10xbf16>
    %405 = arith.truncf %396 : vector<1x84xf32> to vector<1x84xbf16>
    %cst_300 = arith.constant dense<0.000000e+00> : vector<1x10xf32>
    %406 = tpu.matmul %405, %404, %cst_300 {dimension_numbers = #tpu.dot_dimension_numbers<[1], [0], [0], [1], [0, 0, 1, 1], [], []>} : vector<1x84xbf16>, vector<84x10xbf16>, vector<1x10xf32> -> vector<1x10xf32>
    %c0_301 = arith.constant 0 : index
    %c0_302 = arith.constant 0 : index
    %407 = vector.load %arg26[%c0_301, %c0_302] : memref<1x10xf32, #tpu.memory_space<vmem>>, vector<1x10xf32>
    %408 = arith.addf %406, %407 : vector<1x10xf32>
    %c0_303 = arith.constant 0 : index
    %c0_304 = arith.constant 0 : index
    %409 = vector.load %arg27[%c0_303, %c0_304] : memref<2x10xf32, #tpu.memory_space<vmem>>, vector<1x10xf32>
    tpu.vector_store %arg27[%c0_303, %c0_304], %408 {strides = array<i32>} : memref<2x10xf32, #tpu.memory_space<vmem>>, vector<1x10xf32>,
    %c0_305 = arith.constant 0 : index
    %c0_306 = arith.constant 0 : index
    %410 = vector.load %arg25[%c0_305, %c0_306] : memref<84x10xbf16, #tpu.memory_space<vmem>>, vector<84x10xbf16>
    %411 = arith.truncf %403 : vector<1x84xf32> to vector<1x84xbf16>
    %cst_307 = arith.constant dense<0.000000e+00> : vector<1x10xf32>
    %412 = tpu.matmul %411, %410, %cst_307 {dimension_numbers = #tpu.dot_dimension_numbers<[1], [0], [0], [1], [0, 0, 1, 1], [], []>} : vector<1x84xbf16>, vector<84x10xbf16>, vector<1x10xf32> -> vector<1x10xf32>
    %c0_308 = arith.constant 0 : index
    %c0_309 = arith.constant 0 : index
    %413 = vector.load %arg26[%c0_308, %c0_309] : memref<1x10xf32, #tpu.memory_space<vmem>>, vector<1x10xf32>
    %414 = arith.addf %412, %413 : vector<1x10xf32>
    %c1_310 = arith.constant 1 : index
    %c0_311 = arith.constant 0 : index
    %415 = vector.load %arg27[%c1_310, %c0_311] : memref<2x10xf32, #tpu.memory_space<vmem>>, vector<1x10xf32>
    tpu.vector_store %arg27[%c1_310, %c0_311], %414 {strides = array<i32>} : memref<2x10xf32, #tpu.memory_space<vmem>>, vector<1x10xf32>,
    return
  }
}

</mosaic_0001>

<llo_original>
// kernel: lenet_forward.1
$region0: #{lenet_forward.1}
  #allocation0 [shape = 'u32[]', space=smem, size = 0x4, offset = 0x4, fixed_abs, tag = 'smem constant byte address 0x4 - core index']
  #allocation1 [shape = 'u32[144,128]{1,0:T(1,128)}', space=vmem, size = 0x12000, scoped, tag = 'internal scratch']
  #allocation2 [shape = 'f32[28,84]{1,0:T(8,128)}', space=vmem, size = 0x4000, scoped, tag = 'scratch operand']
  #allocation3 [shape = 'f32[10,80]{1,0:T(8,128)}', space=vmem, size = 0x2000, scoped, tag = 'scratch operand']
  %s0 = inlined_call_operand.vmem [shape: f32[2,32,32], index: 0, kind: input, shape index: {}]
  %s1 = inlined_call_operand.vmem [shape: bf16[5,32,168], index: 1, kind: input, shape index: {}]
  %s2 = inlined_call_operand.vmem [shape: f32[168,6], index: 2, kind: input, shape index: {}]
  %s3 = inlined_call_operand.vmem [shape: f32[6,168], index: 3, kind: input, shape index: {}]
  %s4 = inlined_call_operand.vmem [shape: f32[168,84], index: 4, kind: input, shape index: {}]
  %s5 = inlined_call_operand.vmem [shape: f32[168,84], index: 5, kind: input, shape index: {}]
  %s6 = inlined_call_operand.vmem [shape: f32[14,28], index: 6, kind: input, shape index: {}]
  %s7 = inlined_call_operand.vmem [shape: f32[14,28], index: 7, kind: input, shape index: {}]
  %s8 = inlined_call_operand.vmem [shape: f32[1,6], index: 8, kind: input, shape index: {}]
  %s9 = inlined_call_operand.vmem [shape: f32[1,6], index: 9, kind: input, shape index: {}]
  %s10 = inlined_call_operand.vmem [shape: bf16[5,84,160], index: 10, kind: input, shape index: {}]
  %s11 = inlined_call_operand.vmem [shape: f32[160,16], index: 11, kind: input, shape index: {}]
  %s12 = inlined_call_operand.vmem [shape: f32[16,160], index: 12, kind: input, shape index: {}]
  %s13 = inlined_call_operand.vmem [shape: f32[160,80], index: 13, kind: input, shape index: {}]
  %s14 = inlined_call_operand.vmem [shape: f32[160,80], index: 14, kind: input, shape index: {}]
  %s15 = inlined_call_operand.vmem [shape: f32[5,10], index: 15, kind: input, shape index: {}]
  %s16 = inlined_call_operand.vmem [shape: f32[5,10], index: 16, kind: input, shape index: {}]
  %s17 = inlined_call_operand.vmem [shape: f32[1,16], index: 17, kind: input, shape index: {}]
  %s18 = inlined_call_operand.vmem [shape: f32[1,16], index: 18, kind: input, shape index: {}]
  %s19 = inlined_call_operand.vmem [shape: bf16[5,80,120], index: 19, kind: input, shape index: {}]
  %s20 = inlined_call_operand.vmem [shape: f32[1,120], index: 20, kind: input, shape index: {}]
  %s21 = inlined_call_operand.vmem [shape: f32[1,120], index: 21, kind: input, shape index: {}]
  %s22 = inlined_call_operand.vmem [shape: bf16[120,84], index: 22, kind: input, shape index: {}]
  %s23 = inlined_call_operand.vmem [shape: f32[1,84], index: 23, kind: input, shape index: {}]
  %s24 = inlined_call_operand.vmem [shape: f32[1,84], index: 24, kind: input, shape index: {}]
  %s25 = inlined_call_operand.vmem [shape: bf16[84,10], index: 25, kind: input, shape index: {}]
  %s26 = inlined_call_operand.vmem [shape: f32[1,10], index: 26, kind: input, shape index: {}]
  %s27 = inlined_call_operand.hbm [shape: f32[2,10], index: 27, kind: output, shape index: {}]
  %s28 = sld [smem:[#allocation0]]
  $region118: #{lenet_forward.1} parent=0
    _
  %s30 = ssub.s32 1, %s28
  %s31 = scalar_select 0, %s30, %s28
  $region1: #{lenet_forward.1} parent=0
    #allocation4 [shape = 'u8[1024]{0}', space=vmem, size = 0x400, scoped, tag = 'output window, operand 0, single buffered']
    #allocation5 [shape = 's32[1]{0}', space=sflag, size = 0x4, scoped, tag = 'scoped memory for lenet_forward.1']
    %32 = vsyncpa [#allocation5], 0
    // Predicated region
    $region2: #{lenet_forward.1} parent=1 // pred_check
      _
    $region3: #{lenet_forward.1} parent=1 // pred_check_branch
      %34 = sbr.rel (0) target = $region5
    $region4: #{lenet_forward.1} parent=1 // pred_region
      _
    $region5: #{lenet_forward.1} parent=1 // pred_fallthru
      _
    // Predicated region
    $region6: #{lenet_forward.1} parent=1 // pred_check
      _
    $region7: #{lenet_forward.1} parent=1 // pred_check_branch
      %36 = sbr.rel (0) target = $region9
    $region8: #{lenet_forward.1} parent=1 // pred_region
      _
    $region9: #{lenet_forward.1} parent=1 // pred_fallthru
      _
    // Predicated region
    $region10: #{lenet_forward.1} parent=1 // pred_check
      _
    $region11: #{lenet_forward.1} parent=1 // pred_check_branch
      %38 = sbr.rel (0) target = $region13
    $region12: #{lenet_forward.1} parent=1 // pred_region
      _
    $region13: #{lenet_forward.1} parent=1 // pred_fallthru
      _
    // Predicated region
    $region14: #{lenet_forward.1} parent=1 // pred_check
      _
    $region15: #{lenet_forward.1} parent=1 // pred_check_branch
      %40 = sbr.rel (0) target = $region17
    $region16: #{lenet_forward.1} parent=1 // pred_region
      _
    $region17: #{lenet_forward.1} parent=1 // pred_fallthru
      _
    // Predicated region
    $region18: #{lenet_forward.1} parent=1 // pred_check
      _
    $region19: #{lenet_forward.1} parent=1 // pred_check_branch
      %42 = sbr.rel (0) target = $region21
    $region20: #{lenet_forward.1} parent=1 // pred_region
      _
    $region21: #{lenet_forward.1} parent=1 // pred_fallthru
      _
    // Predicated region
    $region22: #{lenet_forward.1} parent=1 // pred_check
      _
    $region23: #{lenet_forward.1} parent=1 // pred_check_branch
      %44 = sbr.rel (0) target = $region25
    $region24: #{lenet_forward.1} parent=1 // pred_region
      _
    $region25: #{lenet_forward.1} parent=1 // pred_fallthru
      _
    // Predicated region
    $region26: #{lenet_forward.1} parent=1 // pred_check
      _
    $region27: #{lenet_forward.1} parent=1 // pred_check_branch
      %46 = sbr.rel (0) target = $region29
    $region28: #{lenet_forward.1} parent=1 // pred_region
      _
    $region29: #{lenet_forward.1} parent=1 // pred_fallthru
      _
    // Predicated region
    $region30: #{lenet_forward.1} parent=1 // pred_check
      _
    $region31: #{lenet_forward.1} parent=1 // pred_check_branch
      %48 = sbr.rel (0) target = $region33
    $region32: #{lenet_forward.1} parent=1 // pred_region
      _
    $region33: #{lenet_forward.1} parent=1 // pred_fallthru
      _
    // Predicated region
    $region34: #{lenet_forward.1} parent=1 // pred_check
      _
    $region35: #{lenet_forward.1} parent=1 // pred_check_branch
      %50 = sbr.rel (0) target = $region37
    $region36: #{lenet_forward.1} parent=1 // pred_region
      _
    $region37: #{lenet_forward.1} parent=1 // pred_fallthru
      _
    // Predicated region
    $region38: #{lenet_forward.1} parent=1 // pred_check
      _
    $region39: #{lenet_forward.1} parent=1 // pred_check_branch
      %52 = sbr.rel (0) target = $region41
    $region40: #{lenet_forward.1} parent=1 // pred_region
      _
    $region41: #{lenet_forward.1} parent=1 // pred_fallthru
      _
    // Predicated region
    $region42: #{lenet_forward.1} parent=1 // pred_check
      _
    $region43: #{lenet_forward.1} parent=1 // pred_check_branch
      %54 = sbr.rel (0) target = $region45
    $region44: #{lenet_forward.1} parent=1 // pred_region
      _
    $region45: #{lenet_forward.1} parent=1 // pred_fallthru
      _
    // Predicated region
    $region46: #{lenet_forward.1} parent=1 // pred_check
      _
    $region47: #{lenet_forward.1} parent=1 // pred_check_branch
      %56 = sbr.rel (0) target = $region49
    $region48: #{lenet_forward.1} parent=1 // pred_region
      _
    $region49: #{lenet_forward.1} parent=1 // pred_fallthru
      _
    // Predicated region
    $region50: #{lenet_forward.1} parent=1 // pred_check
      _
    $region51: #{lenet_forward.1} parent=1 // pred_check_branch
      %58 = sbr.rel (0) target = $region53
    $region52: #{lenet_forward.1} parent=1 // pred_region
      _
    $region53: #{lenet_forward.1} parent=1 // pred_fallthru
      _
    // Predicated region
    $region54: #{lenet_forward.1} parent=1 // pred_check
      _
    $region55: #{lenet_forward.1} parent=1 // pred_check_branch
      %60 = sbr.rel (0) target = $region57
    $region56: #{lenet_forward.1} parent=1 // pred_region
      _
    $region57: #{lenet_forward.1} parent=1 // pred_fallthru
      _
    // Predicated region
    $region58: #{lenet_forward.1} parent=1 // pred_check
      _
    $region59: #{lenet_forward.1} parent=1 // pred_check_branch
      %62 = sbr.rel (0) target = $region61
    $region60: #{lenet_forward.1} parent=1 // pred_region
      _
    $region61: #{lenet_forward.1} parent=1 // pred_fallthru
      _
    // Predicated region
    $region62: #{lenet_forward.1} parent=1 // pred_check
      _
    $region63: #{lenet_forward.1} parent=1 // pred_check_branch
      %64 = sbr.rel (0) target = $region65
    $region64: #{lenet_forward.1} parent=1 // pred_region
      _
    $region65: #{lenet_forward.1} parent=1 // pred_fallthru
      _
    // Predicated region
    $region66: #{lenet_forward.1} parent=1 // pred_check
      _
    $region67: #{lenet_forward.1} parent=1 // pred_check_branch
      %66 = sbr.rel (0) target = $region69
    $region68: #{lenet_forward.1} parent=1 // pred_region
      _
    $region69: #{lenet_forward.1} parent=1 // pred_fallthru
      _
    // Predicated region
    $region70: #{lenet_forward.1} parent=1 // pred_check
      _
    $region71: #{lenet_forward.1} parent=1 // pred_check_branch
      %68 = sbr.rel (0) target = $region73
    $region72: #{lenet_forward.1} parent=1 // pred_region
      _
    $region73: #{lenet_forward.1} parent=1 // pred_fallthru
      _
    // Predicated region
    $region74: #{lenet_forward.1} parent=1 // pred_check
      _
    $region75: #{lenet_forward.1} parent=1 // pred_check_branch
      %70 = sbr.rel (0) target = $region77
    $region76: #{lenet_forward.1} parent=1 // pred_region
      _
    $region77: #{lenet_forward.1} parent=1 // pred_fallthru
      _
    // Predicated region
    $region78: #{lenet_forward.1} parent=1 // pred_check
      _
    $region79: #{lenet_forward.1} parent=1 // pred_check_branch
      %72 = sbr.rel (0) target = $region81
    $region80: #{lenet_forward.1} parent=1 // pred_region
      _
    $region81: #{lenet_forward.1} parent=1 // pred_fallthru
      _
    // Predicated region
    $region82: #{lenet_forward.1} parent=1 // pred_check
      _
    $region83: #{lenet_forward.1} parent=1 // pred_check_branch
      %74 = sbr.rel (0) target = $region85
    $region84: #{lenet_forward.1} parent=1 // pred_region
      _
    $region85: #{lenet_forward.1} parent=1 // pred_fallthru
      _
    // Predicated region
    $region86: #{lenet_forward.1} parent=1 // pred_check
      _
    $region87: #{lenet_forward.1} parent=1 // pred_check_branch
      %76 = sbr.rel (0) target = $region89
    $region88: #{lenet_forward.1} parent=1 // pred_region
      _
    $region89: #{lenet_forward.1} parent=1 // pred_fallthru
      _
    // Predicated region
    $region90: #{lenet_forward.1} parent=1 // pred_check
      _
    $region91: #{lenet_forward.1} parent=1 // pred_check_branch
      %78 = sbr.rel (0) target = $region93
    $region92: #{lenet_forward.1} parent=1 // pred_region
      _
    $region93: #{lenet_forward.1} parent=1 // pred_fallthru
      _
    // Predicated region
    $region94: #{lenet_forward.1} parent=1 // pred_check
      _
    $region95: #{lenet_forward.1} parent=1 // pred_check_branch
      %80 = sbr.rel (0) target = $region97
    $region96: #{lenet_forward.1} parent=1 // pred_region
      _
    $region97: #{lenet_forward.1} parent=1 // pred_fallthru
      _
    // Predicated region
    $region98: #{lenet_forward.1} parent=1 // pred_check
      _
    $region99: #{lenet_forward.1} parent=1 // pred_check_branch
      %82 = sbr.rel (0) target = $region101
    $region100: #{lenet_forward.1} parent=1 // pred_region
      _
    $region101: #{lenet_forward.1} parent=1 // pred_fallthru
      _
    // Predicated region
    $region102: #{lenet_forward.1} parent=1 // pred_check
      _
    $region103: #{lenet_forward.1} parent=1 // pred_check_branch
      %84 = sbr.rel (0) target = $region105
    $region104: #{lenet_forward.1} parent=1 // pred_region
      _
    $region105: #{lenet_forward.1} parent=1 // pred_fallthru
      _
    // Predicated region
    $region106: #{lenet_forward.1} parent=1 // pred_check
      _
    $region107: #{lenet_forward.1} parent=1 // pred_check_branch
      %86 = sbr.rel (0) target = $region109
    $region108: #{lenet_forward.1} parent=1 // pred_region
      _
    $region109: #{lenet_forward.1} parent=1 // pred_fallthru
      _
    %v88 = vld [vmem:[%s0] sm:$0xff]
    %v89 = vld [vmem:[%s0 + $0x8] sm:$0xff]
    %v90 = vld [vmem:[%s0 + $0x10] sm:$0xff]
    %v91 = vld [vmem:[%s0 + $0x18] sm:$0xf]
    %v92 = vld [vmem:[%s1] sm:$0xff]
    %v93 = vld [vmem:[%s1 + $0x8] sm:$0xff]
    %v94 = vld [vmem:[%s1 + $0x10] sm:$0xff]
    %v95 = vld [vmem:[%s1 + $0x18] sm:$0xff]
    %v96 = vpack.c.bf16 %v89, %v88
    %v97 = vpack.c.bf16 %v91, %v90
    %v98 = vld [vmem:[%s0 + $0x1] sm:$0xff]
    %v99 = vld [vmem:[%s0 + $0x9] sm:$0xff]
    %v100 = vld [vmem:[%s0 + $0x11] sm:$0xff]
    %v101 = vld [vmem:[%s0 + $0x19] sm:$0xf]
    %s102 = scalar_lea.vmem %s1, 32
    %v103 = vld [vmem:[%s102] sm:$0xff]
    %v104 = vld [vmem:[%s102 + $0x8] sm:$0xff]
    %v105 = vld [vmem:[%s102 + $0x10] sm:$0xff]
    %v106 = vld [vmem:[%s102 + $0x18] sm:$0xff]
    %v107 = vpack.c.bf16 %v99, %v98
    %v108 = vpack.c.bf16 %v101, %v100
    %v113 = vunpack.c.l.b16 %v103
    %v114 = vunpack.c.h.b16 %v103
    %v115 = vunpack.c.l.b16 %v104
    %v116 = vunpack.c.h.b16 %v104
    %v117 = vunpack.c.l.b16 %v105
    %v118 = vunpack.c.h.b16 %v105
    %v119 = vunpack.c.l.b16 %v106
    %v120 = vunpack.c.h.b16 %v106
    %v121 = vpack.c.b16 %v115, %v113
    %v122 = vpack.c.b16 %v116, %v114
    %v123 = vpack.c.b16 %v119, %v117
    %v124 = vpack.c.b16 %v120, %v118
    %vm129 = vcmask 261120
    %v131 = vsel %vm129, %v107, 0
    %v134 = vsel %vm129, %v108, 0
    %136 = vmatprep.subr.bf16.mxu0 0
    %137 = vmatpush1.bf16.msra.mxu0 0
    %138 = vmatprep.subr.bf16.mxu0 0
    %139 = vmatpush1.bf16.msra.mxu0 0
    %140 = vmatprep.subr.bf16.mxu0 0
    %141 = vmatpush1.bf16.msra.mxu0 0
    %142 = vmatprep.subr.bf16.mxu0 0
    %143 = vmatpush1.bf16.msra.mxu0 0
    %144 = vmatprep.subr.bf16.mxu0 0
    %145 = vmatpush1.bf16.msra.mxu0 0
    %146 = vmatprep.subr.bf16.mxu0 0
    %147 = vmatpush1.bf16.msra.mxu0 0
    %148 = vmatprep.subr.bf16.mxu0 %v124
    %149 = vmatpush1.bf16.msra.mxu0 %v123
    %150 = vmatprep.subr.bf16.mxu0 %v122
    %151 = vmatpush1.bf16.msra.mxu0 %v121
    %152 = vmatprep.subr.bf16.mxu0 0
    %153 = vmatpush2.bf16.msra.mxu0 0
    %154 = vmatprep.subr.bf16.mxu0 0
    %155 = vmatpush2.bf16.msra.mxu0 0
    %156 = vmatprep.subr.bf16.mxu0 0
    %157 = vmatpush2.bf16.msra.mxu0 0
    %158 = vmatprep.subr.bf16.mxu0 0
    %159 = vmatpush2.bf16.msra.mxu0 0
    %160 = vmatprep.subr.bf16.mxu0 0
    %161 = vmatpush2.bf16.msra.mxu0 0
    %162 = vmatprep.subr.bf16.mxu0 0
    %163 = vmatpush2.bf16.msra.mxu0 0
    %164 = vmatprep.subr.bf16.mxu0 0
    %165 = vmatpush2.bf16.msra.mxu0 0
    %166 = vmatprep.subr.bf16.mxu0 0
    %167 = vmatpush2.bf16.msra.mxu0 0
    %168 = vmatprep.mubr.bf16.mxu0 0
    %169 = vmatmul.mubr.bf16.gmra.mxu0 %v131
    %v170 = vpop.f32.mrf.mxu0
    %v171 = vadd.f32 0.0, %v170
    %v172 = vpop.f32.mrf.mxu0
    %v173 = vadd.f32 0.0, %v172
    %v174 = vpop.f32.mrf.mxu0
    %v175 = vadd.f32 0.0, %v174
    %v176 = vpop.f32.mrf.mxu0
    %v177 = vadd.f32 0.0, %v176
    %178 = vmatprep.mubr.bf16.mxu0 0
    %179 = vmatmul.mubr.bf16.gmra.mxu0 %v134
    %v180 = vpop.f32.mrf.mxu0
    %v181 = vadd.f32 0.0, %v180
    %v182 = vpop.f32.mrf.mxu0
    %v183 = vadd.f32 0.0, %v182
    %v184 = vpop.f32.mrf.mxu0
    %v185 = vadd.f32 0.0, %v184
    %v186 = vpop.f32.mrf.mxu0
    %v187 = vadd.f32 0.0, %v186
    %188 = vdwg.mxu0
    %v193 = vunpack.c.l.b16 %v92
    %v194 = vunpack.c.h.b16 %v92
    %v195 = vunpack.c.l.b16 %v93
    %v196 = vunpack.c.h.b16 %v93
    %v197 = vunpack.c.l.b16 %v94
    %v198 = vunpack.c.h.b16 %v94
    %v199 = vunpack.c.l.b16 %v95
    %v200 = vunpack.c.h.b16 %v95
    %v201 = vpack.c.b16 %v195, %v193
    %v202 = vpack.c.b16 %v196, %v194
    %v203 = vpack.c.b16 %v199, %v197
    %v204 = vpack.c.b16 %v200, %v198
    %v210 = vsel %vm129, %v96, 0
    %v213 = vsel %vm129, %v97, 0
    %215 = vmatprep.subr.bf16.mxu0 0
    %216 = vmatpush1.bf16.msra.mxu0 0
    %217 = vmatprep.subr.bf16.mxu0 0
    %218 = vmatpush1.bf16.msra.mxu0 0
    %219 = vmatprep.subr.bf16.mxu0 0
    %220 = vmatpush1.bf16.msra.mxu0 0
    %221 = vmatprep.subr.bf16.mxu0 0
    %222 = vmatpush1.bf16.msra.mxu0 0
    %223 = vmatprep.subr.bf16.mxu0 0
    %224 = vmatpush1.bf16.msra.mxu0 0
    %225 = vmatprep.subr.bf16.mxu0 0
    %226 = vmatpush1.bf16.msra.mxu0 0
    %227 = vmatprep.subr.bf16.mxu0 %v204
    %228 = vmatpush1.bf16.msra.mxu0 %v203
    %229 = vmatprep.subr.bf16.mxu0 %v202
    %230 = vmatpush1.bf16.msra.mxu0 %v201
    %231 = vmatprep.subr.bf16.mxu0 0
    %232 = vmatpush2.bf16.msra.mxu0 0
    %233 = vmatprep.subr.bf16.mxu0 0
    %234 = vmatpush2.bf16.msra.mxu0 0
    %235 = vmatprep.subr.bf16.mxu0 0
    %236 = vmatpush2.bf16.msra.mxu0 0
    %237 = vmatprep.subr.bf16.mxu0 0
    %238 = vmatpush2.bf16.msra.mxu0 0
    %239 = vmatprep.subr.bf16.mxu0 0
    %240 = vmatpush2.bf16.msra.mxu0 0
    %241 = vmatprep.subr.bf16.mxu0 0
    %242 = vmatpush2.bf16.msra.mxu0 0
    %243 = vmatprep.subr.bf16.mxu0 0
    %244 = vmatpush2.bf16.msra.mxu0 0
    %245 = vmatprep.subr.bf16.mxu0 0
    %246 = vmatpush2.bf16.msra.mxu0 0
    %247 = vmatprep.mubr.bf16.mxu0 0
    %248 = vmatmul.mubr.bf16.gmra.mxu0 %v210
    %v249 = vpop.f32.mrf.mxu0
    %v250 = vadd.f32 %v171, %v249
    %v251 = vpop.f32.mrf.mxu0
    %v252 = vadd.f32 %v173, %v251
    %v253 = vpop.f32.mrf.mxu0
    %v254 = vadd.f32 %v175, %v253
    %v255 = vpop.f32.mrf.mxu0
    %v256 = vadd.f32 %v177, %v255
    %257 = vmatprep.mubr.bf16.mxu0 0
    %258 = vmatmul.mubr.bf16.gmra.mxu0 %v213
    %v259 = vpop.f32.mrf.mxu0
    %v260 = vadd.f32 %v181, %v259
    %v261 = vpop.f32.mrf.mxu0
    %v262 = vadd.f32 %v183, %v261
    %v263 = vpop.f32.mrf.mxu0
    %v264 = vadd.f32 %v185, %v263
    %v265 = vpop.f32.mrf.mxu0
    %v266 = vadd.f32 %v187, %v265
    %267 = vdwg.mxu0
    %v268 = vld [vmem:[%s0 + $0x2] sm:$0xff]
    %v269 = vld [vmem:[%s0 + $0xa] sm:$0xff]
    %v270 = vld [vmem:[%s0 + $0x12] sm:$0xff]
    %v271 = vld [vmem:[%s0 + $0x1a] sm:$0xf]
    %s272 = scalar_lea.vmem %s1, 64
    %v273 = vld [vmem:[%s272] sm:$0xff]
    %v274 = vld [vmem:[%s272 + $0x8] sm:$0xff]
    %v275 = vld [vmem:[%s272 + $0x10] sm:$0xff]
    %v276 = vld [vmem:[%s272 + $0x18] sm:$0xff]
    %v277 = vpack.c.bf16 %v269, %v268
    %v278 = vpack.c.bf16 %v271, %v270
    %v283 = vunpack.c.l.b16 %v273
    %v284 = vunpack.c.h.b16 %v273
    %v285 = vunpack.c.l.b16 %v274
    %v286 = vunpack.c.h.b16 %v274
    %v287 = vunpack.c.l.b16 %v275
    %v288 = vunpack.c.h.b16 %v275
    %v289 = vunpack.c.l.b16 %v276
    %v290 = vunpack.c.h.b16 %v276
    %v291 = vpack.c.b16 %v285, %v283
    %v292 = vpack.c.b16 %v286, %v284
    %v293 = vpack.c.b16 %v289, %v287
    %v294 = vpack.c.b16 %v290, %v288
    %v300 = vsel %vm129, %v277, 0
    %v303 = vsel %vm129, %v278, 0
    %305 = vmatprep.subr.bf16.mxu0 0
    %306 = vmatpush1.bf16.msra.mxu0 0
    %307 = vmatprep.subr.bf16.mxu0 0
    %308 = vmatpush1.bf16.msra.mxu0 0
    %309 = vmatprep.subr.bf16.mxu0 0
    %310 = vmatpush1.bf16.msra.mxu0 0
    %311 = vmatprep.subr.bf16.mxu0 0
    %312 = vmatpush1.bf16.msra.mxu0 0
    %313 = vmatprep.subr.bf16.mxu0 0
    %314 = vmatpush1.bf16.msra.mxu0 0
    %315 = vmatprep.subr.bf16.mxu0 0
    %316 = vmatpush1.bf16.msra.mxu0 0
    %317 = vmatprep.subr.bf16.mxu0 %v294
    %318 = vmatpush1.bf16.msra.mxu0 %v293
    %319 = vmatprep.subr.bf16.mxu0 %v292
    %320 = vmatpush1.bf16.msra.mxu0 %v291
    %321 = vmatprep.subr.bf16.mxu0 0
    %322 = vmatpush2.bf16.msra.mxu0 0
    %323 = vmatprep.subr.bf16.mxu0 0
    %324 = vmatpush2.bf16.msra.mxu0 0
    %325 = vmatprep.subr.bf16.mxu0 0
    %326 = vmatpush2.bf16.msra.mxu0 0
    %327 = vmatprep.subr.bf16.mxu0 0
    %328 = vmatpush2.bf16.msra.mxu0 0
    %329 = vmatprep.subr.bf16.mxu0 0
    %330 = vmatpush2.bf16.msra.mxu0 0
    %331 = vmatprep.subr.bf16.mxu0 0
    %332 = vmatpush2.bf16.msra.mxu0 0
    %333 = vmatprep.subr.bf16.mxu0 0
    %334 = vmatpush2.bf16.msra.mxu0 0
    %335 = vmatprep.subr.bf16.mxu0 0
    %336 = vmatpush2.bf16.msra.mxu0 0
    %337 = vmatprep.mubr.bf16.mxu0 0
    %338 = vmatmul.mubr.bf16.gmra.mxu0 %v300
    %v339 = vpop.f32.mrf.mxu0
    %v340 = vadd.f32 0.0, %v339
    %v341 = vpop.f32.mrf.mxu0
    %v342 = vadd.f32 0.0, %v341
    %v343 = vpop.f32.mrf.mxu0
    %v344 = vadd.f32 0.0, %v343
    %v345 = vpop.f32.mrf.mxu0
    %v346 = vadd.f32 0.0, %v345
    %347 = vmatprep.mubr.bf16.mxu0 0
    %348 = vmatmul.mubr.bf16.gmra.mxu0 %v303
    %v349 = vpop.f32.mrf.mxu0
    %v350 = vadd.f32 0.0, %v349
    %v351 = vpop.f32.mrf.mxu0
    %v352 = vadd.f32 0.0, %v351
    %v353 = vpop.f32.mrf.mxu0
    %v354 = vadd.f32 0.0, %v353
    %v355 = vpop.f32.mrf.mxu0
    %v356 = vadd.f32 0.0, %v355
    %357 = vdwg.mxu0
    %v358 = vadd.f32 %v250, %v340
    %v359 = vadd.f32 %v252, %v342
    %v360 = vadd.f32 %v254, %v344
    %v361 = vadd.f32 %v256, %v346
    %v362 = vadd.f32 %v260, %v350
    %v363 = vadd.f32 %v262, %v352
    %v364 = vadd.f32 %v264, %v354
    %v365 = vadd.f32 %v266, %v356
    %v366 = vld [vmem:[%s0 + $0x3] sm:$0xff]
    %v367 = vld [vmem:[%s0 + $0xb] sm:$0xff]
    %v368 = vld [vmem:[%s0 + $0x13] sm:$0xff]
    %v369 = vld [vmem:[%s0 + $0x1b] sm:$0xf]
    %s370 = scalar_lea.vmem %s1, 96
    %v371 = vld [vmem:[%s370] sm:$0xff]
    %v372 = vld [vmem:[%s370 + $0x8] sm:$0xff]
    %v373 = vld [vmem:[%s370 + $0x10] sm:$0xff]
    %v374 = vld [vmem:[%s370 + $0x18] sm:$0xff]
    %v375 = vpack.c.bf16 %v367, %v366
    %v376 = vpack.c.bf16 %v369, %v368
    %v381 = vunpack.c.l.b16 %v371
    %v382 = vunpack.c.h.b16 %v371
    %v383 = vunpack.c.l.b16 %v372
    %v384 = vunpack.c.h.b16 %v372
    %v385 = vunpack.c.l.b16 %v373
    %v386 = vunpack.c.h.b16 %v373
    %v387 = vunpack.c.l.b16 %v374
    %v388 = vunpack.c.h.b16 %v374
    %v389 = vpack.c.b16 %v383, %v381
    %v390 = vpack.c.b16 %v384, %v382
    %v391 = vpack.c.b16 %v387, %v385
    %v392 = vpack.c.b16 %v388, %v386
    %v398 = vsel %vm129, %v375, 0
    %v401 = vsel %vm129, %v376, 0
    %403 = vmatprep.subr.bf16.mxu0 0
    %404 = vmatpush1.bf16.msra.mxu0 0
    %405 = vmatprep.subr.bf16.mxu0 0
    %406 = vmatpush1.bf16.msra.mxu0 0
    %407 = vmatprep.subr.bf16.mxu0 0
    %408 = vmatpush1.bf16.msra.mxu0 0
    %409 = vmatprep.subr.bf16.mxu0 0
    %410 = vmatpush1.bf16.msra.mxu0 0
    %411 = vmatprep.subr.bf16.mxu0 0
    %412 = vmatpush1.bf16.msra.mxu0 0
    %413 = vmatprep.subr.bf16.mxu0 0
    %414 = vmatpush1.bf16.msra.mxu0 0
    %415 = vmatprep.subr.bf16.mxu0 %v392
    %416 = vmatpush1.bf16.msra.mxu0 %v391
    %417 = vmatprep.subr.bf16.mxu0 %v390
    %418 = vmatpush1.bf16.msra.mxu0 %v389
    %419 = vmatprep.subr.bf16.mxu0 0
    %420 = vmatpush2.bf16.msra.mxu0 0
    %421 = vmatprep.subr.bf16.mxu0 0
    %422 = vmatpush2.bf16.msra.mxu0 0
    %423 = vmatprep.subr.bf16.mxu0 0
    %424 = vmatpush2.bf16.msra.mxu0 0
    %425 = vmatprep.subr.bf16.mxu0 0
    %426 = vmatpush2.bf16.msra.mxu0 0
    %427 = vmatprep.subr.bf16.mxu0 0
    %428 = vmatpush2.bf16.msra.mxu0 0
    %429 = vmatprep.subr.bf16.mxu0 0
    %430 = vmatpush2.bf16.msra.mxu0 0
    %431 = vmatprep.subr.bf16.mxu0 0
    %432 = vmatpush2.bf16.msra.mxu0 0
    %433 = vmatprep.subr.bf16.mxu0 0
    %434 = vmatpush2.bf16.msra.mxu0 0
    %435 = vmatprep.mubr.bf16.mxu0 0
    %436 = vmatmul.mubr.bf16.gmra.mxu0 %v398
    %v437 = vpop.f32.mrf.mxu0
    %v438 = vadd.f32 0.0, %v437
    %v439 = vpop.f32.mrf.mxu0
    %v440 = vadd.f32 0.0, %v439
    %v441 = vpop.f32.mrf.mxu0
    %v442 = vadd.f32 0.0, %v441
    %v443 = vpop.f32.mrf.mxu0
    %v444 = vadd.f32 0.0, %v443
    %445 = vmatprep.mubr.bf16.mxu0 0
    %446 = vmatmul.mubr.bf16.gmra.mxu0 %v401
    %v447 = vpop.f32.mrf.mxu0
    %v448 = vadd.f32 0.0, %v447
    %v449 = vpop.f32.mrf.mxu0
    %v450 = vadd.f32 0.0, %v449
    %v451 = vpop.f32.mrf.mxu0
    %v452 = vadd.f32 0.0, %v451
    %v453 = vpop.f32.mrf.mxu0
    %v454 = vadd.f32 0.0, %v453
    %455 = vdwg.mxu0
    %v456 = vadd.f32 %v358, %v438
    %v457 = vadd.f32 %v359, %v440
    %v458 = vadd.f32 %v360, %v442
    %v459 = vadd.f32 %v361, %v444
    %v460 = vadd.f32 %v362, %v448
    %v461 = vadd.f32 %v363, %v450
    %v462 = vadd.f32 %v364, %v452
    %v463 = vadd.f32 %v365, %v454
    %v464 = vld [vmem:[%s0 + $0x4] sm:$0xff]
    %v465 = vld [vmem:[%s0 + $0xc] sm:$0xff]
    %v466 = vld [vmem:[%s0 + $0x14] sm:$0xff]
    %v467 = vld [vmem:[%s0 + $0x1c] sm:$0xf]
    %s468 = scalar_lea.vmem %s1, 128
    %v469 = vld [vmem:[%s468] sm:$0xff]
    %v470 = vld [vmem:[%s468 + $0x8] sm:$0xff]
    %v471 = vld [vmem:[%s468 + $0x10] sm:$0xff]
    %v472 = vld [vmem:[%s468 + $0x18] sm:$0xff]
    %v473 = vpack.c.bf16 %v465, %v464
    %v474 = vpack.c.bf16 %v467, %v466
    %v479 = vunpack.c.l.b16 %v469
    %v480 = vunpack.c.h.b16 %v469
    %v481 = vunpack.c.l.b16 %v470
    %v482 = vunpack.c.h.b16 %v470
    %v483 = vunpack.c.l.b16 %v471
    %v484 = vunpack.c.h.b16 %v471
    %v485 = vunpack.c.l.b16 %v472
    %v486 = vunpack.c.h.b16 %v472
    %v487 = vpack.c.b16 %v481, %v479
    %v488 = vpack.c.b16 %v482, %v480
    %v489 = vpack.c.b16 %v485, %v483
    %v490 = vpack.c.b16 %v486, %v484
    %v496 = vsel %vm129, %v473, 0
    %v499 = vsel %vm129, %v474, 0
    %501 = vmatprep.subr.bf16.mxu0 0
    %502 = vmatpush1.bf16.msra.mxu0 0
    %503 = vmatprep.subr.bf16.mxu0 0
    %504 = vmatpush1.bf16.msra.mxu0 0
    %505 = vmatprep.subr.bf16.mxu0 0
    %506 = vmatpush1.bf16.msra.mxu0 0
    %507 = vmatprep.subr.bf16.mxu0 0
    %508 = vmatpush1.bf16.msra.mxu0 0
    %509 = vmatprep.subr.bf16.mxu0 0
    %510 = vmatpush1.bf16.msra.mxu0 0
    %511 = vmatprep.subr.bf16.mxu0 0
    %512 = vmatpush1.bf16.msra.mxu0 0
    %513 = vmatprep.subr.bf16.mxu0 %v490
    %514 = vmatpush1.bf16.msra.mxu0 %v489
    %515 = vmatprep.subr.bf16.mxu0 %v488
    %516 = vmatpush1.bf16.msra.mxu0 %v487
    %517 = vmatprep.subr.bf16.mxu0 0
    %518 = vmatpush2.bf16.msra.mxu0 0
    %519 = vmatprep.subr.bf16.mxu0 0
    %520 = vmatpush2.bf16.msra.mxu0 0
    %521 = vmatprep.subr.bf16.mxu0 0
    %522 = vmatpush2.bf16.msra.mxu0 0
    %523 = vmatprep.subr.bf16.mxu0 0
    %524 = vmatpush2.bf16.msra.mxu0 0
    %525 = vmatprep.subr.bf16.mxu0 0
    %526 = vmatpush2.bf16.msra.mxu0 0
    %527 = vmatprep.subr.bf16.mxu0 0
    %528 = vmatpush2.bf16.msra.mxu0 0
    %529 = vmatprep.subr.bf16.mxu0 0
    %530 = vmatpush2.bf16.msra.mxu0 0
    %531 = vmatprep.subr.bf16.mxu0 0
    %532 = vmatpush2.bf16.msra.mxu0 0
    %533 = vmatprep.mubr.bf16.mxu0 0
    %534 = vmatmul.mubr.bf16.gmra.mxu0 %v496
    %v535 = vpop.f32.mrf.mxu0
    %v536 = vadd.f32 0.0, %v535
    %v537 = vpop.f32.mrf.mxu0
    %v538 = vadd.f32 0.0, %v537
    %v539 = vpop.f32.mrf.mxu0
    %v540 = vadd.f32 0.0, %v539
    %v541 = vpop.f32.mrf.mxu0
    %v542 = vadd.f32 0.0, %v541
    %543 = vmatprep.mubr.bf16.mxu0 0
    %544 = vmatmul.mubr.bf16.gmra.mxu0 %v499
    %v545 = vpop.f32.mrf.mxu0
    %v546 = vadd.f32 0.0, %v545
    %v547 = vpop.f32.mrf.mxu0
    %v548 = vadd.f32 0.0, %v547
    %v549 = vpop.f32.mrf.mxu0
    %v550 = vadd.f32 0.0, %v549
    %v551 = vpop.f32.mrf.mxu0
    %v552 = vadd.f32 0.0, %v551
    %553 = vdwg.mxu0
    %v554 = vadd.f32 %v456, %v536
    %v555 = vadd.f32 %v457, %v538
    %v556 = vadd.f32 %v458, %v540
    %v557 = vadd.f32 %v459, %v542
    %v558 = vadd.f32 %v460, %v546
    %v559 = vadd.f32 %v461, %v548
    %v560 = vadd.f32 %v462, %v550
    %v561 = vadd.f32 %v463, %v552
    %s562 = scalar_lea.vmem %s0, 32
    %v563 = vld [vmem:[%s562] sm:$0xff]
    %v564 = vld [vmem:[%s562 + $0x8] sm:$0xff]
    %v565 = vld [vmem:[%s562 + $0x10] sm:$0xff]
    %v566 = vld [vmem:[%s562 + $0x18] sm:$0xf]
    %v567 = vpack.c.bf16 %v564, %v563
    %v568 = vpack.c.bf16 %v566, %v565
    %v569 = vld [vmem:[%s562 + $0x1] sm:$0xff]
    %v570 = vld [vmem:[%s562 + $0x9] sm:$0xff]
    %v571 = vld [vmem:[%s562 + $0x11] sm:$0xff]
    %v572 = vld [vmem:[%s562 + $0x19] sm:$0xf]
    %v573 = vpack.c.bf16 %v570, %v569
    %v574 = vpack.c.bf16 %v572, %v571
    %v576 = vsel %vm129, %v573, 0
    %v579 = vsel %vm129, %v574, 0
    %581 = vmatprep.subr.bf16.mxu0 0
    %582 = vmatpush1.bf16.msra.mxu0 0
    %583 = vmatprep.subr.bf16.mxu0 0
    %584 = vmatpush1.bf16.msra.mxu0 0
    %585 = vmatprep.subr.bf16.mxu0 0
    %586 = vmatpush1.bf16.msra.mxu0 0
    %587 = vmatprep.subr.bf16.mxu0 0
    %588 = vmatpush1.bf16.msra.mxu0 0
    %589 = vmatprep.subr.bf16.mxu0 0
    %590 = vmatpush1.bf16.msra.mxu0 0
    %591 = vmatprep.subr.bf16.mxu0 0
    %592 = vmatpush1.bf16.msra.mxu0 0
    %593 = vmatprep.subr.bf16.mxu0 %v124
    %594 = vmatpush1.bf16.msra.mxu0 %v123
    %595 = vmatprep.subr.bf16.mxu0 %v122
    %596 = vmatpush1.bf16.msra.mxu0 %v121
    %597 = vmatprep.subr.bf16.mxu0 0
    %598 = vmatpush2.bf16.msra.mxu0 0
    %599 = vmatprep.subr.bf16.mxu0 0
    %600 = vmatpush2.bf16.msra.mxu0 0
    %601 = vmatprep.subr.bf16.mxu0 0
    %602 = vmatpush2.bf16.msra.mxu0 0
    %603 = vmatprep.subr.bf16.mxu0 0
    %604 = vmatpush2.bf16.msra.mxu0 0
    %605 = vmatprep.subr.bf16.mxu0 0
    %606 = vmatpush2.bf16.msra.mxu0 0
    %607 = vmatprep.subr.bf16.mxu0 0
    %608 = vmatpush2.bf16.msra.mxu0 0
    %609 = vmatprep.subr.bf16.mxu0 0
    %610 = vmatpush2.bf16.msra.mxu0 0
    %611 = vmatprep.subr.bf16.mxu0 0
    %612 = vmatpush2.bf16.msra.mxu0 0
    %613 = vmatprep.mubr.bf16.mxu0 0
    %614 = vmatmul.mubr.bf16.gmra.mxu0 %v576
    %v615 = vpop.f32.mrf.mxu0
    %v616 = vadd.f32 0.0, %v615
    %v617 = vpop.f32.mrf.mxu0
    %v618 = vadd.f32 0.0, %v617
    %v619 = vpop.f32.mrf.mxu0
    %v620 = vadd.f32 0.0, %v619
    %v621 = vpop.f32.mrf.mxu0
    %v622 = vadd.f32 0.0, %v621
    %623 = vmatprep.mubr.bf16.mxu0 0
    %624 = vmatmul.mubr.bf16.gmra.mxu0 %v579
    %v625 = vpop.f32.mrf.mxu0
    %v626 = vadd.f32 0.0, %v625
    %v627 = vpop.f32.mrf.mxu0
    %v628 = vadd.f32 0.0, %v627
    %v629 = vpop.f32.mrf.mxu0
    %v630 = vadd.f32 0.0, %v629
    %v631 = vpop.f32.mrf.mxu0
    %v632 = vadd.f32 0.0, %v631
    %633 = vdwg.mxu0
    %v635 = vsel %vm129, %v567, 0
    %v638 = vsel %vm129, %v568, 0
    %640 = vmatprep.subr.bf16.mxu0 0
    %641 = vmatpush1.bf16.msra.mxu0 0
    %642 = vmatprep.subr.bf16.mxu0 0
    %643 = vmatpush1.bf16.msra.mxu0 0
    %644 = vmatprep.subr.bf16.mxu0 0
    %645 = vmatpush1.bf16.msra.mxu0 0
    %646 = vmatprep.subr.bf16.mxu0 0
    %647 = vmatpush1.bf16.msra.mxu0 0
    %648 = vmatprep.subr.bf16.mxu0 0
    %649 = vmatpush1.bf16.msra.mxu0 0
    %650 = vmatprep.subr.bf16.mxu0 0
    %651 = vmatpush1.bf16.msra.mxu0 0
    %652 = vmatprep.subr.bf16.mxu0 %v204
    %653 = vmatpush1.bf16.msra.mxu0 %v203
    %654 = vmatprep.subr.bf16.mxu0 %v202
    %655 = vmatpush1.bf16.msra.mxu0 %v201
    %656 = vmatprep.subr.bf16.mxu0 0
    %657 = vmatpush2.bf16.msra.mxu0 0
    %658 = vmatprep.subr.bf16.mxu0 0
    %659 = vmatpush2.bf16.msra.mxu0 0
    %660 = vmatprep.subr.bf16.mxu0 0
    %661 = vmatpush2.bf16.msra.mxu0 0
    %662 = vmatprep.subr.bf16.mxu0 0
    %663 = vmatpush2.bf16.msra.mxu0 0
    %664 = vmatprep.subr.bf16.mxu0 0
    %665 = vmatpush2.bf16.msra.mxu0 0
    %666 = vmatprep.subr.bf16.mxu0 0
    %667 = vmatpush2.bf16.msra.mxu0 0
    %668 = vmatprep.subr.bf16.mxu0 0
    %669 = vmatpush2.bf16.msra.mxu0 0
    %670 = vmatprep.subr.bf16.mxu0 0
    %671 = vmatpush2.bf16.msra.mxu0 0
    %672 = vmatprep.mubr.bf16.mxu0 0
    %673 = vmatmul.mubr.bf16.gmra.mxu0 %v635
    %v674 = vpop.f32.mrf.mxu0
    %v675 = vadd.f32 %v616, %v674
    %v676 = vpop.f32.mrf.mxu0
    %v677 = vadd.f32 %v618, %v676
    %v678 = vpop.f32.mrf.mxu0
    %v679 = vadd.f32 %v620, %v678
    %v680 = vpop.f32.mrf.mxu0
    %v681 = vadd.f32 %v622, %v680
    %682 = vmatprep.mubr.bf16.mxu0 0
    %683 = vmatmul.mubr.bf16.gmra.mxu0 %v638
    %v684 = vpop.f32.mrf.mxu0
    %v685 = vadd.f32 %v626, %v684
    %v686 = vpop.f32.mrf.mxu0
    %v687 = vadd.f32 %v628, %v686
    %v688 = vpop.f32.mrf.mxu0
    %v689 = vadd.f32 %v630, %v688
    %v690 = vpop.f32.mrf.mxu0
    %v691 = vadd.f32 %v632, %v690
    %692 = vdwg.mxu0
    %v693 = vld [vmem:[%s562 + $0x2] sm:$0xff]
    %v694 = vld [vmem:[%s562 + $0xa] sm:$0xff]
    %v695 = vld [vmem:[%s562 + $0x12] sm:$0xff]
    %v696 = vld [vmem:[%s562 + $0x1a] sm:$0xf]
    %v697 = vpack.c.bf16 %v694, %v693
    %v698 = vpack.c.bf16 %v696, %v695
    %v700 = vsel %vm129, %v697, 0
    %v703 = vsel %vm129, %v698, 0
    %705 = vmatprep.subr.bf16.mxu0 0
    %706 = vmatpush1.bf16.msra.mxu0 0
    %707 = vmatprep.subr.bf16.mxu0 0
    %708 = vmatpush1.bf16.msra.mxu0 0
    %709 = vmatprep.subr.bf16.mxu0 0
    %710 = vmatpush1.bf16.msra.mxu0 0
    %711 = vmatprep.subr.bf16.mxu0 0
    %712 = vmatpush1.bf16.msra.mxu0 0
    %713 = vmatprep.subr.bf16.mxu0 0
    %714 = vmatpush1.bf16.msra.mxu0 0
    %715 = vmatprep.subr.bf16.mxu0 0
    %716 = vmatpush1.bf16.msra.mxu0 0
    %717 = vmatprep.subr.bf16.mxu0 %v294
    %718 = vmatpush1.bf16.msra.mxu0 %v293
    %719 = vmatprep.subr.bf16.mxu0 %v292
    %720 = vmatpush1.bf16.msra.mxu0 %v291
    %721 = vmatprep.subr.bf16.mxu0 0
    %722 = vmatpush2.bf16.msra.mxu0 0
    %723 = vmatprep.subr.bf16.mxu0 0
    %724 = vmatpush2.bf16.msra.mxu0 0
    %725 = vmatprep.subr.bf16.mxu0 0
    %726 = vmatpush2.bf16.msra.mxu0 0
    %727 = vmatprep.subr.bf16.mxu0 0
    %728 = vmatpush2.bf16.msra.mxu0 0
    %729 = vmatprep.subr.bf16.mxu0 0
    %730 = vmatpush2.bf16.msra.mxu0 0
    %731 = vmatprep.subr.bf16.mxu0 0
    %732 = vmatpush2.bf16.msra.mxu0 0
    %733 = vmatprep.subr.bf16.mxu0 0
    %734 = vmatpush2.bf16.msra.mxu0 0
    %735 = vmatprep.subr.bf16.mxu0 0
    %736 = vmatpush2.bf16.msra.mxu0 0
    %737 = vmatprep.mubr.bf16.mxu0 0
    %738 = vmatmul.mubr.bf16.gmra.mxu0 %v700
    %v739 = vpop.f32.mrf.mxu0
    %v740 = vadd.f32 0.0, %v739
    %v741 = vpop.f32.mrf.mxu0
    %v742 = vadd.f32 0.0, %v741
    %v743 = vpop.f32.mrf.mxu0
    %v744 = vadd.f32 0.0, %v743
    %v745 = vpop.f32.mrf.mxu0
    %v746 = vadd.f32 0.0, %v745
    %747 = vmatprep.mubr.bf16.mxu0 0
    %748 = vmatmul.mubr.bf16.gmra.mxu0 %v703
    %v749 = vpop.f32.mrf.mxu0
    %v750 = vadd.f32 0.0, %v749
    %v751 = vpop.f32.mrf.mxu0
    %v752 = vadd.f32 0.0, %v751
    %v753 = vpop.f32.mrf.mxu0
    %v754 = vadd.f32 0.0, %v753
    %v755 = vpop.f32.mrf.mxu0
    %v756 = vadd.f32 0.0, %v755
    %757 = vdwg.mxu0
    %v758 = vadd.f32 %v675, %v740
    %v759 = vadd.f32 %v677, %v742
    %v760 = vadd.f32 %v679, %v744
    %v761 = vadd.f32 %v681, %v746
    %v762 = vadd.f32 %v685, %v750
    %v763 = vadd.f32 %v687, %v752
    %v764 = vadd.f32 %v689, %v754
    %v765 = vadd.f32 %v691, %v756
    %v766 = vld [vmem:[%s562 + $0x3] sm:$0xff]
    %v767 = vld [vmem:[%s562 + $0xb] sm:$0xff]
    %v768 = vld [vmem:[%s562 + $0x13] sm:$0xff]
    %v769 = vld [vmem:[%s562 + $0x1b] sm:$0xf]
    %v770 = vpack.c.bf16 %v767, %v766
    %v771 = vpack.c.bf16 %v769, %v768
    %v773 = vsel %vm129, %v770, 0
    %v776 = vsel %vm129, %v771, 0
    %778 = vmatprep.subr.bf16.mxu0 0
    %779 = vmatpush1.bf16.msra.mxu0 0
    %780 = vmatprep.subr.bf16.mxu0 0
    %781 = vmatpush1.bf16.msra.mxu0 0
    %782 = vmatprep.subr.bf16.mxu0 0
    %783 = vmatpush1.bf16.msra.mxu0 0
    %784 = vmatprep.subr.bf16.mxu0 0
    %785 = vmatpush1.bf16.msra.mxu0 0
    %786 = vmatprep.subr.bf16.mxu0 0
    %787 = vmatpush1.bf16.msra.mxu0 0
    %788 = vmatprep.subr.bf16.mxu0 0
    %789 = vmatpush1.bf16.msra.mxu0 0
    %790 = vmatprep.subr.bf16.mxu0 %v392
    %791 = vmatpush1.bf16.msra.mxu0 %v391
    %792 = vmatprep.subr.bf16.mxu0 %v390
    %793 = vmatpush1.bf16.msra.mxu0 %v389
    %794 = vmatprep.subr.bf16.mxu0 0
    %795 = vmatpush2.bf16.msra.mxu0 0
    %796 = vmatprep.subr.bf16.mxu0 0
    %797 = vmatpush2.bf16.msra.mxu0 0
    %798 = vmatprep.subr.bf16.mxu0 0
    %799 = vmatpush2.bf16.msra.mxu0 0
    %800 = vmatprep.subr.bf16.mxu0 0
    %801 = vmatpush2.bf16.msra.mxu0 0
    %802 = vmatprep.subr.bf16.mxu0 0
    %803 = vmatpush2.bf16.msra.mxu0 0
    %804 = vmatprep.subr.bf16.mxu0 0
    %805 = vmatpush2.bf16.msra.mxu0 0
    %806 = vmatprep.subr.bf16.mxu0 0
    %807 = vmatpush2.bf16.msra.mxu0 0
    %808 = vmatprep.subr.bf16.mxu0 0
    %809 = vmatpush2.bf16.msra.mxu0 0
    %810 = vmatprep.mubr.bf16.mxu0 0
    %811 = vmatmul.mubr.bf16.gmra.mxu0 %v773
    %v812 = vpop.f32.mrf.mxu0
    %v813 = vadd.f32 0.0, %v812
    %v814 = vpop.f32.mrf.mxu0
    %v815 = vadd.f32 0.0, %v814
    %v816 = vpop.f32.mrf.mxu0
    %v817 = vadd.f32 0.0, %v816
    %v818 = vpop.f32.mrf.mxu0
    %v819 = vadd.f32 0.0, %v818
    %820 = vmatprep.mubr.bf16.mxu0 0
    %821 = vmatmul.mubr.bf16.gmra.mxu0 %v776
    %v822 = vpop.f32.mrf.mxu0
    %v823 = vadd.f32 0.0, %v822
    %v824 = vpop.f32.mrf.mxu0
    %v825 = vadd.f32 0.0, %v824
    %v826 = vpop.f32.mrf.mxu0
    %v827 = vadd.f32 0.0, %v826
    %v828 = vpop.f32.mrf.mxu0
    %v829 = vadd.f32 0.0, %v828
    %830 = vdwg.mxu0
    %v831 = vadd.f32 %v758, %v813
    %v832 = vadd.f32 %v759, %v815
    %v833 = vadd.f32 %v760, %v817
    %v834 = vadd.f32 %v761, %v819
    %v835 = vadd.f32 %v762, %v823
    %v836 = vadd.f32 %v763, %v825
    %v837 = vadd.f32 %v764, %v827
    %v838 = vadd.f32 %v765, %v829
    %v839 = vld [vmem:[%s562 + $0x4] sm:$0xff]
    %v840 = vld [vmem:[%s562 + $0xc] sm:$0xff]
    %v841 = vld [vmem:[%s562 + $0x14] sm:$0xff]
    %v842 = vld [vmem:[%s562 + $0x1c] sm:$0xf]
    %v843 = vpack.c.bf16 %v840, %v839
    %v844 = vpack.c.bf16 %v842, %v841
    %v846 = vsel %vm129, %v843, 0
    %v849 = vsel %vm129, %v844, 0
    %851 = vmatprep.subr.bf16.mxu0 0
    %852 = vmatpush1.bf16.msra.mxu0 0
    %853 = vmatprep.subr.bf16.mxu0 0
    %854 = vmatpush1.bf16.msra.mxu0 0
    %855 = vmatprep.subr.bf16.mxu0 0
    %856 = vmatpush1.bf16.msra.mxu0 0
    %857 = vmatprep.subr.bf16.mxu0 0
    %858 = vmatpush1.bf16.msra.mxu0 0
    %859 = vmatprep.subr.bf16.mxu0 0
    %860 = vmatpush1.bf16.msra.mxu0 0
    %861 = vmatprep.subr.bf16.mxu0 0
    %862 = vmatpush1.bf16.msra.mxu0 0
    %863 = vmatprep.subr.bf16.mxu0 %v490
    %864 = vmatpush1.bf16.msra.mxu0 %v489
    %865 = vmatprep.subr.bf16.mxu0 %v488
    %866 = vmatpush1.bf16.msra.mxu0 %v487
    %867 = vmatprep.subr.bf16.mxu0 0
    %868 = vmatpush2.bf16.msra.mxu0 0
    %869 = vmatprep.subr.bf16.mxu0 0
    %870 = vmatpush2.bf16.msra.mxu0 0
    %871 = vmatprep.subr.bf16.mxu0 0
    %872 = vmatpush2.bf16.msra.mxu0 0
    %873 = vmatprep.subr.bf16.mxu0 0
    %874 = vmatpush2.bf16.msra.mxu0 0
    %875 = vmatprep.subr.bf16.mxu0 0
    %876 = vmatpush2.bf16.msra.mxu0 0
    %877 = vmatprep.subr.bf16.mxu0 0
    %878 = vmatpush2.bf16.msra.mxu0 0
    %879 = vmatprep.subr.bf16.mxu0 0
    %880 = vmatpush2.bf16.msra.mxu0 0
    %881 = vmatprep.subr.bf16.mxu0 0
    %882 = vmatpush2.bf16.msra.mxu0 0
    %883 = vmatprep.mubr.bf16.mxu0 0
    %884 = vmatmul.mubr.bf16.gmra.mxu0 %v846
    %v885 = vpop.f32.mrf.mxu0
    %v886 = vadd.f32 0.0, %v885
    %v887 = vpop.f32.mrf.mxu0
    %v888 = vadd.f32 0.0, %v887
    %v889 = vpop.f32.mrf.mxu0
    %v890 = vadd.f32 0.0, %v889
    %v891 = vpop.f32.mrf.mxu0
    %v892 = vadd.f32 0.0, %v891
    %893 = vmatprep.mubr.bf16.mxu0 0
    %894 = vmatmul.mubr.bf16.gmra.mxu0 %v849
    %v895 = vpop.f32.mrf.mxu0
    %v896 = vadd.f32 0.0, %v895
    %v897 = vpop.f32.mrf.mxu0
    %v898 = vadd.f32 0.0, %v897
    %v899 = vpop.f32.mrf.mxu0
    %v900 = vadd.f32 0.0, %v899
    %v901 = vpop.f32.mrf.mxu0
    %v902 = vadd.f32 0.0, %v901
    %903 = vdwg.mxu0
    %v904 = vadd.f32 %v831, %v886
    %v905 = vadd.f32 %v832, %v888
    %v906 = vadd.f32 %v833, %v890
    %v907 = vadd.f32 %v834, %v892
    %v908 = vadd.f32 %v835, %v896
    %v909 = vadd.f32 %v836, %v898
    %v910 = vadd.f32 %v837, %v900
    %v911 = vadd.f32 %v838, %v902
    %v912 = vld [vmem:[%s2] sm:$0xff]
    %v913 = vld [vmem:[%s2 + $0x8] sm:$0xff]
    %v914 = vld [vmem:[%s2 + $0x10] sm:$0xff]
    %v915 = vld [vmem:[%s2 + $0x18] sm:$0xff]
    %v916 = vld [vmem:[%s2 + $0x20] sm:$0xff]
    %v917 = vld [vmem:[%s2 + $0x28] sm:$0xff]
    %v918 = vld [vmem:[%s2 + $0x30] sm:$0xff]
    %v919 = vld [vmem:[%s2 + $0x38] sm:$0xff]
    %v920 = vld [vmem:[%s2 + $0x40] sm:$0xff]
    %v921 = vld [vmem:[%s2 + $0x48] sm:$0xff]
    %v922 = vld [vmem:[%s2 + $0x50] sm:$0xff]
    %v923 = vld [vmem:[%s2 + $0x58] sm:$0xff]
    %v924 = vld [vmem:[%s2 + $0x60] sm:$0xff]
    %v925 = vld [vmem:[%s2 + $0x68] sm:$0xff]
    %v926 = vld [vmem:[%s2 + $0x70] sm:$0xff]
    %v927 = vld [vmem:[%s2 + $0x78] sm:$0xff]
    %v928 = vld [vmem:[%s2 + $0x80] sm:$0xff]
    %v929 = vld [vmem:[%s2 + $0x88] sm:$0xff]
    %v930 = vld [vmem:[%s2 + $0x90] sm:$0xff]
    %v931 = vld [vmem:[%s2 + $0x98] sm:$0xff]
    %v932 = vld [vmem:[%s2 + $0xa0] sm:$0xff]
    %v933 = vld [vmem:[%s3] sm:$0x3f]
    %v934 = vld [vmem:[%s3 + $0x8] sm:$0x3f]
    %v935 = vld [vmem:[%s8] sm:$0x1]
    %v936 = vld [vmem:[%s9] sm:$0x1]
    %v937 = vadd.f32 %v554, %v556
    %v938 = vadd.f32 %v937, %v558
    %vm939 = vcmask 1043456
    %v940 = vsel %vm939, %v560, 0.0
    %v941 = vadd.f32 %v938, %v940
    %v942 = vrot.slane %v941, 4
    %v943 = vadd.f32 %v941, %v942
    %v944 = vrot.slane %v943, 2
    %v945 = vadd.f32 %v943, %v944
    %v946 = vrot.slane %v945, 1
    %v947 = vadd.f32 %v945, %v946
    %vm948 = vcmask 326656
    %v949 = vsel %vm948, %v555, 0.0
    %v950 = vsel %vm948, %v557, 0.0
    %v951 = vadd.f32 %v949, %v950
    %v952 = vsel %vm948, %v559, 0.0
    %v953 = vadd.f32 %v951, %v952
    %vm954 = vcmask 322560
    %v955 = vsel %vm954, %v561, 0.0
    %v956 = vadd.f32 %v953, %v955
    %v957 = vrot.slane %v956, 4
    %v958 = vadd.f32 %v956, %v957
    %v959 = vrot.slane %v958, 2
    %v960 = vadd.f32 %v958, %v959
    %v961 = vrot.slane %v960, 1
    %v962 = vadd.f32 %v960, %v961
    %v963 = vadd.f32 %v904, %v906
    %v964 = vadd.f32 %v963, %v908
    %v965 = vsel %vm939, %v910, 0.0
    %v966 = vadd.f32 %v964, %v965
    %v967 = vrot.slane %v966, 4
    %v968 = vadd.f32 %v966, %v967
    %v969 = vrot.slane %v968, 2
    %v970 = vadd.f32 %v968, %v969
    %v971 = vrot.slane %v970, 1
    %v972 = vadd.f32 %v970, %v971
    %v973 = vsel %vm948, %v905, 0.0
    %v974 = vsel %vm948, %v907, 0.0
    %v975 = vadd.f32 %v973, %v974
    %v976 = vsel %vm948, %v909, 0.0
    %v977 = vadd.f32 %v975, %v976
    %v978 = vsel %vm954, %v911, 0.0
    %v979 = vadd.f32 %v977, %v978
    %v980 = vrot.slane %v979, 4
    %v981 = vadd.f32 %v979, %v980
    %v982 = vrot.slane %v981, 2
    %v983 = vadd.f32 %v981, %v982
    %v984 = vrot.slane %v983, 1
    %v985 = vadd.f32 %v983, %v984
    %v986 = vadd.f32 %v947, %v972
    %v987 = vadd.f32 %v962, %v985
    %v989 = vsel %vm948, %v987, 0
    %991 = vmatprep.subr.mxu0 0.0
    %992 = vmatpush1.msra.mxu0 %v927
    %993 = vmatprep.subr.mxu0 0.0
    %994 = vmatpush1.msra.mxu0 %v926
    %995 = vmatprep.subr.mxu0 0.0
    %996 = vmatpush1.msra.mxu0 %v925
    %997 = vmatprep.subr.mxu0 0.0
    %998 = vmatpush1.msra.mxu0 %v924
    %999 = vmatprep.subr.mxu0 0.0
    %1000 = vmatpush1.msra.mxu0 %v923
    %1001 = vmatprep.subr.mxu0 0.0
    %1002 = vmatpush1.msra.mxu0 %v922
    %1003 = vmatprep.subr.mxu0 0.0
    %1004 = vmatpush1.msra.mxu0 %v921
    %1005 = vmatprep.subr.mxu0 0.0
    %1006 = vmatpush1.msra.mxu0 %v920
    %1007 = vmatprep.subr.mxu0 0.0
    %1008 = vmatpush1.msra.mxu0 %v919
    %1009 = vmatprep.subr.mxu0 0.0
    %1010 = vmatpush1.msra.mxu0 %v918
    %1011 = vmatprep.subr.mxu0 0.0
    %1012 = vmatpush1.msra.mxu0 %v917
    %1013 = vmatprep.subr.mxu0 0.0
    %1014 = vmatpush1.msra.mxu0 %v916
    %1015 = vmatprep.subr.mxu0 0.0
    %1016 = vmatpush1.msra.mxu0 %v915
    %1017 = vmatprep.subr.mxu0 0.0
    %1018 = vmatpush1.msra.mxu0 %v914
    %1019 = vmatprep.subr.mxu0 0.0
    %1020 = vmatpush1.msra.mxu0 %v913
    %1021 = vmatprep.subr.mxu0 0.0
    %1022 = vmatpush1.msra.mxu0 %v912
    %1023 = vmatprep.subr.mxu0 0.0
    %1024 = vmatpush2.msra.mxu0 0.0
    %1025 = vmatprep.subr.mxu0 0.0
    %1026 = vmatpush2.msra.mxu0 0.0
    %1027 = vmatprep.subr.mxu0 0.0
    %1028 = vmatpush2.msra.mxu0 0.0
    %1029 = vmatprep.subr.mxu0 0.0
    %1030 = vmatpush2.msra.mxu0 0.0
    %1031 = vmatprep.subr.mxu0 0.0
    %1032 = vmatpush2.msra.mxu0 0.0
    %1033 = vmatprep.subr.mxu0 0.0
    %1034 = vmatpush2.msra.mxu0 0.0
    %1035 = vmatprep.subr.mxu0 0.0
    %1036 = vmatpush2.msra.mxu0 0.0
    %1037 = vmatprep.subr.mxu0 0.0
    %1038 = vmatpush2.msra.mxu0 0.0
    %1039 = vmatprep.subr.mxu0 0.0
    %1040 = vmatpush2.msra.mxu0 0.0
    %1041 = vmatprep.subr.mxu0 0.0
    %1042 = vmatpush2.msra.mxu0 0.0
    %1043 = vmatprep.subr.mxu0 0.0
    %1044 = vmatpush2.msra.mxu0 0.0
    %1045 = vmatprep.subr.mxu0 0.0
    %1046 = vmatpush2.msra.mxu0 %v932
    %1047 = vmatprep.subr.mxu0 0.0
    %1048 = vmatpush2.msra.mxu0 %v931
    %1049 = vmatprep.subr.mxu0 0.0
    %1050 = vmatpush2.msra.mxu0 %v930
    %1051 = vmatprep.subr.mxu0 0.0
    %1052 = vmatpush2.msra.mxu0 %v929
    %1053 = vmatprep.subr.mxu0 0.0
    %1054 = vmatpush2.msra.mxu0 %v928
    %1055 = vmatprep.mubr.f32.mxu0 %v989
    %1056 = vmatmul.mubr.f32.gmra.mxu0 %v986
    %v1057 = vpop.f32.mrf.mxu0
    %v1058 = vadd.f32 0.0, %v1057
    %v1059 = vpop.f32.mrf.mxu0
    %1060 = vdwg.mxu0
    %v1061 = vrcp.pop 1568.0
    %v1062 = vmul.f32 %v1058, %v1061
    %vm1063 = vcmask 48128
    %v1065 = vsel %vm1063, %v1062, 0
    %vm1067 = vcmask 1045504
    %v1069 = vsel %vm1067, %v933, 0
    %v1072 = vsel %vm1067, %v934, 0
    %1074 = vmatprep.subr.mxu0 0.0
    %1075 = vmatpush1.msra.mxu0 0.0
    %1076 = vmatprep.subr.mxu0 0.0
    %1077 = vmatpush1.msra.mxu0 0.0
    %1078 = vmatprep.subr.mxu0 0.0
    %1079 = vmatpush1.msra.mxu0 0.0
    %1080 = vmatprep.subr.mxu0 0.0
    %1081 = vmatpush1.msra.mxu0 0.0
    %1082 = vmatprep.subr.mxu0 0.0
    %1083 = vmatpush1.msra.mxu0 0.0
    %1084 = vmatprep.subr.mxu0 0.0
    %1085 = vmatpush1.msra.mxu0 0.0
    %1086 = vmatprep.subr.mxu0 0.0
    %1087 = vmatpush1.msra.mxu0 0.0
    %1088 = vmatprep.subr.mxu0 0.0
    %1089 = vmatpush1.msra.mxu0 0.0
    %1090 = vmatprep.subr.mxu0 0.0
    %1091 = vmatpush1.msra.mxu0 0.0
    %1092 = vmatprep.subr.mxu0 0.0
    %1093 = vmatpush1.msra.mxu0 0.0
    %1094 = vmatprep.subr.mxu0 0.0
    %1095 = vmatpush1.msra.mxu0 0.0
    %1096 = vmatprep.subr.mxu0 0.0
    %1097 = vmatpush1.msra.mxu0 0.0
    %1098 = vmatprep.subr.mxu0 0.0
    %1099 = vmatpush1.msra.mxu0 0.0
    %1100 = vmatprep.subr.mxu0 0.0
    %1101 = vmatpush1.msra.mxu0 0.0
    %1102 = vmatprep.subr.mxu0 0.0
    %1103 = vmatpush1.msra.mxu0 0.0
    %1104 = vmatprep.subr.mxu0 %v1072
    %1105 = vmatpush1.msra.mxu0 %v1069
    %1106 = vmatprep.subr.mxu0 0.0
    %1107 = vmatpush2.msra.mxu0 0.0
    %1108 = vmatprep.subr.mxu0 0.0
    %1109 = vmatpush2.msra.mxu0 0.0
    %1110 = vmatprep.subr.mxu0 0.0
    %1111 = vmatpush2.msra.mxu0 0.0
    %1112 = vmatprep.subr.mxu0 0.0
    %1113 = vmatpush2.msra.mxu0 0.0
    %1114 = vmatprep.subr.mxu0 0.0
    %1115 = vmatpush2.msra.mxu0 0.0
    %1116 = vmatprep.subr.mxu0 0.0
    %1117 = vmatpush2.msra.mxu0 0.0
    %1118 = vmatprep.subr.mxu0 0.0
    %1119 = vmatpush2.msra.mxu0 0.0
    %1120 = vmatprep.subr.mxu0 0.0
    %1121 = vmatpush2.msra.mxu0 0.0
    %1122 = vmatprep.subr.mxu0 0.0
    %1123 = vmatpush2.msra.mxu0 0.0
    %1124 = vmatprep.subr.mxu0 0.0
    %1125 = vmatpush2.msra.mxu0 0.0
    %1126 = vmatprep.subr.mxu0 0.0
    %1127 = vmatpush2.msra.mxu0 0.0
    %1128 = vmatprep.subr.mxu0 0.0
    %1129 = vmatpush2.msra.mxu0 0.0
    %1130 = vmatprep.subr.mxu0 0.0
    %1131 = vmatpush2.msra.mxu0 0.0
    %1132 = vmatprep.subr.mxu0 0.0
    %1133 = vmatpush2.msra.mxu0 0.0
    %1134 = vmatprep.subr.mxu0 0.0
    %1135 = vmatpush2.msra.mxu0 0.0
    %1136 = vmatprep.subr.mxu0 0.0
    %1137 = vmatpush2.msra.mxu0 0.0
    %1138 = vmatprep.mubr.f32.mxu0 0.0
    %1139 = vmatmul.mubr.f32.gmra.mxu0 %v1065
    %v1140 = vpop.f32.mrf.mxu0
    %v1141 = vadd.f32 0.0, %v1140
    %v1142 = vpop.f32.mrf.mxu0
    %v1143 = vadd.f32 0.0, %v1142
    %1144 = vdwg.mxu0
    %v1145 = vlaneseq
    %v1146 = vshrl.u32 %v1145, 7
    %v1147 = vsub.s32 0, %v1146
    %v1148 = vrot.slane %v1141, %v1147
    %v1149 = vlaneseq
    %v1150 = vshrl.u32 %v1149, 7
    %v1151 = vsub.s32 0, %v1150
    %v1152 = vrot.slane %v1143, %v1151
    %v1153 = vsub.f32 %v554, %v1148
    %v1154 = vsub.f32 %v555, %v1152
    %v1155 = vsub.f32 %v556, %v1148
    %v1156 = vsub.f32 %v557, %v1152
    %v1157 = vsub.f32 %v558, %v1148
    %v1158 = vsub.f32 %v559, %v1152
    %v1159 = vsub.f32 %v560, %v1148
    %v1160 = vsub.f32 %v561, %v1152
    %v1161 = vmul.f32 %v1153, %v1153
    %v1162 = vmul.f32 %v1154, %v1154
    %v1163 = vmul.f32 %v1155, %v1155
    %v1164 = vmul.f32 %v1156, %v1156
    %v1165 = vmul.f32 %v1157, %v1157
    %v1166 = vmul.f32 %v1158, %v1158
    %v1167 = vmul.f32 %v1159, %v1159
    %v1168 = vmul.f32 %v1160, %v1160
    %v1169 = vadd.f32 %v1161, %v1163
    %v1170 = vadd.f32 %v1169, %v1165
    %v1171 = vsel %vm939, %v1167, 0.0
    %v1172 = vadd.f32 %v1170, %v1171
    %v1173 = vrot.slane %v1172, 4
    %v1174 = vadd.f32 %v1172, %v1173
    %v1175 = vrot.slane %v1174, 2
    %v1176 = vadd.f32 %v1174, %v1175
    %v1177 = vrot.slane %v1176, 1
    %v1178 = vadd.f32 %v1176, %v1177
    %v1179 = vsel %vm948, %v1162, 0.0
    %v1180 = vsel %vm948, %v1164, 0.0
    %v1181 = vadd.f32 %v1179, %v1180
    %v1182 = vsel %vm948, %v1166, 0.0
    %v1183 = vadd.f32 %v1181, %v1182
    %v1184 = vsel %vm954, %v1168, 0.0
    %v1185 = vadd.f32 %v1183, %v1184
    %v1186 = vrot.slane %v1185, 4
    %v1187 = vadd.f32 %v1185, %v1186
    %v1188 = vrot.slane %v1187, 2
    %v1189 = vadd.f32 %v1187, %v1188
    %v1190 = vrot.slane %v1189, 1
    %v1191 = vadd.f32 %v1189, %v1190
    %v1192 = vsub.f32 %v904, %v1148
    %v1193 = vsub.f32 %v905, %v1152
    %v1194 = vsub.f32 %v906, %v1148
    %v1195 = vsub.f32 %v907, %v1152
    %v1196 = vsub.f32 %v908, %v1148
    %v1197 = vsub.f32 %v909, %v1152
    %v1198 = vsub.f32 %v910, %v1148
    %v1199 = vsub.f32 %v911, %v1152
    %v1200 = vmul.f32 %v1192, %v1192
    %v1201 = vmul.f32 %v1193, %v1193
    %v1202 = vmul.f32 %v1194, %v1194
    %v1203 = vmul.f32 %v1195, %v1195
    %v1204 = vmul.f32 %v1196, %v1196
    %v1205 = vmul.f32 %v1197, %v1197
    %v1206 = vmul.f32 %v1198, %v1198
    %v1207 = vmul.f32 %v1199, %v1199
    %v1208 = vadd.f32 %v1200, %v1202
    %v1209 = vadd.f32 %v1208, %v1204
    %v1210 = vsel %vm939, %v1206, 0.0
    %v1211 = vadd.f32 %v1209, %v1210
    %v1212 = vrot.slane %v1211, 4
    %v1213 = vadd.f32 %v1211, %v1212
    %v1214 = vrot.slane %v1213, 2
    %v1215 = vadd.f32 %v1213, %v1214
    %v1216 = vrot.slane %v1215, 1
    %v1217 = vadd.f32 %v1215, %v1216
    %v1218 = vsel %vm948, %v1201, 0.0
    %v1219 = vsel %vm948, %v1203, 0.0
    %v1220 = vadd.f32 %v1218, %v1219
    %v1221 = vsel %vm948, %v1205, 0.0
    %v1222 = vadd.f32 %v1220, %v1221
    %v1223 = vsel %vm954, %v1207, 0.0
    %v1224 = vadd.f32 %v1222, %v1223
    %v1225 = vrot.slane %v1224, 4
    %v1226 = vadd.f32 %v1224, %v1225
    %v1227 = vrot.slane %v1226, 2
    %v1228 = vadd.f32 %v1226, %v1227
    %v1229 = vrot.slane %v1228, 1
    %v1230 = vadd.f32 %v1228, %v1229
    %v1231 = vadd.f32 %v1178, %v1217
    %v1232 = vadd.f32 %v1191, %v1230
    %v1234 = vsel %vm948, %v1232, 0
    %1236 = vmatprep.subr.mxu0 0.0
    %1237 = vmatpush1.msra.mxu0 %v927
    %1238 = vmatprep.subr.mxu0 0.0
    %1239 = vmatpush1.msra.mxu0 %v926
    %1240 = vmatprep.subr.mxu0 0.0
    %1241 = vmatpush1.msra.mxu0 %v925
    %1242 = vmatprep.subr.mxu0 0.0
    %1243 = vmatpush1.msra.mxu0 %v924
    %1244 = vmatprep.subr.mxu0 0.0
    %1245 = vmatpush1.msra.mxu0 %v923
    %1246 = vmatprep.subr.mxu0 0.0
    %1247 = vmatpush1.msra.mxu0 %v922
    %1248 = vmatprep.subr.mxu0 0.0
    %1249 = vmatpush1.msra.mxu0 %v921
    %1250 = vmatprep.subr.mxu0 0.0
    %1251 = vmatpush1.msra.mxu0 %v920
    %1252 = vmatprep.subr.mxu0 0.0
    %1253 = vmatpush1.msra.mxu0 %v919
    %1254 = vmatprep.subr.mxu0 0.0
    %1255 = vmatpush1.msra.mxu0 %v918
    %1256 = vmatprep.subr.mxu0 0.0
    %1257 = vmatpush1.msra.mxu0 %v917
    %1258 = vmatprep.subr.mxu0 0.0
    %1259 = vmatpush1.msra.mxu0 %v916
    %1260 = vmatprep.subr.mxu0 0.0
    %1261 = vmatpush1.msra.mxu0 %v915
    %1262 = vmatprep.subr.mxu0 0.0
    %1263 = vmatpush1.msra.mxu0 %v914
    %1264 = vmatprep.subr.mxu0 0.0
    %1265 = vmatpush1.msra.mxu0 %v913
    %1266 = vmatprep.subr.mxu0 0.0
    %1267 = vmatpush1.msra.mxu0 %v912
    %1268 = vmatprep.subr.mxu0 0.0
    %1269 = vmatpush2.msra.mxu0 0.0
    %1270 = vmatprep.subr.mxu0 0.0
    %1271 = vmatpush2.msra.mxu0 0.0
    %1272 = vmatprep.subr.mxu0 0.0
    %1273 = vmatpush2.msra.mxu0 0.0
    %1274 = vmatprep.subr.mxu0 0.0
    %1275 = vmatpush2.msra.mxu0 0.0
    %1276 = vmatprep.subr.mxu0 0.0
    %1277 = vmatpush2.msra.mxu0 0.0
    %1278 = vmatprep.subr.mxu0 0.0
    %1279 = vmatpush2.msra.mxu0 0.0
    %1280 = vmatprep.subr.mxu0 0.0
    %1281 = vmatpush2.msra.mxu0 0.0
    %1282 = vmatprep.subr.mxu0 0.0
    %1283 = vmatpush2.msra.mxu0 0.0
    %1284 = vmatprep.subr.mxu0 0.0
    %1285 = vmatpush2.msra.mxu0 0.0
    %1286 = vmatprep.subr.mxu0 0.0
    %1287 = vmatpush2.msra.mxu0 0.0
    %1288 = vmatprep.subr.mxu0 0.0
    %1289 = vmatpush2.msra.mxu0 0.0
    %1290 = vmatprep.subr.mxu0 0.0
    %1291 = vmatpush2.msra.mxu0 %v932
    %1292 = vmatprep.subr.mxu0 0.0
    %1293 = vmatpush2.msra.mxu0 %v931
    %1294 = vmatprep.subr.mxu0 0.0
    %1295 = vmatpush2.msra.mxu0 %v930
    %1296 = vmatprep.subr.mxu0 0.0
    %1297 = vmatpush2.msra.mxu0 %v929
    %1298 = vmatprep.subr.mxu0 0.0
    %1299 = vmatpush2.msra.mxu0 %v928
    %1300 = vmatprep.mubr.f32.mxu0 %v1234
    %1301 = vmatmul.mubr.f32.gmra.mxu0 %v1231
    %v1302 = vpop.f32.mrf.mxu0
    %v1303 = vadd.f32 0.0, %v1302
    %v1304 = vpop.f32.mrf.mxu0
    %1305 = vdwg.mxu0
    %v1306 = vmul.f32 %v1303, %v1061
    %v1307 = vadd.f32 %v1306, 1e-05
    %v1308 = vrsqrt.pop %v1307
    %v1309 = vmul.f32 %v935, %v1308
    %v1310 = vmul.f32 %v1062, %v1309
    %v1311 = vsub.f32 %v936, %v1310
    %v1313 = vsel %vm1063, %v1309, 0
    %1315 = vmatprep.subr.mxu0 0.0
    %1316 = vmatpush1.msra.mxu0 0.0
    %1317 = vmatprep.subr.mxu0 0.0
    %1318 = vmatpush1.msra.mxu0 0.0
    %1319 = vmatprep.subr.mxu0 0.0
    %1320 = vmatpush1.msra.mxu0 0.0
    %1321 = vmatprep.subr.mxu0 0.0
    %1322 = vmatpush1.msra.mxu0 0.0
    %1323 = vmatprep.subr.mxu0 0.0
    %1324 = vmatpush1.msra.mxu0 0.0
    %1325 = vmatprep.subr.mxu0 0.0
    %1326 = vmatpush1.msra.mxu0 0.0
    %1327 = vmatprep.subr.mxu0 0.0
    %1328 = vmatpush1.msra.mxu0 0.0
    %1329 = vmatprep.subr.mxu0 0.0
    %1330 = vmatpush1.msra.mxu0 0.0
    %1331 = vmatprep.subr.mxu0 0.0
    %1332 = vmatpush1.msra.mxu0 0.0
    %1333 = vmatprep.subr.mxu0 0.0
    %1334 = vmatpush1.msra.mxu0 0.0
    %1335 = vmatprep.subr.mxu0 0.0
    %1336 = vmatpush1.msra.mxu0 0.0
    %1337 = vmatprep.subr.mxu0 0.0
    %1338 = vmatpush1.msra.mxu0 0.0
    %1339 = vmatprep.subr.mxu0 0.0
    %1340 = vmatpush1.msra.mxu0 0.0
    %1341 = vmatprep.subr.mxu0 0.0
    %1342 = vmatpush1.msra.mxu0 0.0
    %1343 = vmatprep.subr.mxu0 0.0
    %1344 = vmatpush1.msra.mxu0 0.0
    %1345 = vmatprep.subr.mxu0 %v1072
    %1346 = vmatpush1.msra.mxu0 %v1069
    %1347 = vmatprep.subr.mxu0 0.0
    %1348 = vmatpush2.msra.mxu0 0.0
    %1349 = vmatprep.subr.mxu0 0.0
    %1350 = vmatpush2.msra.mxu0 0.0
    %1351 = vmatprep.subr.mxu0 0.0
    %1352 = vmatpush2.msra.mxu0 0.0
    %1353 = vmatprep.subr.mxu0 0.0
    %1354 = vmatpush2.msra.mxu0 0.0
    %1355 = vmatprep.subr.mxu0 0.0
    %1356 = vmatpush2.msra.mxu0 0.0
    %1357 = vmatprep.subr.mxu0 0.0
    %1358 = vmatpush2.msra.mxu0 0.0
    %1359 = vmatprep.subr.mxu0 0.0
    %1360 = vmatpush2.msra.mxu0 0.0
    %1361 = vmatprep.subr.mxu0 0.0
    %1362 = vmatpush2.msra.mxu0 0.0
    %1363 = vmatprep.subr.mxu0 0.0
    %1364 = vmatpush2.msra.mxu0 0.0
    %1365 = vmatprep.subr.mxu0 0.0
    %1366 = vmatpush2.msra.mxu0 0.0
    %1367 = vmatprep.subr.mxu0 0.0
    %1368 = vmatpush2.msra.mxu0 0.0
    %1369 = vmatprep.subr.mxu0 0.0
    %1370 = vmatpush2.msra.mxu0 0.0
    %1371 = vmatprep.subr.mxu0 0.0
    %1372 = vmatpush2.msra.mxu0 0.0
    %1373 = vmatprep.subr.mxu0 0.0
    %1374 = vmatpush2.msra.mxu0 0.0
    %1375 = vmatprep.subr.mxu0 0.0
    %1376 = vmatpush2.msra.mxu0 0.0
    %1377 = vmatprep.subr.mxu0 0.0
    %1378 = vmatpush2.msra.mxu0 0.0
    %1379 = vmatprep.mubr.f32.mxu0 0.0
    %1380 = vmatmul.mubr.f32.gmra.mxu0 %v1313
    %v1381 = vpop.f32.mrf.mxu0
    %v1382 = vadd.f32 0.0, %v1381
    %v1383 = vpop.f32.mrf.mxu0
    %v1384 = vadd.f32 0.0, %v1383
    %1385 = vdwg.mxu0
    %v1387 = vsel %vm1063, %v1311, 0
    %1389 = vmatprep.subr.mxu0 0.0
    %1390 = vmatpush1.msra.mxu0 0.0
    %1391 = vmatprep.subr.mxu0 0.0
    %1392 = vmatpush1.msra.mxu0 0.0
    %1393 = vmatprep.subr.mxu0 0.0
    %1394 = vmatpush1.msra.mxu0 0.0
    %1395 = vmatprep.subr.mxu0 0.0
    %1396 = vmatpush1.msra.mxu0 0.0
    %1397 = vmatprep.subr.mxu0 0.0
    %1398 = vmatpush1.msra.mxu0 0.0
    %1399 = vmatprep.subr.mxu0 0.0
    %1400 = vmatpush1.msra.mxu0 0.0
    %1401 = vmatprep.subr.mxu0 0.0
    %1402 = vmatpush1.msra.mxu0 0.0
    %1403 = vmatprep.subr.mxu0 0.0
    %1404 = vmatpush1.msra.mxu0 0.0
    %1405 = vmatprep.subr.mxu0 0.0
    %1406 = vmatpush1.msra.mxu0 0.0
    %1407 = vmatprep.subr.mxu0 0.0
    %1408 = vmatpush1.msra.mxu0 0.0
    %1409 = vmatprep.subr.mxu0 0.0
    %1410 = vmatpush1.msra.mxu0 0.0
    %1411 = vmatprep.subr.mxu0 0.0
    %1412 = vmatpush1.msra.mxu0 0.0
    %1413 = vmatprep.subr.mxu0 0.0
    %1414 = vmatpush1.msra.mxu0 0.0
    %1415 = vmatprep.subr.mxu0 0.0
    %1416 = vmatpush1.msra.mxu0 0.0
    %1417 = vmatprep.subr.mxu0 0.0
    %1418 = vmatpush1.msra.mxu0 0.0
    %1419 = vmatprep.subr.mxu0 %v1072
    %1420 = vmatpush1.msra.mxu0 %v1069
    %1421 = vmatprep.subr.mxu0 0.0
    %1422 = vmatpush2.msra.mxu0 0.0
    %1423 = vmatprep.subr.mxu0 0.0
    %1424 = vmatpush2.msra.mxu0 0.0
    %1425 = vmatprep.subr.mxu0 0.0
    %1426 = vmatpush2.msra.mxu0 0.0
    %1427 = vmatprep.subr.mxu0 0.0
    %1428 = vmatpush2.msra.mxu0 0.0
    %1429 = vmatprep.subr.mxu0 0.0
    %1430 = vmatpush2.msra.mxu0 0.0
    %1431 = vmatprep.subr.mxu0 0.0
    %1432 = vmatpush2.msra.mxu0 0.0
    %1433 = vmatprep.subr.mxu0 0.0
    %1434 = vmatpush2.msra.mxu0 0.0
    %1435 = vmatprep.subr.mxu0 0.0
    %1436 = vmatpush2.msra.mxu0 0.0
    %1437 = vmatprep.subr.mxu0 0.0
    %1438 = vmatpush2.msra.mxu0 0.0
    %1439 = vmatprep.subr.mxu0 0.0
    %1440 = vmatpush2.msra.mxu0 0.0
    %1441 = vmatprep.subr.mxu0 0.0
    %1442 = vmatpush2.msra.mxu0 0.0
    %1443 = vmatprep.subr.mxu0 0.0
    %1444 = vmatpush2.msra.mxu0 0.0
    %1445 = vmatprep.subr.mxu0 0.0
    %1446 = vmatpush2.msra.mxu0 0.0
    %1447 = vmatprep.subr.mxu0 0.0
    %1448 = vmatpush2.msra.mxu0 0.0
    %1449 = vmatprep.subr.mxu0 0.0
    %1450 = vmatpush2.msra.mxu0 0.0
    %1451 = vmatprep.subr.mxu0 0.0
    %1452 = vmatpush2.msra.mxu0 0.0
    %1453 = vmatprep.mubr.f32.mxu0 0.0
    %1454 = vmatmul.mubr.f32.gmra.mxu0 %v1387
    %v1455 = vpop.f32.mrf.mxu0
    %v1456 = vadd.f32 0.0, %v1455
    %v1457 = vpop.f32.mrf.mxu0
    %v1458 = vadd.f32 0.0, %v1457
    %1459 = vdwg.mxu0
    %v1460 = vlaneseq
    %v1461 = vshrl.u32 %v1460, 7
    %v1462 = vsub.s32 0, %v1461
    %v1463 = vrot.slane %v1382, %v1462
    %v1464 = vlaneseq
    %v1465 = vshrl.u32 %v1464, 7
    %v1466 = vsub.s32 0, %v1465
    %v1467 = vrot.slane %v1384, %v1466
    %v1468 = vmul.f32 %v554, %v1463
    %v1469 = vmul.f32 %v555, %v1467
    %v1470 = vmul.f32 %v556, %v1463
    %v1471 = vmul.f32 %v557, %v1467
    %v1472 = vmul.f32 %v558, %v1463
    %v1473 = vmul.f32 %v559, %v1467
    %v1474 = vmul.f32 %v560, %v1463
    %v1475 = vmul.f32 %v561, %v1467
    %v1476 = vlaneseq
    %v1477 = vshrl.u32 %v1476, 7
    %v1478 = vsub.s32 0, %v1477
    %v1479 = vrot.slane %v1456, %v1478
    %v1480 = vlaneseq
    %v1481 = vshrl.u32 %v1480, 7
    %v1482 = vsub.s32 0, %v1481
    %v1483 = vrot.slane %v1458, %v1482
    %v1484 = vadd.f32 %v1468, %v1479
    %v1485 = vadd.f32 %v1469, %v1483
    %v1486 = vadd.f32 %v1470, %v1479
    %v1487 = vadd.f32 %v1471, %v1483
    %v1488 = vadd.f32 %v1472, %v1479
    %v1489 = vadd.f32 %v1473, %v1483
    %v1490 = vadd.f32 %v1474, %v1479
    %v1491 = vadd.f32 %v1475, %v1483
    %v1492 = vxor.u32 %v1484, 2147483648
    %v1493 = vxor.u32 %v1485, 2147483648
    %v1494 = vxor.u32 %v1486, 2147483648
    %v1495 = vxor.u32 %v1487, 2147483648
    %v1496 = vxor.u32 %v1488, 2147483648
    %v1497 = vxor.u32 %v1489, 2147483648
    %v1498 = vxor.u32 %v1490, 2147483648
    %v1499 = vxor.u32 %v1491, 2147483648
    %v1500 = vmul.f32 %v1492, 1.442695
    %v1501 = vpow.pop %v1500
    %v1502 = vmul.f32 %v1493, 1.442695
    %v1503 = vpow.pop %v1502
    %v1504 = vmul.f32 %v1494, 1.442695
    %v1505 = vpow.pop %v1504
    %v1506 = vmul.f32 %v1495, 1.442695
    %v1507 = vpow.pop %v1506
    %v1508 = vmul.f32 %v1496, 1.442695
    %v1509 = vpow.pop %v1508
    %v1510 = vmul.f32 %v1497, 1.442695
    %v1511 = vpow.pop %v1510
    %v1512 = vmul.f32 %v1498, 1.442695
    %v1513 = vpow.pop %v1512
    %v1514 = vmul.f32 %v1499, 1.442695
    %v1515 = vpow.pop %v1514
    %v1516 = vadd.f32 %v1501, 1.0
    %v1517 = vadd.f32 %v1503, 1.0
    %v1518 = vadd.f32 %v1505, 1.0
    %v1519 = vadd.f32 %v1507, 1.0
    %v1520 = vadd.f32 %v1509, 1.0
    %v1521 = vadd.f32 %v1511, 1.0
    %v1522 = vadd.f32 %v1513, 1.0
    %v1523 = vadd.f32 %v1515, 1.0
    %v1524 = vrcp.pop %v1516
    %v1525 = vmul.f32 1.0, %v1524
    %v1526 = vrcp.pop %v1517
    %v1527 = vmul.f32 1.0, %v1526
    %v1528 = vrcp.pop %v1518
    %v1529 = vmul.f32 1.0, %v1528
    %v1530 = vrcp.pop %v1519
    %v1531 = vmul.f32 1.0, %v1530
    %v1532 = vrcp.pop %v1520
    %v1533 = vmul.f32 1.0, %v1532
    %v1534 = vrcp.pop %v1521
    %v1535 = vmul.f32 1.0, %v1534
    %v1536 = vrcp.pop %v1522
    %v1537 = vmul.f32 1.0, %v1536
    %v1538 = vrcp.pop %v1523
    %v1539 = vmul.f32 1.0, %v1538
    %v1540 = vld [vmem:[%s4] sm:$0xff]
    %v1541 = vld [vmem:[%s4 + $0x8] sm:$0xff]
    %v1542 = vld [vmem:[%s4 + $0x10] sm:$0xff]
    %v1543 = vld [vmem:[%s4 + $0x18] sm:$0xff]
    %v1544 = vld [vmem:[%s4 + $0x20] sm:$0xff]
    %v1545 = vld [vmem:[%s4 + $0x28] sm:$0xff]
    %v1546 = vld [vmem:[%s4 + $0x30] sm:$0xff]
    %v1547 = vld [vmem:[%s4 + $0x38] sm:$0xff]
    %v1548 = vld [vmem:[%s4 + $0x40] sm:$0xff]
    %v1549 = vld [vmem:[%s4 + $0x48] sm:$0xff]
    %v1550 = vld [vmem:[%s4 + $0x50] sm:$0xff]
    %v1551 = vld [vmem:[%s4 + $0x58] sm:$0xff]
    %v1552 = vld [vmem:[%s4 + $0x60] sm:$0xff]
    %v1553 = vld [vmem:[%s4 + $0x68] sm:$0xff]
    %v1554 = vld [vmem:[%s4 + $0x70] sm:$0xff]
    %v1555 = vld [vmem:[%s4 + $0x78] sm:$0xff]
    %v1556 = vld [vmem:[%s4 + $0x80] sm:$0xff]
    %v1557 = vld [vmem:[%s4 + $0x88] sm:$0xff]
    %v1558 = vld [vmem:[%s4 + $0x90] sm:$0xff]
    %v1559 = vld [vmem:[%s4 + $0x98] sm:$0xff]
    %v1560 = vld [vmem:[%s4 + $0xa0] sm:$0xff]
    %v1562 = vsel %vm948, %v1527, 0
    %v1565 = vsel %vm948, %v1531, 0
    %v1568 = vsel %vm948, %v1535, 0
    %v1571 = vsel %vm948, %v1539, 0
    %1573 = vmatprep.subr.mxu0 0.0
    %1574 = vmatpush1.msra.mxu0 %v1555
    %1575 = vmatprep.subr.mxu0 0.0
    %1576 = vmatpush1.msra.mxu0 %v1554
    %1577 = vmatprep.subr.mxu0 0.0
    %1578 = vmatpush1.msra.mxu0 %v1553
    %1579 = vmatprep.subr.mxu0 0.0
    %1580 = vmatpush1.msra.mxu0 %v1552
    %1581 = vmatprep.subr.mxu0 0.0
    %1582 = vmatpush1.msra.mxu0 %v1551
    %1583 = vmatprep.subr.mxu0 0.0
    %1584 = vmatpush1.msra.mxu0 %v1550
    %1585 = vmatprep.subr.mxu0 0.0
    %1586 = vmatpush1.msra.mxu0 %v1549
    %1587 = vmatprep.subr.mxu0 0.0
    %1588 = vmatpush1.msra.mxu0 %v1548
    %1589 = vmatprep.subr.mxu0 0.0
    %1590 = vmatpush1.msra.mxu0 %v1547
    %1591 = vmatprep.subr.mxu0 0.0
    %1592 = vmatpush1.msra.mxu0 %v1546
    %1593 = vmatprep.subr.mxu0 0.0
    %1594 = vmatpush1.msra.mxu0 %v1545
    %1595 = vmatprep.subr.mxu0 0.0
    %1596 = vmatpush1.msra.mxu0 %v1544
    %1597 = vmatprep.subr.mxu0 0.0
    %1598 = vmatpush1.msra.mxu0 %v1543
    %1599 = vmatprep.subr.mxu0 0.0
    %1600 = vmatpush1.msra.mxu0 %v1542
    %1601 = vmatprep.subr.mxu0 0.0
    %1602 = vmatpush1.msra.mxu0 %v1541
    %1603 = vmatprep.subr.mxu0 0.0
    %1604 = vmatpush1.msra.mxu0 %v1540
    %1605 = vmatprep.subr.mxu0 0.0
    %1606 = vmatpush2.msra.mxu0 0.0
    %1607 = vmatprep.subr.mxu0 0.0
    %1608 = vmatpush2.msra.mxu0 0.0
    %1609 = vmatprep.subr.mxu0 0.0
    %1610 = vmatpush2.msra.mxu0 0.0
    %1611 = vmatprep.subr.mxu0 0.0
    %1612 = vmatpush2.msra.mxu0 0.0
    %1613 = vmatprep.subr.mxu0 0.0
    %1614 = vmatpush2.msra.mxu0 0.0
    %1615 = vmatprep.subr.mxu0 0.0
    %1616 = vmatpush2.msra.mxu0 0.0
    %1617 = vmatprep.subr.mxu0 0.0
    %1618 = vmatpush2.msra.mxu0 0.0
    %1619 = vmatprep.subr.mxu0 0.0
    %1620 = vmatpush2.msra.mxu0 0.0
    %1621 = vmatprep.subr.mxu0 0.0
    %1622 = vmatpush2.msra.mxu0 0.0
    %1623 = vmatprep.subr.mxu0 0.0
    %1624 = vmatpush2.msra.mxu0 0.0
    %1625 = vmatprep.subr.mxu0 0.0
    %1626 = vmatpush2.msra.mxu0 0.0
    %1627 = vmatprep.subr.mxu0 0.0
    %1628 = vmatpush2.msra.mxu0 %v1560
    %1629 = vmatprep.subr.mxu0 0.0
    %1630 = vmatpush2.msra.mxu0 %v1559
    %1631 = vmatprep.subr.mxu0 0.0
    %1632 = vmatpush2.msra.mxu0 %v1558
    %1633 = vmatprep.subr.mxu0 0.0
    %1634 = vmatpush2.msra.mxu0 %v1557
    %1635 = vmatprep.subr.mxu0 0.0
    %1636 = vmatpush2.msra.mxu0 %v1556
    %1637 = vmatprep.mubr.f32.mxu0 %v1562
    %1638 = vmatmul.mubr.f32.gmra.mxu0 %v1525
    %v1639 = vpop.f32.mrf.mxu0
    %v1640 = vadd.f32 0.0, %v1639
    %v1641 = vpop.f32.mrf.mxu0
    %1642 = vmatprep.mubr.f32.mxu0 %v1565
    %1643 = vmatmul.mubr.f32.gmra.mxu0 %v1529
    %v1644 = vpop.f32.mrf.mxu0
    %v1645 = vadd.f32 0.0, %v1644
    %v1646 = vpop.f32.mrf.mxu0
    %1647 = vmatprep.mubr.f32.mxu0 %v1568
    %1648 = vmatmul.mubr.f32.gmra.mxu0 %v1533
    %v1649 = vpop.f32.mrf.mxu0
    %v1650 = vadd.f32 0.0, %v1649
    %v1651 = vpop.f32.mrf.mxu0
    %1652 = vmatprep.mubr.f32.mxu0 %v1571
    %1653 = vmatmul.mubr.f32.gmra.mxu0 %v1537
    %v1654 = vpop.f32.mrf.mxu0
    %v1655 = vadd.f32 0.0, %v1654
    %v1656 = vpop.f32.mrf.mxu0
    %1657 = vdwg.mxu0
    %v1658 = vld [vmem:[%s5] sm:$0xff]
    %v1659 = vld [vmem:[%s5 + $0x8] sm:$0xff]
    %v1660 = vld [vmem:[%s5 + $0x10] sm:$0xff]
    %v1661 = vld [vmem:[%s5 + $0x18] sm:$0xff]
    %v1662 = vld [vmem:[%s5 + $0x20] sm:$0xff]
    %v1663 = vld [vmem:[%s5 + $0x28] sm:$0xff]
    %v1664 = vld [vmem:[%s5 + $0x30] sm:$0xff]
    %v1665 = vld [vmem:[%s5 + $0x38] sm:$0xff]
    %v1666 = vld [vmem:[%s5 + $0x40] sm:$0xff]
    %v1667 = vld [vmem:[%s5 + $0x48] sm:$0xff]
    %v1668 = vld [vmem:[%s5 + $0x50] sm:$0xff]
    %v1669 = vld [vmem:[%s5 + $0x58] sm:$0xff]
    %v1670 = vld [vmem:[%s5 + $0x60] sm:$0xff]
    %v1671 = vld [vmem:[%s5 + $0x68] sm:$0xff]
    %v1672 = vld [vmem:[%s5 + $0x70] sm:$0xff]
    %v1673 = vld [vmem:[%s5 + $0x78] sm:$0xff]
    %v1674 = vld [vmem:[%s5 + $0x80] sm:$0xff]
    %v1675 = vld [vmem:[%s5 + $0x88] sm:$0xff]
    %v1676 = vld [vmem:[%s5 + $0x90] sm:$0xff]
    %v1677 = vld [vmem:[%s5 + $0x98] sm:$0xff]
    %v1678 = vld [vmem:[%s5 + $0xa0] sm:$0xff]
    %1679 = vmatprep.subr.mxu0 0.0
    %1680 = vmatpush1.msra.mxu0 %v1673
    %1681 = vmatprep.subr.mxu0 0.0
    %1682 = vmatpush1.msra.mxu0 %v1672
    %1683 = vmatprep.subr.mxu0 0.0
    %1684 = vmatpush1.msra.mxu0 %v1671
    %1685 = vmatprep.subr.mxu0 0.0
    %1686 = vmatpush1.msra.mxu0 %v1670
    %1687 = vmatprep.subr.mxu0 0.0
    %1688 = vmatpush1.msra.mxu0 %v1669
    %1689 = vmatprep.subr.mxu0 0.0
    %1690 = vmatpush1.msra.mxu0 %v1668
    %1691 = vmatprep.subr.mxu0 0.0
    %1692 = vmatpush1.msra.mxu0 %v1667
    %1693 = vmatprep.subr.mxu0 0.0
    %1694 = vmatpush1.msra.mxu0 %v1666
    %1695 = vmatprep.subr.mxu0 0.0
    %1696 = vmatpush1.msra.mxu0 %v1665
    %1697 = vmatprep.subr.mxu0 0.0
    %1698 = vmatpush1.msra.mxu0 %v1664
    %1699 = vmatprep.subr.mxu0 0.0
    %1700 = vmatpush1.msra.mxu0 %v1663
    %1701 = vmatprep.subr.mxu0 0.0
    %1702 = vmatpush1.msra.mxu0 %v1662
    %1703 = vmatprep.subr.mxu0 0.0
    %1704 = vmatpush1.msra.mxu0 %v1661
    %1705 = vmatprep.subr.mxu0 0.0
    %1706 = vmatpush1.msra.mxu0 %v1660
    %1707 = vmatprep.subr.mxu0 0.0
    %1708 = vmatpush1.msra.mxu0 %v1659
    %1709 = vmatprep.subr.mxu0 0.0
    %1710 = vmatpush1.msra.mxu0 %v1658
    %1711 = vmatprep.subr.mxu0 0.0
    %1712 = vmatpush2.msra.mxu0 0.0
    %1713 = vmatprep.subr.mxu0 0.0
    %1714 = vmatpush2.msra.mxu0 0.0
    %1715 = vmatprep.subr.mxu0 0.0
    %1716 = vmatpush2.msra.mxu0 0.0
    %1717 = vmatprep.subr.mxu0 0.0
    %1718 = vmatpush2.msra.mxu0 0.0
    %1719 = vmatprep.subr.mxu0 0.0
    %1720 = vmatpush2.msra.mxu0 0.0
    %1721 = vmatprep.subr.mxu0 0.0
    %1722 = vmatpush2.msra.mxu0 0.0
    %1723 = vmatprep.subr.mxu0 0.0
    %1724 = vmatpush2.msra.mxu0 0.0
    %1725 = vmatprep.subr.mxu0 0.0
    %1726 = vmatpush2.msra.mxu0 0.0
    %1727 = vmatprep.subr.mxu0 0.0
    %1728 = vmatpush2.msra.mxu0 0.0
    %1729 = vmatprep.subr.mxu0 0.0
    %1730 = vmatpush2.msra.mxu0 0.0
    %1731 = vmatprep.subr.mxu0 0.0
    %1732 = vmatpush2.msra.mxu0 0.0
    %1733 = vmatprep.subr.mxu0 0.0
    %1734 = vmatpush2.msra.mxu0 %v1678
    %1735 = vmatprep.subr.mxu0 0.0
    %1736 = vmatpush2.msra.mxu0 %v1677
    %1737 = vmatprep.subr.mxu0 0.0
    %1738 = vmatpush2.msra.mxu0 %v1676
    %1739 = vmatprep.subr.mxu0 0.0
    %1740 = vmatpush2.msra.mxu0 %v1675
    %1741 = vmatprep.subr.mxu0 0.0
    %1742 = vmatpush2.msra.mxu0 %v1674
    %1743 = vmatprep.mubr.f32.mxu0 %v1562
    %1744 = vmatmul.mubr.f32.gmra.mxu0 %v1525
    %v1745 = vpop.f32.mrf.mxu0
    %v1746 = vadd.f32 0.0, %v1745
    %v1747 = vpop.f32.mrf.mxu0
    %1748 = vmatprep.mubr.f32.mxu0 %v1565
    %1749 = vmatmul.mubr.f32.gmra.mxu0 %v1529
    %v1750 = vpop.f32.mrf.mxu0
    %v1751 = vadd.f32 0.0, %v1750
    %v1752 = vpop.f32.mrf.mxu0
    %1753 = vmatprep.mubr.f32.mxu0 %v1568
    %1754 = vmatmul.mubr.f32.gmra.mxu0 %v1533
    %v1755 = vpop.f32.mrf.mxu0
    %v1756 = vadd.f32 0.0, %v1755
    %v1757 = vpop.f32.mrf.mxu0
    %1758 = vmatprep.mubr.f32.mxu0 %v1571
    %1759 = vmatmul.mubr.f32.gmra.mxu0 %v1537
    %v1760 = vpop.f32.mrf.mxu0
    %v1761 = vadd.f32 0.0, %v1760
    %v1762 = vpop.f32.mrf.mxu0
    %1763 = vdwg.mxu0
    %v1764 = vmax.f32 %v1640, %v1746
    %v1765 = vmax.f32 %v1645, %v1751
    %v1766 = vmax.f32 %v1650, %v1756
    %v1767 = vmax.f32 %v1655, %v1761
    %v1768 = vld [vmem:[%s6] sm:$0xff]
    %v1769 = vld [vmem:[%s6 + $0x8] sm:$0x3f]
    %vm1770 = vcmask 228352
    %v1772 = vsel %vm1770, %v1768, 0
    %v1775 = vsel %vm1770, %v1769, 0
    %v1778 = vsel %vm939, %v1767, 0
    %1780 = vmatprep.subr.mxu0 0.0
    %1781 = vmatpush1.msra.mxu0 0.0
    %1782 = vmatprep.subr.mxu0 0.0
    %1783 = vmatpush1.msra.mxu0 0.0
    %1784 = vmatprep.subr.mxu0 0.0
    %1785 = vmatpush1.msra.mxu0 0.0
    %1786 = vmatprep.subr.mxu0 0.0
    %1787 = vmatpush1.msra.mxu0 0.0
    %1788 = vmatprep.subr.mxu0 0.0
    %1789 = vmatpush1.msra.mxu0 0.0
    %1790 = vmatprep.subr.mxu0 0.0
    %1791 = vmatpush1.msra.mxu0 0.0
    %1792 = vmatprep.subr.mxu0 0.0
    %1793 = vmatpush1.msra.mxu0 0.0
    %1794 = vmatprep.subr.mxu0 0.0
    %1795 = vmatpush1.msra.mxu0 0.0
    %1796 = vmatprep.subr.mxu0 0.0
    %1797 = vmatpush1.msra.mxu0 0.0
    %1798 = vmatprep.subr.mxu0 0.0
    %1799 = vmatpush1.msra.mxu0 0.0
    %1800 = vmatprep.subr.mxu0 0.0
    %1801 = vmatpush1.msra.mxu0 0.0
    %1802 = vmatprep.subr.mxu0 0.0
    %1803 = vmatpush1.msra.mxu0 0.0
    %1804 = vmatprep.subr.mxu0 0.0
    %1805 = vmatpush1.msra.mxu0 %v1778
    %1806 = vmatprep.subr.mxu0 0.0
    %1807 = vmatpush1.msra.mxu0 %v1766
    %1808 = vmatprep.subr.mxu0 0.0
    %1809 = vmatpush1.msra.mxu0 %v1765
    %1810 = vmatprep.subr.mxu0 0.0
    %1811 = vmatpush1.msra.mxu0 %v1764
    %1812 = vmatprep.subr.mxu0 0.0
    %1813 = vmatpush2.msra.mxu0 0.0
    %1814 = vmatprep.subr.mxu0 0.0
    %1815 = vmatpush2.msra.mxu0 0.0
    %1816 = vmatprep.subr.mxu0 0.0
    %1817 = vmatpush2.msra.mxu0 0.0
    %1818 = vmatprep.subr.mxu0 0.0
    %1819 = vmatpush2.msra.mxu0 0.0
    %1820 = vmatprep.subr.mxu0 0.0
    %1821 = vmatpush2.msra.mxu0 0.0
    %1822 = vmatprep.subr.mxu0 0.0
    %1823 = vmatpush2.msra.mxu0 0.0
    %1824 = vmatprep.subr.mxu0 0.0
    %1825 = vmatpush2.msra.mxu0 0.0
    %1826 = vmatprep.subr.mxu0 0.0
    %1827 = vmatpush2.msra.mxu0 0.0
    %1828 = vmatprep.subr.mxu0 0.0
    %1829 = vmatpush2.msra.mxu0 0.0
    %1830 = vmatprep.subr.mxu0 0.0
    %1831 = vmatpush2.msra.mxu0 0.0
    %1832 = vmatprep.subr.mxu0 0.0
    %1833 = vmatpush2.msra.mxu0 0.0
    %1834 = vmatprep.subr.mxu0 0.0
    %1835 = vmatpush2.msra.mxu0 0.0
    %1836 = vmatprep.subr.mxu0 0.0
    %1837 = vmatpush2.msra.mxu0 0.0
    %1838 = vmatprep.subr.mxu0 0.0
    %1839 = vmatpush2.msra.mxu0 0.0
    %1840 = vmatprep.subr.mxu0 0.0
    %1841 = vmatpush2.msra.mxu0 0.0
    %1842 = vmatprep.subr.mxu0 0.0
    %1843 = vmatpush2.msra.mxu0 0.0
    %1844 = vmatprep.mubr.f32.mxu0 0.0
    %1845 = vmatmul.mubr.f32.gmra.mxu0 %v1772
    %v1846 = vpop.f32.mrf.mxu0
    %v1847 = vadd.f32 0.0, %v1846
    %v1848 = vpop.f32.mrf.mxu0
    %1849 = vmatprep.mubr.f32.mxu0 0.0
    %1850 = vmatmul.mubr.f32.gmra.mxu0 %v1775
    %v1851 = vpop.f32.mrf.mxu0
    %v1852 = vadd.f32 0.0, %v1851
    %v1853 = vpop.f32.mrf.mxu0
    %1854 = vdwg.mxu0
    %v1855 = vld [vmem:[%s7] sm:$0xff]
    %v1856 = vld [vmem:[%s7 + $0x8] sm:$0x3f]
    %v1858 = vsel %vm1770, %v1855, 0
    %v1861 = vsel %vm1770, %v1856, 0
    %1863 = vmatprep.subr.mxu0 0.0
    %1864 = vmatpush1.msra.mxu0 0.0
    %1865 = vmatprep.subr.mxu0 0.0
    %1866 = vmatpush1.msra.mxu0 0.0
    %1867 = vmatprep.subr.mxu0 0.0
    %1868 = vmatpush1.msra.mxu0 0.0
    %1869 = vmatprep.subr.mxu0 0.0
    %1870 = vmatpush1.msra.mxu0 0.0
    %1871 = vmatprep.subr.mxu0 0.0
    %1872 = vmatpush1.msra.mxu0 0.0
    %1873 = vmatprep.subr.mxu0 0.0
    %1874 = vmatpush1.msra.mxu0 0.0
    %1875 = vmatprep.subr.mxu0 0.0
    %1876 = vmatpush1.msra.mxu0 0.0
    %1877 = vmatprep.subr.mxu0 0.0
    %1878 = vmatpush1.msra.mxu0 0.0
    %1879 = vmatprep.subr.mxu0 0.0
    %1880 = vmatpush1.msra.mxu0 0.0
    %1881 = vmatprep.subr.mxu0 0.0
    %1882 = vmatpush1.msra.mxu0 0.0
    %1883 = vmatprep.subr.mxu0 0.0
    %1884 = vmatpush1.msra.mxu0 0.0
    %1885 = vmatprep.subr.mxu0 0.0
    %1886 = vmatpush1.msra.mxu0 0.0
    %1887 = vmatprep.subr.mxu0 0.0
    %1888 = vmatpush1.msra.mxu0 %v1778
    %1889 = vmatprep.subr.mxu0 0.0
    %1890 = vmatpush1.msra.mxu0 %v1766
    %1891 = vmatprep.subr.mxu0 0.0
    %1892 = vmatpush1.msra.mxu0 %v1765
    %1893 = vmatprep.subr.mxu0 0.0
    %1894 = vmatpush1.msra.mxu0 %v1764
    %1895 = vmatprep.subr.mxu0 0.0
    %1896 = vmatpush2.msra.mxu0 0.0
    %1897 = vmatprep.subr.mxu0 0.0
    %1898 = vmatpush2.msra.mxu0 0.0
    %1899 = vmatprep.subr.mxu0 0.0
    %1900 = vmatpush2.msra.mxu0 0.0
    %1901 = vmatprep.subr.mxu0 0.0
    %1902 = vmatpush2.msra.mxu0 0.0
    %1903 = vmatprep.subr.mxu0 0.0
    %1904 = vmatpush2.msra.mxu0 0.0
    %1905 = vmatprep.subr.mxu0 0.0
    %1906 = vmatpush2.msra.mxu0 0.0
    %1907 = vmatprep.subr.mxu0 0.0
    %1908 = vmatpush2.msra.mxu0 0.0
    %1909 = vmatprep.subr.mxu0 0.0
    %1910 = vmatpush2.msra.mxu0 0.0
    %1911 = vmatprep.subr.mxu0 0.0
    %1912 = vmatpush2.msra.mxu0 0.0
    %1913 = vmatprep.subr.mxu0 0.0
    %1914 = vmatpush2.msra.mxu0 0.0
    %1915 = vmatprep.subr.mxu0 0.0
    %1916 = vmatpush2.msra.mxu0 0.0
    %1917 = vmatprep.subr.mxu0 0.0
    %1918 = vmatpush2.msra.mxu0 0.0
    %1919 = vmatprep.subr.mxu0 0.0
    %1920 = vmatpush2.msra.mxu0 0.0
    %1921 = vmatprep.subr.mxu0 0.0
    %1922 = vmatpush2.msra.mxu0 0.0
    %1923 = vmatprep.subr.mxu0 0.0
    %1924 = vmatpush2.msra.mxu0 0.0
    %1925 = vmatprep.subr.mxu0 0.0
    %1926 = vmatpush2.msra.mxu0 0.0
    %1927 = vmatprep.mubr.f32.mxu0 0.0
    %1928 = vmatmul.mubr.f32.gmra.mxu0 %v1858
    %v1929 = vpop.f32.mrf.mxu0
    %v1930 = vadd.f32 0.0, %v1929
    %v1931 = vpop.f32.mrf.mxu0
    %1932 = vmatprep.mubr.f32.mxu0 0.0
    %1933 = vmatmul.mubr.f32.gmra.mxu0 %v1861
    %v1934 = vpop.f32.mrf.mxu0
    %v1935 = vadd.f32 0.0, %v1934
    %v1936 = vpop.f32.mrf.mxu0
    %1937 = vdwg.mxu0
    %v1938 = vmax.f32 %v1847, %v1930
    %v1939 = vmax.f32 %v1852, %v1935
    %vm1940 = vcmask 687104
    %1941 = vst.msk [vmem:[#allocation2] sm:$0xff] %vm1940, %v1938
    %vm1942 = vcmask 685056
    %1943 = vst.msk [vmem:[#allocation2 + $0x8] sm:$0x3f] %vm1942, %v1939
    %v1944 = vmul.f32 %v904, %v1463
    %v1945 = vmul.f32 %v905, %v1467
    %v1946 = vmul.f32 %v906, %v1463
    %v1947 = vmul.f32 %v907, %v1467
    %v1948 = vmul.f32 %v908, %v1463
    %v1949 = vmul.f32 %v909, %v1467
    %v1950 = vmul.f32 %v910, %v1463
    %v1951 = vmul.f32 %v911, %v1467
    %v1952 = vadd.f32 %v1944, %v1479
    %v1953 = vadd.f32 %v1945, %v1483
    %v1954 = vadd.f32 %v1946, %v1479
    %v1955 = vadd.f32 %v1947, %v1483
    %v1956 = vadd.f32 %v1948, %v1479
    %v1957 = vadd.f32 %v1949, %v1483
    %v1958 = vadd.f32 %v1950, %v1479
    %v1959 = vadd.f32 %v1951, %v1483
    %v1960 = vxor.u32 %v1952, 2147483648
    %v1961 = vxor.u32 %v1953, 2147483648
    %v1962 = vxor.u32 %v1954, 2147483648
    %v1963 = vxor.u32 %v1955, 2147483648
    %v1964 = vxor.u32 %v1956, 2147483648
    %v1965 = vxor.u32 %v1957, 2147483648
    %v1966 = vxor.u32 %v1958, 2147483648
    %v1967 = vxor.u32 %v1959, 2147483648
    %v1968 = vmul.f32 %v1960, 1.442695
    %v1969 = vpow.pop %v1968
    %v1970 = vmul.f32 %v1961, 1.442695
    %v1971 = vpow.pop %v1970
    %v1972 = vmul.f32 %v1962, 1.442695
    %v1973 = vpow.pop %v1972
    %v1974 = vmul.f32 %v1963, 1.442695
    %v1975 = vpow.pop %v1974
    %v1976 = vmul.f32 %v1964, 1.442695
    %v1977 = vpow.pop %v1976
    %v1978 = vmul.f32 %v1965, 1.442695
    %v1979 = vpow.pop %v1978
    %v1980 = vmul.f32 %v1966, 1.442695
    %v1981 = vpow.pop %v1980
    %v1982 = vmul.f32 %v1967, 1.442695
    %v1983 = vpow.pop %v1982
    %v1984 = vadd.f32 %v1969, 1.0
    %v1985 = vadd.f32 %v1971, 1.0
    %v1986 = vadd.f32 %v1973, 1.0
    %v1987 = vadd.f32 %v1975, 1.0
    %v1988 = vadd.f32 %v1977, 1.0
    %v1989 = vadd.f32 %v1979, 1.0
    %v1990 = vadd.f32 %v1981, 1.0
    %v1991 = vadd.f32 %v1983, 1.0
    %v1992 = vrcp.pop %v1984
    %v1993 = vmul.f32 1.0, %v1992
    %v1994 = vrcp.pop %v1985
    %v1995 = vmul.f32 1.0, %v1994
    %v1996 = vrcp.pop %v1986
    %v1997 = vmul.f32 1.0, %v1996
    %v1998 = vrcp.pop %v1987
    %v1999 = vmul.f32 1.0, %v1998
    %v2000 = vrcp.pop %v1988
    %v2001 = vmul.f32 1.0, %v2000
    %v2002 = vrcp.pop %v1989
    %v2003 = vmul.f32 1.0, %v2002
    %v2004 = vrcp.pop %v1990
    %v2005 = vmul.f32 1.0, %v2004
    %v2006 = vrcp.pop %v1991
    %v2007 = vmul.f32 1.0, %v2006
    %v2008 = vld [vmem:[%s4] sm:$0xff]
    %v2009 = vld [vmem:[%s4 + $0x8] sm:$0xff]
    %v2010 = vld [vmem:[%s4 + $0x10] sm:$0xff]
    %v2011 = vld [vmem:[%s4 + $0x18] sm:$0xff]
    %v2012 = vld [vmem:[%s4 + $0x20] sm:$0xff]
    %v2013 = vld [vmem:[%s4 + $0x28] sm:$0xff]
    %v2014 = vld [vmem:[%s4 + $0x30] sm:$0xff]
    %v2015 = vld [vmem:[%s4 + $0x38] sm:$0xff]
    %v2016 = vld [vmem:[%s4 + $0x40] sm:$0xff]
    %v2017 = vld [vmem:[%s4 + $0x48] sm:$0xff]
    %v2018 = vld [vmem:[%s4 + $0x50] sm:$0xff]
    %v2019 = vld [vmem:[%s4 + $0x58] sm:$0xff]
    %v2020 = vld [vmem:[%s4 + $0x60] sm:$0xff]
    %v2021 = vld [vmem:[%s4 + $0x68] sm:$0xff]
    %v2022 = vld [vmem:[%s4 + $0x70] sm:$0xff]
    %v2023 = vld [vmem:[%s4 + $0x78] sm:$0xff]
    %v2024 = vld [vmem:[%s4 + $0x80] sm:$0xff]
    %v2025 = vld [vmem:[%s4 + $0x88] sm:$0xff]
    %v2026 = vld [vmem:[%s4 + $0x90] sm:$0xff]
    %v2027 = vld [vmem:[%s4 + $0x98] sm:$0xff]
    %v2028 = vld [vmem:[%s4 + $0xa0] sm:$0xff]
    %v2030 = vsel %vm948, %v1995, 0
    %v2033 = vsel %vm948, %v1999, 0
    %v2036 = vsel %vm948, %v2003, 0
    %v2039 = vsel %vm948, %v2007, 0
    %2041 = vmatprep.subr.mxu0 0.0
    %2042 = vmatpush1.msra.mxu0 %v2023
    %2043 = vmatprep.subr.mxu0 0.0
    %2044 = vmatpush1.msra.mxu0 %v2022
    %2045 = vmatprep.subr.mxu0 0.0
    %2046 = vmatpush1.msra.mxu0 %v2021
    %2047 = vmatprep.subr.mxu0 0.0
    %2048 = vmatpush1.msra.mxu0 %v2020
    %2049 = vmatprep.subr.mxu0 0.0
    %2050 = vmatpush1.msra.mxu0 %v2019
    %2051 = vmatprep.subr.mxu0 0.0
    %2052 = vmatpush1.msra.mxu0 %v2018
    %2053 = vmatprep.subr.mxu0 0.0
    %2054 = vmatpush1.msra.mxu0 %v2017
    %2055 = vmatprep.subr.mxu0 0.0
    %2056 = vmatpush1.msra.mxu0 %v2016
    %2057 = vmatprep.subr.mxu0 0.0
    %2058 = vmatpush1.msra.mxu0 %v2015
    %2059 = vmatprep.subr.mxu0 0.0
    %2060 = vmatpush1.msra.mxu0 %v2014
    %2061 = vmatprep.subr.mxu0 0.0
    %2062 = vmatpush1.msra.mxu0 %v2013
    %2063 = vmatprep.subr.mxu0 0.0
    %2064 = vmatpush1.msra.mxu0 %v2012
    %2065 = vmatprep.subr.mxu0 0.0
    %2066 = vmatpush1.msra.mxu0 %v2011
    %2067 = vmatprep.subr.mxu0 0.0
    %2068 = vmatpush1.msra.mxu0 %v2010
    %2069 = vmatprep.subr.mxu0 0.0
    %2070 = vmatpush1.msra.mxu0 %v2009
    %2071 = vmatprep.subr.mxu0 0.0
    %2072 = vmatpush1.msra.mxu0 %v2008
    %2073 = vmatprep.subr.mxu0 0.0
    %2074 = vmatpush2.msra.mxu0 0.0
    %2075 = vmatprep.subr.mxu0 0.0
    %2076 = vmatpush2.msra.mxu0 0.0
    %2077 = vmatprep.subr.mxu0 0.0
    %2078 = vmatpush2.msra.mxu0 0.0
    %2079 = vmatprep.subr.mxu0 0.0
    %2080 = vmatpush2.msra.mxu0 0.0
    %2081 = vmatprep.subr.mxu0 0.0
    %2082 = vmatpush2.msra.mxu0 0.0
    %2083 = vmatprep.subr.mxu0 0.0
    %2084 = vmatpush2.msra.mxu0 0.0
    %2085 = vmatprep.subr.mxu0 0.0
    %2086 = vmatpush2.msra.mxu0 0.0
    %2087 = vmatprep.subr.mxu0 0.0
    %2088 = vmatpush2.msra.mxu0 0.0
    %2089 = vmatprep.subr.mxu0 0.0
    %2090 = vmatpush2.msra.mxu0 0.0
    %2091 = vmatprep.subr.mxu0 0.0
    %2092 = vmatpush2.msra.mxu0 0.0
    %2093 = vmatprep.subr.mxu0 0.0
    %2094 = vmatpush2.msra.mxu0 0.0
    %2095 = vmatprep.subr.mxu0 0.0
    %2096 = vmatpush2.msra.mxu0 %v2028
    %2097 = vmatprep.subr.mxu0 0.0
    %2098 = vmatpush2.msra.mxu0 %v2027
    %2099 = vmatprep.subr.mxu0 0.0
    %2100 = vmatpush2.msra.mxu0 %v2026
    %2101 = vmatprep.subr.mxu0 0.0
    %2102 = vmatpush2.msra.mxu0 %v2025
    %2103 = vmatprep.subr.mxu0 0.0
    %2104 = vmatpush2.msra.mxu0 %v2024
    %2105 = vmatprep.mubr.f32.mxu0 %v2030
    %2106 = vmatmul.mubr.f32.gmra.mxu0 %v1993
    %v2107 = vpop.f32.mrf.mxu0
    %v2108 = vadd.f32 0.0, %v2107
    %v2109 = vpop.f32.mrf.mxu0
    %2110 = vmatprep.mubr.f32.mxu0 %v2033
    %2111 = vmatmul.mubr.f32.gmra.mxu0 %v1997
    %v2112 = vpop.f32.mrf.mxu0
    %v2113 = vadd.f32 0.0, %v2112
    %v2114 = vpop.f32.mrf.mxu0
    %2115 = vmatprep.mubr.f32.mxu0 %v2036
    %2116 = vmatmul.mubr.f32.gmra.mxu0 %v2001
    %v2117 = vpop.f32.mrf.mxu0
    %v2118 = vadd.f32 0.0, %v2117
    %v2119 = vpop.f32.mrf.mxu0
    %2120 = vmatprep.mubr.f32.mxu0 %v2039
    %2121 = vmatmul.mubr.f32.gmra.mxu0 %v2005
    %v2122 = vpop.f32.mrf.mxu0
    %v2123 = vadd.f32 0.0, %v2122
    %v2124 = vpop.f32.mrf.mxu0
    %2125 = vdwg.mxu0
    %v2126 = vld [vmem:[%s5] sm:$0xff]
    %v2127 = vld [vmem:[%s5 + $0x8] sm:$0xff]
    %v2128 = vld [vmem:[%s5 + $0x10] sm:$0xff]
    %v2129 = vld [vmem:[%s5 + $0x18] sm:$0xff]
    %v2130 = vld [vmem:[%s5 + $0x20] sm:$0xff]
    %v2131 = vld [vmem:[%s5 + $0x28] sm:$0xff]
    %v2132 = vld [vmem:[%s5 + $0x30] sm:$0xff]
    %v2133 = vld [vmem:[%s5 + $0x38] sm:$0xff]
    %v2134 = vld [vmem:[%s5 + $0x40] sm:$0xff]
    %v2135 = vld [vmem:[%s5 + $0x48] sm:$0xff]
    %v2136 = vld [vmem:[%s5 + $0x50] sm:$0xff]
    %v2137 = vld [vmem:[%s5 + $0x58] sm:$0xff]
    %v2138 = vld [vmem:[%s5 + $0x60] sm:$0xff]
    %v2139 = vld [vmem:[%s5 + $0x68] sm:$0xff]
    %v2140 = vld [vmem:[%s5 + $0x70] sm:$0xff]
    %v2141 = vld [vmem:[%s5 + $0x78] sm:$0xff]
    %v2142 = vld [vmem:[%s5 + $0x80] sm:$0xff]
    %v2143 = vld [vmem:[%s5 + $0x88] sm:$0xff]
    %v2144 = vld [vmem:[%s5 + $0x90] sm:$0xff]
    %v2145 = vld [vmem:[%s5 + $0x98] sm:$0xff]
    %v2146 = vld [vmem:[%s5 + $0xa0] sm:$0xff]
    %2147 = vmatprep.subr.mxu0 0.0
    %2148 = vmatpush1.msra.mxu0 %v2141
    %2149 = vmatprep.subr.mxu0 0.0
    %2150 = vmatpush1.msra.mxu0 %v2140
    %2151 = vmatprep.subr.mxu0 0.0
    %2152 = vmatpush1.msra.mxu0 %v2139
    %2153 = vmatprep.subr.mxu0 0.0
    %2154 = vmatpush1.msra.mxu0 %v2138
    %2155 = vmatprep.subr.mxu0 0.0
    %2156 = vmatpush1.msra.mxu0 %v2137
    %2157 = vmatprep.subr.mxu0 0.0
    %2158 = vmatpush1.msra.mxu0 %v2136
    %2159 = vmatprep.subr.mxu0 0.0
    %2160 = vmatpush1.msra.mxu0 %v2135
    %2161 = vmatprep.subr.mxu0 0.0
    %2162 = vmatpush1.msra.mxu0 %v2134
    %2163 = vmatprep.subr.mxu0 0.0
    %2164 = vmatpush1.msra.mxu0 %v2133
    %2165 = vmatprep.subr.mxu0 0.0
    %2166 = vmatpush1.msra.mxu0 %v2132
    %2167 = vmatprep.subr.mxu0 0.0
    %2168 = vmatpush1.msra.mxu0 %v2131
    %2169 = vmatprep.subr.mxu0 0.0
    %2170 = vmatpush1.msra.mxu0 %v2130
    %2171 = vmatprep.subr.mxu0 0.0
    %2172 = vmatpush1.msra.mxu0 %v2129
    %2173 = vmatprep.subr.mxu0 0.0
    %2174 = vmatpush1.msra.mxu0 %v2128
    %2175 = vmatprep.subr.mxu0 0.0
    %2176 = vmatpush1.msra.mxu0 %v2127
    %2177 = vmatprep.subr.mxu0 0.0
    %2178 = vmatpush1.msra.mxu0 %v2126
    %2179 = vmatprep.subr.mxu0 0.0
    %2180 = vmatpush2.msra.mxu0 0.0
    %2181 = vmatprep.subr.mxu0 0.0
    %2182 = vmatpush2.msra.mxu0 0.0
    %2183 = vmatprep.subr.mxu0 0.0
    %2184 = vmatpush2.msra.mxu0 0.0
    %2185 = vmatprep.subr.mxu0 0.0
    %2186 = vmatpush2.msra.mxu0 0.0
    %2187 = vmatprep.subr.mxu0 0.0
    %2188 = vmatpush2.msra.mxu0 0.0
    %2189 = vmatprep.subr.mxu0 0.0
    %2190 = vmatpush2.msra.mxu0 0.0
    %2191 = vmatprep.subr.mxu0 0.0
    %2192 = vmatpush2.msra.mxu0 0.0
    %2193 = vmatprep.subr.mxu0 0.0
    %2194 = vmatpush2.msra.mxu0 0.0
    %2195 = vmatprep.subr.mxu0 0.0
    %2196 = vmatpush2.msra.mxu0 0.0
    %2197 = vmatprep.subr.mxu0 0.0
    %2198 = vmatpush2.msra.mxu0 0.0
    %2199 = vmatprep.subr.mxu0 0.0
    %2200 = vmatpush2.msra.mxu0 0.0
    %2201 = vmatprep.subr.mxu0 0.0
    %2202 = vmatpush2.msra.mxu0 %v2146
    %2203 = vmatprep.subr.mxu0 0.0
    %2204 = vmatpush2.msra.mxu0 %v2145
    %2205 = vmatprep.subr.mxu0 0.0
    %2206 = vmatpush2.msra.mxu0 %v2144
    %2207 = vmatprep.subr.mxu0 0.0
    %2208 = vmatpush2.msra.mxu0 %v2143
    %2209 = vmatprep.subr.mxu0 0.0
    %2210 = vmatpush2.msra.mxu0 %v2142
    %2211 = vmatprep.mubr.f32.mxu0 %v2030
    %2212 = vmatmul.mubr.f32.gmra.mxu0 %v1993
    %v2213 = vpop.f32.mrf.mxu0
    %v2214 = vadd.f32 0.0, %v2213
    %v2215 = vpop.f32.mrf.mxu0
    %2216 = vmatprep.mubr.f32.mxu0 %v2033
    %2217 = vmatmul.mubr.f32.gmra.mxu0 %v1997
    %v2218 = vpop.f32.mrf.mxu0
    %v2219 = vadd.f32 0.0, %v2218
    %v2220 = vpop.f32.mrf.mxu0
    %2221 = vmatprep.mubr.f32.mxu0 %v2036
    %2222 = vmatmul.mubr.f32.gmra.mxu0 %v2001
    %v2223 = vpop.f32.mrf.mxu0
    %v2224 = vadd.f32 0.0, %v2223
    %v2225 = vpop.f32.mrf.mxu0
    %2226 = vmatprep.mubr.f32.mxu0 %v2039
    %2227 = vmatmul.mubr.f32.gmra.mxu0 %v2005
    %v2228 = vpop.f32.mrf.mxu0
    %v2229 = vadd.f32 0.0, %v2228
    %v2230 = vpop.f32.mrf.mxu0
    %2231 = vdwg.mxu0
    %v2232 = vmax.f32 %v2108, %v2214
    %v2233 = vmax.f32 %v2113, %v2219
    %v2234 = vmax.f32 %v2118, %v2224
    %v2235 = vmax.f32 %v2123, %v2229
    %v2236 = vld [vmem:[%s6] sm:$0xff]
    %v2237 = vld [vmem:[%s6 + $0x8] sm:$0x3f]
    %v2239 = vsel %vm1770, %v2236, 0
    %v2242 = vsel %vm1770, %v2237, 0
    %v2245 = vsel %vm939, %v2235, 0
    %2247 = vmatprep.subr.mxu0 0.0
    %2248 = vmatpush1.msra.mxu0 0.0
    %2249 = vmatprep.subr.mxu0 0.0
    %2250 = vmatpush1.msra.mxu0 0.0
    %2251 = vmatprep.subr.mxu0 0.0
    %2252 = vmatpush1.msra.mxu0 0.0
    %2253 = vmatprep.subr.mxu0 0.0
    %2254 = vmatpush1.msra.mxu0 0.0
    %2255 = vmatprep.subr.mxu0 0.0
    %2256 = vmatpush1.msra.mxu0 0.0
    %2257 = vmatprep.subr.mxu0 0.0
    %2258 = vmatpush1.msra.mxu0 0.0
    %2259 = vmatprep.subr.mxu0 0.0
    %2260 = vmatpush1.msra.mxu0 0.0
    %2261 = vmatprep.subr.mxu0 0.0
    %2262 = vmatpush1.msra.mxu0 0.0
    %2263 = vmatprep.subr.mxu0 0.0
    %2264 = vmatpush1.msra.mxu0 0.0
    %2265 = vmatprep.subr.mxu0 0.0
    %2266 = vmatpush1.msra.mxu0 0.0
    %2267 = vmatprep.subr.mxu0 0.0
    %2268 = vmatpush1.msra.mxu0 0.0
    %2269 = vmatprep.subr.mxu0 0.0
    %2270 = vmatpush1.msra.mxu0 0.0
    %2271 = vmatprep.subr.mxu0 0.0
    %2272 = vmatpush1.msra.mxu0 %v2245
    %2273 = vmatprep.subr.mxu0 0.0
    %2274 = vmatpush1.msra.mxu0 %v2234
    %2275 = vmatprep.subr.mxu0 0.0
    %2276 = vmatpush1.msra.mxu0 %v2233
    %2277 = vmatprep.subr.mxu0 0.0
    %2278 = vmatpush1.msra.mxu0 %v2232
    %2279 = vmatprep.subr.mxu0 0.0
    %2280 = vmatpush2.msra.mxu0 0.0
    %2281 = vmatprep.subr.mxu0 0.0
    %2282 = vmatpush2.msra.mxu0 0.0
    %2283 = vmatprep.subr.mxu0 0.0
    %2284 = vmatpush2.msra.mxu0 0.0
    %2285 = vmatprep.subr.mxu0 0.0
    %2286 = vmatpush2.msra.mxu0 0.0
    %2287 = vmatprep.subr.mxu0 0.0
    %2288 = vmatpush2.msra.mxu0 0.0
    %2289 = vmatprep.subr.mxu0 0.0
    %2290 = vmatpush2.msra.mxu0 0.0
    %2291 = vmatprep.subr.mxu0 0.0
    %2292 = vmatpush2.msra.mxu0 0.0
    %2293 = vmatprep.subr.mxu0 0.0
    %2294 = vmatpush2.msra.mxu0 0.0
    %2295 = vmatprep.subr.mxu0 0.0
    %2296 = vmatpush2.msra.mxu0 0.0
    %2297 = vmatprep.subr.mxu0 0.0
    %2298 = vmatpush2.msra.mxu0 0.0
    %2299 = vmatprep.subr.mxu0 0.0
    %2300 = vmatpush2.msra.mxu0 0.0
    %2301 = vmatprep.subr.mxu0 0.0
    %2302 = vmatpush2.msra.mxu0 0.0
    %2303 = vmatprep.subr.mxu0 0.0
    %2304 = vmatpush2.msra.mxu0 0.0
    %2305 = vmatprep.subr.mxu0 0.0
    %2306 = vmatpush2.msra.mxu0 0.0
    %2307 = vmatprep.subr.mxu0 0.0
    %2308 = vmatpush2.msra.mxu0 0.0
    %2309 = vmatprep.subr.mxu0 0.0
    %2310 = vmatpush2.msra.mxu0 0.0
    %2311 = vmatprep.mubr.f32.mxu0 0.0
    %2312 = vmatmul.mubr.f32.gmra.mxu0 %v2239
    %v2313 = vpop.f32.mrf.mxu0
    %v2314 = vadd.f32 0.0, %v2313
    %v2315 = vpop.f32.mrf.mxu0
    %2316 = vmatprep.mubr.f32.mxu0 0.0
    %2317 = vmatmul.mubr.f32.gmra.mxu0 %v2242
    %v2318 = vpop.f32.mrf.mxu0
    %v2319 = vadd.f32 0.0, %v2318
    %v2320 = vpop.f32.mrf.mxu0
    %2321 = vdwg.mxu0
    %v2322 = vld [vmem:[%s7] sm:$0xff]
    %v2323 = vld [vmem:[%s7 + $0x8] sm:$0x3f]
    %v2325 = vsel %vm1770, %v2322, 0
    %v2328 = vsel %vm1770, %v2323, 0
    %2330 = vmatprep.subr.mxu0 0.0
    %2331 = vmatpush1.msra.mxu0 0.0
    %2332 = vmatprep.subr.mxu0 0.0
    %2333 = vmatpush1.msra.mxu0 0.0
    %2334 = vmatprep.subr.mxu0 0.0
    %2335 = vmatpush1.msra.mxu0 0.0
    %2336 = vmatprep.subr.mxu0 0.0
    %2337 = vmatpush1.msra.mxu0 0.0
    %2338 = vmatprep.subr.mxu0 0.0
    %2339 = vmatpush1.msra.mxu0 0.0
    %2340 = vmatprep.subr.mxu0 0.0
    %2341 = vmatpush1.msra.mxu0 0.0
    %2342 = vmatprep.subr.mxu0 0.0
    %2343 = vmatpush1.msra.mxu0 0.0
    %2344 = vmatprep.subr.mxu0 0.0
    %2345 = vmatpush1.msra.mxu0 0.0
    %2346 = vmatprep.subr.mxu0 0.0
    %2347 = vmatpush1.msra.mxu0 0.0
    %2348 = vmatprep.subr.mxu0 0.0
    %2349 = vmatpush1.msra.mxu0 0.0
    %2350 = vmatprep.subr.mxu0 0.0
    %2351 = vmatpush1.msra.mxu0 0.0
    %2352 = vmatprep.subr.mxu0 0.0
    %2353 = vmatpush1.msra.mxu0 0.0
    %2354 = vmatprep.subr.mxu0 0.0
    %2355 = vmatpush1.msra.mxu0 %v2245
    %2356 = vmatprep.subr.mxu0 0.0
    %2357 = vmatpush1.msra.mxu0 %v2234
    %2358 = vmatprep.subr.mxu0 0.0
    %2359 = vmatpush1.msra.mxu0 %v2233
    %2360 = vmatprep.subr.mxu0 0.0
    %2361 = vmatpush1.msra.mxu0 %v2232
    %2362 = vmatprep.subr.mxu0 0.0
    %2363 = vmatpush2.msra.mxu0 0.0
    %2364 = vmatprep.subr.mxu0 0.0
    %2365 = vmatpush2.msra.mxu0 0.0
    %2366 = vmatprep.subr.mxu0 0.0
    %2367 = vmatpush2.msra.mxu0 0.0
    %2368 = vmatprep.subr.mxu0 0.0
    %2369 = vmatpush2.msra.mxu0 0.0
    %2370 = vmatprep.subr.mxu0 0.0
    %2371 = vmatpush2.msra.mxu0 0.0
    %2372 = vmatprep.subr.mxu0 0.0
    %2373 = vmatpush2.msra.mxu0 0.0
    %2374 = vmatprep.subr.mxu0 0.0
    %2375 = vmatpush2.msra.mxu0 0.0
    %2376 = vmatprep.subr.mxu0 0.0
    %2377 = vmatpush2.msra.mxu0 0.0
    %2378 = vmatprep.subr.mxu0 0.0
    %2379 = vmatpush2.msra.mxu0 0.0
    %2380 = vmatprep.subr.mxu0 0.0
    %2381 = vmatpush2.msra.mxu0 0.0
    %2382 = vmatprep.subr.mxu0 0.0
    %2383 = vmatpush2.msra.mxu0 0.0
    %2384 = vmatprep.subr.mxu0 0.0
    %2385 = vmatpush2.msra.mxu0 0.0
    %2386 = vmatprep.subr.mxu0 0.0
    %2387 = vmatpush2.msra.mxu0 0.0
    %2388 = vmatprep.subr.mxu0 0.0
    %2389 = vmatpush2.msra.mxu0 0.0
    %2390 = vmatprep.subr.mxu0 0.0
    %2391 = vmatpush2.msra.mxu0 0.0
    %2392 = vmatprep.subr.mxu0 0.0
    %2393 = vmatpush2.msra.mxu0 0.0
    %2394 = vmatprep.mubr.f32.mxu0 0.0
    %2395 = vmatmul.mubr.f32.gmra.mxu0 %v2325
    %v2396 = vpop.f32.mrf.mxu0
    %v2397 = vadd.f32 0.0, %v2396
    %v2398 = vpop.f32.mrf.mxu0
    %2399 = vmatprep.mubr.f32.mxu0 0.0
    %2400 = vmatmul.mubr.f32.gmra.mxu0 %v2328
    %v2401 = vpop.f32.mrf.mxu0
    %v2402 = vadd.f32 0.0, %v2401
    %v2403 = vpop.f32.mrf.mxu0
    %2404 = vdwg.mxu0
    %v2405 = vmax.f32 %v2314, %v2397
    %v2406 = vmax.f32 %v2319, %v2402
    %2407 = vst.msk [vmem:[#allocation2 + $0xe] sm:$0xff] %vm1940, %v2405
    %2408 = vst.msk [vmem:[#allocation2 + $0x16] sm:$0x3f] %vm1942, %v2406
    %v2409 = vld [vmem:[#allocation2] sm:$0xff]
    %v2410 = vld [vmem:[#allocation2 + $0x8] sm:$0x3]
    %v2411 = vld [vmem:[%s10] sm:$0xff]
    %v2412 = vld [vmem:[%s10 + $0x8] sm:$0xff]
    %v2413 = vld [vmem:[%s10 + $0x10] sm:$0xff]
    %v2414 = vld [vmem:[%s10 + $0x18] sm:$0xff]
    %v2415 = vld [vmem:[%s10 + $0x20] sm:$0xff]
    %v2416 = vld [vmem:[%s10 + $0x28] sm:$0xff]
    %v2417 = vld [vmem:[%s10 + $0x30] sm:$0xff]
    %v2418 = vld [vmem:[%s10 + $0x38] sm:$0xff]
    %v2419 = vld [vmem:[%s10 + $0x40] sm:$0xff]
    %v2420 = vld [vmem:[%s10 + $0x48] sm:$0xff]
    %v2421 = vld [vmem:[%s10 + $0x50] sm:$0x33]
    %v2422 = vpack.c.bf16 %v2410, %v2409
    %v2423 = vld [vmem:[#allocation2 + $0x1] sm:$0xff]
    %v2424 = vld [vmem:[#allocation2 + $0x9] sm:$0x3]
    %s2425 = scalar_lea.vmem %s10, 88
    %v2426 = vld [vmem:[%s2425] sm:$0xff]
    %v2427 = vld [vmem:[%s2425 + $0x8] sm:$0xff]
    %v2428 = vld [vmem:[%s2425 + $0x10] sm:$0xff]
    %v2429 = vld [vmem:[%s2425 + $0x18] sm:$0xff]
    %v2430 = vld [vmem:[%s2425 + $0x20] sm:$0xff]
    %v2431 = vld [vmem:[%s2425 + $0x28] sm:$0xff]
    %v2432 = vld [vmem:[%s2425 + $0x30] sm:$0xff]
    %v2433 = vld [vmem:[%s2425 + $0x38] sm:$0xff]
    %v2434 = vld [vmem:[%s2425 + $0x40] sm:$0xff]
    %v2435 = vld [vmem:[%s2425 + $0x48] sm:$0xff]
    %v2436 = vld [vmem:[%s2425 + $0x50] sm:$0x33]
    %v2437 = vpack.c.bf16 %v2424, %v2423
    %v2449 = vunpack.c.l.b16 %v2426
    %v2450 = vunpack.c.h.b16 %v2426
    %v2451 = vunpack.c.l.b16 %v2427
    %v2452 = vunpack.c.h.b16 %v2427
    %v2453 = vunpack.c.l.b16 %v2428
    %v2454 = vunpack.c.h.b16 %v2428
    %v2455 = vunpack.c.l.b16 %v2429
    %v2456 = vunpack.c.h.b16 %v2429
    %v2457 = vunpack.c.l.b16 %v2430
    %v2458 = vunpack.c.h.b16 %v2430
    %v2459 = vunpack.c.l.b16 %v2431
    %v2460 = vunpack.c.h.b16 %v2431
    %v2461 = vunpack.c.l.b16 %v2432
    %v2462 = vunpack.c.h.b16 %v2432
    %v2463 = vunpack.c.l.b16 %v2433
    %v2464 = vunpack.c.h.b16 %v2433
    %v2465 = vunpack.c.l.b16 %v2434
    %v2466 = vunpack.c.h.b16 %v2434
    %v2467 = vunpack.c.l.b16 %v2435
    %v2468 = vunpack.c.h.b16 %v2435
    %v2469 = vunpack.c.l.b16 %v2436
    %v2470 = vunpack.c.h.b16 %v2436
    %v2471 = vpack.c.b16 %v2451, %v2449
    %v2472 = vpack.c.b16 %v2452, %v2450
    %v2473 = vpack.c.b16 %v2455, %v2453
    %v2474 = vpack.c.b16 %v2456, %v2454
    %v2475 = vpack.c.b16 %v2459, %v2457
    %v2476 = vpack.c.b16 %v2460, %v2458
    %v2477 = vpack.c.b16 %v2463, %v2461
    %v2478 = vpack.c.b16 %v2464, %v2462
    %v2479 = vpack.c.b16 %v2467, %v2465
    %v2480 = vpack.c.b16 %v2468, %v2466
    %v2481 = vpack.c.b16 %v2469, %v2469
    %v2482 = vpack.c.b16 %v2470, %v2470
    %v2494 = vsel %vm1940, %v2437, 0
    %vm2496 = vcmask 1041408
    %v2498 = vsel %vm2496, %v2481, 0
    %v2501 = vsel %vm2496, %v2482, 0
    %2503 = vmatprep.subr.bf16.mxu0 0
    %2504 = vmatpush1.bf16.msra.mxu0 0
    %2505 = vmatprep.subr.bf16.mxu0 0
    %2506 = vmatpush1.bf16.msra.mxu0 0
    %2507 = vmatprep.subr.bf16.mxu0 %v2501
    %2508 = vmatpush1.bf16.msra.mxu0 %v2498
    %2509 = vmatprep.subr.bf16.mxu0 %v2480
    %2510 = vmatpush1.bf16.msra.mxu0 %v2479
    %2511 = vmatprep.subr.bf16.mxu0 %v2478
    %2512 = vmatpush1.bf16.msra.mxu0 %v2477
    %2513 = vmatprep.subr.bf16.mxu0 %v2476
    %2514 = vmatpush1.bf16.msra.mxu0 %v2475
    %2515 = vmatprep.subr.bf16.mxu0 %v2474
    %2516 = vmatpush1.bf16.msra.mxu0 %v2473
    %2517 = vmatprep.subr.bf16.mxu0 %v2472
    %2518 = vmatpush1.bf16.msra.mxu0 %v2471
    %2519 = vmatprep.subr.bf16.mxu0 0
    %2520 = vmatpush2.bf16.msra.mxu0 0
    %2521 = vmatprep.subr.bf16.mxu0 0
    %2522 = vmatpush2.bf16.msra.mxu0 0
    %2523 = vmatprep.subr.bf16.mxu0 0
    %2524 = vmatpush2.bf16.msra.mxu0 0
    %2525 = vmatprep.subr.bf16.mxu0 0
    %2526 = vmatpush2.bf16.msra.mxu0 0
    %2527 = vmatprep.subr.bf16.mxu0 0
    %2528 = vmatpush2.bf16.msra.mxu0 0
    %2529 = vmatprep.subr.bf16.mxu0 0
    %2530 = vmatpush2.bf16.msra.mxu0 0
    %2531 = vmatprep.subr.bf16.mxu0 0
    %2532 = vmatpush2.bf16.msra.mxu0 0
    %2533 = vmatprep.subr.bf16.mxu0 0
    %2534 = vmatpush2.bf16.msra.mxu0 0
    %2535 = vmatprep.mubr.bf16.mxu0 0
    %2536 = vmatmul.mubr.bf16.gmra.mxu0 %v2494
    %v2537 = vpop.f32.mrf.mxu0
    %v2538 = vadd.f32 0.0, %v2537
    %v2539 = vpop.f32.mrf.mxu0
    %v2540 = vadd.f32 0.0, %v2539
    %v2541 = vpop.f32.mrf.mxu0
    %v2542 = vadd.f32 0.0, %v2541
    %v2543 = vpop.f32.mrf.mxu0
    %v2544 = vadd.f32 0.0, %v2543
    %2545 = vdwg.mxu0
    %v2557 = vunpack.c.l.b16 %v2411
    %v2558 = vunpack.c.h.b16 %v2411
    %v2559 = vunpack.c.l.b16 %v2412
    %v2560 = vunpack.c.h.b16 %v2412
    %v2561 = vunpack.c.l.b16 %v2413
    %v2562 = vunpack.c.h.b16 %v2413
    %v2563 = vunpack.c.l.b16 %v2414
    %v2564 = vunpack.c.h.b16 %v2414
    %v2565 = vunpack.c.l.b16 %v2415
    %v2566 = vunpack.c.h.b16 %v2415
    %v2567 = vunpack.c.l.b16 %v2416
    %v2568 = vunpack.c.h.b16 %v2416
    %v2569 = vunpack.c.l.b16 %v2417
    %v2570 = vunpack.c.h.b16 %v2417
    %v2571 = vunpack.c.l.b16 %v2418
    %v2572 = vunpack.c.h.b16 %v2418
    %v2573 = vunpack.c.l.b16 %v2419
    %v2574 = vunpack.c.h.b16 %v2419
    %v2575 = vunpack.c.l.b16 %v2420
    %v2576 = vunpack.c.h.b16 %v2420
    %v2577 = vunpack.c.l.b16 %v2421
    %v2578 = vunpack.c.h.b16 %v2421
    %v2579 = vpack.c.b16 %v2559, %v2557
    %v2580 = vpack.c.b16 %v2560, %v2558
    %v2581 = vpack.c.b16 %v2563, %v2561
    %v2582 = vpack.c.b16 %v2564, %v2562
    %v2583 = vpack.c.b16 %v2567, %v2565
    %v2584 = vpack.c.b16 %v2568, %v2566
    %v2585 = vpack.c.b16 %v2571, %v2569
    %v2586 = vpack.c.b16 %v2572, %v2570
    %v2587 = vpack.c.b16 %v2575, %v2573
    %v2588 = vpack.c.b16 %v2576, %v2574
    %v2589 = vpack.c.b16 %v2577, %v2577
    %v2590 = vpack.c.b16 %v2578, %v2578
    %v2602 = vsel %vm1940, %v2422, 0
    %v2605 = vsel %vm2496, %v2589, 0
    %v2608 = vsel %vm2496, %v2590, 0
    %2610 = vmatprep.subr.bf16.mxu0 0
    %2611 = vmatpush1.bf16.msra.mxu0 0
    %2612 = vmatprep.subr.bf16.mxu0 0
    %2613 = vmatpush1.bf16.msra.mxu0 0
    %2614 = vmatprep.subr.bf16.mxu0 %v2608
    %2615 = vmatpush1.bf16.msra.mxu0 %v2605
    %2616 = vmatprep.subr.bf16.mxu0 %v2588
    %2617 = vmatpush1.bf16.msra.mxu0 %v2587
    %2618 = vmatprep.subr.bf16.mxu0 %v2586
    %2619 = vmatpush1.bf16.msra.mxu0 %v2585
    %2620 = vmatprep.subr.bf16.mxu0 %v2584
    %2621 = vmatpush1.bf16.msra.mxu0 %v2583
    %2622 = vmatprep.subr.bf16.mxu0 %v2582
    %2623 = vmatpush1.bf16.msra.mxu0 %v2581
    %2624 = vmatprep.subr.bf16.mxu0 %v2580
    %2625 = vmatpush1.bf16.msra.mxu0 %v2579
    %2626 = vmatprep.subr.bf16.mxu0 0
    %2627 = vmatpush2.bf16.msra.mxu0 0
    %2628 = vmatprep.subr.bf16.mxu0 0
    %2629 = vmatpush2.bf16.msra.mxu0 0
    %2630 = vmatprep.subr.bf16.mxu0 0
    %2631 = vmatpush2.bf16.msra.mxu0 0
    %2632 = vmatprep.subr.bf16.mxu0 0
    %2633 = vmatpush2.bf16.msra.mxu0 0
    %2634 = vmatprep.subr.bf16.mxu0 0
    %2635 = vmatpush2.bf16.msra.mxu0 0
    %2636 = vmatprep.subr.bf16.mxu0 0
    %2637 = vmatpush2.bf16.msra.mxu0 0
    %2638 = vmatprep.subr.bf16.mxu0 0
    %2639 = vmatpush2.bf16.msra.mxu0 0
    %2640 = vmatprep.subr.bf16.mxu0 0
    %2641 = vmatpush2.bf16.msra.mxu0 0
    %2642 = vmatprep.mubr.bf16.mxu0 0
    %2643 = vmatmul.mubr.bf16.gmra.mxu0 %v2602
    %v2644 = vpop.f32.mrf.mxu0
    %v2645 = vadd.f32 %v2538, %v2644
    %v2646 = vpop.f32.mrf.mxu0
    %v2647 = vadd.f32 %v2540, %v2646
    %v2648 = vpop.f32.mrf.mxu0
    %v2649 = vadd.f32 %v2542, %v2648
    %v2650 = vpop.f32.mrf.mxu0
    %v2651 = vadd.f32 %v2544, %v2650
    %2652 = vdwg.mxu0
    %v2653 = vld [vmem:[#allocation2 + $0x2] sm:$0xff]
    %v2654 = vld [vmem:[#allocation2 + $0xa] sm:$0x3]
    %s2655 = scalar_lea.vmem %s10, 176
    %v2656 = vld [vmem:[%s2655] sm:$0xff]
    %v2657 = vld [vmem:[%s2655 + $0x8] sm:$0xff]
    %v2658 = vld [vmem:[%s2655 + $0x10] sm:$0xff]
    %v2659 = vld [vmem:[%s2655 + $0x18] sm:$0xff]
    %v2660 = vld [vmem:[%s2655 + $0x20] sm:$0xff]
    %v2661 = vld [vmem:[%s2655 + $0x28] sm:$0xff]
    %v2662 = vld [vmem:[%s2655 + $0x30] sm:$0xff]
    %v2663 = vld [vmem:[%s2655 + $0x38] sm:$0xff]
    %v2664 = vld [vmem:[%s2655 + $0x40] sm:$0xff]
    %v2665 = vld [vmem:[%s2655 + $0x48] sm:$0xff]
    %v2666 = vld [vmem:[%s2655 + $0x50] sm:$0x33]
    %v2667 = vpack.c.bf16 %v2654, %v2653
    %v2679 = vunpack.c.l.b16 %v2656
    %v2680 = vunpack.c.h.b16 %v2656
    %v2681 = vunpack.c.l.b16 %v2657
    %v2682 = vunpack.c.h.b16 %v2657
    %v2683 = vunpack.c.l.b16 %v2658
    %v2684 = vunpack.c.h.b16 %v2658
    %v2685 = vunpack.c.l.b16 %v2659
    %v2686 = vunpack.c.h.b16 %v2659
    %v2687 = vunpack.c.l.b16 %v2660
    %v2688 = vunpack.c.h.b16 %v2660
    %v2689 = vunpack.c.l.b16 %v2661
    %v2690 = vunpack.c.h.b16 %v2661
    %v2691 = vunpack.c.l.b16 %v2662
    %v2692 = vunpack.c.h.b16 %v2662
    %v2693 = vunpack.c.l.b16 %v2663
    %v2694 = vunpack.c.h.b16 %v2663
    %v2695 = vunpack.c.l.b16 %v2664
    %v2696 = vunpack.c.h.b16 %v2664
    %v2697 = vunpack.c.l.b16 %v2665
    %v2698 = vunpack.c.h.b16 %v2665
    %v2699 = vunpack.c.l.b16 %v2666
    %v2700 = vunpack.c.h.b16 %v2666
    %v2701 = vpack.c.b16 %v2681, %v2679
    %v2702 = vpack.c.b16 %v2682, %v2680
    %v2703 = vpack.c.b16 %v2685, %v2683
    %v2704 = vpack.c.b16 %v2686, %v2684
    %v2705 = vpack.c.b16 %v2689, %v2687
    %v2706 = vpack.c.b16 %v2690, %v2688
    %v2707 = vpack.c.b16 %v2693, %v2691
    %v2708 = vpack.c.b16 %v2694, %v2692
    %v2709 = vpack.c.b16 %v2697, %v2695
    %v2710 = vpack.c.b16 %v2698, %v2696
    %v2711 = vpack.c.b16 %v2699, %v2699
    %v2712 = vpack.c.b16 %v2700, %v2700
    %v2724 = vsel %vm1940, %v2667, 0
    %v2727 = vsel %vm2496, %v2711, 0
    %v2730 = vsel %vm2496, %v2712, 0
    %2732 = vmatprep.subr.bf16.mxu0 0
    %2733 = vmatpush1.bf16.msra.mxu0 0
    %2734 = vmatprep.subr.bf16.mxu0 0
    %2735 = vmatpush1.bf16.msra.mxu0 0
    %2736 = vmatprep.subr.bf16.mxu0 %v2730
    %2737 = vmatpush1.bf16.msra.mxu0 %v2727
    %2738 = vmatprep.subr.bf16.mxu0 %v2710
    %2739 = vmatpush1.bf16.msra.mxu0 %v2709
    %2740 = vmatprep.subr.bf16.mxu0 %v2708
    %2741 = vmatpush1.bf16.msra.mxu0 %v2707
    %2742 = vmatprep.subr.bf16.mxu0 %v2706
    %2743 = vmatpush1.bf16.msra.mxu0 %v2705
    %2744 = vmatprep.subr.bf16.mxu0 %v2704
    %2745 = vmatpush1.bf16.msra.mxu0 %v2703
    %2746 = vmatprep.subr.bf16.mxu0 %v2702
    %2747 = vmatpush1.bf16.msra.mxu0 %v2701
    %2748 = vmatprep.subr.bf16.mxu0 0
    %2749 = vmatpush2.bf16.msra.mxu0 0
    %2750 = vmatprep.subr.bf16.mxu0 0
    %2751 = vmatpush2.bf16.msra.mxu0 0
    %2752 = vmatprep.subr.bf16.mxu0 0
    %2753 = vmatpush2.bf16.msra.mxu0 0
    %2754 = vmatprep.subr.bf16.mxu0 0
    %2755 = vmatpush2.bf16.msra.mxu0 0
    %2756 = vmatprep.subr.bf16.mxu0 0
    %2757 = vmatpush2.bf16.msra.mxu0 0
    %2758 = vmatprep.subr.bf16.mxu0 0
    %2759 = vmatpush2.bf16.msra.mxu0 0
    %2760 = vmatprep.subr.bf16.mxu0 0
    %2761 = vmatpush2.bf16.msra.mxu0 0
    %2762 = vmatprep.subr.bf16.mxu0 0
    %2763 = vmatpush2.bf16.msra.mxu0 0
    %2764 = vmatprep.mubr.bf16.mxu0 0
    %2765 = vmatmul.mubr.bf16.gmra.mxu0 %v2724
    %v2766 = vpop.f32.mrf.mxu0
    %v2767 = vadd.f32 0.0, %v2766
    %v2768 = vpop.f32.mrf.mxu0
    %v2769 = vadd.f32 0.0, %v2768
    %v2770 = vpop.f32.mrf.mxu0
    %v2771 = vadd.f32 0.0, %v2770
    %v2772 = vpop.f32.mrf.mxu0
    %v2773 = vadd.f32 0.0, %v2772
    %2774 = vdwg.mxu0
    %v2775 = vadd.f32 %v2645, %v2767
    %v2776 = vadd.f32 %v2647, %v2769
    %v2777 = vadd.f32 %v2649, %v2771
    %v2778 = vadd.f32 %v2651, %v2773
    %v2779 = vld [vmem:[#allocation2 + $0x3] sm:$0xff]
    %v2780 = vld [vmem:[#allocation2 + $0xb] sm:$0x3]
    %s2781 = scalar_lea.vmem %s10, 264
    %v2782 = vld [vmem:[%s2781] sm:$0xff]
    %v2783 = vld [vmem:[%s2781 + $0x8] sm:$0xff]
    %v2784 = vld [vmem:[%s2781 + $0x10] sm:$0xff]
    %v2785 = vld [vmem:[%s2781 + $0x18] sm:$0xff]
    %v2786 = vld [vmem:[%s2781 + $0x20] sm:$0xff]
    %v2787 = vld [vmem:[%s2781 + $0x28] sm:$0xff]
    %v2788 = vld [vmem:[%s2781 + $0x30] sm:$0xff]
    %v2789 = vld [vmem:[%s2781 + $0x38] sm:$0xff]
    %v2790 = vld [vmem:[%s2781 + $0x40] sm:$0xff]
    %v2791 = vld [vmem:[%s2781 + $0x48] sm:$0xff]
    %v2792 = vld [vmem:[%s2781 + $0x50] sm:$0x33]
    %v2793 = vpack.c.bf16 %v2780, %v2779
    %v2805 = vunpack.c.l.b16 %v2782
    %v2806 = vunpack.c.h.b16 %v2782
    %v2807 = vunpack.c.l.b16 %v2783
    %v2808 = vunpack.c.h.b16 %v2783
    %v2809 = vunpack.c.l.b16 %v2784
    %v2810 = vunpack.c.h.b16 %v2784
    %v2811 = vunpack.c.l.b16 %v2785
    %v2812 = vunpack.c.h.b16 %v2785
    %v2813 = vunpack.c.l.b16 %v2786
    %v2814 = vunpack.c.h.b16 %v2786
    %v2815 = vunpack.c.l.b16 %v2787
    %v2816 = vunpack.c.h.b16 %v2787
    %v2817 = vunpack.c.l.b16 %v2788
    %v2818 = vunpack.c.h.b16 %v2788
    %v2819 = vunpack.c.l.b16 %v2789
    %v2820 = vunpack.c.h.b16 %v2789
    %v2821 = vunpack.c.l.b16 %v2790
    %v2822 = vunpack.c.h.b16 %v2790
    %v2823 = vunpack.c.l.b16 %v2791
    %v2824 = vunpack.c.h.b16 %v2791
    %v2825 = vunpack.c.l.b16 %v2792
    %v2826 = vunpack.c.h.b16 %v2792
    %v2827 = vpack.c.b16 %v2807, %v2805
    %v2828 = vpack.c.b16 %v2808, %v2806
    %v2829 = vpack.c.b16 %v2811, %v2809
    %v2830 = vpack.c.b16 %v2812, %v2810
    %v2831 = vpack.c.b16 %v2815, %v2813
    %v2832 = vpack.c.b16 %v2816, %v2814
    %v2833 = vpack.c.b16 %v2819, %v2817
    %v2834 = vpack.c.b16 %v2820, %v2818
    %v2835 = vpack.c.b16 %v2823, %v2821
    %v2836 = vpack.c.b16 %v2824, %v2822
    %v2837 = vpack.c.b16 %v2825, %v2825
    %v2838 = vpack.c.b16 %v2826, %v2826
    %v2850 = vsel %vm1940, %v2793, 0
    %v2853 = vsel %vm2496, %v2837, 0
    %v2856 = vsel %vm2496, %v2838, 0
    %2858 = vmatprep.subr.bf16.mxu0 0
    %2859 = vmatpush1.bf16.msra.mxu0 0
    %2860 = vmatprep.subr.bf16.mxu0 0
    %2861 = vmatpush1.bf16.msra.mxu0 0
    %2862 = vmatprep.subr.bf16.mxu0 %v2856
    %2863 = vmatpush1.bf16.msra.mxu0 %v2853
    %2864 = vmatprep.subr.bf16.mxu0 %v2836
    %2865 = vmatpush1.bf16.msra.mxu0 %v2835
    %2866 = vmatprep.subr.bf16.mxu0 %v2834
    %2867 = vmatpush1.bf16.msra.mxu0 %v2833
    %2868 = vmatprep.subr.bf16.mxu0 %v2832
    %2869 = vmatpush1.bf16.msra.mxu0 %v2831
    %2870 = vmatprep.subr.bf16.mxu0 %v2830
    %2871 = vmatpush1.bf16.msra.mxu0 %v2829
    %2872 = vmatprep.subr.bf16.mxu0 %v2828
    %2873 = vmatpush1.bf16.msra.mxu0 %v2827
    %2874 = vmatprep.subr.bf16.mxu0 0
    %2875 = vmatpush2.bf16.msra.mxu0 0
    %2876 = vmatprep.subr.bf16.mxu0 0
    %2877 = vmatpush2.bf16.msra.mxu0 0
    %2878 = vmatprep.subr.bf16.mxu0 0
    %2879 = vmatpush2.bf16.msra.mxu0 0
    %2880 = vmatprep.subr.bf16.mxu0 0
    %2881 = vmatpush2.bf16.msra.mxu0 0
    %2882 = vmatprep.subr.bf16.mxu0 0
    %2883 = vmatpush2.bf16.msra.mxu0 0
    %2884 = vmatprep.subr.bf16.mxu0 0
    %2885 = vmatpush2.bf16.msra.mxu0 0
    %2886 = vmatprep.subr.bf16.mxu0 0
    %2887 = vmatpush2.bf16.msra.mxu0 0
    %2888 = vmatprep.subr.bf16.mxu0 0
    %2889 = vmatpush2.bf16.msra.mxu0 0
    %2890 = vmatprep.mubr.bf16.mxu0 0
    %2891 = vmatmul.mubr.bf16.gmra.mxu0 %v2850
    %v2892 = vpop.f32.mrf.mxu0
    %v2893 = vadd.f32 0.0, %v2892
    %v2894 = vpop.f32.mrf.mxu0
    %v2895 = vadd.f32 0.0, %v2894
    %v2896 = vpop.f32.mrf.mxu0
    %v2897 = vadd.f32 0.0, %v2896
    %v2898 = vpop.f32.mrf.mxu0
    %v2899 = vadd.f32 0.0, %v2898
    %2900 = vdwg.mxu0
    %v2901 = vadd.f32 %v2775, %v2893
    %v2902 = vadd.f32 %v2776, %v2895
    %v2903 = vadd.f32 %v2777, %v2897
    %v2904 = vadd.f32 %v2778, %v2899
    %v2905 = vld [vmem:[#allocation2 + $0x4] sm:$0xff]
    %v2906 = vld [vmem:[#allocation2 + $0xc] sm:$0x3]
    %s2907 = scalar_lea.vmem %s10, 352
    %v2908 = vld [vmem:[%s2907] sm:$0xff]
    %v2909 = vld [vmem:[%s2907 + $0x8] sm:$0xff]
    %v2910 = vld [vmem:[%s2907 + $0x10] sm:$0xff]
    %v2911 = vld [vmem:[%s2907 + $0x18] sm:$0xff]
    %v2912 = vld [vmem:[%s2907 + $0x20] sm:$0xff]
    %v2913 = vld [vmem:[%s2907 + $0x28] sm:$0xff]
    %v2914 = vld [vmem:[%s2907 + $0x30] sm:$0xff]
    %v2915 = vld [vmem:[%s2907 + $0x38] sm:$0xff]
    %v2916 = vld [vmem:[%s2907 + $0x40] sm:$0xff]
    %v2917 = vld [vmem:[%s2907 + $0x48] sm:$0xff]
    %v2918 = vld [vmem:[%s2907 + $0x50] sm:$0x33]
    %v2919 = vpack.c.bf16 %v2906, %v2905
    %v2931 = vunpack.c.l.b16 %v2908
    %v2932 = vunpack.c.h.b16 %v2908
    %v2933 = vunpack.c.l.b16 %v2909
    %v2934 = vunpack.c.h.b16 %v2909
    %v2935 = vunpack.c.l.b16 %v2910
    %v2936 = vunpack.c.h.b16 %v2910
    %v2937 = vunpack.c.l.b16 %v2911
    %v2938 = vunpack.c.h.b16 %v2911
    %v2939 = vunpack.c.l.b16 %v2912
    %v2940 = vunpack.c.h.b16 %v2912
    %v2941 = vunpack.c.l.b16 %v2913
    %v2942 = vunpack.c.h.b16 %v2913
    %v2943 = vunpack.c.l.b16 %v2914
    %v2944 = vunpack.c.h.b16 %v2914
    %v2945 = vunpack.c.l.b16 %v2915
    %v2946 = vunpack.c.h.b16 %v2915
    %v2947 = vunpack.c.l.b16 %v2916
    %v2948 = vunpack.c.h.b16 %v2916
    %v2949 = vunpack.c.l.b16 %v2917
    %v2950 = vunpack.c.h.b16 %v2917
    %v2951 = vunpack.c.l.b16 %v2918
    %v2952 = vunpack.c.h.b16 %v2918
    %v2953 = vpack.c.b16 %v2933, %v2931
    %v2954 = vpack.c.b16 %v2934, %v2932
    %v2955 = vpack.c.b16 %v2937, %v2935
    %v2956 = vpack.c.b16 %v2938, %v2936
    %v2957 = vpack.c.b16 %v2941, %v2939
    %v2958 = vpack.c.b16 %v2942, %v2940
    %v2959 = vpack.c.b16 %v2945, %v2943
    %v2960 = vpack.c.b16 %v2946, %v2944
    %v2961 = vpack.c.b16 %v2949, %v2947
    %v2962 = vpack.c.b16 %v2950, %v2948
    %v2963 = vpack.c.b16 %v2951, %v2951
    %v2964 = vpack.c.b16 %v2952, %v2952
    %v2976 = vsel %vm1940, %v2919, 0
    %v2979 = vsel %vm2496, %v2963, 0
    %v2982 = vsel %vm2496, %v2964, 0
    %2984 = vmatprep.subr.bf16.mxu0 0
    %2985 = vmatpush1.bf16.msra.mxu0 0
    %2986 = vmatprep.subr.bf16.mxu0 0
    %2987 = vmatpush1.bf16.msra.mxu0 0
    %2988 = vmatprep.subr.bf16.mxu0 %v2982
    %2989 = vmatpush1.bf16.msra.mxu0 %v2979
    %2990 = vmatprep.subr.bf16.mxu0 %v2962
    %2991 = vmatpush1.bf16.msra.mxu0 %v2961
    %2992 = vmatprep.subr.bf16.mxu0 %v2960
    %2993 = vmatpush1.bf16.msra.mxu0 %v2959
    %2994 = vmatprep.subr.bf16.mxu0 %v2958
    %2995 = vmatpush1.bf16.msra.mxu0 %v2957
    %2996 = vmatprep.subr.bf16.mxu0 %v2956
    %2997 = vmatpush1.bf16.msra.mxu0 %v2955
    %2998 = vmatprep.subr.bf16.mxu0 %v2954
    %2999 = vmatpush1.bf16.msra.mxu0 %v2953
    %3000 = vmatprep.subr.bf16.mxu0 0
    %3001 = vmatpush2.bf16.msra.mxu0 0
    %3002 = vmatprep.subr.bf16.mxu0 0
    %3003 = vmatpush2.bf16.msra.mxu0 0
    %3004 = vmatprep.subr.bf16.mxu0 0
    %3005 = vmatpush2.bf16.msra.mxu0 0
    %3006 = vmatprep.subr.bf16.mxu0 0
    %3007 = vmatpush2.bf16.msra.mxu0 0
    %3008 = vmatprep.subr.bf16.mxu0 0
    %3009 = vmatpush2.bf16.msra.mxu0 0
    %3010 = vmatprep.subr.bf16.mxu0 0
    %3011 = vmatpush2.bf16.msra.mxu0 0
    %3012 = vmatprep.subr.bf16.mxu0 0
    %3013 = vmatpush2.bf16.msra.mxu0 0
    %3014 = vmatprep.subr.bf16.mxu0 0
    %3015 = vmatpush2.bf16.msra.mxu0 0
    %3016 = vmatprep.mubr.bf16.mxu0 0
    %3017 = vmatmul.mubr.bf16.gmra.mxu0 %v2976
    %v3018 = vpop.f32.mrf.mxu0
    %v3019 = vadd.f32 0.0, %v3018
    %v3020 = vpop.f32.mrf.mxu0
    %v3021 = vadd.f32 0.0, %v3020
    %v3022 = vpop.f32.mrf.mxu0
    %v3023 = vadd.f32 0.0, %v3022
    %v3024 = vpop.f32.mrf.mxu0
    %v3025 = vadd.f32 0.0, %v3024
    %3026 = vdwg.mxu0
    %v3027 = vadd.f32 %v2901, %v3019
    %v3028 = vadd.f32 %v2902, %v3021
    %v3029 = vadd.f32 %v2903, %v3023
    %v3030 = vadd.f32 %v2904, %v3025
    %v3031 = vld [vmem:[#allocation2 + $0xe] sm:$0xff]
    %v3032 = vld [vmem:[#allocation2 + $0x16] sm:$0x3]
    %v3033 = vpack.c.bf16 %v3032, %v3031
    %v3034 = vld [vmem:[#allocation2 + $0xf] sm:$0xff]
    %v3035 = vld [vmem:[#allocation2 + $0x17] sm:$0x3]
    %v3036 = vpack.c.bf16 %v3035, %v3034
    %v3038 = vsel %vm1940, %v3036, 0
    %3040 = vmatprep.subr.bf16.mxu0 0
    %3041 = vmatpush1.bf16.msra.mxu0 0
    %3042 = vmatprep.subr.bf16.mxu0 0
    %3043 = vmatpush1.bf16.msra.mxu0 0
    %3044 = vmatprep.subr.bf16.mxu0 %v2501
    %3045 = vmatpush1.bf16.msra.mxu0 %v2498
    %3046 = vmatprep.subr.bf16.mxu0 %v2480
    %3047 = vmatpush1.bf16.msra.mxu0 %v2479
    %3048 = vmatprep.subr.bf16.mxu0 %v2478
    %3049 = vmatpush1.bf16.msra.mxu0 %v2477
    %3050 = vmatprep.subr.bf16.mxu0 %v2476
    %3051 = vmatpush1.bf16.msra.mxu0 %v2475
    %3052 = vmatprep.subr.bf16.mxu0 %v2474
    %3053 = vmatpush1.bf16.msra.mxu0 %v2473
    %3054 = vmatprep.subr.bf16.mxu0 %v2472
    %3055 = vmatpush1.bf16.msra.mxu0 %v2471
    %3056 = vmatprep.subr.bf16.mxu0 0
    %3057 = vmatpush2.bf16.msra.mxu0 0
    %3058 = vmatprep.subr.bf16.mxu0 0
    %3059 = vmatpush2.bf16.msra.mxu0 0
    %3060 = vmatprep.subr.bf16.mxu0 0
    %3061 = vmatpush2.bf16.msra.mxu0 0
    %3062 = vmatprep.subr.bf16.mxu0 0
    %3063 = vmatpush2.bf16.msra.mxu0 0
    %3064 = vmatprep.subr.bf16.mxu0 0
    %3065 = vmatpush2.bf16.msra.mxu0 0
    %3066 = vmatprep.subr.bf16.mxu0 0
    %3067 = vmatpush2.bf16.msra.mxu0 0
    %3068 = vmatprep.subr.bf16.mxu0 0
    %3069 = vmatpush2.bf16.msra.mxu0 0
    %3070 = vmatprep.subr.bf16.mxu0 0
    %3071 = vmatpush2.bf16.msra.mxu0 0
    %3072 = vmatprep.mubr.bf16.mxu0 0
    %3073 = vmatmul.mubr.bf16.gmra.mxu0 %v3038
    %v3074 = vpop.f32.mrf.mxu0
    %v3075 = vadd.f32 0.0, %v3074
    %v3076 = vpop.f32.mrf.mxu0
    %v3077 = vadd.f32 0.0, %v3076
    %v3078 = vpop.f32.mrf.mxu0
    %v3079 = vadd.f32 0.0, %v3078
    %v3080 = vpop.f32.mrf.mxu0
    %v3081 = vadd.f32 0.0, %v3080
    %3082 = vdwg.mxu0
    %v3084 = vsel %vm1940, %v3033, 0
    %3086 = vmatprep.subr.bf16.mxu0 0
    %3087 = vmatpush1.bf16.msra.mxu0 0
    %3088 = vmatprep.subr.bf16.mxu0 0
    %3089 = vmatpush1.bf16.msra.mxu0 0
    %3090 = vmatprep.subr.bf16.mxu0 %v2608
    %3091 = vmatpush1.bf16.msra.mxu0 %v2605
    %3092 = vmatprep.subr.bf16.mxu0 %v2588
    %3093 = vmatpush1.bf16.msra.mxu0 %v2587
    %3094 = vmatprep.subr.bf16.mxu0 %v2586
    %3095 = vmatpush1.bf16.msra.mxu0 %v2585
    %3096 = vmatprep.subr.bf16.mxu0 %v2584
    %3097 = vmatpush1.bf16.msra.mxu0 %v2583
    %3098 = vmatprep.subr.bf16.mxu0 %v2582
    %3099 = vmatpush1.bf16.msra.mxu0 %v2581
    %3100 = vmatprep.subr.bf16.mxu0 %v2580
    %3101 = vmatpush1.bf16.msra.mxu0 %v2579
    %3102 = vmatprep.subr.bf16.mxu0 0
    %3103 = vmatpush2.bf16.msra.mxu0 0
    %3104 = vmatprep.subr.bf16.mxu0 0
    %3105 = vmatpush2.bf16.msra.mxu0 0
    %3106 = vmatprep.subr.bf16.mxu0 0
    %3107 = vmatpush2.bf16.msra.mxu0 0
    %3108 = vmatprep.subr.bf16.mxu0 0
    %3109 = vmatpush2.bf16.msra.mxu0 0
    %3110 = vmatprep.subr.bf16.mxu0 0
    %3111 = vmatpush2.bf16.msra.mxu0 0
    %3112 = vmatprep.subr.bf16.mxu0 0
    %3113 = vmatpush2.bf16.msra.mxu0 0
    %3114 = vmatprep.subr.bf16.mxu0 0
    %3115 = vmatpush2.bf16.msra.mxu0 0
    %3116 = vmatprep.subr.bf16.mxu0 0
    %3117 = vmatpush2.bf16.msra.mxu0 0
    %3118 = vmatprep.mubr.bf16.mxu0 0
    %3119 = vmatmul.mubr.bf16.gmra.mxu0 %v3084
    %v3120 = vpop.f32.mrf.mxu0
    %v3121 = vadd.f32 %v3075, %v3120
    %v3122 = vpop.f32.mrf.mxu0
    %v3123 = vadd.f32 %v3077, %v3122
    %v3124 = vpop.f32.mrf.mxu0
    %v3125 = vadd.f32 %v3079, %v3124
    %v3126 = vpop.f32.mrf.mxu0
    %v3127 = vadd.f32 %v3081, %v3126
    %3128 = vdwg.mxu0
    %v3129 = vld [vmem:[#allocation2 + $0x10] sm:$0xff]
    %v3130 = vld [vmem:[#allocation2 + $0x18] sm:$0x3]
    %v3131 = vpack.c.bf16 %v3130, %v3129
    %v3133 = vsel %vm1940, %v3131, 0
    %3135 = vmatprep.subr.bf16.mxu0 0
    %3136 = vmatpush1.bf16.msra.mxu0 0
    %3137 = vmatprep.subr.bf16.mxu0 0
    %3138 = vmatpush1.bf16.msra.mxu0 0
    %3139 = vmatprep.subr.bf16.mxu0 %v2730
    %3140 = vmatpush1.bf16.msra.mxu0 %v2727
    %3141 = vmatprep.subr.bf16.mxu0 %v2710
    %3142 = vmatpush1.bf16.msra.mxu0 %v2709
    %3143 = vmatprep.subr.bf16.mxu0 %v2708
    %3144 = vmatpush1.bf16.msra.mxu0 %v2707
    %3145 = vmatprep.subr.bf16.mxu0 %v2706
    %3146 = vmatpush1.bf16.msra.mxu0 %v2705
    %3147 = vmatprep.subr.bf16.mxu0 %v2704
    %3148 = vmatpush1.bf16.msra.mxu0 %v2703
    %3149 = vmatprep.subr.bf16.mxu0 %v2702
    %3150 = vmatpush1.bf16.msra.mxu0 %v2701
    %3151 = vmatprep.subr.bf16.mxu0 0
    %3152 = vmatpush2.bf16.msra.mxu0 0
    %3153 = vmatprep.subr.bf16.mxu0 0
    %3154 = vmatpush2.bf16.msra.mxu0 0
    %3155 = vmatprep.subr.bf16.mxu0 0
    %3156 = vmatpush2.bf16.msra.mxu0 0
    %3157 = vmatprep.subr.bf16.mxu0 0
    %3158 = vmatpush2.bf16.msra.mxu0 0
    %3159 = vmatprep.subr.bf16.mxu0 0
    %3160 = vmatpush2.bf16.msra.mxu0 0
    %3161 = vmatprep.subr.bf16.mxu0 0
    %3162 = vmatpush2.bf16.msra.mxu0 0
    %3163 = vmatprep.subr.bf16.mxu0 0
    %3164 = vmatpush2.bf16.msra.mxu0 0
    %3165 = vmatprep.subr.bf16.mxu0 0
    %3166 = vmatpush2.bf16.msra.mxu0 0
    %3167 = vmatprep.mubr.bf16.mxu0 0
    %3168 = vmatmul.mubr.bf16.gmra.mxu0 %v3133
    %v3169 = vpop.f32.mrf.mxu0
    %v3170 = vadd.f32 0.0, %v3169
    %v3171 = vpop.f32.mrf.mxu0
    %v3172 = vadd.f32 0.0, %v3171
    %v3173 = vpop.f32.mrf.mxu0
    %v3174 = vadd.f32 0.0, %v3173
    %v3175 = vpop.f32.mrf.mxu0
    %v3176 = vadd.f32 0.0, %v3175
    %3177 = vdwg.mxu0
    %v3178 = vadd.f32 %v3121, %v3170
    %v3179 = vadd.f32 %v3123, %v3172
    %v3180 = vadd.f32 %v3125, %v3174
    %v3181 = vadd.f32 %v3127, %v3176
    %v3182 = vld [vmem:[#allocation2 + $0x11] sm:$0xff]
    %v3183 = vld [vmem:[#allocation2 + $0x19] sm:$0x3]
    %v3184 = vpack.c.bf16 %v3183, %v3182
    %v3186 = vsel %vm1940, %v3184, 0
    %3188 = vmatprep.subr.bf16.mxu0 0
    %3189 = vmatpush1.bf16.msra.mxu0 0
    %3190 = vmatprep.subr.bf16.mxu0 0
    %3191 = vmatpush1.bf16.msra.mxu0 0
    %3192 = vmatprep.subr.bf16.mxu0 %v2856
    %3193 = vmatpush1.bf16.msra.mxu0 %v2853
    %3194 = vmatprep.subr.bf16.mxu0 %v2836
    %3195 = vmatpush1.bf16.msra.mxu0 %v2835
    %3196 = vmatprep.subr.bf16.mxu0 %v2834
    %3197 = vmatpush1.bf16.msra.mxu0 %v2833
    %3198 = vmatprep.subr.bf16.mxu0 %v2832
    %3199 = vmatpush1.bf16.msra.mxu0 %v2831
    %3200 = vmatprep.subr.bf16.mxu0 %v2830
    %3201 = vmatpush1.bf16.msra.mxu0 %v2829
    %3202 = vmatprep.subr.bf16.mxu0 %v2828
    %3203 = vmatpush1.bf16.msra.mxu0 %v2827
    %3204 = vmatprep.subr.bf16.mxu0 0
    %3205 = vmatpush2.bf16.msra.mxu0 0
    %3206 = vmatprep.subr.bf16.mxu0 0
    %3207 = vmatpush2.bf16.msra.mxu0 0
    %3208 = vmatprep.subr.bf16.mxu0 0
    %3209 = vmatpush2.bf16.msra.mxu0 0
    %3210 = vmatprep.subr.bf16.mxu0 0
    %3211 = vmatpush2.bf16.msra.mxu0 0
    %3212 = vmatprep.subr.bf16.mxu0 0
    %3213 = vmatpush2.bf16.msra.mxu0 0
    %3214 = vmatprep.subr.bf16.mxu0 0
    %3215 = vmatpush2.bf16.msra.mxu0 0
    %3216 = vmatprep.subr.bf16.mxu0 0
    %3217 = vmatpush2.bf16.msra.mxu0 0
    %3218 = vmatprep.subr.bf16.mxu0 0
    %3219 = vmatpush2.bf16.msra.mxu0 0
    %3220 = vmatprep.mubr.bf16.mxu0 0
    %3221 = vmatmul.mubr.bf16.gmra.mxu0 %v3186
    %v3222 = vpop.f32.mrf.mxu0
    %v3223 = vadd.f32 0.0, %v3222
    %v3224 = vpop.f32.mrf.mxu0
    %v3225 = vadd.f32 0.0, %v3224
    %v3226 = vpop.f32.mrf.mxu0
    %v3227 = vadd.f32 0.0, %v3226
    %v3228 = vpop.f32.mrf.mxu0
    %v3229 = vadd.f32 0.0, %v3228
    %3230 = vdwg.mxu0
    %v3231 = vadd.f32 %v3178, %v3223
    %v3232 = vadd.f32 %v3179, %v3225
    %v3233 = vadd.f32 %v3180, %v3227
    %v3234 = vadd.f32 %v3181, %v3229
    %v3235 = vld [vmem:[#allocation2 + $0x12] sm:$0xff]
    %v3236 = vld [vmem:[#allocation2 + $0x1a] sm:$0x3]
    %v3237 = vpack.c.bf16 %v3236, %v3235
    %v3239 = vsel %vm1940, %v3237, 0
    %3241 = vmatprep.subr.bf16.mxu0 0
    %3242 = vmatpush1.bf16.msra.mxu0 0
    %3243 = vmatprep.subr.bf16.mxu0 0
    %3244 = vmatpush1.bf16.msra.mxu0 0
    %3245 = vmatprep.subr.bf16.mxu0 %v2982
    %3246 = vmatpush1.bf16.msra.mxu0 %v2979
    %3247 = vmatprep.subr.bf16.mxu0 %v2962
    %3248 = vmatpush1.bf16.msra.mxu0 %v2961
    %3249 = vmatprep.subr.bf16.mxu0 %v2960
    %3250 = vmatpush1.bf16.msra.mxu0 %v2959
    %3251 = vmatprep.subr.bf16.mxu0 %v2958
    %3252 = vmatpush1.bf16.msra.mxu0 %v2957
    %3253 = vmatprep.subr.bf16.mxu0 %v2956
    %3254 = vmatpush1.bf16.msra.mxu0 %v2955
    %3255 = vmatprep.subr.bf16.mxu0 %v2954
    %3256 = vmatpush1.bf16.msra.mxu0 %v2953
    %3257 = vmatprep.subr.bf16.mxu0 0
    %3258 = vmatpush2.bf16.msra.mxu0 0
    %3259 = vmatprep.subr.bf16.mxu0 0
    %3260 = vmatpush2.bf16.msra.mxu0 0
    %3261 = vmatprep.subr.bf16.mxu0 0
    %3262 = vmatpush2.bf16.msra.mxu0 0
    %3263 = vmatprep.subr.bf16.mxu0 0
    %3264 = vmatpush2.bf16.msra.mxu0 0
    %3265 = vmatprep.subr.bf16.mxu0 0
    %3266 = vmatpush2.bf16.msra.mxu0 0
    %3267 = vmatprep.subr.bf16.mxu0 0
    %3268 = vmatpush2.bf16.msra.mxu0 0
    %3269 = vmatprep.subr.bf16.mxu0 0
    %3270 = vmatpush2.bf16.msra.mxu0 0
    %3271 = vmatprep.subr.bf16.mxu0 0
    %3272 = vmatpush2.bf16.msra.mxu0 0
    %3273 = vmatprep.mubr.bf16.mxu0 0
    %3274 = vmatmul.mubr.bf16.gmra.mxu0 %v3239
    %v3275 = vpop.f32.mrf.mxu0
    %v3276 = vadd.f32 0.0, %v3275
    %v3277 = vpop.f32.mrf.mxu0
    %v3278 = vadd.f32 0.0, %v3277
    %v3279 = vpop.f32.mrf.mxu0
    %v3280 = vadd.f32 0.0, %v3279
    %v3281 = vpop.f32.mrf.mxu0
    %v3282 = vadd.f32 0.0, %v3281
    %3283 = vdwg.mxu0
    %v3284 = vadd.f32 %v3231, %v3276
    %v3285 = vadd.f32 %v3232, %v3278
    %v3286 = vadd.f32 %v3233, %v3280
    %v3287 = vadd.f32 %v3234, %v3282
    %v3288 = vld [vmem:[%s11] sm:$0xff]
    %v3289 = vld [vmem:[%s11 + $0x8] sm:$0xff]
    %v3290 = vld [vmem:[%s11 + $0x10] sm:$0xff]
    %v3291 = vld [vmem:[%s11 + $0x18] sm:$0xff]
    %v3292 = vld [vmem:[%s11 + $0x20] sm:$0xff]
    %v3293 = vld [vmem:[%s11 + $0x28] sm:$0xff]
    %v3294 = vld [vmem:[%s11 + $0x30] sm:$0xff]
    %v3295 = vld [vmem:[%s11 + $0x38] sm:$0xff]
    %v3296 = vld [vmem:[%s11 + $0x40] sm:$0xff]
    %v3297 = vld [vmem:[%s11 + $0x48] sm:$0xff]
    %v3298 = vld [vmem:[%s11 + $0x50] sm:$0xff]
    %v3299 = vld [vmem:[%s11 + $0x58] sm:$0xff]
    %v3300 = vld [vmem:[%s11 + $0x60] sm:$0xff]
    %v3301 = vld [vmem:[%s11 + $0x68] sm:$0xff]
    %v3302 = vld [vmem:[%s11 + $0x70] sm:$0xff]
    %v3303 = vld [vmem:[%s11 + $0x78] sm:$0xff]
    %v3304 = vld [vmem:[%s11 + $0x80] sm:$0xff]
    %v3305 = vld [vmem:[%s11 + $0x88] sm:$0xff]
    %v3306 = vld [vmem:[%s11 + $0x90] sm:$0xff]
    %v3307 = vld [vmem:[%s11 + $0x98] sm:$0xff]
    %v3308 = vld [vmem:[%s12] sm:$0xff]
    %v3309 = vld [vmem:[%s12 + $0x8] sm:$0xff]
    %v3310 = vld [vmem:[%s12 + $0x10] sm:$0xff]
    %v3311 = vld [vmem:[%s12 + $0x18] sm:$0xff]
    %v3312 = vld [vmem:[%s17] sm:$0x1]
    %v3313 = vld [vmem:[%s18] sm:$0x1]
    %v3314 = vsel %vm2496, %v3029, 0.0
    %v3315 = vadd.f32 %v3027, %v3314
    %v3316 = vrot.slane %v3315, 4
    %v3317 = vadd.f32 %v3315, %v3316
    %v3318 = vrot.slane %v3317, 2
    %v3319 = vadd.f32 %v3317, %v3318
    %v3320 = vrot.slane %v3319, 1
    %v3321 = vadd.f32 %v3319, %v3320
    %v3322 = vsel %vm129, %v3028, 0.0
    %vm3323 = vcmask 254976
    %v3324 = vsel %vm3323, %v3030, 0.0
    %v3325 = vadd.f32 %v3322, %v3324
    %v3326 = vrot.slane %v3325, 4
    %v3327 = vadd.f32 %v3325, %v3326
    %v3328 = vrot.slane %v3327, 2
    %v3329 = vadd.f32 %v3327, %v3328
    %v3330 = vrot.slane %v3329, 1
    %v3331 = vadd.f32 %v3329, %v3330
    %v3332 = vsel %vm2496, %v3286, 0.0
    %v3333 = vadd.f32 %v3284, %v3332
    %v3334 = vrot.slane %v3333, 4
    %v3335 = vadd.f32 %v3333, %v3334
    %v3336 = vrot.slane %v3335, 2
    %v3337 = vadd.f32 %v3335, %v3336
    %v3338 = vrot.slane %v3337, 1
    %v3339 = vadd.f32 %v3337, %v3338
    %v3340 = vsel %vm129, %v3285, 0.0
    %v3341 = vsel %vm3323, %v3287, 0.0
    %v3342 = vadd.f32 %v3340, %v3341
    %v3343 = vrot.slane %v3342, 4
    %v3344 = vadd.f32 %v3342, %v3343
    %v3345 = vrot.slane %v3344, 2
    %v3346 = vadd.f32 %v3344, %v3345
    %v3347 = vrot.slane %v3346, 1
    %v3348 = vadd.f32 %v3346, %v3347
    %v3349 = vadd.f32 %v3321, %v3339
    %v3350 = vadd.f32 %v3331, %v3348
    %v3352 = vsel %vm129, %v3350, 0
    %3354 = vmatprep.subr.mxu0 0.0
    %3355 = vmatpush1.msra.mxu0 %v3303
    %3356 = vmatprep.subr.mxu0 0.0
    %3357 = vmatpush1.msra.mxu0 %v3302
    %3358 = vmatprep.subr.mxu0 0.0
    %3359 = vmatpush1.msra.mxu0 %v3301
    %3360 = vmatprep.subr.mxu0 0.0
    %3361 = vmatpush1.msra.mxu0 %v3300
    %3362 = vmatprep.subr.mxu0 0.0
    %3363 = vmatpush1.msra.mxu0 %v3299
    %3364 = vmatprep.subr.mxu0 0.0
    %3365 = vmatpush1.msra.mxu0 %v3298
    %3366 = vmatprep.subr.mxu0 0.0
    %3367 = vmatpush1.msra.mxu0 %v3297
    %3368 = vmatprep.subr.mxu0 0.0
    %3369 = vmatpush1.msra.mxu0 %v3296
    %3370 = vmatprep.subr.mxu0 0.0
    %3371 = vmatpush1.msra.mxu0 %v3295
    %3372 = vmatprep.subr.mxu0 0.0
    %3373 = vmatpush1.msra.mxu0 %v3294
    %3374 = vmatprep.subr.mxu0 0.0
    %3375 = vmatpush1.msra.mxu0 %v3293
    %3376 = vmatprep.subr.mxu0 0.0
    %3377 = vmatpush1.msra.mxu0 %v3292
    %3378 = vmatprep.subr.mxu0 0.0
    %3379 = vmatpush1.msra.mxu0 %v3291
    %3380 = vmatprep.subr.mxu0 0.0
    %3381 = vmatpush1.msra.mxu0 %v3290
    %3382 = vmatprep.subr.mxu0 0.0
    %3383 = vmatpush1.msra.mxu0 %v3289
    %3384 = vmatprep.subr.mxu0 0.0
    %3385 = vmatpush1.msra.mxu0 %v3288
    %3386 = vmatprep.subr.mxu0 0.0
    %3387 = vmatpush2.msra.mxu0 0.0
    %3388 = vmatprep.subr.mxu0 0.0
    %3389 = vmatpush2.msra.mxu0 0.0
    %3390 = vmatprep.subr.mxu0 0.0
    %3391 = vmatpush2.msra.mxu0 0.0
    %3392 = vmatprep.subr.mxu0 0.0
    %3393 = vmatpush2.msra.mxu0 0.0
    %3394 = vmatprep.subr.mxu0 0.0
    %3395 = vmatpush2.msra.mxu0 0.0
    %3396 = vmatprep.subr.mxu0 0.0
    %3397 = vmatpush2.msra.mxu0 0.0
    %3398 = vmatprep.subr.mxu0 0.0
    %3399 = vmatpush2.msra.mxu0 0.0
    %3400 = vmatprep.subr.mxu0 0.0
    %3401 = vmatpush2.msra.mxu0 0.0
    %3402 = vmatprep.subr.mxu0 0.0
    %3403 = vmatpush2.msra.mxu0 0.0
    %3404 = vmatprep.subr.mxu0 0.0
    %3405 = vmatpush2.msra.mxu0 0.0
    %3406 = vmatprep.subr.mxu0 0.0
    %3407 = vmatpush2.msra.mxu0 0.0
    %3408 = vmatprep.subr.mxu0 0.0
    %3409 = vmatpush2.msra.mxu0 0.0
    %3410 = vmatprep.subr.mxu0 0.0
    %3411 = vmatpush2.msra.mxu0 %v3307
    %3412 = vmatprep.subr.mxu0 0.0
    %3413 = vmatpush2.msra.mxu0 %v3306
    %3414 = vmatprep.subr.mxu0 0.0
    %3415 = vmatpush2.msra.mxu0 %v3305
    %3416 = vmatprep.subr.mxu0 0.0
    %3417 = vmatpush2.msra.mxu0 %v3304
    %3418 = vmatprep.mubr.f32.mxu0 %v3352
    %3419 = vmatmul.mubr.f32.gmra.mxu0 %v3349
    %v3420 = vpop.f32.mrf.mxu0
    %v3421 = vadd.f32 0.0, %v3420
    %v3422 = vpop.f32.mrf.mxu0
    %3423 = vdwg.mxu0
    %v3424 = vrcp.pop 200.0
    %v3425 = vmul.f32 %v3421, %v3424
    %vm3426 = vcmask 130048
    %v3428 = vsel %vm3426, %v3425, 0
    %3430 = vmatprep.subr.mxu0 0.0
    %3431 = vmatpush1.msra.mxu0 0.0
    %3432 = vmatprep.subr.mxu0 0.0
    %3433 = vmatpush1.msra.mxu0 0.0
    %3434 = vmatprep.subr.mxu0 0.0
    %3435 = vmatpush1.msra.mxu0 0.0
    %3436 = vmatprep.subr.mxu0 0.0
    %3437 = vmatpush1.msra.mxu0 0.0
    %3438 = vmatprep.subr.mxu0 0.0
    %3439 = vmatpush1.msra.mxu0 0.0
    %3440 = vmatprep.subr.mxu0 0.0
    %3441 = vmatpush1.msra.mxu0 0.0
    %3442 = vmatprep.subr.mxu0 0.0
    %3443 = vmatpush1.msra.mxu0 0.0
    %3444 = vmatprep.subr.mxu0 0.0
    %3445 = vmatpush1.msra.mxu0 0.0
    %3446 = vmatprep.subr.mxu0 0.0
    %3447 = vmatpush1.msra.mxu0 0.0
    %3448 = vmatprep.subr.mxu0 0.0
    %3449 = vmatpush1.msra.mxu0 0.0
    %3450 = vmatprep.subr.mxu0 0.0
    %3451 = vmatpush1.msra.mxu0 0.0
    %3452 = vmatprep.subr.mxu0 0.0
    %3453 = vmatpush1.msra.mxu0 0.0
    %3454 = vmatprep.subr.mxu0 0.0
    %3455 = vmatpush1.msra.mxu0 0.0
    %3456 = vmatprep.subr.mxu0 0.0
    %3457 = vmatpush1.msra.mxu0 0.0
    %3458 = vmatprep.subr.mxu0 %v3311
    %3459 = vmatpush1.msra.mxu0 %v3310
    %3460 = vmatprep.subr.mxu0 %v3309
    %3461 = vmatpush1.msra.mxu0 %v3308
    %3462 = vmatprep.subr.mxu0 0.0
    %3463 = vmatpush2.msra.mxu0 0.0
    %3464 = vmatprep.subr.mxu0 0.0
    %3465 = vmatpush2.msra.mxu0 0.0
    %3466 = vmatprep.subr.mxu0 0.0
    %3467 = vmatpush2.msra.mxu0 0.0
    %3468 = vmatprep.subr.mxu0 0.0
    %3469 = vmatpush2.msra.mxu0 0.0
    %3470 = vmatprep.subr.mxu0 0.0
    %3471 = vmatpush2.msra.mxu0 0.0
    %3472 = vmatprep.subr.mxu0 0.0
    %3473 = vmatpush2.msra.mxu0 0.0
    %3474 = vmatprep.subr.mxu0 0.0
    %3475 = vmatpush2.msra.mxu0 0.0
    %3476 = vmatprep.subr.mxu0 0.0
    %3477 = vmatpush2.msra.mxu0 0.0
    %3478 = vmatprep.subr.mxu0 0.0
    %3479 = vmatpush2.msra.mxu0 0.0
    %3480 = vmatprep.subr.mxu0 0.0
    %3481 = vmatpush2.msra.mxu0 0.0
    %3482 = vmatprep.subr.mxu0 0.0
    %3483 = vmatpush2.msra.mxu0 0.0
    %3484 = vmatprep.subr.mxu0 0.0
    %3485 = vmatpush2.msra.mxu0 0.0
    %3486 = vmatprep.subr.mxu0 0.0
    %3487 = vmatpush2.msra.mxu0 0.0
    %3488 = vmatprep.subr.mxu0 0.0
    %3489 = vmatpush2.msra.mxu0 0.0
    %3490 = vmatprep.subr.mxu0 0.0
    %3491 = vmatpush2.msra.mxu0 0.0
    %3492 = vmatprep.subr.mxu0 0.0
    %3493 = vmatpush2.msra.mxu0 0.0
    %3494 = vmatprep.mubr.f32.mxu0 0.0
    %3495 = vmatmul.mubr.f32.gmra.mxu0 %v3428
    %v3496 = vpop.f32.mrf.mxu0
    %v3497 = vadd.f32 0.0, %v3496
    %v3498 = vpop.f32.mrf.mxu0
    %v3499 = vadd.f32 0.0, %v3498
    %3500 = vdwg.mxu0
    %v3501 = vlaneseq
    %v3502 = vshrl.u32 %v3501, 7
    %v3503 = vsub.s32 0, %v3502
    %v3504 = vrot.slane %v3497, %v3503
    %v3505 = vlaneseq
    %v3506 = vshrl.u32 %v3505, 7
    %v3507 = vsub.s32 0, %v3506
    %v3508 = vrot.slane %v3499, %v3507
    %v3509 = vsub.f32 %v3027, %v3504
    %v3510 = vsub.f32 %v3028, %v3508
    %v3511 = vsub.f32 %v3029, %v3504
    %v3512 = vsub.f32 %v3030, %v3508
    %v3513 = vmul.f32 %v3509, %v3509
    %v3514 = vmul.f32 %v3510, %v3510
    %v3515 = vmul.f32 %v3511, %v3511
    %v3516 = vmul.f32 %v3512, %v3512
    %v3517 = vsel %vm2496, %v3515, 0.0
    %v3518 = vadd.f32 %v3513, %v3517
    %v3519 = vrot.slane %v3518, 4
    %v3520 = vadd.f32 %v3518, %v3519
    %v3521 = vrot.slane %v3520, 2
    %v3522 = vadd.f32 %v3520, %v3521
    %v3523 = vrot.slane %v3522, 1
    %v3524 = vadd.f32 %v3522, %v3523
    %v3525 = vsel %vm129, %v3514, 0.0
    %v3526 = vsel %vm3323, %v3516, 0.0
    %v3527 = vadd.f32 %v3525, %v3526
    %v3528 = vrot.slane %v3527, 4
    %v3529 = vadd.f32 %v3527, %v3528
    %v3530 = vrot.slane %v3529, 2
    %v3531 = vadd.f32 %v3529, %v3530
    %v3532 = vrot.slane %v3531, 1
    %v3533 = vadd.f32 %v3531, %v3532
    %v3534 = vsub.f32 %v3284, %v3504
    %v3535 = vsub.f32 %v3285, %v3508
    %v3536 = vsub.f32 %v3286, %v3504
    %v3537 = vsub.f32 %v3287, %v3508
    %v3538 = vmul.f32 %v3534, %v3534
    %v3539 = vmul.f32 %v3535, %v3535
    %v3540 = vmul.f32 %v3536, %v3536
    %v3541 = vmul.f32 %v3537, %v3537
    %v3542 = vsel %vm2496, %v3540, 0.0
    %v3543 = vadd.f32 %v3538, %v3542
    %v3544 = vrot.slane %v3543, 4
    %v3545 = vadd.f32 %v3543, %v3544
    %v3546 = vrot.slane %v3545, 2
    %v3547 = vadd.f32 %v3545, %v3546
    %v3548 = vrot.slane %v3547, 1
    %v3549 = vadd.f32 %v3547, %v3548
    %v3550 = vsel %vm129, %v3539, 0.0
    %v3551 = vsel %vm3323, %v3541, 0.0
    %v3552 = vadd.f32 %v3550, %v3551
    %v3553 = vrot.slane %v3552, 4
    %v3554 = vadd.f32 %v3552, %v3553
    %v3555 = vrot.slane %v3554, 2
    %v3556 = vadd.f32 %v3554, %v3555
    %v3557 = vrot.slane %v3556, 1
    %v3558 = vadd.f32 %v3556, %v3557
    %v3559 = vadd.f32 %v3524, %v3549
    %v3560 = vadd.f32 %v3533, %v3558
    %v3562 = vsel %vm129, %v3560, 0
    %3564 = vmatprep.subr.mxu0 0.0
    %3565 = vmatpush1.msra.mxu0 %v3303
    %3566 = vmatprep.subr.mxu0 0.0
    %3567 = vmatpush1.msra.mxu0 %v3302
    %3568 = vmatprep.subr.mxu0 0.0
    %3569 = vmatpush1.msra.mxu0 %v3301
    %3570 = vmatprep.subr.mxu0 0.0
    %3571 = vmatpush1.msra.mxu0 %v3300
    %3572 = vmatprep.subr.mxu0 0.0
    %3573 = vmatpush1.msra.mxu0 %v3299
    %3574 = vmatprep.subr.mxu0 0.0
    %3575 = vmatpush1.msra.mxu0 %v3298
    %3576 = vmatprep.subr.mxu0 0.0
    %3577 = vmatpush1.msra.mxu0 %v3297
    %3578 = vmatprep.subr.mxu0 0.0
    %3579 = vmatpush1.msra.mxu0 %v3296
    %3580 = vmatprep.subr.mxu0 0.0
    %3581 = vmatpush1.msra.mxu0 %v3295
    %3582 = vmatprep.subr.mxu0 0.0
    %3583 = vmatpush1.msra.mxu0 %v3294
    %3584 = vmatprep.subr.mxu0 0.0
    %3585 = vmatpush1.msra.mxu0 %v3293
    %3586 = vmatprep.subr.mxu0 0.0
    %3587 = vmatpush1.msra.mxu0 %v3292
    %3588 = vmatprep.subr.mxu0 0.0
    %3589 = vmatpush1.msra.mxu0 %v3291
    %3590 = vmatprep.subr.mxu0 0.0
    %3591 = vmatpush1.msra.mxu0 %v3290
    %3592 = vmatprep.subr.mxu0 0.0
    %3593 = vmatpush1.msra.mxu0 %v3289
    %3594 = vmatprep.subr.mxu0 0.0
    %3595 = vmatpush1.msra.mxu0 %v3288
    %3596 = vmatprep.subr.mxu0 0.0
    %3597 = vmatpush2.msra.mxu0 0.0
    %3598 = vmatprep.subr.mxu0 0.0
    %3599 = vmatpush2.msra.mxu0 0.0
    %3600 = vmatprep.subr.mxu0 0.0
    %3601 = vmatpush2.msra.mxu0 0.0
    %3602 = vmatprep.subr.mxu0 0.0
    %3603 = vmatpush2.msra.mxu0 0.0
    %3604 = vmatprep.subr.mxu0 0.0
    %3605 = vmatpush2.msra.mxu0 0.0
    %3606 = vmatprep.subr.mxu0 0.0
    %3607 = vmatpush2.msra.mxu0 0.0
    %3608 = vmatprep.subr.mxu0 0.0
    %3609 = vmatpush2.msra.mxu0 0.0
    %3610 = vmatprep.subr.mxu0 0.0
    %3611 = vmatpush2.msra.mxu0 0.0
    %3612 = vmatprep.subr.mxu0 0.0
    %3613 = vmatpush2.msra.mxu0 0.0
    %3614 = vmatprep.subr.mxu0 0.0
    %3615 = vmatpush2.msra.mxu0 0.0
    %3616 = vmatprep.subr.mxu0 0.0
    %3617 = vmatpush2.msra.mxu0 0.0
    %3618 = vmatprep.subr.mxu0 0.0
    %3619 = vmatpush2.msra.mxu0 0.0
    %3620 = vmatprep.subr.mxu0 0.0
    %3621 = vmatpush2.msra.mxu0 %v3307
    %3622 = vmatprep.subr.mxu0 0.0
    %3623 = vmatpush2.msra.mxu0 %v3306
    %3624 = vmatprep.subr.mxu0 0.0
    %3625 = vmatpush2.msra.mxu0 %v3305
    %3626 = vmatprep.subr.mxu0 0.0
    %3627 = vmatpush2.msra.mxu0 %v3304
    %3628 = vmatprep.mubr.f32.mxu0 %v3562
    %3629 = vmatmul.mubr.f32.gmra.mxu0 %v3559
    %v3630 = vpop.f32.mrf.mxu0
    %v3631 = vadd.f32 0.0, %v3630
    %v3632 = vpop.f32.mrf.mxu0
    %3633 = vdwg.mxu0
    %v3634 = vmul.f32 %v3631, %v3424
    %v3635 = vadd.f32 %v3634, 1e-05
    %v3636 = vrsqrt.pop %v3635
    %v3637 = vmul.f32 %v3312, %v3636
    %v3638 = vmul.f32 %v3425, %v3637
    %v3639 = vsub.f32 %v3313, %v3638
    %v3641 = vsel %vm3426, %v3637, 0
    %3643 = vmatprep.subr.mxu0 0.0
    %3644 = vmatpush1.msra.mxu0 0.0
    %3645 = vmatprep.subr.mxu0 0.0
    %3646 = vmatpush1.msra.mxu0 0.0
    %3647 = vmatprep.subr.mxu0 0.0
    %3648 = vmatpush1.msra.mxu0 0.0
    %3649 = vmatprep.subr.mxu0 0.0
    %3650 = vmatpush1.msra.mxu0 0.0
    %3651 = vmatprep.subr.mxu0 0.0
    %3652 = vmatpush1.msra.mxu0 0.0
    %3653 = vmatprep.subr.mxu0 0.0
    %3654 = vmatpush1.msra.mxu0 0.0
    %3655 = vmatprep.subr.mxu0 0.0
    %3656 = vmatpush1.msra.mxu0 0.0
    %3657 = vmatprep.subr.mxu0 0.0
    %3658 = vmatpush1.msra.mxu0 0.0
    %3659 = vmatprep.subr.mxu0 0.0
    %3660 = vmatpush1.msra.mxu0 0.0
    %3661 = vmatprep.subr.mxu0 0.0
    %3662 = vmatpush1.msra.mxu0 0.0
    %3663 = vmatprep.subr.mxu0 0.0
    %3664 = vmatpush1.msra.mxu0 0.0
    %3665 = vmatprep.subr.mxu0 0.0
    %3666 = vmatpush1.msra.mxu0 0.0
    %3667 = vmatprep.subr.mxu0 0.0
    %3668 = vmatpush1.msra.mxu0 0.0
    %3669 = vmatprep.subr.mxu0 0.0
    %3670 = vmatpush1.msra.mxu0 0.0
    %3671 = vmatprep.subr.mxu0 %v3311
    %3672 = vmatpush1.msra.mxu0 %v3310
    %3673 = vmatprep.subr.mxu0 %v3309
    %3674 = vmatpush1.msra.mxu0 %v3308
    %3675 = vmatprep.subr.mxu0 0.0
    %3676 = vmatpush2.msra.mxu0 0.0
    %3677 = vmatprep.subr.mxu0 0.0
    %3678 = vmatpush2.msra.mxu0 0.0
    %3679 = vmatprep.subr.mxu0 0.0
    %3680 = vmatpush2.msra.mxu0 0.0
    %3681 = vmatprep.subr.mxu0 0.0
    %3682 = vmatpush2.msra.mxu0 0.0
    %3683 = vmatprep.subr.mxu0 0.0
    %3684 = vmatpush2.msra.mxu0 0.0
    %3685 = vmatprep.subr.mxu0 0.0
    %3686 = vmatpush2.msra.mxu0 0.0
    %3687 = vmatprep.subr.mxu0 0.0
    %3688 = vmatpush2.msra.mxu0 0.0
    %3689 = vmatprep.subr.mxu0 0.0
    %3690 = vmatpush2.msra.mxu0 0.0
    %3691 = vmatprep.subr.mxu0 0.0
    %3692 = vmatpush2.msra.mxu0 0.0
    %3693 = vmatprep.subr.mxu0 0.0
    %3694 = vmatpush2.msra.mxu0 0.0
    %3695 = vmatprep.subr.mxu0 0.0
    %3696 = vmatpush2.msra.mxu0 0.0
    %3697 = vmatprep.subr.mxu0 0.0
    %3698 = vmatpush2.msra.mxu0 0.0
    %3699 = vmatprep.subr.mxu0 0.0
    %3700 = vmatpush2.msra.mxu0 0.0
    %3701 = vmatprep.subr.mxu0 0.0
    %3702 = vmatpush2.msra.mxu0 0.0
    %3703 = vmatprep.subr.mxu0 0.0
    %3704 = vmatpush2.msra.mxu0 0.0
    %3705 = vmatprep.subr.mxu0 0.0
    %3706 = vmatpush2.msra.mxu0 0.0
    %3707 = vmatprep.mubr.f32.mxu0 0.0
    %3708 = vmatmul.mubr.f32.gmra.mxu0 %v3641
    %v3709 = vpop.f32.mrf.mxu0
    %v3710 = vadd.f32 0.0, %v3709
    %v3711 = vpop.f32.mrf.mxu0
    %v3712 = vadd.f32 0.0, %v3711
    %3713 = vdwg.mxu0
    %v3715 = vsel %vm3426, %v3639, 0
    %3717 = vmatprep.subr.mxu0 0.0
    %3718 = vmatpush1.msra.mxu0 0.0
    %3719 = vmatprep.subr.mxu0 0.0
    %3720 = vmatpush1.msra.mxu0 0.0
    %3721 = vmatprep.subr.mxu0 0.0
    %3722 = vmatpush1.msra.mxu0 0.0
    %3723 = vmatprep.subr.mxu0 0.0
    %3724 = vmatpush1.msra.mxu0 0.0
    %3725 = vmatprep.subr.mxu0 0.0
    %3726 = vmatpush1.msra.mxu0 0.0
    %3727 = vmatprep.subr.mxu0 0.0
    %3728 = vmatpush1.msra.mxu0 0.0
    %3729 = vmatprep.subr.mxu0 0.0
    %3730 = vmatpush1.msra.mxu0 0.0
    %3731 = vmatprep.subr.mxu0 0.0
    %3732 = vmatpush1.msra.mxu0 0.0
    %3733 = vmatprep.subr.mxu0 0.0
    %3734 = vmatpush1.msra.mxu0 0.0
    %3735 = vmatprep.subr.mxu0 0.0
    %3736 = vmatpush1.msra.mxu0 0.0
    %3737 = vmatprep.subr.mxu0 0.0
    %3738 = vmatpush1.msra.mxu0 0.0
    %3739 = vmatprep.subr.mxu0 0.0
    %3740 = vmatpush1.msra.mxu0 0.0
    %3741 = vmatprep.subr.mxu0 0.0
    %3742 = vmatpush1.msra.mxu0 0.0
    %3743 = vmatprep.subr.mxu0 0.0
    %3744 = vmatpush1.msra.mxu0 0.0
    %3745 = vmatprep.subr.mxu0 %v3311
    %3746 = vmatpush1.msra.mxu0 %v3310
    %3747 = vmatprep.subr.mxu0 %v3309
    %3748 = vmatpush1.msra.mxu0 %v3308
    %3749 = vmatprep.subr.mxu0 0.0
    %3750 = vmatpush2.msra.mxu0 0.0
    %3751 = vmatprep.subr.mxu0 0.0
    %3752 = vmatpush2.msra.mxu0 0.0
    %3753 = vmatprep.subr.mxu0 0.0
    %3754 = vmatpush2.msra.mxu0 0.0
    %3755 = vmatprep.subr.mxu0 0.0
    %3756 = vmatpush2.msra.mxu0 0.0
    %3757 = vmatprep.subr.mxu0 0.0
    %3758 = vmatpush2.msra.mxu0 0.0
    %3759 = vmatprep.subr.mxu0 0.0
    %3760 = vmatpush2.msra.mxu0 0.0
    %3761 = vmatprep.subr.mxu0 0.0
    %3762 = vmatpush2.msra.mxu0 0.0
    %3763 = vmatprep.subr.mxu0 0.0
    %3764 = vmatpush2.msra.mxu0 0.0
    %3765 = vmatprep.subr.mxu0 0.0
    %3766 = vmatpush2.msra.mxu0 0.0
    %3767 = vmatprep.subr.mxu0 0.0
    %3768 = vmatpush2.msra.mxu0 0.0
    %3769 = vmatprep.subr.mxu0 0.0
    %3770 = vmatpush2.msra.mxu0 0.0
    %3771 = vmatprep.subr.mxu0 0.0
    %3772 = vmatpush2.msra.mxu0 0.0
    %3773 = vmatprep.subr.mxu0 0.0
    %3774 = vmatpush2.msra.mxu0 0.0
    %3775 = vmatprep.subr.mxu0 0.0
    %3776 = vmatpush2.msra.mxu0 0.0
    %3777 = vmatprep.subr.mxu0 0.0
    %3778 = vmatpush2.msra.mxu0 0.0
    %3779 = vmatprep.subr.mxu0 0.0
    %3780 = vmatpush2.msra.mxu0 0.0
    %3781 = vmatprep.mubr.f32.mxu0 0.0
    %3782 = vmatmul.mubr.f32.gmra.mxu0 %v3715
    %v3783 = vpop.f32.mrf.mxu0
    %v3784 = vadd.f32 0.0, %v3783
    %v3785 = vpop.f32.mrf.mxu0
    %v3786 = vadd.f32 0.0, %v3785
    %3787 = vdwg.mxu0
    %v3788 = vlaneseq
    %v3789 = vshrl.u32 %v3788, 7
    %v3790 = vsub.s32 0, %v3789
    %v3791 = vrot.slane %v3710, %v3790
    %v3792 = vlaneseq
    %v3793 = vshrl.u32 %v3792, 7
    %v3794 = vsub.s32 0, %v3793
    %v3795 = vrot.slane %v3712, %v3794
    %v3796 = vmul.f32 %v3027, %v3791
    %v3797 = vmul.f32 %v3028, %v3795
    %v3798 = vmul.f32 %v3029, %v3791
    %v3799 = vmul.f32 %v3030, %v3795
    %v3800 = vlaneseq
    %v3801 = vshrl.u32 %v3800, 7
    %v3802 = vsub.s32 0, %v3801
    %v3803 = vrot.slane %v3784, %v3802
    %v3804 = vlaneseq
    %v3805 = vshrl.u32 %v3804, 7
    %v3806 = vsub.s32 0, %v3805
    %v3807 = vrot.slane %v3786, %v3806
    %v3808 = vadd.f32 %v3796, %v3803
    %v3809 = vadd.f32 %v3797, %v3807
    %v3810 = vadd.f32 %v3798, %v3803
    %v3811 = vadd.f32 %v3799, %v3807
    %v3812 = vxor.u32 %v3808, 2147483648
    %v3813 = vxor.u32 %v3809, 2147483648
    %v3814 = vxor.u32 %v3810, 2147483648
    %v3815 = vxor.u32 %v3811, 2147483648
    %v3816 = vmul.f32 %v3812, 1.442695
    %v3817 = vpow.pop %v3816
    %v3818 = vmul.f32 %v3813, 1.442695
    %v3819 = vpow.pop %v3818
    %v3820 = vmul.f32 %v3814, 1.442695
    %v3821 = vpow.pop %v3820
    %v3822 = vmul.f32 %v3815, 1.442695
    %v3823 = vpow.pop %v3822
    %v3824 = vadd.f32 %v3817, 1.0
    %v3825 = vadd.f32 %v3819, 1.0
    %v3826 = vadd.f32 %v3821, 1.0
    %v3827 = vadd.f32 %v3823, 1.0
    %v3828 = vrcp.pop %v3824
    %v3829 = vmul.f32 1.0, %v3828
    %v3830 = vrcp.pop %v3825
    %v3831 = vmul.f32 1.0, %v3830
    %v3832 = vrcp.pop %v3826
    %v3833 = vmul.f32 1.0, %v3832
    %v3834 = vrcp.pop %v3827
    %v3835 = vmul.f32 1.0, %v3834
    %v3836 = vld [vmem:[%s13] sm:$0xff]
    %v3837 = vld [vmem:[%s13 + $0x8] sm:$0xff]
    %v3838 = vld [vmem:[%s13 + $0x10] sm:$0xff]
    %v3839 = vld [vmem:[%s13 + $0x18] sm:$0xff]
    %v3840 = vld [vmem:[%s13 + $0x20] sm:$0xff]
    %v3841 = vld [vmem:[%s13 + $0x28] sm:$0xff]
    %v3842 = vld [vmem:[%s13 + $0x30] sm:$0xff]
    %v3843 = vld [vmem:[%s13 + $0x38] sm:$0xff]
    %v3844 = vld [vmem:[%s13 + $0x40] sm:$0xff]
    %v3845 = vld [vmem:[%s13 + $0x48] sm:$0xff]
    %v3846 = vld [vmem:[%s13 + $0x50] sm:$0xff]
    %v3847 = vld [vmem:[%s13 + $0x58] sm:$0xff]
    %v3848 = vld [vmem:[%s13 + $0x60] sm:$0xff]
    %v3849 = vld [vmem:[%s13 + $0x68] sm:$0xff]
    %v3850 = vld [vmem:[%s13 + $0x70] sm:$0xff]
    %v3851 = vld [vmem:[%s13 + $0x78] sm:$0xff]
    %v3852 = vld [vmem:[%s13 + $0x80] sm:$0xff]
    %v3853 = vld [vmem:[%s13 + $0x88] sm:$0xff]
    %v3854 = vld [vmem:[%s13 + $0x90] sm:$0xff]
    %v3855 = vld [vmem:[%s13 + $0x98] sm:$0xff]
    %v3857 = vsel %vm129, %v3831, 0
    %v3860 = vsel %vm129, %v3835, 0
    %3862 = vmatprep.subr.mxu0 0.0
    %3863 = vmatpush1.msra.mxu0 %v3851
    %3864 = vmatprep.subr.mxu0 0.0
    %3865 = vmatpush1.msra.mxu0 %v3850
    %3866 = vmatprep.subr.mxu0 0.0
    %3867 = vmatpush1.msra.mxu0 %v3849
    %3868 = vmatprep.subr.mxu0 0.0
    %3869 = vmatpush1.msra.mxu0 %v3848
    %3870 = vmatprep.subr.mxu0 0.0
    %3871 = vmatpush1.msra.mxu0 %v3847
    %3872 = vmatprep.subr.mxu0 0.0
    %3873 = vmatpush1.msra.mxu0 %v3846
    %3874 = vmatprep.subr.mxu0 0.0
    %3875 = vmatpush1.msra.mxu0 %v3845
    %3876 = vmatprep.subr.mxu0 0.0
    %3877 = vmatpush1.msra.mxu0 %v3844
    %3878 = vmatprep.subr.mxu0 0.0
    %3879 = vmatpush1.msra.mxu0 %v3843
    %3880 = vmatprep.subr.mxu0 0.0
    %3881 = vmatpush1.msra.mxu0 %v3842
    %3882 = vmatprep.subr.mxu0 0.0
    %3883 = vmatpush1.msra.mxu0 %v3841
    %3884 = vmatprep.subr.mxu0 0.0
    %3885 = vmatpush1.msra.mxu0 %v3840
    %3886 = vmatprep.subr.mxu0 0.0
    %3887 = vmatpush1.msra.mxu0 %v3839
    %3888 = vmatprep.subr.mxu0 0.0
    %3889 = vmatpush1.msra.mxu0 %v3838
    %3890 = vmatprep.subr.mxu0 0.0
    %3891 = vmatpush1.msra.mxu0 %v3837
    %3892 = vmatprep.subr.mxu0 0.0
    %3893 = vmatpush1.msra.mxu0 %v3836
    %3894 = vmatprep.subr.mxu0 0.0
    %3895 = vmatpush2.msra.mxu0 0.0
    %3896 = vmatprep.subr.mxu0 0.0
    %3897 = vmatpush2.msra.mxu0 0.0
    %3898 = vmatprep.subr.mxu0 0.0
    %3899 = vmatpush2.msra.mxu0 0.0
    %3900 = vmatprep.subr.mxu0 0.0
    %3901 = vmatpush2.msra.mxu0 0.0
    %3902 = vmatprep.subr.mxu0 0.0
    %3903 = vmatpush2.msra.mxu0 0.0
    %3904 = vmatprep.subr.mxu0 0.0
    %3905 = vmatpush2.msra.mxu0 0.0
    %3906 = vmatprep.subr.mxu0 0.0
    %3907 = vmatpush2.msra.mxu0 0.0
    %3908 = vmatprep.subr.mxu0 0.0
    %3909 = vmatpush2.msra.mxu0 0.0
    %3910 = vmatprep.subr.mxu0 0.0
    %3911 = vmatpush2.msra.mxu0 0.0
    %3912 = vmatprep.subr.mxu0 0.0
    %3913 = vmatpush2.msra.mxu0 0.0
    %3914 = vmatprep.subr.mxu0 0.0
    %3915 = vmatpush2.msra.mxu0 0.0
    %3916 = vmatprep.subr.mxu0 0.0
    %3917 = vmatpush2.msra.mxu0 0.0
    %3918 = vmatprep.subr.mxu0 0.0
    %3919 = vmatpush2.msra.mxu0 %v3855
    %3920 = vmatprep.subr.mxu0 0.0
    %3921 = vmatpush2.msra.mxu0 %v3854
    %3922 = vmatprep.subr.mxu0 0.0
    %3923 = vmatpush2.msra.mxu0 %v3853
    %3924 = vmatprep.subr.mxu0 0.0
    %3925 = vmatpush2.msra.mxu0 %v3852
    %3926 = vmatprep.mubr.f32.mxu0 %v3857
    %3927 = vmatmul.mubr.f32.gmra.mxu0 %v3829
    %v3928 = vpop.f32.mrf.mxu0
    %v3929 = vadd.f32 0.0, %v3928
    %v3930 = vpop.f32.mrf.mxu0
    %3931 = vmatprep.mubr.f32.mxu0 %v3860
    %3932 = vmatmul.mubr.f32.gmra.mxu0 %v3833
    %v3933 = vpop.f32.mrf.mxu0
    %v3934 = vadd.f32 0.0, %v3933
    %v3935 = vpop.f32.mrf.mxu0
    %3936 = vdwg.mxu0
    %v3937 = vld [vmem:[%s14] sm:$0xff]
    %v3938 = vld [vmem:[%s14 + $0x8] sm:$0xff]
    %v3939 = vld [vmem:[%s14 + $0x10] sm:$0xff]
    %v3940 = vld [vmem:[%s14 + $0x18] sm:$0xff]
    %v3941 = vld [vmem:[%s14 + $0x20] sm:$0xff]
    %v3942 = vld [vmem:[%s14 + $0x28] sm:$0xff]
    %v3943 = vld [vmem:[%s14 + $0x30] sm:$0xff]
    %v3944 = vld [vmem:[%s14 + $0x38] sm:$0xff]
    %v3945 = vld [vmem:[%s14 + $0x40] sm:$0xff]
    %v3946 = vld [vmem:[%s14 + $0x48] sm:$0xff]
    %v3947 = vld [vmem:[%s14 + $0x50] sm:$0xff]
    %v3948 = vld [vmem:[%s14 + $0x58] sm:$0xff]
    %v3949 = vld [vmem:[%s14 + $0x60] sm:$0xff]
    %v3950 = vld [vmem:[%s14 + $0x68] sm:$0xff]
    %v3951 = vld [vmem:[%s14 + $0x70] sm:$0xff]
    %v3952 = vld [vmem:[%s14 + $0x78] sm:$0xff]
    %v3953 = vld [vmem:[%s14 + $0x80] sm:$0xff]
    %v3954 = vld [vmem:[%s14 + $0x88] sm:$0xff]
    %v3955 = vld [vmem:[%s14 + $0x90] sm:$0xff]
    %v3956 = vld [vmem:[%s14 + $0x98] sm:$0xff]
    %3957 = vmatprep.subr.mxu0 0.0
    %3958 = vmatpush1.msra.mxu0 %v3952
    %3959 = vmatprep.subr.mxu0 0.0
    %3960 = vmatpush1.msra.mxu0 %v3951
    %3961 = vmatprep.subr.mxu0 0.0
    %3962 = vmatpush1.msra.mxu0 %v3950
    %3963 = vmatprep.subr.mxu0 0.0
    %3964 = vmatpush1.msra.mxu0 %v3949
    %3965 = vmatprep.subr.mxu0 0.0
    %3966 = vmatpush1.msra.mxu0 %v3948
    %3967 = vmatprep.subr.mxu0 0.0
    %3968 = vmatpush1.msra.mxu0 %v3947
    %3969 = vmatprep.subr.mxu0 0.0
    %3970 = vmatpush1.msra.mxu0 %v3946
    %3971 = vmatprep.subr.mxu0 0.0
    %3972 = vmatpush1.msra.mxu0 %v3945
    %3973 = vmatprep.subr.mxu0 0.0
    %3974 = vmatpush1.msra.mxu0 %v3944
    %3975 = vmatprep.subr.mxu0 0.0
    %3976 = vmatpush1.msra.mxu0 %v3943
    %3977 = vmatprep.subr.mxu0 0.0
    %3978 = vmatpush1.msra.mxu0 %v3942
    %3979 = vmatprep.subr.mxu0 0.0
    %3980 = vmatpush1.msra.mxu0 %v3941
    %3981 = vmatprep.subr.mxu0 0.0
    %3982 = vmatpush1.msra.mxu0 %v3940
    %3983 = vmatprep.subr.mxu0 0.0
    %3984 = vmatpush1.msra.mxu0 %v3939
    %3985 = vmatprep.subr.mxu0 0.0
    %3986 = vmatpush1.msra.mxu0 %v3938
    %3987 = vmatprep.subr.mxu0 0.0
    %3988 = vmatpush1.msra.mxu0 %v3937
    %3989 = vmatprep.subr.mxu0 0.0
    %3990 = vmatpush2.msra.mxu0 0.0
    %3991 = vmatprep.subr.mxu0 0.0
    %3992 = vmatpush2.msra.mxu0 0.0
    %3993 = vmatprep.subr.mxu0 0.0
    %3994 = vmatpush2.msra.mxu0 0.0
    %3995 = vmatprep.subr.mxu0 0.0
    %3996 = vmatpush2.msra.mxu0 0.0
    %3997 = vmatprep.subr.mxu0 0.0
    %3998 = vmatpush2.msra.mxu0 0.0
    %3999 = vmatprep.subr.mxu0 0.0
    %4000 = vmatpush2.msra.mxu0 0.0
    %4001 = vmatprep.subr.mxu0 0.0
    %4002 = vmatpush2.msra.mxu0 0.0
    %4003 = vmatprep.subr.mxu0 0.0
    %4004 = vmatpush2.msra.mxu0 0.0
    %4005 = vmatprep.subr.mxu0 0.0
    %4006 = vmatpush2.msra.mxu0 0.0
    %4007 = vmatprep.subr.mxu0 0.0
    %4008 = vmatpush2.msra.mxu0 0.0
    %4009 = vmatprep.subr.mxu0 0.0
    %4010 = vmatpush2.msra.mxu0 0.0
    %4011 = vmatprep.subr.mxu0 0.0
    %4012 = vmatpush2.msra.mxu0 0.0
    %4013 = vmatprep.subr.mxu0 0.0
    %4014 = vmatpush2.msra.mxu0 %v3956
    %4015 = vmatprep.subr.mxu0 0.0
    %4016 = vmatpush2.msra.mxu0 %v3955
    %4017 = vmatprep.subr.mxu0 0.0
    %4018 = vmatpush2.msra.mxu0 %v3954
    %4019 = vmatprep.subr.mxu0 0.0
    %4020 = vmatpush2.msra.mxu0 %v3953
    %4021 = vmatprep.mubr.f32.mxu0 %v3857
    %4022 = vmatmul.mubr.f32.gmra.mxu0 %v3829
    %v4023 = vpop.f32.mrf.mxu0
    %v4024 = vadd.f32 0.0, %v4023
    %v4025 = vpop.f32.mrf.mxu0
    %4026 = vmatprep.mubr.f32.mxu0 %v3860
    %4027 = vmatmul.mubr.f32.gmra.mxu0 %v3833
    %v4028 = vpop.f32.mrf.mxu0
    %v4029 = vadd.f32 0.0, %v4028
    %v4030 = vpop.f32.mrf.mxu0
    %4031 = vdwg.mxu0
    %v4032 = vmax.f32 %v3929, %v4024
    %v4033 = vmax.f32 %v3934, %v4029
    %v4034 = vld [vmem:[%s15] sm:$0x1f]
    %vm4035 = vcmask 80896
    %v4037 = vsel %vm4035, %v4034, 0
    %v4040 = vsel %vm2496, %v4033, 0
    %4042 = vmatprep.subr.mxu0 0.0
    %4043 = vmatpush1.msra.mxu0 0.0
    %4044 = vmatprep.subr.mxu0 0.0
    %4045 = vmatpush1.msra.mxu0 0.0
    %4046 = vmatprep.subr.mxu0 0.0
    %4047 = vmatpush1.msra.mxu0 0.0
    %4048 = vmatprep.subr.mxu0 0.0
    %4049 = vmatpush1.msra.mxu0 0.0
    %4050 = vmatprep.subr.mxu0 0.0
    %4051 = vmatpush1.msra.mxu0 0.0
    %4052 = vmatprep.subr.mxu0 0.0
    %4053 = vmatpush1.msra.mxu0 0.0
    %4054 = vmatprep.subr.mxu0 0.0
    %4055 = vmatpush1.msra.mxu0 0.0
    %4056 = vmatprep.subr.mxu0 0.0
    %4057 = vmatpush1.msra.mxu0 0.0
    %4058 = vmatprep.subr.mxu0 0.0
    %4059 = vmatpush1.msra.mxu0 0.0
    %4060 = vmatprep.subr.mxu0 0.0
    %4061 = vmatpush1.msra.mxu0 0.0
    %4062 = vmatprep.subr.mxu0 0.0
    %4063 = vmatpush1.msra.mxu0 0.0
    %4064 = vmatprep.subr.mxu0 0.0
    %4065 = vmatpush1.msra.mxu0 0.0
    %4066 = vmatprep.subr.mxu0 0.0
    %4067 = vmatpush1.msra.mxu0 0.0
    %4068 = vmatprep.subr.mxu0 0.0
    %4069 = vmatpush1.msra.mxu0 0.0
    %4070 = vmatprep.subr.mxu0 0.0
    %4071 = vmatpush1.msra.mxu0 %v4040
    %4072 = vmatprep.subr.mxu0 0.0
    %4073 = vmatpush1.msra.mxu0 %v4032
    %4074 = vmatprep.subr.mxu0 0.0
    %4075 = vmatpush2.msra.mxu0 0.0
    %4076 = vmatprep.subr.mxu0 0.0
    %4077 = vmatpush2.msra.mxu0 0.0
    %4078 = vmatprep.subr.mxu0 0.0
    %4079 = vmatpush2.msra.mxu0 0.0
    %4080 = vmatprep.subr.mxu0 0.0
    %4081 = vmatpush2.msra.mxu0 0.0
    %4082 = vmatprep.subr.mxu0 0.0
    %4083 = vmatpush2.msra.mxu0 0.0
    %4084 = vmatprep.subr.mxu0 0.0
    %4085 = vmatpush2.msra.mxu0 0.0
    %4086 = vmatprep.subr.mxu0 0.0
    %4087 = vmatpush2.msra.mxu0 0.0
    %4088 = vmatprep.subr.mxu0 0.0
    %4089 = vmatpush2.msra.mxu0 0.0
    %4090 = vmatprep.subr.mxu0 0.0
    %4091 = vmatpush2.msra.mxu0 0.0
    %4092 = vmatprep.subr.mxu0 0.0
    %4093 = vmatpush2.msra.mxu0 0.0
    %4094 = vmatprep.subr.mxu0 0.0
    %4095 = vmatpush2.msra.mxu0 0.0
    %4096 = vmatprep.subr.mxu0 0.0
    %4097 = vmatpush2.msra.mxu0 0.0
    %4098 = vmatprep.subr.mxu0 0.0
    %4099 = vmatpush2.msra.mxu0 0.0
    %4100 = vmatprep.subr.mxu0 0.0
    %4101 = vmatpush2.msra.mxu0 0.0
    %4102 = vmatprep.subr.mxu0 0.0
    %4103 = vmatpush2.msra.mxu0 0.0
    %4104 = vmatprep.subr.mxu0 0.0
    %4105 = vmatpush2.msra.mxu0 0.0
    %4106 = vmatprep.mubr.f32.mxu0 0.0
    %4107 = vmatmul.mubr.f32.gmra.mxu0 %v4037
    %v4108 = vpop.f32.mrf.mxu0
    %v4109 = vadd.f32 0.0, %v4108
    %v4110 = vpop.f32.mrf.mxu0
    %4111 = vdwg.mxu0
    %v4112 = vld [vmem:[%s16] sm:$0x1f]
    %v4114 = vsel %vm4035, %v4112, 0
    %4116 = vmatprep.subr.mxu0 0.0
    %4117 = vmatpush1.msra.mxu0 0.0
    %4118 = vmatprep.subr.mxu0 0.0
    %4119 = vmatpush1.msra.mxu0 0.0
    %4120 = vmatprep.subr.mxu0 0.0
    %4121 = vmatpush1.msra.mxu0 0.0
    %4122 = vmatprep.subr.mxu0 0.0
    %4123 = vmatpush1.msra.mxu0 0.0
    %4124 = vmatprep.subr.mxu0 0.0
    %4125 = vmatpush1.msra.mxu0 0.0
    %4126 = vmatprep.subr.mxu0 0.0
    %4127 = vmatpush1.msra.mxu0 0.0
    %4128 = vmatprep.subr.mxu0 0.0
    %4129 = vmatpush1.msra.mxu0 0.0
    %4130 = vmatprep.subr.mxu0 0.0
    %4131 = vmatpush1.msra.mxu0 0.0
    %4132 = vmatprep.subr.mxu0 0.0
    %4133 = vmatpush1.msra.mxu0 0.0
    %4134 = vmatprep.subr.mxu0 0.0
    %4135 = vmatpush1.msra.mxu0 0.0
    %4136 = vmatprep.subr.mxu0 0.0
    %4137 = vmatpush1.msra.mxu0 0.0
    %4138 = vmatprep.subr.mxu0 0.0
    %4139 = vmatpush1.msra.mxu0 0.0
    %4140 = vmatprep.subr.mxu0 0.0
    %4141 = vmatpush1.msra.mxu0 0.0
    %4142 = vmatprep.subr.mxu0 0.0
    %4143 = vmatpush1.msra.mxu0 0.0
    %4144 = vmatprep.subr.mxu0 0.0
    %4145 = vmatpush1.msra.mxu0 %v4040
    %4146 = vmatprep.subr.mxu0 0.0
    %4147 = vmatpush1.msra.mxu0 %v4032
    %4148 = vmatprep.subr.mxu0 0.0
    %4149 = vmatpush2.msra.mxu0 0.0
    %4150 = vmatprep.subr.mxu0 0.0
    %4151 = vmatpush2.msra.mxu0 0.0
    %4152 = vmatprep.subr.mxu0 0.0
    %4153 = vmatpush2.msra.mxu0 0.0
    %4154 = vmatprep.subr.mxu0 0.0
    %4155 = vmatpush2.msra.mxu0 0.0
    %4156 = vmatprep.subr.mxu0 0.0
    %4157 = vmatpush2.msra.mxu0 0.0
    %4158 = vmatprep.subr.mxu0 0.0
    %4159 = vmatpush2.msra.mxu0 0.0
    %4160 = vmatprep.subr.mxu0 0.0
    %4161 = vmatpush2.msra.mxu0 0.0
    %4162 = vmatprep.subr.mxu0 0.0
    %4163 = vmatpush2.msra.mxu0 0.0
    %4164 = vmatprep.subr.mxu0 0.0
    %4165 = vmatpush2.msra.mxu0 0.0
    %4166 = vmatprep.subr.mxu0 0.0
    %4167 = vmatpush2.msra.mxu0 0.0
    %4168 = vmatprep.subr.mxu0 0.0
    %4169 = vmatpush2.msra.mxu0 0.0
    %4170 = vmatprep.subr.mxu0 0.0
    %4171 = vmatpush2.msra.mxu0 0.0
    %4172 = vmatprep.subr.mxu0 0.0
    %4173 = vmatpush2.msra.mxu0 0.0
    %4174 = vmatprep.subr.mxu0 0.0
    %4175 = vmatpush2.msra.mxu0 0.0
    %4176 = vmatprep.subr.mxu0 0.0
    %4177 = vmatpush2.msra.mxu0 0.0
    %4178 = vmatprep.subr.mxu0 0.0
    %4179 = vmatpush2.msra.mxu0 0.0
    %4180 = vmatprep.mubr.f32.mxu0 0.0
    %4181 = vmatmul.mubr.f32.gmra.mxu0 %v4114
    %v4182 = vpop.f32.mrf.mxu0
    %v4183 = vadd.f32 0.0, %v4182
    %v4184 = vpop.f32.mrf.mxu0
    %4185 = vdwg.mxu0
    %v4186 = vmax.f32 %v4109, %v4183
    %vm4187 = vcmask 651264
    %4188 = vst.msk [vmem:[#allocation3] sm:$0x1f] %vm4187, %v4186
    %v4189 = vmul.f32 %v3284, %v3791
    %v4190 = vmul.f32 %v3285, %v3795
    %v4191 = vmul.f32 %v3286, %v3791
    %v4192 = vmul.f32 %v3287, %v3795
    %v4193 = vadd.f32 %v4189, %v3803
    %v4194 = vadd.f32 %v4190, %v3807
    %v4195 = vadd.f32 %v4191, %v3803
    %v4196 = vadd.f32 %v4192, %v3807
    %v4197 = vxor.u32 %v4193, 2147483648
    %v4198 = vxor.u32 %v4194, 2147483648
    %v4199 = vxor.u32 %v4195, 2147483648
    %v4200 = vxor.u32 %v4196, 2147483648
    %v4201 = vmul.f32 %v4197, 1.442695
    %v4202 = vpow.pop %v4201
    %v4203 = vmul.f32 %v4198, 1.442695
    %v4204 = vpow.pop %v4203
    %v4205 = vmul.f32 %v4199, 1.442695
    %v4206 = vpow.pop %v4205
    %v4207 = vmul.f32 %v4200, 1.442695
    %v4208 = vpow.pop %v4207
    %v4209 = vadd.f32 %v4202, 1.0
    %v4210 = vadd.f32 %v4204, 1.0
    %v4211 = vadd.f32 %v4206, 1.0
    %v4212 = vadd.f32 %v4208, 1.0
    %v4213 = vrcp.pop %v4209
    %v4214 = vmul.f32 1.0, %v4213
    %v4215 = vrcp.pop %v4210
    %v4216 = vmul.f32 1.0, %v4215
    %v4217 = vrcp.pop %v4211
    %v4218 = vmul.f32 1.0, %v4217
    %v4219 = vrcp.pop %v4212
    %v4220 = vmul.f32 1.0, %v4219
    %v4221 = vld [vmem:[%s13] sm:$0xff]
    %v4222 = vld [vmem:[%s13 + $0x8] sm:$0xff]
    %v4223 = vld [vmem:[%s13 + $0x10] sm:$0xff]
    %v4224 = vld [vmem:[%s13 + $0x18] sm:$0xff]
    %v4225 = vld [vmem:[%s13 + $0x20] sm:$0xff]
    %v4226 = vld [vmem:[%s13 + $0x28] sm:$0xff]
    %v4227 = vld [vmem:[%s13 + $0x30] sm:$0xff]
    %v4228 = vld [vmem:[%s13 + $0x38] sm:$0xff]
    %v4229 = vld [vmem:[%s13 + $0x40] sm:$0xff]
    %v4230 = vld [vmem:[%s13 + $0x48] sm:$0xff]
    %v4231 = vld [vmem:[%s13 + $0x50] sm:$0xff]
    %v4232 = vld [vmem:[%s13 + $0x58] sm:$0xff]
    %v4233 = vld [vmem:[%s13 + $0x60] sm:$0xff]
    %v4234 = vld [vmem:[%s13 + $0x68] sm:$0xff]
    %v4235 = vld [vmem:[%s13 + $0x70] sm:$0xff]
    %v4236 = vld [vmem:[%s13 + $0x78] sm:$0xff]
    %v4237 = vld [vmem:[%s13 + $0x80] sm:$0xff]
    %v4238 = vld [vmem:[%s13 + $0x88] sm:$0xff]
    %v4239 = vld [vmem:[%s13 + $0x90] sm:$0xff]
    %v4240 = vld [vmem:[%s13 + $0x98] sm:$0xff]
    %v4242 = vsel %vm129, %v4216, 0
    %v4245 = vsel %vm129, %v4220, 0
    %4247 = vmatprep.subr.mxu0 0.0
    %4248 = vmatpush1.msra.mxu0 %v4236
    %4249 = vmatprep.subr.mxu0 0.0
    %4250 = vmatpush1.msra.mxu0 %v4235
    %4251 = vmatprep.subr.mxu0 0.0
    %4252 = vmatpush1.msra.mxu0 %v4234
    %4253 = vmatprep.subr.mxu0 0.0
    %4254 = vmatpush1.msra.mxu0 %v4233
    %4255 = vmatprep.subr.mxu0 0.0
    %4256 = vmatpush1.msra.mxu0 %v4232
    %4257 = vmatprep.subr.mxu0 0.0
    %4258 = vmatpush1.msra.mxu0 %v4231
    %4259 = vmatprep.subr.mxu0 0.0
    %4260 = vmatpush1.msra.mxu0 %v4230
    %4261 = vmatprep.subr.mxu0 0.0
    %4262 = vmatpush1.msra.mxu0 %v4229
    %4263 = vmatprep.subr.mxu0 0.0
    %4264 = vmatpush1.msra.mxu0 %v4228
    %4265 = vmatprep.subr.mxu0 0.0
    %4266 = vmatpush1.msra.mxu0 %v4227
    %4267 = vmatprep.subr.mxu0 0.0
    %4268 = vmatpush1.msra.mxu0 %v4226
    %4269 = vmatprep.subr.mxu0 0.0
    %4270 = vmatpush1.msra.mxu0 %v4225
    %4271 = vmatprep.subr.mxu0 0.0
    %4272 = vmatpush1.msra.mxu0 %v4224
    %4273 = vmatprep.subr.mxu0 0.0
    %4274 = vmatpush1.msra.mxu0 %v4223
    %4275 = vmatprep.subr.mxu0 0.0
    %4276 = vmatpush1.msra.mxu0 %v4222
    %4277 = vmatprep.subr.mxu0 0.0
    %4278 = vmatpush1.msra.mxu0 %v4221
    %4279 = vmatprep.subr.mxu0 0.0
    %4280 = vmatpush2.msra.mxu0 0.0
    %4281 = vmatprep.subr.mxu0 0.0
    %4282 = vmatpush2.msra.mxu0 0.0
    %4283 = vmatprep.subr.mxu0 0.0
    %4284 = vmatpush2.msra.mxu0 0.0
    %4285 = vmatprep.subr.mxu0 0.0
    %4286 = vmatpush2.msra.mxu0 0.0
    %4287 = vmatprep.subr.mxu0 0.0
    %4288 = vmatpush2.msra.mxu0 0.0
    %4289 = vmatprep.subr.mxu0 0.0
    %4290 = vmatpush2.msra.mxu0 0.0
    %4291 = vmatprep.subr.mxu0 0.0
    %4292 = vmatpush2.msra.mxu0 0.0
    %4293 = vmatprep.subr.mxu0 0.0
    %4294 = vmatpush2.msra.mxu0 0.0
    %4295 = vmatprep.subr.mxu0 0.0
    %4296 = vmatpush2.msra.mxu0 0.0
    %4297 = vmatprep.subr.mxu0 0.0
    %4298 = vmatpush2.msra.mxu0 0.0
    %4299 = vmatprep.subr.mxu0 0.0
    %4300 = vmatpush2.msra.mxu0 0.0
    %4301 = vmatprep.subr.mxu0 0.0
    %4302 = vmatpush2.msra.mxu0 0.0
    %4303 = vmatprep.subr.mxu0 0.0
    %4304 = vmatpush2.msra.mxu0 %v4240
    %4305 = vmatprep.subr.mxu0 0.0
    %4306 = vmatpush2.msra.mxu0 %v4239
    %4307 = vmatprep.subr.mxu0 0.0
    %4308 = vmatpush2.msra.mxu0 %v4238
    %4309 = vmatprep.subr.mxu0 0.0
    %4310 = vmatpush2.msra.mxu0 %v4237
    %4311 = vmatprep.mubr.f32.mxu0 %v4242
    %4312 = vmatmul.mubr.f32.gmra.mxu0 %v4214
    %v4313 = vpop.f32.mrf.mxu0
    %v4314 = vadd.f32 0.0, %v4313
    %v4315 = vpop.f32.mrf.mxu0
    %4316 = vmatprep.mubr.f32.mxu0 %v4245
    %4317 = vmatmul.mubr.f32.gmra.mxu0 %v4218
    %v4318 = vpop.f32.mrf.mxu0
    %v4319 = vadd.f32 0.0, %v4318
    %v4320 = vpop.f32.mrf.mxu0
    %4321 = vdwg.mxu0
    %v4322 = vld [vmem:[%s14] sm:$0xff]
    %v4323 = vld [vmem:[%s14 + $0x8] sm:$0xff]
    %v4324 = vld [vmem:[%s14 + $0x10] sm:$0xff]
    %v4325 = vld [vmem:[%s14 + $0x18] sm:$0xff]
    %v4326 = vld [vmem:[%s14 + $0x20] sm:$0xff]
    %v4327 = vld [vmem:[%s14 + $0x28] sm:$0xff]
    %v4328 = vld [vmem:[%s14 + $0x30] sm:$0xff]
    %v4329 = vld [vmem:[%s14 + $0x38] sm:$0xff]
    %v4330 = vld [vmem:[%s14 + $0x40] sm:$0xff]
    %v4331 = vld [vmem:[%s14 + $0x48] sm:$0xff]
    %v4332 = vld [vmem:[%s14 + $0x50] sm:$0xff]
    %v4333 = vld [vmem:[%s14 + $0x58] sm:$0xff]
    %v4334 = vld [vmem:[%s14 + $0x60] sm:$0xff]
    %v4335 = vld [vmem:[%s14 + $0x68] sm:$0xff]
    %v4336 = vld [vmem:[%s14 + $0x70] sm:$0xff]
    %v4337 = vld [vmem:[%s14 + $0x78] sm:$0xff]
    %v4338 = vld [vmem:[%s14 + $0x80] sm:$0xff]
    %v4339 = vld [vmem:[%s14 + $0x88] sm:$0xff]
    %v4340 = vld [vmem:[%s14 + $0x90] sm:$0xff]
    %v4341 = vld [vmem:[%s14 + $0x98] sm:$0xff]
    %4342 = vmatprep.subr.mxu0 0.0
    %4343 = vmatpush1.msra.mxu0 %v4337
    %4344 = vmatprep.subr.mxu0 0.0
    %4345 = vmatpush1.msra.mxu0 %v4336
    %4346 = vmatprep.subr.mxu0 0.0
    %4347 = vmatpush1.msra.mxu0 %v4335
    %4348 = vmatprep.subr.mxu0 0.0
    %4349 = vmatpush1.msra.mxu0 %v4334
    %4350 = vmatprep.subr.mxu0 0.0
    %4351 = vmatpush1.msra.mxu0 %v4333
    %4352 = vmatprep.subr.mxu0 0.0
    %4353 = vmatpush1.msra.mxu0 %v4332
    %4354 = vmatprep.subr.mxu0 0.0
    %4355 = vmatpush1.msra.mxu0 %v4331
    %4356 = vmatprep.subr.mxu0 0.0
    %4357 = vmatpush1.msra.mxu0 %v4330
    %4358 = vmatprep.subr.mxu0 0.0
    %4359 = vmatpush1.msra.mxu0 %v4329
    %4360 = vmatprep.subr.mxu0 0.0
    %4361 = vmatpush1.msra.mxu0 %v4328
    %4362 = vmatprep.subr.mxu0 0.0
    %4363 = vmatpush1.msra.mxu0 %v4327
    %4364 = vmatprep.subr.mxu0 0.0
    %4365 = vmatpush1.msra.mxu0 %v4326
    %4366 = vmatprep.subr.mxu0 0.0
    %4367 = vmatpush1.msra.mxu0 %v4325
    %4368 = vmatprep.subr.mxu0 0.0
    %4369 = vmatpush1.msra.mxu0 %v4324
    %4370 = vmatprep.subr.mxu0 0.0
    %4371 = vmatpush1.msra.mxu0 %v4323
    %4372 = vmatprep.subr.mxu0 0.0
    %4373 = vmatpush1.msra.mxu0 %v4322
    %4374 = vmatprep.subr.mxu0 0.0
    %4375 = vmatpush2.msra.mxu0 0.0
    %4376 = vmatprep.subr.mxu0 0.0
    %4377 = vmatpush2.msra.mxu0 0.0
    %4378 = vmatprep.subr.mxu0 0.0
    %4379 = vmatpush2.msra.mxu0 0.0
    %4380 = vmatprep.subr.mxu0 0.0
    %4381 = vmatpush2.msra.mxu0 0.0
    %4382 = vmatprep.subr.mxu0 0.0
    %4383 = vmatpush2.msra.mxu0 0.0
    %4384 = vmatprep.subr.mxu0 0.0
    %4385 = vmatpush2.msra.mxu0 0.0
    %4386 = vmatprep.subr.mxu0 0.0
    %4387 = vmatpush2.msra.mxu0 0.0
    %4388 = vmatprep.subr.mxu0 0.0
    %4389 = vmatpush2.msra.mxu0 0.0
    %4390 = vmatprep.subr.mxu0 0.0
    %4391 = vmatpush2.msra.mxu0 0.0
    %4392 = vmatprep.subr.mxu0 0.0
    %4393 = vmatpush2.msra.mxu0 0.0
    %4394 = vmatprep.subr.mxu0 0.0
    %4395 = vmatpush2.msra.mxu0 0.0
    %4396 = vmatprep.subr.mxu0 0.0
    %4397 = vmatpush2.msra.mxu0 0.0
    %4398 = vmatprep.subr.mxu0 0.0
    %4399 = vmatpush2.msra.mxu0 %v4341
    %4400 = vmatprep.subr.mxu0 0.0
    %4401 = vmatpush2.msra.mxu0 %v4340
    %4402 = vmatprep.subr.mxu0 0.0
    %4403 = vmatpush2.msra.mxu0 %v4339
    %4404 = vmatprep.subr.mxu0 0.0
    %4405 = vmatpush2.msra.mxu0 %v4338
    %4406 = vmatprep.mubr.f32.mxu0 %v4242
    %4407 = vmatmul.mubr.f32.gmra.mxu0 %v4214
    %v4408 = vpop.f32.mrf.mxu0
    %v4409 = vadd.f32 0.0, %v4408
    %v4410 = vpop.f32.mrf.mxu0
    %4411 = vmatprep.mubr.f32.mxu0 %v4245
    %4412 = vmatmul.mubr.f32.gmra.mxu0 %v4218
    %v4413 = vpop.f32.mrf.mxu0
    %v4414 = vadd.f32 0.0, %v4413
    %v4415 = vpop.f32.mrf.mxu0
    %4416 = vdwg.mxu0
    %v4417 = vmax.f32 %v4314, %v4409
    %v4418 = vmax.f32 %v4319, %v4414
    %v4419 = vld [vmem:[%s15] sm:$0x1f]
    %v4421 = vsel %vm4035, %v4419, 0
    %v4424 = vsel %vm2496, %v4418, 0
    %4426 = vmatprep.subr.mxu0 0.0
    %4427 = vmatpush1.msra.mxu0 0.0
    %4428 = vmatprep.subr.mxu0 0.0
    %4429 = vmatpush1.msra.mxu0 0.0
    %4430 = vmatprep.subr.mxu0 0.0
    %4431 = vmatpush1.msra.mxu0 0.0
    %4432 = vmatprep.subr.mxu0 0.0
    %4433 = vmatpush1.msra.mxu0 0.0
    %4434 = vmatprep.subr.mxu0 0.0
    %4435 = vmatpush1.msra.mxu0 0.0
    %4436 = vmatprep.subr.mxu0 0.0
    %4437 = vmatpush1.msra.mxu0 0.0
    %4438 = vmatprep.subr.mxu0 0.0
    %4439 = vmatpush1.msra.mxu0 0.0
    %4440 = vmatprep.subr.mxu0 0.0
    %4441 = vmatpush1.msra.mxu0 0.0
    %4442 = vmatprep.subr.mxu0 0.0
    %4443 = vmatpush1.msra.mxu0 0.0
    %4444 = vmatprep.subr.mxu0 0.0
    %4445 = vmatpush1.msra.mxu0 0.0
    %4446 = vmatprep.subr.mxu0 0.0
    %4447 = vmatpush1.msra.mxu0 0.0
    %4448 = vmatprep.subr.mxu0 0.0
    %4449 = vmatpush1.msra.mxu0 0.0
    %4450 = vmatprep.subr.mxu0 0.0
    %4451 = vmatpush1.msra.mxu0 0.0
    %4452 = vmatprep.subr.mxu0 0.0
    %4453 = vmatpush1.msra.mxu0 0.0
    %4454 = vmatprep.subr.mxu0 0.0
    %4455 = vmatpush1.msra.mxu0 %v4424
    %4456 = vmatprep.subr.mxu0 0.0
    %4457 = vmatpush1.msra.mxu0 %v4417
    %4458 = vmatprep.subr.mxu0 0.0
    %4459 = vmatpush2.msra.mxu0 0.0
    %4460 = vmatprep.subr.mxu0 0.0
    %4461 = vmatpush2.msra.mxu0 0.0
    %4462 = vmatprep.subr.mxu0 0.0
    %4463 = vmatpush2.msra.mxu0 0.0
    %4464 = vmatprep.subr.mxu0 0.0
    %4465 = vmatpush2.msra.mxu0 0.0
    %4466 = vmatprep.subr.mxu0 0.0
    %4467 = vmatpush2.msra.mxu0 0.0
    %4468 = vmatprep.subr.mxu0 0.0
    %4469 = vmatpush2.msra.mxu0 0.0
    %4470 = vmatprep.subr.mxu0 0.0
    %4471 = vmatpush2.msra.mxu0 0.0
    %4472 = vmatprep.subr.mxu0 0.0
    %4473 = vmatpush2.msra.mxu0 0.0
    %4474 = vmatprep.subr.mxu0 0.0
    %4475 = vmatpush2.msra.mxu0 0.0
    %4476 = vmatprep.subr.mxu0 0.0
    %4477 = vmatpush2.msra.mxu0 0.0
    %4478 = vmatprep.subr.mxu0 0.0
    %4479 = vmatpush2.msra.mxu0 0.0
    %4480 = vmatprep.subr.mxu0 0.0
    %4481 = vmatpush2.msra.mxu0 0.0
    %4482 = vmatprep.subr.mxu0 0.0
    %4483 = vmatpush2.msra.mxu0 0.0
    %4484 = vmatprep.subr.mxu0 0.0
    %4485 = vmatpush2.msra.mxu0 0.0
    %4486 = vmatprep.subr.mxu0 0.0
    %4487 = vmatpush2.msra.mxu0 0.0
    %4488 = vmatprep.subr.mxu0 0.0
    %4489 = vmatpush2.msra.mxu0 0.0
    %4490 = vmatprep.mubr.f32.mxu0 0.0
    %4491 = vmatmul.mubr.f32.gmra.mxu0 %v4421
    %v4492 = vpop.f32.mrf.mxu0
    %v4493 = vadd.f32 0.0, %v4492
    %v4494 = vpop.f32.mrf.mxu0
    %4495 = vdwg.mxu0
    %v4496 = vld [vmem:[%s16] sm:$0x1f]
    %v4498 = vsel %vm4035, %v4496, 0
    %4500 = vmatprep.subr.mxu0 0.0
    %4501 = vmatpush1.msra.mxu0 0.0
    %4502 = vmatprep.subr.mxu0 0.0
    %4503 = vmatpush1.msra.mxu0 0.0
    %4504 = vmatprep.subr.mxu0 0.0
    %4505 = vmatpush1.msra.mxu0 0.0
    %4506 = vmatprep.subr.mxu0 0.0
    %4507 = vmatpush1.msra.mxu0 0.0
    %4508 = vmatprep.subr.mxu0 0.0
    %4509 = vmatpush1.msra.mxu0 0.0
    %4510 = vmatprep.subr.mxu0 0.0
    %4511 = vmatpush1.msra.mxu0 0.0
    %4512 = vmatprep.subr.mxu0 0.0
    %4513 = vmatpush1.msra.mxu0 0.0
    %4514 = vmatprep.subr.mxu0 0.0
    %4515 = vmatpush1.msra.mxu0 0.0
    %4516 = vmatprep.subr.mxu0 0.0
    %4517 = vmatpush1.msra.mxu0 0.0
    %4518 = vmatprep.subr.mxu0 0.0
    %4519 = vmatpush1.msra.mxu0 0.0
    %4520 = vmatprep.subr.mxu0 0.0
    %4521 = vmatpush1.msra.mxu0 0.0
    %4522 = vmatprep.subr.mxu0 0.0
    %4523 = vmatpush1.msra.mxu0 0.0
    %4524 = vmatprep.subr.mxu0 0.0
    %4525 = vmatpush1.msra.mxu0 0.0
    %4526 = vmatprep.subr.mxu0 0.0
    %4527 = vmatpush1.msra.mxu0 0.0
    %4528 = vmatprep.subr.mxu0 0.0
    %4529 = vmatpush1.msra.mxu0 %v4424
    %4530 = vmatprep.subr.mxu0 0.0
    %4531 = vmatpush1.msra.mxu0 %v4417
    %4532 = vmatprep.subr.mxu0 0.0
    %4533 = vmatpush2.msra.mxu0 0.0
    %4534 = vmatprep.subr.mxu0 0.0
    %4535 = vmatpush2.msra.mxu0 0.0
    %4536 = vmatprep.subr.mxu0 0.0
    %4537 = vmatpush2.msra.mxu0 0.0
    %4538 = vmatprep.subr.mxu0 0.0
    %4539 = vmatpush2.msra.mxu0 0.0
    %4540 = vmatprep.subr.mxu0 0.0
    %4541 = vmatpush2.msra.mxu0 0.0
    %4542 = vmatprep.subr.mxu0 0.0
    %4543 = vmatpush2.msra.mxu0 0.0
    %4544 = vmatprep.subr.mxu0 0.0
    %4545 = vmatpush2.msra.mxu0 0.0
    %4546 = vmatprep.subr.mxu0 0.0
    %4547 = vmatpush2.msra.mxu0 0.0
    %4548 = vmatprep.subr.mxu0 0.0
    %4549 = vmatpush2.msra.mxu0 0.0
    %4550 = vmatprep.subr.mxu0 0.0
    %4551 = vmatpush2.msra.mxu0 0.0
    %4552 = vmatprep.subr.mxu0 0.0
    %4553 = vmatpush2.msra.mxu0 0.0
    %4554 = vmatprep.subr.mxu0 0.0
    %4555 = vmatpush2.msra.mxu0 0.0
    %4556 = vmatprep.subr.mxu0 0.0
    %4557 = vmatpush2.msra.mxu0 0.0
    %4558 = vmatprep.subr.mxu0 0.0
    %4559 = vmatpush2.msra.mxu0 0.0
    %4560 = vmatprep.subr.mxu0 0.0
    %4561 = vmatpush2.msra.mxu0 0.0
    %4562 = vmatprep.subr.mxu0 0.0
    %4563 = vmatpush2.msra.mxu0 0.0
    %4564 = vmatprep.mubr.f32.mxu0 0.0
    %4565 = vmatmul.mubr.f32.gmra.mxu0 %v4498
    %v4566 = vpop.f32.mrf.mxu0
    %v4567 = vadd.f32 0.0, %v4566
    %v4568 = vpop.f32.mrf.mxu0
    %4569 = vdwg.mxu0
    %v4570 = vmax.f32 %v4493, %v4567
    %4571 = vst.msk [vmem:[#allocation3 + $0x5] sm:$0x1f] %vm4187, %v4570
    %v4572 = vld [vmem:[#allocation3] sm:$0x1]
    %v4573 = vld [vmem:[%s19] sm:$0xf]
    %v4574 = vld [vmem:[%s19 + $0x4] sm:$0xf]
    %v4575 = vld [vmem:[%s19 + $0x8] sm:$0xf]
    %v4576 = vld [vmem:[%s19 + $0xc] sm:$0xf]
    %v4577 = vld [vmem:[%s19 + $0x10] sm:$0xf]
    %v4578 = vld [vmem:[%s19 + $0x14] sm:$0xf]
    %v4579 = vld [vmem:[%s19 + $0x18] sm:$0xf]
    %v4580 = vld [vmem:[%s19 + $0x1c] sm:$0xf]
    %v4581 = vld [vmem:[%s19 + $0x20] sm:$0xf]
    %v4582 = vld [vmem:[%s19 + $0x24] sm:$0xf]
    %v4583 = vpack.c.bf16 %v4572, %v4572
    %v4584 = vld [vmem:[#allocation3 + $0x1] sm:$0x1]
    %s4585 = scalar_lea.vmem %s19, 40
    %v4586 = vld [vmem:[%s4585] sm:$0xf]
    %v4587 = vld [vmem:[%s4585 + $0x4] sm:$0xf]
    %v4588 = vld [vmem:[%s4585 + $0x8] sm:$0xf]
    %v4589 = vld [vmem:[%s4585 + $0xc] sm:$0xf]
    %v4590 = vld [vmem:[%s4585 + $0x10] sm:$0xf]
    %v4591 = vld [vmem:[%s4585 + $0x14] sm:$0xf]
    %v4592 = vld [vmem:[%s4585 + $0x18] sm:$0xf]
    %v4593 = vld [vmem:[%s4585 + $0x1c] sm:$0xf]
    %v4594 = vld [vmem:[%s4585 + $0x20] sm:$0xf]
    %v4595 = vld [vmem:[%s4585 + $0x24] sm:$0xf]
    %v4596 = vpack.c.bf16 %v4584, %v4584
    %v4607 = vunpack.c.l.b16 %v4586
    %v4608 = vunpack.c.l.b16 %v4587
    %v4609 = vunpack.c.l.b16 %v4588
    %v4610 = vunpack.c.l.b16 %v4589
    %v4611 = vunpack.c.l.b16 %v4590
    %v4612 = vunpack.c.l.b16 %v4591
    %v4613 = vunpack.c.l.b16 %v4592
    %v4614 = vunpack.c.l.b16 %v4593
    %v4615 = vunpack.c.l.b16 %v4594
    %v4616 = vunpack.c.l.b16 %v4595
    %v4617 = vpack.c.b16 %v4608, %v4607
    %v4618 = vpack.c.b16 %v4610, %v4609
    %v4619 = vpack.c.b16 %v4612, %v4611
    %v4620 = vpack.c.b16 %v4614, %v4613
    %v4621 = vpack.c.b16 %v4616, %v4615
    %vm4627 = vcmask 654336
    %v4629 = vsel %vm4627, %v4596, 0
    %4631 = vmatprep.subr.bf16.mxu0 0
    %4632 = vmatpush1.bf16.msra.mxu0 0
    %4633 = vmatprep.subr.bf16.mxu0 0
    %4634 = vmatpush1.bf16.msra.mxu0 0
    %4635 = vmatprep.subr.bf16.mxu0 0
    %4636 = vmatpush1.bf16.msra.mxu0 0
    %4637 = vmatprep.subr.bf16.mxu0 0
    %4638 = vmatpush1.bf16.msra.mxu0 %v4621
    %4639 = vmatprep.subr.bf16.mxu0 0
    %4640 = vmatpush1.bf16.msra.mxu0 %v4620
    %4641 = vmatprep.subr.bf16.mxu0 0
    %4642 = vmatpush1.bf16.msra.mxu0 %v4619
    %4643 = vmatprep.subr.bf16.mxu0 0
    %4644 = vmatpush1.bf16.msra.mxu0 %v4618
    %4645 = vmatprep.subr.bf16.mxu0 0
    %4646 = vmatpush1.bf16.msra.mxu0 %v4617
    %4647 = vmatprep.subr.bf16.mxu0 0
    %4648 = vmatpush2.bf16.msra.mxu0 0
    %4649 = vmatprep.subr.bf16.mxu0 0
    %4650 = vmatpush2.bf16.msra.mxu0 0
    %4651 = vmatprep.subr.bf16.mxu0 0
    %4652 = vmatpush2.bf16.msra.mxu0 0
    %4653 = vmatprep.subr.bf16.mxu0 0
    %4654 = vmatpush2.bf16.msra.mxu0 0
    %4655 = vmatprep.subr.bf16.mxu0 0
    %4656 = vmatpush2.bf16.msra.mxu0 0
    %4657 = vmatprep.subr.bf16.mxu0 0
    %4658 = vmatpush2.bf16.msra.mxu0 0
    %4659 = vmatprep.subr.bf16.mxu0 0
    %4660 = vmatpush2.bf16.msra.mxu0 0
    %4661 = vmatprep.subr.bf16.mxu0 0
    %4662 = vmatpush2.bf16.msra.mxu0 0
    %4663 = vmatprep.mubr.bf16.mxu0 0
    %4664 = vmatmul.mubr.bf16.gmra.mxu0 %v4629
    %v4665 = vpop.f32.mrf.mxu0
    %v4666 = vadd.f32 0.0, %v4665
    %v4667 = vpop.f32.mrf.mxu0
    %v4668 = vpop.f32.mrf.mxu0
    %v4669 = vpop.f32.mrf.mxu0
    %4670 = vdwg.mxu0
    %v4681 = vunpack.c.l.b16 %v4573
    %v4682 = vunpack.c.l.b16 %v4574
    %v4683 = vunpack.c.l.b16 %v4575
    %v4684 = vunpack.c.l.b16 %v4576
    %v4685 = vunpack.c.l.b16 %v4577
    %v4686 = vunpack.c.l.b16 %v4578
    %v4687 = vunpack.c.l.b16 %v4579
    %v4688 = vunpack.c.l.b16 %v4580
    %v4689 = vunpack.c.l.b16 %v4581
    %v4690 = vunpack.c.l.b16 %v4582
    %v4691 = vpack.c.b16 %v4682, %v4681
    %v4692 = vpack.c.b16 %v4684, %v4683
    %v4693 = vpack.c.b16 %v4686, %v4685
    %v4694 = vpack.c.b16 %v4688, %v4687
    %v4695 = vpack.c.b16 %v4690, %v4689
    %v4702 = vsel %vm4627, %v4583, 0
    %4704 = vmatprep.subr.bf16.mxu0 0
    %4705 = vmatpush1.bf16.msra.mxu0 0
    %4706 = vmatprep.subr.bf16.mxu0 0
    %4707 = vmatpush1.bf16.msra.mxu0 0
    %4708 = vmatprep.subr.bf16.mxu0 0
    %4709 = vmatpush1.bf16.msra.mxu0 0
    %4710 = vmatprep.subr.bf16.mxu0 0
    %4711 = vmatpush1.bf16.msra.mxu0 %v4695
    %4712 = vmatprep.subr.bf16.mxu0 0
    %4713 = vmatpush1.bf16.msra.mxu0 %v4694
    %4714 = vmatprep.subr.bf16.mxu0 0
    %4715 = vmatpush1.bf16.msra.mxu0 %v4693
    %4716 = vmatprep.subr.bf16.mxu0 0
    %4717 = vmatpush1.bf16.msra.mxu0 %v4692
    %4718 = vmatprep.subr.bf16.mxu0 0
    %4719 = vmatpush1.bf16.msra.mxu0 %v4691
    %4720 = vmatprep.subr.bf16.mxu0 0
    %4721 = vmatpush2.bf16.msra.mxu0 0
    %4722 = vmatprep.subr.bf16.mxu0 0
    %4723 = vmatpush2.bf16.msra.mxu0 0
    %4724 = vmatprep.subr.bf16.mxu0 0
    %4725 = vmatpush2.bf16.msra.mxu0 0
    %4726 = vmatprep.subr.bf16.mxu0 0
    %4727 = vmatpush2.bf16.msra.mxu0 0
    %4728 = vmatprep.subr.bf16.mxu0 0
    %4729 = vmatpush2.bf16.msra.mxu0 0
    %4730 = vmatprep.subr.bf16.mxu0 0
    %4731 = vmatpush2.bf16.msra.mxu0 0
    %4732 = vmatprep.subr.bf16.mxu0 0
    %4733 = vmatpush2.bf16.msra.mxu0 0
    %4734 = vmatprep.subr.bf16.mxu0 0
    %4735 = vmatpush2.bf16.msra.mxu0 0
    %4736 = vmatprep.mubr.bf16.mxu0 0
    %4737 = vmatmul.mubr.bf16.gmra.mxu0 %v4702
    %v4738 = vpop.f32.mrf.mxu0
    %v4739 = vadd.f32 %v4666, %v4738
    %v4740 = vpop.f32.mrf.mxu0
    %v4741 = vpop.f32.mrf.mxu0
    %v4742 = vpop.f32.mrf.mxu0
    %4743 = vdwg.mxu0
    %v4744 = vld [vmem:[#allocation3 + $0x2] sm:$0x1]
    %s4745 = scalar_lea.vmem %s19, 80
    %v4746 = vld [vmem:[%s4745] sm:$0xf]
    %v4747 = vld [vmem:[%s4745 + $0x4] sm:$0xf]
    %v4748 = vld [vmem:[%s4745 + $0x8] sm:$0xf]
    %v4749 = vld [vmem:[%s4745 + $0xc] sm:$0xf]
    %v4750 = vld [vmem:[%s4745 + $0x10] sm:$0xf]
    %v4751 = vld [vmem:[%s4745 + $0x14] sm:$0xf]
    %v4752 = vld [vmem:[%s4745 + $0x18] sm:$0xf]
    %v4753 = vld [vmem:[%s4745 + $0x1c] sm:$0xf]
    %v4754 = vld [vmem:[%s4745 + $0x20] sm:$0xf]
    %v4755 = vld [vmem:[%s4745 + $0x24] sm:$0xf]
    %v4756 = vpack.c.bf16 %v4744, %v4744
    %v4767 = vunpack.c.l.b16 %v4746
    %v4768 = vunpack.c.l.b16 %v4747
    %v4769 = vunpack.c.l.b16 %v4748
    %v4770 = vunpack.c.l.b16 %v4749
    %v4771 = vunpack.c.l.b16 %v4750
    %v4772 = vunpack.c.l.b16 %v4751
    %v4773 = vunpack.c.l.b16 %v4752
    %v4774 = vunpack.c.l.b16 %v4753
    %v4775 = vunpack.c.l.b16 %v4754
    %v4776 = vunpack.c.l.b16 %v4755
    %v4777 = vpack.c.b16 %v4768, %v4767
    %v4778 = vpack.c.b16 %v4770, %v4769
    %v4779 = vpack.c.b16 %v4772, %v4771
    %v4780 = vpack.c.b16 %v4774, %v4773
    %v4781 = vpack.c.b16 %v4776, %v4775
    %v4788 = vsel %vm4627, %v4756, 0
    %4790 = vmatprep.subr.bf16.mxu0 0
    %4791 = vmatpush1.bf16.msra.mxu0 0
    %4792 = vmatprep.subr.bf16.mxu0 0
    %4793 = vmatpush1.bf16.msra.mxu0 0
    %4794 = vmatprep.subr.bf16.mxu0 0
    %4795 = vmatpush1.bf16.msra.mxu0 0
    %4796 = vmatprep.subr.bf16.mxu0 0
    %4797 = vmatpush1.bf16.msra.mxu0 %v4781
    %4798 = vmatprep.subr.bf16.mxu0 0
    %4799 = vmatpush1.bf16.msra.mxu0 %v4780
    %4800 = vmatprep.subr.bf16.mxu0 0
    %4801 = vmatpush1.bf16.msra.mxu0 %v4779
    %4802 = vmatprep.subr.bf16.mxu0 0
    %4803 = vmatpush1.bf16.msra.mxu0 %v4778
    %4804 = vmatprep.subr.bf16.mxu0 0
    %4805 = vmatpush1.bf16.msra.mxu0 %v4777
    %4806 = vmatprep.subr.bf16.mxu0 0
    %4807 = vmatpush2.bf16.msra.mxu0 0
    %4808 = vmatprep.subr.bf16.mxu0 0
    %4809 = vmatpush2.bf16.msra.mxu0 0
    %4810 = vmatprep.subr.bf16.mxu0 0
    %4811 = vmatpush2.bf16.msra.mxu0 0
    %4812 = vmatprep.subr.bf16.mxu0 0
    %4813 = vmatpush2.bf16.msra.mxu0 0
    %4814 = vmatprep.subr.bf16.mxu0 0
    %4815 = vmatpush2.bf16.msra.mxu0 0
    %4816 = vmatprep.subr.bf16.mxu0 0
    %4817 = vmatpush2.bf16.msra.mxu0 0
    %4818 = vmatprep.subr.bf16.mxu0 0
    %4819 = vmatpush2.bf16.msra.mxu0 0
    %4820 = vmatprep.subr.bf16.mxu0 0
    %4821 = vmatpush2.bf16.msra.mxu0 0
    %4822 = vmatprep.mubr.bf16.mxu0 0
    %4823 = vmatmul.mubr.bf16.gmra.mxu0 %v4788
    %v4824 = vpop.f32.mrf.mxu0
    %v4825 = vadd.f32 0.0, %v4824
    %v4826 = vpop.f32.mrf.mxu0
    %v4827 = vpop.f32.mrf.mxu0
    %v4828 = vpop.f32.mrf.mxu0
    %4829 = vdwg.mxu0
    %v4830 = vadd.f32 %v4739, %v4825
    %v4831 = vld [vmem:[#allocation3 + $0x3] sm:$0x1]
    %s4832 = scalar_lea.vmem %s19, 120
    %v4833 = vld [vmem:[%s4832] sm:$0xf]
    %v4834 = vld [vmem:[%s4832 + $0x4] sm:$0xf]
    %v4835 = vld [vmem:[%s4832 + $0x8] sm:$0xf]
    %v4836 = vld [vmem:[%s4832 + $0xc] sm:$0xf]
    %v4837 = vld [vmem:[%s4832 + $0x10] sm:$0xf]
    %v4838 = vld [vmem:[%s4832 + $0x14] sm:$0xf]
    %v4839 = vld [vmem:[%s4832 + $0x18] sm:$0xf]
    %v4840 = vld [vmem:[%s4832 + $0x1c] sm:$0xf]
    %v4841 = vld [vmem:[%s4832 + $0x20] sm:$0xf]
    %v4842 = vld [vmem:[%s4832 + $0x24] sm:$0xf]
    %v4843 = vpack.c.bf16 %v4831, %v4831
    %v4854 = vunpack.c.l.b16 %v4833
    %v4855 = vunpack.c.l.b16 %v4834
    %v4856 = vunpack.c.l.b16 %v4835
    %v4857 = vunpack.c.l.b16 %v4836
    %v4858 = vunpack.c.l.b16 %v4837
    %v4859 = vunpack.c.l.b16 %v4838
    %v4860 = vunpack.c.l.b16 %v4839
    %v4861 = vunpack.c.l.b16 %v4840
    %v4862 = vunpack.c.l.b16 %v4841
    %v4863 = vunpack.c.l.b16 %v4842
    %v4864 = vpack.c.b16 %v4855, %v4854
    %v4865 = vpack.c.b16 %v4857, %v4856
    %v4866 = vpack.c.b16 %v4859, %v4858
    %v4867 = vpack.c.b16 %v4861, %v4860
    %v4868 = vpack.c.b16 %v4863, %v4862
    %v4875 = vsel %vm4627, %v4843, 0
    %4877 = vmatprep.subr.bf16.mxu0 0
    %4878 = vmatpush1.bf16.msra.mxu0 0
    %4879 = vmatprep.subr.bf16.mxu0 0
    %4880 = vmatpush1.bf16.msra.mxu0 0
    %4881 = vmatprep.subr.bf16.mxu0 0
    %4882 = vmatpush1.bf16.msra.mxu0 0
    %4883 = vmatprep.subr.bf16.mxu0 0
    %4884 = vmatpush1.bf16.msra.mxu0 %v4868
    %4885 = vmatprep.subr.bf16.mxu0 0
    %4886 = vmatpush1.bf16.msra.mxu0 %v4867
    %4887 = vmatprep.subr.bf16.mxu0 0
    %4888 = vmatpush1.bf16.msra.mxu0 %v4866
    %4889 = vmatprep.subr.bf16.mxu0 0
    %4890 = vmatpush1.bf16.msra.mxu0 %v4865
    %4891 = vmatprep.subr.bf16.mxu0 0
    %4892 = vmatpush1.bf16.msra.mxu0 %v4864
    %4893 = vmatprep.subr.bf16.mxu0 0
    %4894 = vmatpush2.bf16.msra.mxu0 0
    %4895 = vmatprep.subr.bf16.mxu0 0
    %4896 = vmatpush2.bf16.msra.mxu0 0
    %4897 = vmatprep.subr.bf16.mxu0 0
    %4898 = vmatpush2.bf16.msra.mxu0 0
    %4899 = vmatprep.subr.bf16.mxu0 0
    %4900 = vmatpush2.bf16.msra.mxu0 0
    %4901 = vmatprep.subr.bf16.mxu0 0
    %4902 = vmatpush2.bf16.msra.mxu0 0
    %4903 = vmatprep.subr.bf16.mxu0 0
    %4904 = vmatpush2.bf16.msra.mxu0 0
    %4905 = vmatprep.subr.bf16.mxu0 0
    %4906 = vmatpush2.bf16.msra.mxu0 0
    %4907 = vmatprep.subr.bf16.mxu0 0
    %4908 = vmatpush2.bf16.msra.mxu0 0
    %4909 = vmatprep.mubr.bf16.mxu0 0
    %4910 = vmatmul.mubr.bf16.gmra.mxu0 %v4875
    %v4911 = vpop.f32.mrf.mxu0
    %v4912 = vadd.f32 0.0, %v4911
    %v4913 = vpop.f32.mrf.mxu0
    %v4914 = vpop.f32.mrf.mxu0
    %v4915 = vpop.f32.mrf.mxu0
    %4916 = vdwg.mxu0
    %v4917 = vadd.f32 %v4830, %v4912
    %v4918 = vld [vmem:[#allocation3 + $0x4] sm:$0x1]
    %s4919 = scalar_lea.vmem %s19, 160
    %v4920 = vld [vmem:[%s4919] sm:$0xf]
    %v4921 = vld [vmem:[%s4919 + $0x4] sm:$0xf]
    %v4922 = vld [vmem:[%s4919 + $0x8] sm:$0xf]
    %v4923 = vld [vmem:[%s4919 + $0xc] sm:$0xf]
    %v4924 = vld [vmem:[%s4919 + $0x10] sm:$0xf]
    %v4925 = vld [vmem:[%s4919 + $0x14] sm:$0xf]
    %v4926 = vld [vmem:[%s4919 + $0x18] sm:$0xf]
    %v4927 = vld [vmem:[%s4919 + $0x1c] sm:$0xf]
    %v4928 = vld [vmem:[%s4919 + $0x20] sm:$0xf]
    %v4929 = vld [vmem:[%s4919 + $0x24] sm:$0xf]
    %v4930 = vpack.c.bf16 %v4918, %v4918
    %v4941 = vunpack.c.l.b16 %v4920
    %v4942 = vunpack.c.l.b16 %v4921
    %v4943 = vunpack.c.l.b16 %v4922
    %v4944 = vunpack.c.l.b16 %v4923
    %v4945 = vunpack.c.l.b16 %v4924
    %v4946 = vunpack.c.l.b16 %v4925
    %v4947 = vunpack.c.l.b16 %v4926
    %v4948 = vunpack.c.l.b16 %v4927
    %v4949 = vunpack.c.l.b16 %v4928
    %v4950 = vunpack.c.l.b16 %v4929
    %v4951 = vpack.c.b16 %v4942, %v4941
    %v4952 = vpack.c.b16 %v4944, %v4943
    %v4953 = vpack.c.b16 %v4946, %v4945
    %v4954 = vpack.c.b16 %v4948, %v4947
    %v4955 = vpack.c.b16 %v4950, %v4949
    %v4962 = vsel %vm4627, %v4930, 0
    %4964 = vmatprep.subr.bf16.mxu0 0
    %4965 = vmatpush1.bf16.msra.mxu0 0
    %4966 = vmatprep.subr.bf16.mxu0 0
    %4967 = vmatpush1.bf16.msra.mxu0 0
    %4968 = vmatprep.subr.bf16.mxu0 0
    %4969 = vmatpush1.bf16.msra.mxu0 0
    %4970 = vmatprep.subr.bf16.mxu0 0
    %4971 = vmatpush1.bf16.msra.mxu0 %v4955
    %4972 = vmatprep.subr.bf16.mxu0 0
    %4973 = vmatpush1.bf16.msra.mxu0 %v4954
    %4974 = vmatprep.subr.bf16.mxu0 0
    %4975 = vmatpush1.bf16.msra.mxu0 %v4953
    %4976 = vmatprep.subr.bf16.mxu0 0
    %4977 = vmatpush1.bf16.msra.mxu0 %v4952
    %4978 = vmatprep.subr.bf16.mxu0 0
    %4979 = vmatpush1.bf16.msra.mxu0 %v4951
    %4980 = vmatprep.subr.bf16.mxu0 0
    %4981 = vmatpush2.bf16.msra.mxu0 0
    %4982 = vmatprep.subr.bf16.mxu0 0
    %4983 = vmatpush2.bf16.msra.mxu0 0
    %4984 = vmatprep.subr.bf16.mxu0 0
    %4985 = vmatpush2.bf16.msra.mxu0 0
    %4986 = vmatprep.subr.bf16.mxu0 0
    %4987 = vmatpush2.bf16.msra.mxu0 0
    %4988 = vmatprep.subr.bf16.mxu0 0
    %4989 = vmatpush2.bf16.msra.mxu0 0
    %4990 = vmatprep.subr.bf16.mxu0 0
    %4991 = vmatpush2.bf16.msra.mxu0 0
    %4992 = vmatprep.subr.bf16.mxu0 0
    %4993 = vmatpush2.bf16.msra.mxu0 0
    %4994 = vmatprep.subr.bf16.mxu0 0
    %4995 = vmatpush2.bf16.msra.mxu0 0
    %4996 = vmatprep.mubr.bf16.mxu0 0
    %4997 = vmatmul.mubr.bf16.gmra.mxu0 %v4962
    %v4998 = vpop.f32.mrf.mxu0
    %v4999 = vadd.f32 0.0, %v4998
    %v5000 = vpop.f32.mrf.mxu0
    %v5001 = vpop.f32.mrf.mxu0
    %v5002 = vpop.f32.mrf.mxu0
    %5003 = vdwg.mxu0
    %v5004 = vadd.f32 %v4917, %v4999
    %v5005 = vld [vmem:[#allocation3 + $0x5] sm:$0x1]
    %v5006 = vpack.c.bf16 %v5005, %v5005
    %v5007 = vld [vmem:[#allocation3 + $0x6] sm:$0x1]
    %v5008 = vpack.c.bf16 %v5007, %v5007
    %v5010 = vsel %vm4627, %v5008, 0
    %5012 = vmatprep.subr.bf16.mxu0 0
    %5013 = vmatpush1.bf16.msra.mxu0 0
    %5014 = vmatprep.subr.bf16.mxu0 0
    %5015 = vmatpush1.bf16.msra.mxu0 0
    %5016 = vmatprep.subr.bf16.mxu0 0
    %5017 = vmatpush1.bf16.msra.mxu0 0
    %5018 = vmatprep.subr.bf16.mxu0 0
    %5019 = vmatpush1.bf16.msra.mxu0 %v4621
    %5020 = vmatprep.subr.bf16.mxu0 0
    %5021 = vmatpush1.bf16.msra.mxu0 %v4620
    %5022 = vmatprep.subr.bf16.mxu0 0
    %5023 = vmatpush1.bf16.msra.mxu0 %v4619
    %5024 = vmatprep.subr.bf16.mxu0 0
    %5025 = vmatpush1.bf16.msra.mxu0 %v4618
    %5026 = vmatprep.subr.bf16.mxu0 0
    %5027 = vmatpush1.bf16.msra.mxu0 %v4617
    %5028 = vmatprep.subr.bf16.mxu0 0
    %5029 = vmatpush2.bf16.msra.mxu0 0
    %5030 = vmatprep.subr.bf16.mxu0 0
    %5031 = vmatpush2.bf16.msra.mxu0 0
    %5032 = vmatprep.subr.bf16.mxu0 0
    %5033 = vmatpush2.bf16.msra.mxu0 0
    %5034 = vmatprep.subr.bf16.mxu0 0
    %5035 = vmatpush2.bf16.msra.mxu0 0
    %5036 = vmatprep.subr.bf16.mxu0 0
    %5037 = vmatpush2.bf16.msra.mxu0 0
    %5038 = vmatprep.subr.bf16.mxu0 0
    %5039 = vmatpush2.bf16.msra.mxu0 0
    %5040 = vmatprep.subr.bf16.mxu0 0
    %5041 = vmatpush2.bf16.msra.mxu0 0
    %5042 = vmatprep.subr.bf16.mxu0 0
    %5043 = vmatpush2.bf16.msra.mxu0 0
    %5044 = vmatprep.mubr.bf16.mxu0 0
    %5045 = vmatmul.mubr.bf16.gmra.mxu0 %v5010
    %v5046 = vpop.f32.mrf.mxu0
    %v5047 = vadd.f32 0.0, %v5046
    %v5048 = vpop.f32.mrf.mxu0
    %v5049 = vpop.f32.mrf.mxu0
    %v5050 = vpop.f32.mrf.mxu0
    %5051 = vdwg.mxu0
    %v5053 = vsel %vm4627, %v5006, 0
    %5055 = vmatprep.subr.bf16.mxu0 0
    %5056 = vmatpush1.bf16.msra.mxu0 0
    %5057 = vmatprep.subr.bf16.mxu0 0
    %5058 = vmatpush1.bf16.msra.mxu0 0
    %5059 = vmatprep.subr.bf16.mxu0 0
    %5060 = vmatpush1.bf16.msra.mxu0 0
    %5061 = vmatprep.subr.bf16.mxu0 0
    %5062 = vmatpush1.bf16.msra.mxu0 %v4695
    %5063 = vmatprep.subr.bf16.mxu0 0
    %5064 = vmatpush1.bf16.msra.mxu0 %v4694
    %5065 = vmatprep.subr.bf16.mxu0 0
    %5066 = vmatpush1.bf16.msra.mxu0 %v4693
    %5067 = vmatprep.subr.bf16.mxu0 0
    %5068 = vmatpush1.bf16.msra.mxu0 %v4692
    %5069 = vmatprep.subr.bf16.mxu0 0
    %5070 = vmatpush1.bf16.msra.mxu0 %v4691
    %5071 = vmatprep.subr.bf16.mxu0 0
    %5072 = vmatpush2.bf16.msra.mxu0 0
    %5073 = vmatprep.subr.bf16.mxu0 0
    %5074 = vmatpush2.bf16.msra.mxu0 0
    %5075 = vmatprep.subr.bf16.mxu0 0
    %5076 = vmatpush2.bf16.msra.mxu0 0
    %5077 = vmatprep.subr.bf16.mxu0 0
    %5078 = vmatpush2.bf16.msra.mxu0 0
    %5079 = vmatprep.subr.bf16.mxu0 0
    %5080 = vmatpush2.bf16.msra.mxu0 0
    %5081 = vmatprep.subr.bf16.mxu0 0
    %5082 = vmatpush2.bf16.msra.mxu0 0
    %5083 = vmatprep.subr.bf16.mxu0 0
    %5084 = vmatpush2.bf16.msra.mxu0 0
    %5085 = vmatprep.subr.bf16.mxu0 0
    %5086 = vmatpush2.bf16.msra.mxu0 0
    %5087 = vmatprep.mubr.bf16.mxu0 0
    %5088 = vmatmul.mubr.bf16.gmra.mxu0 %v5053
    %v5089 = vpop.f32.mrf.mxu0
    %v5090 = vadd.f32 %v5047, %v5089
    %v5091 = vpop.f32.mrf.mxu0
    %v5092 = vpop.f32.mrf.mxu0
    %v5093 = vpop.f32.mrf.mxu0
    %5094 = vdwg.mxu0
    %v5095 = vld [vmem:[#allocation3 + $0x7] sm:$0x1]
    %v5096 = vpack.c.bf16 %v5095, %v5095
    %v5098 = vsel %vm4627, %v5096, 0
    %5100 = vmatprep.subr.bf16.mxu0 0
    %5101 = vmatpush1.bf16.msra.mxu0 0
    %5102 = vmatprep.subr.bf16.mxu0 0
    %5103 = vmatpush1.bf16.msra.mxu0 0
    %5104 = vmatprep.subr.bf16.mxu0 0
    %5105 = vmatpush1.bf16.msra.mxu0 0
    %5106 = vmatprep.subr.bf16.mxu0 0
    %5107 = vmatpush1.bf16.msra.mxu0 %v4781
    %5108 = vmatprep.subr.bf16.mxu0 0
    %5109 = vmatpush1.bf16.msra.mxu0 %v4780
    %5110 = vmatprep.subr.bf16.mxu0 0
    %5111 = vmatpush1.bf16.msra.mxu0 %v4779
    %5112 = vmatprep.subr.bf16.mxu0 0
    %5113 = vmatpush1.bf16.msra.mxu0 %v4778
    %5114 = vmatprep.subr.bf16.mxu0 0
    %5115 = vmatpush1.bf16.msra.mxu0 %v4777
    %5116 = vmatprep.subr.bf16.mxu0 0
    %5117 = vmatpush2.bf16.msra.mxu0 0
    %5118 = vmatprep.subr.bf16.mxu0 0
    %5119 = vmatpush2.bf16.msra.mxu0 0
    %5120 = vmatprep.subr.bf16.mxu0 0
    %5121 = vmatpush2.bf16.msra.mxu0 0
    %5122 = vmatprep.subr.bf16.mxu0 0
    %5123 = vmatpush2.bf16.msra.mxu0 0
    %5124 = vmatprep.subr.bf16.mxu0 0
    %5125 = vmatpush2.bf16.msra.mxu0 0
    %5126 = vmatprep.subr.bf16.mxu0 0
    %5127 = vmatpush2.bf16.msra.mxu0 0
    %5128 = vmatprep.subr.bf16.mxu0 0
    %5129 = vmatpush2.bf16.msra.mxu0 0
    %5130 = vmatprep.subr.bf16.mxu0 0
    %5131 = vmatpush2.bf16.msra.mxu0 0
    %5132 = vmatprep.mubr.bf16.mxu0 0
    %5133 = vmatmul.mubr.bf16.gmra.mxu0 %v5098
    %v5134 = vpop.f32.mrf.mxu0
    %v5135 = vadd.f32 0.0, %v5134
    %v5136 = vpop.f32.mrf.mxu0
    %v5137 = vpop.f32.mrf.mxu0
    %v5138 = vpop.f32.mrf.mxu0
    %5139 = vdwg.mxu0
    %v5140 = vadd.f32 %v5090, %v5135
    %v5141 = vld [vmem:[#allocation3 + $0x8] sm:$0x1]
    %v5142 = vpack.c.bf16 %v5141, %v5141
    %v5144 = vsel %vm4627, %v5142, 0
    %5146 = vmatprep.subr.bf16.mxu0 0
    %5147 = vmatpush1.bf16.msra.mxu0 0
    %5148 = vmatprep.subr.bf16.mxu0 0
    %5149 = vmatpush1.bf16.msra.mxu0 0
    %5150 = vmatprep.subr.bf16.mxu0 0
    %5151 = vmatpush1.bf16.msra.mxu0 0
    %5152 = vmatprep.subr.bf16.mxu0 0
    %5153 = vmatpush1.bf16.msra.mxu0 %v4868
    %5154 = vmatprep.subr.bf16.mxu0 0
    %5155 = vmatpush1.bf16.msra.mxu0 %v4867
    %5156 = vmatprep.subr.bf16.mxu0 0
    %5157 = vmatpush1.bf16.msra.mxu0 %v4866
    %5158 = vmatprep.subr.bf16.mxu0 0
    %5159 = vmatpush1.bf16.msra.mxu0 %v4865
    %5160 = vmatprep.subr.bf16.mxu0 0
    %5161 = vmatpush1.bf16.msra.mxu0 %v4864
    %5162 = vmatprep.subr.bf16.mxu0 0
    %5163 = vmatpush2.bf16.msra.mxu0 0
    %5164 = vmatprep.subr.bf16.mxu0 0
    %5165 = vmatpush2.bf16.msra.mxu0 0
    %5166 = vmatprep.subr.bf16.mxu0 0
    %5167 = vmatpush2.bf16.msra.mxu0 0
    %5168 = vmatprep.subr.bf16.mxu0 0
    %5169 = vmatpush2.bf16.msra.mxu0 0
    %5170 = vmatprep.subr.bf16.mxu0 0
    %5171 = vmatpush2.bf16.msra.mxu0 0
    %5172 = vmatprep.subr.bf16.mxu0 0
    %5173 = vmatpush2.bf16.msra.mxu0 0
    %5174 = vmatprep.subr.bf16.mxu0 0
    %5175 = vmatpush2.bf16.msra.mxu0 0
    %5176 = vmatprep.subr.bf16.mxu0 0
    %5177 = vmatpush2.bf16.msra.mxu0 0
    %5178 = vmatprep.mubr.bf16.mxu0 0
    %5179 = vmatmul.mubr.bf16.gmra.mxu0 %v5144
    %v5180 = vpop.f32.mrf.mxu0
    %v5181 = vadd.f32 0.0, %v5180
    %v5182 = vpop.f32.mrf.mxu0
    %v5183 = vpop.f32.mrf.mxu0
    %v5184 = vpop.f32.mrf.mxu0
    %5185 = vdwg.mxu0
    %v5186 = vadd.f32 %v5140, %v5181
    %v5187 = vld [vmem:[#allocation3 + $0x9] sm:$0x1]
    %v5188 = vpack.c.bf16 %v5187, %v5187
    %v5190 = vsel %vm4627, %v5188, 0
    %5192 = vmatprep.subr.bf16.mxu0 0
    %5193 = vmatpush1.bf16.msra.mxu0 0
    %5194 = vmatprep.subr.bf16.mxu0 0
    %5195 = vmatpush1.bf16.msra.mxu0 0
    %5196 = vmatprep.subr.bf16.mxu0 0
    %5197 = vmatpush1.bf16.msra.mxu0 0
    %5198 = vmatprep.subr.bf16.mxu0 0
    %5199 = vmatpush1.bf16.msra.mxu0 %v4955
    %5200 = vmatprep.subr.bf16.mxu0 0
    %5201 = vmatpush1.bf16.msra.mxu0 %v4954
    %5202 = vmatprep.subr.bf16.mxu0 0
    %5203 = vmatpush1.bf16.msra.mxu0 %v4953
    %5204 = vmatprep.subr.bf16.mxu0 0
    %5205 = vmatpush1.bf16.msra.mxu0 %v4952
    %5206 = vmatprep.subr.bf16.mxu0 0
    %5207 = vmatpush1.bf16.msra.mxu0 %v4951
    %5208 = vmatprep.subr.bf16.mxu0 0
    %5209 = vmatpush2.bf16.msra.mxu0 0
    %5210 = vmatprep.subr.bf16.mxu0 0
    %5211 = vmatpush2.bf16.msra.mxu0 0
    %5212 = vmatprep.subr.bf16.mxu0 0
    %5213 = vmatpush2.bf16.msra.mxu0 0
    %5214 = vmatprep.subr.bf16.mxu0 0
    %5215 = vmatpush2.bf16.msra.mxu0 0
    %5216 = vmatprep.subr.bf16.mxu0 0
    %5217 = vmatpush2.bf16.msra.mxu0 0
    %5218 = vmatprep.subr.bf16.mxu0 0
    %5219 = vmatpush2.bf16.msra.mxu0 0
    %5220 = vmatprep.subr.bf16.mxu0 0
    %5221 = vmatpush2.bf16.msra.mxu0 0
    %5222 = vmatprep.subr.bf16.mxu0 0
    %5223 = vmatpush2.bf16.msra.mxu0 0
    %5224 = vmatprep.mubr.bf16.mxu0 0
    %5225 = vmatmul.mubr.bf16.gmra.mxu0 %v5190
    %v5226 = vpop.f32.mrf.mxu0
    %v5227 = vadd.f32 0.0, %v5226
    %v5228 = vpop.f32.mrf.mxu0
    %v5229 = vpop.f32.mrf.mxu0
    %v5230 = vpop.f32.mrf.mxu0
    %5231 = vdwg.mxu0
    %v5232 = vadd.f32 %v5186, %v5227
    %v5233 = vld [vmem:[%s20] sm:$0x1]
    %v5234 = vld [vmem:[%s21] sm:$0x1]
    %v5235 = vadd.f32 %v5004, %v5232
    %v5236 = vrcp.pop 2.0
    %v5237 = vmul.f32 %v5235, %v5236
    %v5238 = vsub.f32 %v5004, %v5237
    %v5239 = vmul.f32 %v5238, %v5238
    %v5240 = vsub.f32 %v5232, %v5237
    %v5241 = vmul.f32 %v5240, %v5240
    %v5242 = vadd.f32 %v5239, %v5241
    %v5243 = vmul.f32 %v5242, %v5236
    %v5244 = vadd.f32 %v5243, 1e-05
    %v5245 = vrsqrt.pop %v5244
    %v5246 = vmul.f32 %v5233, %v5245
    %v5247 = vmul.f32 %v5237, %v5246
    %v5248 = vsub.f32 %v5234, %v5247
    %v5249 = vmul.f32 %v5004, %v5246
    %v5250 = vadd.f32 %v5249, %v5248
    %v5251 = vxor.u32 %v5250, 2147483648
    %v5252 = vmul.f32 %v5251, 1.442695
    %v5253 = vpow.pop %v5252
    %v5254 = vadd.f32 %v5253, 1.0
    %v5255 = vrcp.pop %v5254
    %v5256 = vmul.f32 1.0, %v5255
    %v5257 = vmul.f32 %v5232, %v5246
    %v5258 = vadd.f32 %v5257, %v5248
    %v5259 = vxor.u32 %v5258, 2147483648
    %v5260 = vmul.f32 %v5259, 1.442695
    %v5261 = vpow.pop %v5260
    %v5262 = vadd.f32 %v5261, 1.0
    %v5263 = vrcp.pop %v5262
    %v5264 = vmul.f32 1.0, %v5263
    %v5265 = vld [vmem:[%s22] sm:$0xf]
    %v5266 = vld [vmem:[%s22 + $0x4] sm:$0xf]
    %v5267 = vld [vmem:[%s22 + $0x8] sm:$0xf]
    %v5268 = vld [vmem:[%s22 + $0xc] sm:$0xf]
    %v5269 = vld [vmem:[%s22 + $0x10] sm:$0xf]
    %v5270 = vld [vmem:[%s22 + $0x14] sm:$0xf]
    %v5271 = vld [vmem:[%s22 + $0x18] sm:$0xf]
    %v5272 = vld [vmem:[%s22 + $0x1c] sm:$0xf]
    %v5273 = vld [vmem:[%s22 + $0x20] sm:$0xf]
    %v5274 = vld [vmem:[%s22 + $0x24] sm:$0xf]
    %v5275 = vld [vmem:[%s22 + $0x28] sm:$0xf]
    %v5276 = vld [vmem:[%s22 + $0x2c] sm:$0xf]
    %v5277 = vld [vmem:[%s22 + $0x30] sm:$0xf]
    %v5278 = vld [vmem:[%s22 + $0x34] sm:$0xf]
    %v5279 = vld [vmem:[%s22 + $0x38] sm:$0xf]
    %v5280 = vpack.c.bf16 %v5256, %v5256
    %v5296 = vunpack.c.l.b16 %v5265
    %v5297 = vunpack.c.l.b16 %v5266
    %v5298 = vunpack.c.l.b16 %v5267
    %v5299 = vunpack.c.l.b16 %v5268
    %v5300 = vunpack.c.l.b16 %v5269
    %v5301 = vunpack.c.l.b16 %v5270
    %v5302 = vunpack.c.l.b16 %v5271
    %v5303 = vunpack.c.l.b16 %v5272
    %v5304 = vunpack.c.l.b16 %v5273
    %v5305 = vunpack.c.l.b16 %v5274
    %v5306 = vunpack.c.l.b16 %v5275
    %v5307 = vunpack.c.l.b16 %v5276
    %v5308 = vunpack.c.l.b16 %v5277
    %v5309 = vunpack.c.l.b16 %v5278
    %v5310 = vunpack.c.l.b16 %v5279
    %v5311 = vpack.c.b16 %v5297, %v5296
    %v5312 = vpack.c.b16 %v5299, %v5298
    %v5313 = vpack.c.b16 %v5301, %v5300
    %v5314 = vpack.c.b16 %v5303, %v5302
    %v5315 = vpack.c.b16 %v5305, %v5304
    %v5316 = vpack.c.b16 %v5307, %v5306
    %v5317 = vpack.c.b16 %v5309, %v5308
    %v5318 = vpack.c.b16 %v5310, %v5310
    %vm5326 = vcmask 982016
    %v5328 = vsel %vm5326, %v5280, 0
    %v5331 = vsel %vm939, %v5318, 0
    %5333 = vmatprep.subr.bf16.mxu0 0
    %5334 = vmatpush1.bf16.msra.mxu0 %v5331
    %5335 = vmatprep.subr.bf16.mxu0 0
    %5336 = vmatpush1.bf16.msra.mxu0 %v5317
    %5337 = vmatprep.subr.bf16.mxu0 0
    %5338 = vmatpush1.bf16.msra.mxu0 %v5316
    %5339 = vmatprep.subr.bf16.mxu0 0
    %5340 = vmatpush1.bf16.msra.mxu0 %v5315
    %5341 = vmatprep.subr.bf16.mxu0 0
    %5342 = vmatpush1.bf16.msra.mxu0 %v5314
    %5343 = vmatprep.subr.bf16.mxu0 0
    %5344 = vmatpush1.bf16.msra.mxu0 %v5313
    %5345 = vmatprep.subr.bf16.mxu0 0
    %5346 = vmatpush1.bf16.msra.mxu0 %v5312
    %5347 = vmatprep.subr.bf16.mxu0 0
    %5348 = vmatpush1.bf16.msra.mxu0 %v5311
    %5349 = vmatprep.subr.bf16.mxu0 0
    %5350 = vmatpush2.bf16.msra.mxu0 0
    %5351 = vmatprep.subr.bf16.mxu0 0
    %5352 = vmatpush2.bf16.msra.mxu0 0
    %5353 = vmatprep.subr.bf16.mxu0 0
    %5354 = vmatpush2.bf16.msra.mxu0 0
    %5355 = vmatprep.subr.bf16.mxu0 0
    %5356 = vmatpush2.bf16.msra.mxu0 0
    %5357 = vmatprep.subr.bf16.mxu0 0
    %5358 = vmatpush2.bf16.msra.mxu0 0
    %5359 = vmatprep.subr.bf16.mxu0 0
    %5360 = vmatpush2.bf16.msra.mxu0 0
    %5361 = vmatprep.subr.bf16.mxu0 0
    %5362 = vmatpush2.bf16.msra.mxu0 0
    %5363 = vmatprep.subr.bf16.mxu0 0
    %5364 = vmatpush2.bf16.msra.mxu0 0
    %5365 = vmatprep.mubr.bf16.mxu0 0
    %5366 = vmatmul.mubr.bf16.gmra.mxu0 %v5328
    %v5367 = vpop.f32.mrf.mxu0
    %v5368 = vadd.f32 0.0, %v5367
    %v5369 = vpop.f32.mrf.mxu0
    %v5370 = vpop.f32.mrf.mxu0
    %v5371 = vpop.f32.mrf.mxu0
    %5372 = vdwg.mxu0
    %v5373 = vpack.c.bf16 %v5264, %v5264
    %v5375 = vsel %vm5326, %v5373, 0
    %5377 = vmatprep.subr.bf16.mxu0 0
    %5378 = vmatpush1.bf16.msra.mxu0 %v5331
    %5379 = vmatprep.subr.bf16.mxu0 0
    %5380 = vmatpush1.bf16.msra.mxu0 %v5317
    %5381 = vmatprep.subr.bf16.mxu0 0
    %5382 = vmatpush1.bf16.msra.mxu0 %v5316
    %5383 = vmatprep.subr.bf16.mxu0 0
    %5384 = vmatpush1.bf16.msra.mxu0 %v5315
    %5385 = vmatprep.subr.bf16.mxu0 0
    %5386 = vmatpush1.bf16.msra.mxu0 %v5314
    %5387 = vmatprep.subr.bf16.mxu0 0
    %5388 = vmatpush1.bf16.msra.mxu0 %v5313
    %5389 = vmatprep.subr.bf16.mxu0 0
    %5390 = vmatpush1.bf16.msra.mxu0 %v5312
    %5391 = vmatprep.subr.bf16.mxu0 0
    %5392 = vmatpush1.bf16.msra.mxu0 %v5311
    %5393 = vmatprep.subr.bf16.mxu0 0
    %5394 = vmatpush2.bf16.msra.mxu0 0
    %5395 = vmatprep.subr.bf16.mxu0 0
    %5396 = vmatpush2.bf16.msra.mxu0 0
    %5397 = vmatprep.subr.bf16.mxu0 0
    %5398 = vmatpush2.bf16.msra.mxu0 0
    %5399 = vmatprep.subr.bf16.mxu0 0
    %5400 = vmatpush2.bf16.msra.mxu0 0
    %5401 = vmatprep.subr.bf16.mxu0 0
    %5402 = vmatpush2.bf16.msra.mxu0 0
    %5403 = vmatprep.subr.bf16.mxu0 0
    %5404 = vmatpush2.bf16.msra.mxu0 0
    %5405 = vmatprep.subr.bf16.mxu0 0
    %5406 = vmatpush2.bf16.msra.mxu0 0
    %5407 = vmatprep.subr.bf16.mxu0 0
    %5408 = vmatpush2.bf16.msra.mxu0 0
    %5409 = vmatprep.mubr.bf16.mxu0 0
    %5410 = vmatmul.mubr.bf16.gmra.mxu0 %v5375
    %v5411 = vpop.f32.mrf.mxu0
    %v5412 = vadd.f32 0.0, %v5411
    %v5413 = vpop.f32.mrf.mxu0
    %v5414 = vpop.f32.mrf.mxu0
    %v5415 = vpop.f32.mrf.mxu0
    %5416 = vdwg.mxu0
    %v5417 = vld [vmem:[%s23] sm:$0x1]
    %v5418 = vld [vmem:[%s24] sm:$0x1]
    %v5419 = vadd.f32 %v5368, %v5412
    %v5420 = vmul.f32 %v5419, %v5236
    %v5421 = vsub.f32 %v5368, %v5420
    %v5422 = vmul.f32 %v5421, %v5421
    %v5423 = vsub.f32 %v5412, %v5420
    %v5424 = vmul.f32 %v5423, %v5423
    %v5425 = vadd.f32 %v5422, %v5424
    %v5426 = vmul.f32 %v5425, %v5236
    %v5427 = vadd.f32 %v5426, 1e-05
    %v5428 = vrsqrt.pop %v5427
    %v5429 = vmul.f32 %v5417, %v5428
    %v5430 = vmul.f32 %v5420, %v5429
    %v5431 = vsub.f32 %v5418, %v5430
    %v5432 = vmul.f32 %v5368, %v5429
    %v5433 = vadd.f32 %v5432, %v5431
    %v5434 = vxor.u32 %v5433, 2147483648
    %v5435 = vmul.f32 %v5434, 1.442695
    %v5436 = vpow.pop %v5435
    %v5437 = vadd.f32 %v5436, 1.0
    %v5438 = vrcp.pop %v5437
    %v5439 = vmul.f32 1.0, %v5438
    %v5440 = vmul.f32 %v5412, %v5429
    %v5441 = vadd.f32 %v5440, %v5431
    %v5442 = vxor.u32 %v5441, 2147483648
    %v5443 = vmul.f32 %v5442, 1.442695
    %v5444 = vpow.pop %v5443
    %v5445 = vadd.f32 %v5444, 1.0
    %v5446 = vrcp.pop %v5445
    %v5447 = vmul.f32 1.0, %v5446
    %v5448 = vld [vmem:[%s25] sm:$0xf]
    %v5449 = vld [vmem:[%s25 + $0x4] sm:$0xf]
    %v5450 = vld [vmem:[%s25 + $0x8] sm:$0xf]
    %v5451 = vld [vmem:[%s25 + $0xc] sm:$0xf]
    %v5452 = vld [vmem:[%s25 + $0x10] sm:$0xf]
    %v5453 = vld [vmem:[%s25 + $0x14] sm:$0xf]
    %v5454 = vld [vmem:[%s25 + $0x18] sm:$0xf]
    %v5455 = vld [vmem:[%s25 + $0x1c] sm:$0xf]
    %v5456 = vld [vmem:[%s25 + $0x20] sm:$0xf]
    %v5457 = vld [vmem:[%s25 + $0x24] sm:$0xf]
    %v5458 = vld [vmem:[%s25 + $0x28] sm:$0x3]
    %v5459 = vpack.c.bf16 %v5439, %v5439
    %v5460 = vld [vmem:[%s26] sm:$0x1]
    %v5472 = vunpack.c.l.b16 %v5448
    %v5473 = vunpack.c.l.b16 %v5449
    %v5474 = vunpack.c.l.b16 %v5450
    %v5475 = vunpack.c.l.b16 %v5451
    %v5476 = vunpack.c.l.b16 %v5452
    %v5477 = vunpack.c.l.b16 %v5453
    %v5478 = vunpack.c.l.b16 %v5454
    %v5479 = vunpack.c.l.b16 %v5455
    %v5480 = vunpack.c.l.b16 %v5456
    %v5481 = vunpack.c.l.b16 %v5457
    %v5482 = vunpack.c.l.b16 %v5458
    %v5483 = vpack.c.b16 %v5473, %v5472
    %v5484 = vpack.c.b16 %v5475, %v5474
    %v5485 = vpack.c.b16 %v5477, %v5476
    %v5486 = vpack.c.b16 %v5479, %v5478
    %v5487 = vpack.c.b16 %v5481, %v5480
    %v5488 = vpack.c.b16 %v5482, %v5482
    %v5495 = vsel %vm1940, %v5459, 0
    %v5498 = vsel %vm2496, %v5488, 0
    %5500 = vmatprep.subr.bf16.mxu0 0
    %5501 = vmatpush1.bf16.msra.mxu0 0
    %5502 = vmatprep.subr.bf16.mxu0 0
    %5503 = vmatpush1.bf16.msra.mxu0 0
    %5504 = vmatprep.subr.bf16.mxu0 0
    %5505 = vmatpush1.bf16.msra.mxu0 %v5498
    %5506 = vmatprep.subr.bf16.mxu0 0
    %5507 = vmatpush1.bf16.msra.mxu0 %v5487
    %5508 = vmatprep.subr.bf16.mxu0 0
    %5509 = vmatpush1.bf16.msra.mxu0 %v5486
    %5510 = vmatprep.subr.bf16.mxu0 0
    %5511 = vmatpush1.bf16.msra.mxu0 %v5485
    %5512 = vmatprep.subr.bf16.mxu0 0
    %5513 = vmatpush1.bf16.msra.mxu0 %v5484
    %5514 = vmatprep.subr.bf16.mxu0 0
    %5515 = vmatpush1.bf16.msra.mxu0 %v5483
    %5516 = vmatprep.subr.bf16.mxu0 0
    %5517 = vmatpush2.bf16.msra.mxu0 0
    %5518 = vmatprep.subr.bf16.mxu0 0
    %5519 = vmatpush2.bf16.msra.mxu0 0
    %5520 = vmatprep.subr.bf16.mxu0 0
    %5521 = vmatpush2.bf16.msra.mxu0 0
    %5522 = vmatprep.subr.bf16.mxu0 0
    %5523 = vmatpush2.bf16.msra.mxu0 0
    %5524 = vmatprep.subr.bf16.mxu0 0
    %5525 = vmatpush2.bf16.msra.mxu0 0
    %5526 = vmatprep.subr.bf16.mxu0 0
    %5527 = vmatpush2.bf16.msra.mxu0 0
    %5528 = vmatprep.subr.bf16.mxu0 0
    %5529 = vmatpush2.bf16.msra.mxu0 0
    %5530 = vmatprep.subr.bf16.mxu0 0
    %5531 = vmatpush2.bf16.msra.mxu0 0
    %5532 = vmatprep.mubr.bf16.mxu0 0
    %5533 = vmatmul.mubr.bf16.gmra.mxu0 %v5495
    %v5534 = vpop.f32.mrf.mxu0
    %v5535 = vadd.f32 %v5460, %v5534
    %v5536 = vpop.f32.mrf.mxu0
    %v5537 = vpop.f32.mrf.mxu0
    %v5538 = vpop.f32.mrf.mxu0
    %5539 = vdwg.mxu0
    %vm5540 = vcmask 73728
    %5541 = vst.msk [vmem:[#allocation4] sm:$0x1] %vm5540, %v5535
    %v5542 = vld [vmem:[%s25] sm:$0xf]
    %v5543 = vld [vmem:[%s25 + $0x4] sm:$0xf]
    %v5544 = vld [vmem:[%s25 + $0x8] sm:$0xf]
    %v5545 = vld [vmem:[%s25 + $0xc] sm:$0xf]
    %v5546 = vld [vmem:[%s25 + $0x10] sm:$0xf]
    %v5547 = vld [vmem:[%s25 + $0x14] sm:$0xf]
    %v5548 = vld [vmem:[%s25 + $0x18] sm:$0xf]
    %v5549 = vld [vmem:[%s25 + $0x1c] sm:$0xf]
    %v5550 = vld [vmem:[%s25 + $0x20] sm:$0xf]
    %v5551 = vld [vmem:[%s25 + $0x24] sm:$0xf]
    %v5552 = vld [vmem:[%s25 + $0x28] sm:$0x3]
    %v5553 = vpack.c.bf16 %v5447, %v5447
    %v5554 = vld [vmem:[%s26] sm:$0x1]
    %v5566 = vunpack.c.l.b16 %v5542
    %v5567 = vunpack.c.l.b16 %v5543
    %v5568 = vunpack.c.l.b16 %v5544
    %v5569 = vunpack.c.l.b16 %v5545
    %v5570 = vunpack.c.l.b16 %v5546
    %v5571 = vunpack.c.l.b16 %v5547
    %v5572 = vunpack.c.l.b16 %v5548
    %v5573 = vunpack.c.l.b16 %v5549
    %v5574 = vunpack.c.l.b16 %v5550
    %v5575 = vunpack.c.l.b16 %v5551
    %v5576 = vunpack.c.l.b16 %v5552
    %v5577 = vpack.c.b16 %v5567, %v5566
    %v5578 = vpack.c.b16 %v5569, %v5568
    %v5579 = vpack.c.b16 %v5571, %v5570
    %v5580 = vpack.c.b16 %v5573, %v5572
    %v5581 = vpack.c.b16 %v5575, %v5574
    %v5582 = vpack.c.b16 %v5576, %v5576
    %v5589 = vsel %vm1940, %v5553, 0
    %v5592 = vsel %vm2496, %v5582, 0
    %5594 = vmatprep.subr.bf16.mxu0 0
    %5595 = vmatpush1.bf16.msra.mxu0 0
    %5596 = vmatprep.subr.bf16.mxu0 0
    %5597 = vmatpush1.bf16.msra.mxu0 0
    %5598 = vmatprep.subr.bf16.mxu0 0
    %5599 = vmatpush1.bf16.msra.mxu0 %v5592
    %5600 = vmatprep.subr.bf16.mxu0 0
    %5601 = vmatpush1.bf16.msra.mxu0 %v5581
    %5602 = vmatprep.subr.bf16.mxu0 0
    %5603 = vmatpush1.bf16.msra.mxu0 %v5580
    %5604 = vmatprep.subr.bf16.mxu0 0
    %5605 = vmatpush1.bf16.msra.mxu0 %v5579
    %5606 = vmatprep.subr.bf16.mxu0 0
    %5607 = vmatpush1.bf16.msra.mxu0 %v5578
    %5608 = vmatprep.subr.bf16.mxu0 0
    %5609 = vmatpush1.bf16.msra.mxu0 %v5577
    %5610 = vmatprep.subr.bf16.mxu0 0
    %5611 = vmatpush2.bf16.msra.mxu0 0
    %5612 = vmatprep.subr.bf16.mxu0 0
    %5613 = vmatpush2.bf16.msra.mxu0 0
    %5614 = vmatprep.subr.bf16.mxu0 0
    %5615 = vmatpush2.bf16.msra.mxu0 0
    %5616 = vmatprep.subr.bf16.mxu0 0
    %5617 = vmatpush2.bf16.msra.mxu0 0
    %5618 = vmatprep.subr.bf16.mxu0 0
    %5619 = vmatpush2.bf16.msra.mxu0 0
    %5620 = vmatprep.subr.bf16.mxu0 0
    %5621 = vmatpush2.bf16.msra.mxu0 0
    %5622 = vmatprep.subr.bf16.mxu0 0
    %5623 = vmatpush2.bf16.msra.mxu0 0
    %5624 = vmatprep.subr.bf16.mxu0 0
    %5625 = vmatpush2.bf16.msra.mxu0 0
    %5626 = vmatprep.mubr.bf16.mxu0 0
    %5627 = vmatmul.mubr.bf16.gmra.mxu0 %v5589
    %v5628 = vpop.f32.mrf.mxu0
    %v5629 = vadd.f32 %v5554, %v5628
    %v5630 = vpop.f32.mrf.mxu0
    %v5631 = vpop.f32.mrf.mxu0
    %v5632 = vpop.f32.mrf.mxu0
    %5633 = vdwg.mxu0
    %5634 = vst.msk [vmem:[#allocation4 + $0x1] sm:$0x1] %vm5540, %v5629
    // Predicated region
    $region110: #{lenet_forward.1} parent=1 // pred_check
      _
    $region111: #{lenet_forward.1} parent=1 // pred_check_branch
      %5636 = sbr.rel (0) target = $region113
    $region112: #{lenet_forward.1} parent=1 // pred_region
      %s5638 = ssub.s32 32, 32
      %5639 = vsyncadd [#allocation5], %s5638
      %s5641 = sshll.u32 [#allocation4], 4
      %s5642 = int_to_ptr.vmem [resolvable:$true] %s5641
      %5644 = dma.vmem_to_hbm [thread:$0]  %s5642, 32, %s27, [#allocation5]
    $region113: #{lenet_forward.1} parent=1 // pred_fallthru
      _
    // Predicated region
    $region114: #{lenet_forward.1} parent=1 // pred_check
      _
    $region115: #{lenet_forward.1} parent=1 // pred_check_branch
      %5646 = sbr.rel (0) target = $region117
    $region116: #{lenet_forward.1} parent=1 // pred_region
      %5647 = dma.done [#allocation5], 32
    $region117: #{lenet_forward.1} parent=1 // pred_fallthru
      _
    %5648 = vsyncpa [#allocation5], 1

</llo_original>
